<compile_context>
chip_gen: v5e
topology: v5e:2x2
jax: 0.10.0
libtpu: 0.0.40
codegen_flags: <defaults>
</compile_context>

<pallas_src>
import functools

import jax
import jax.numpy as jnp
from jax.experimental import pallas as pl
from jax.experimental.pallas import tpu as pltpu


def _round_up(x, m):
    return -(-x // m) * m


# --------------------------------------------------------------------------
# Kernel 3: parallel matmul + bias  (out = x @ w + b), grid over (M, N) tiles
# --------------------------------------------------------------------------
def _matmul_bias_kernel(x_ref, w_ref, b_ref, o_ref):
    acc = jnp.dot(x_ref[...], w_ref[...], preferred_element_type=jnp.float32)
    o_ref[...] = (acc + b_ref[...]).astype(o_ref.dtype)


def _pick_tile(dim, pref, align):
    """Largest tile <= pref that is a multiple of `align` and divides `dim`;
    falls back to the full dimension (always a legal block shape)."""
    if dim <= pref or dim % align != 0:
        return dim
    t = (pref // align) * align
    while t >= align:
        if dim % t == 0:
            return t
        t -= align
    return dim


def matmul_bias(x, w, b, *, out_dtype=jnp.float32, tm_pref=1024, tn_pref=512):
    """x: (M, K), w: (K, N), b: (1, N) -> (M, N). Fully parallel over M/N tiles.

    N is padded internally to a fixed lane-aligned tile so a vocab-sized head
    never falls back to a full-width (VMEM-busting, masked-store) block."""
    M, K = x.shape
    _, N = w.shape

    tn = min(tn_pref, _round_up(N, 128))
    Np = _round_up(N, tn)
    if Np != N:
        w = jnp.pad(w, ((0, 0), (0, Np - N)))
        b = jnp.pad(b, ((0, 0), (0, Np - N)))

    # Cover the full M in one tile when it fits so W streams from HBM exactly once.
    tm = M if M <= tm_pref else _pick_tile(M, tm_pref, 8)

    out = pl.pallas_call(
        _matmul_bias_kernel,
        out_shape=jax.ShapeDtypeStruct((M, Np), out_dtype),
        grid_spec=pltpu.PrefetchScalarGridSpec(
            num_scalar_prefetch=0,
            grid=(M // tm, Np // tn),
            in_specs=[
                pl.BlockSpec((tm, K), lambda i, j: (i, 0)),
                pl.BlockSpec((K, tn), lambda i, j: (0, j)),
                pl.BlockSpec((1, tn), lambda i, j: (0, j)),
            ],
            out_specs=pl.BlockSpec((tm, tn), lambda i, j: (i, j)),
        ),
        compiler_params=pltpu.CompilerParams(
            dimension_semantics=("parallel", "parallel"),
            vmem_limit_bytes=32 * 1024 * 1024),
    )(x, w, b)
    return out if Np == N else out[:, :N]


# --------------------------------------------------------------------------
# Kernels 1+2 fused: block input projection + sequential LSTM recurrence
# --------------------------------------------------------------------------
def _lstm_kernel(x_ref, wih_ref, whh_ref, b_ref, hseq_ref, gx_sc, h_sc, c_sc,
                 *, hidden_size, time_block, batch):
    """x_ref    : (Tb*B, E) bf16  inputs for this block of timesteps (time-major rows)
       wih_ref  : (E, 4H)   bf16  input->gates weights (resident across grid)
       whh_ref  : (H, 4H)   bf16  hidden->gates weights (resident across grid)
       b_ref    : (1, 4H)   f32   b_ih + b_hh
       hseq_ref : (Tb*B, H) bf16  hidden states for this block of timesteps
       gx_sc    : (Tb*B,4H) f32   per-block input-projection scratch (never hits HBM)
       h_sc/c_sc: (B, H)    f32   recurrent state, persists across grid steps."""
    @pl.when(pl.program_id(0) == 0)
    def _():
        h_sc[...] = jnp.zeros_like(h_sc)
        c_sc[...] = jnp.zeros_like(c_sc)

    H = hidden_size

    # Fused input projection for the whole time block: one (Tb*B, E)x(E, 4H) MXU
    # matmul, off the per-timestep serial path (replaces the old gates_x HBM pass).
    gx_sc[...] = jnp.dot(x_ref[...], wih_ref[...],
                         preferred_element_type=jnp.float32) + b_ref[...]

    def step(i, carry):
        rows = pl.ds(pl.multiple_of(i * batch, batch), batch)
        # Only this (B,H)x(H,4H) matmul sits on the serial critical path.
        gates = gx_sc[rows, :] + jnp.dot(
            h_sc[...].astype(jnp.bfloat16), whh_ref[...],
            preferred_element_type=jnp.float32)                     # (B, 4H) f32
        i_g = jax.nn.sigmoid(gates[:, 0 * H:1 * H])                 # PyTorch gate order: i,f,g,o
        f_g = jax.nn.sigmoid(gates[:, 1 * H:2 * H])
        g_g = jnp.tanh(gates[:, 2 * H:3 * H])
        o_g = jax.nn.sigmoid(gates[:, 3 * H:4 * H])
        c_new = f_g * c_sc[...] + i_g * g_g
        h_new = o_g * jnp.tanh(c_new)
        c_sc[...] = c_new
        h_sc[...] = h_new
        hseq_ref[rows, :] = h_new.astype(hseq_ref.dtype)
        return carry

    jax.lax.fori_loop(0, time_block, step, 0, unroll=True)


def lstm_recurrence(x_2d, w_ih_bf16, w_hh_bf16, b_all, *, time_block, batch):
    """x_2d: (Tp*B, E) bf16, time-major rows. Returns h_seq (Tp*B, H) bf16."""
    M, E = x_2d.shape
    H = w_hh_bf16.shape[0]
    G = 4 * H
    rows = time_block * batch
    kernel = functools.partial(_lstm_kernel, hidden_size=H,
                               time_block=time_block, batch=batch)
    return pl.pallas_call(
        kernel,
        out_shape=jax.ShapeDtypeStruct((M, H), jnp.bfloat16),
        grid_spec=pltpu.PrefetchScalarGridSpec(
            num_scalar_prefetch=0,
            grid=(M // rows,),
            in_specs=[
                pl.BlockSpec((rows, E), lambda t: (t, 0)),   # x block
                pl.BlockSpec((E, G), lambda t: (0, 0)),      # W_ih^T (resident)
                pl.BlockSpec((H, G), lambda t: (0, 0)),      # W_hh^T (resident)
                pl.BlockSpec((1, G), lambda t: (0, 0)),      # b_ih + b_hh
            ],
            out_specs=pl.BlockSpec((rows, H), lambda t: (t, 0)),
            scratch_shapes=[
                pltpu.VMEM((rows, G), jnp.float32),   # per-block gates_x scratch
                pltpu.VMEM((batch, H), jnp.float32),  # h state (f32, carried across grid)
                pltpu.VMEM((batch, H), jnp.float32),  # c state
            ],
        ),
        compiler_params=pltpu.CompilerParams(
            dimension_semantics=("arbitrary",),       # recurrence: must never be "parallel"
            vmem_limit_bytes=32 * 1024 * 1024),
    )(x_2d, w_ih_bf16, w_hh_bf16, b_all)


def _pick_time_block(T, Bp, E, H, *, max_tb=32, budget_bytes=24 << 20):
    """Largest time block <= max_tb whose per-block VMEM footprint fits the budget
    (valid on all generations with vmem_limit_bytes=32 MiB), capped so a single
    block covers the whole padded sequence when possible."""
    full = _round_up(T, 8)
    tb = max_tb
    while tb > 8:
        need = (2 * tb * Bp * E * 2          # x block, double-buffered, bf16
                + tb * Bp * 4 * H * 4        # gates scratch, f32
                + 2 * tb * Bp * H * 2        # hseq out block, double-buffered, bf16
                + 2 * E * 4 * H * 2          # W_ih bf16 (x2 buffers)
                + 2 * H * 4 * H * 2          # W_hh bf16 (x2 buffers)
                + 2 * Bp * H * 4             # h, c f32
                + 2 * 4 * H * 4)             # bias
        if need <= budget_bytes:
            break
        tb //= 2
    return min(tb, full)


# --------------------------------------------------------------------------
# Full forward
# --------------------------------------------------------------------------
def decoder_rnn_forward(params, features, captions):
    """features: (B, E) f32, captions: (B, T) int32 -> logits (B, T, V) f32."""
    B, E = features.shape
    T = captions.shape[1]
    H = params["w_hh_t"].shape[0]
    V = params["w_fc_t"].shape[1]

    # ---- glue (plain JAX): embedding gather + concat, moved to bf16 up front ----
    emb = params["embedding"][captions[:, :-1]].astype(jnp.bfloat16)   # (B, T-1, E)
    feat = features[:, None, :].astype(jnp.bfloat16)                   # (B, 1, E)
    x = jnp.concatenate([feat, emb], axis=1)                           # (B, T, E) bf16
    x_tbe = jnp.transpose(x, (1, 0, 2))                                # (T, B, E) bf16

    # Pad batch to 16 (bf16 sublane packing) and time to a multiple of time_block.
    Bp = _round_up(B, 16)
    time_block = _pick_time_block(T, Bp, E, H)
    Tp = _round_up(T, time_block)
    x_p = jnp.pad(x_tbe, ((0, Tp - T), (0, Bp - B), (0, 0)))           # (Tp, Bp, E) bf16

    # bf16 matmul operands, f32 accumulation everywhere.
    w_ih_b = params["w_ih_t"].astype(jnp.bfloat16)
    w_hh_b = params["w_hh_t"].astype(jnp.bfloat16)
    w_fc_b = params["w_fc_t"].astype(jnp.bfloat16)

    # (1)+(2) Fused input projection + sequential recurrence (blocked over time).
    h_seq = lstm_recurrence(
        x_p.reshape(Tp * Bp, E), w_ih_b, w_hh_b, params["b_all"],
        time_block=time_block, batch=Bp)                               # (Tp*Bp, H) bf16

    # (3) Shuffle the narrow bf16 h_seq to batch-major, then one parallel FC matmul;
    #     the wide f32 logits come out already batch-major (no f32 transpose).
    h_bth = jnp.transpose(h_seq.reshape(Tp, Bp, H), (1, 0, 2)).reshape(Bp * Tp, H)
    logits = matmul_bias(h_bth, w_fc_b, params["b_fc"], out_dtype=jnp.float32)
    return logits.reshape(Bp, Tp, V)[:B, :T]                           # (B, T, V)


# --------------------------------------------------------------------------
# Pure-JAX reference mirroring the same precision plan (bf16 matmuls, f32 accum)
# --------------------------------------------------------------------------
def _reference_forward(params, features, captions):
    emb = params["embedding"][captions[:, :-1]]
    x = jnp.concatenate([features[:, None, :], emb], axis=1)
    x_tbe = jnp.transpose(x, (1, 0, 2)).astype(jnp.bfloat16)
    B = x.shape[0]
    H = params["w_hh_t"].shape[0]
    w_ih_b = params["w_ih_t"].astype(jnp.bfloat16)
    w_hh_b = params["w_hh_t"].astype(jnp.bfloat16)
    w_fc_b = params["w_fc_t"].astype(jnp.bfloat16)

    gx = jnp.einsum("tbe,eg->tbg", x_tbe, w_ih_b,
                    preferred_element_type=jnp.float32) + params["b_all"]

    def step(carry, gx_t):
        h, c = carry
        gates = gx_t + jnp.dot(h.astype(jnp.bfloat16), w_hh_b,
                               preferred_element_type=jnp.float32)
        i_g = jax.nn.sigmoid(gates[:, 0 * H:1 * H])
        f_g = jax.nn.sigmoid(gates[:, 1 * H:2 * H])
        g_g = jnp.tanh(gates[:, 2 * H:3 * H])
        o_g = jax.nn.sigmoid(gates[:, 3 * H:4 * H])
        c = f_g * c + i_g * g_g
        h = o_g * jnp.tanh(c)
        return (h, c), h.astype(jnp.bfloat16)

    init = (jnp.zeros((B, H), jnp.float32), jnp.zeros((B, H), jnp.float32))
    _, hseq = jax.lax.scan(step, init, gx)                       # (T, B, H) bf16
    logits = jnp.einsum("tbh,hv->tbv", hseq, w_fc_b,
                        preferred_element_type=jnp.float32) + params["b_fc"]
    return jnp.transpose(logits, (1, 0, 2))


def init_params(key, embed_size, hidden_size, vocab_size):
    ks = jax.random.split(key, 7)
    scale = 0.1
    return {
        "embedding": scale * jax.random.normal(ks[0], (vocab_size, embed_size), jnp.float32),
        # Stored pre-transposed for the kernels: (E, 4H), (H, 4H), (H, V).
        "w_ih_t": scale * jax.random.normal(ks[1], (embed_size, 4 * hidden_size), jnp.float32),
        "w_hh_t": scale * jax.random.normal(ks[2], (hidden_size, 4 * hidden_size), jnp.float32),
        "b_all": (scale * jax.random.normal(ks[3], (1, 4 * hidden_size), jnp.float32)
                  + scale * jax.random.normal(ks[4], (1, 4 * hidden_size), jnp.float32)),
        "w_fc_t": scale * jax.random.normal(ks[5], (hidden_size, vocab_size), jnp.float32),
        "b_fc": scale * jax.random.normal(ks[6], (1, vocab_size), jnp.float32),
    }


if __name__ == "__main__":
    # Small, lane/sublane-aligned shapes (H/V multiples of 128; batch gets padded to 16).
    batch = 8
    embed_size = 128
    hidden_size = 128
    vocab_size = 256
    seq_len = 12          # caption length; LSTM sees 1 image step + (seq_len-1) tokens = seq_len

    key = jax.random.PRNGKey(0)
    k_param, k_feat, k_cap = jax.random.split(key, 3)
    params = init_params(k_param, embed_size, hidden_size, vocab_size)

    features = jax.random.normal(k_feat, (batch, embed_size), jnp.float32)
    captions = jax.random.randint(k_cap, (batch, seq_len), 0, vocab_size, jnp.int32)

    logits = decoder_rnn_forward(params, features, captions)
    logits = jax.block_until_ready(logits)

    ref = _reference_forward(params, features, captions)
    assert logits.shape == (batch, seq_len, vocab_size), logits.shape
    max_err = float(jnp.max(jnp.abs(logits - ref)))
    assert jnp.allclose(logits, ref, atol=2e-3, rtol=2e-3), f"mismatch vs reference (max abs err {max_err})"

    # TODO(synk): DecoderRNN.sample() (greedy autoregressive decode driven by host .item()
    # control flow) is not implemented as a kernel; nn.LSTM dropout is a no-op for num_layers=1.
    print("KERNEL_OK")
</pallas_src>

<mosaic_0001>
module attributes {stable_mosaic.version = 11 : i64} {
  func.func @_lstm_kernel(%arg0: i32, %arg1: memref<256x128xbf16, #tpu.memory_space<vmem>>, %arg2: memref<128x512xbf16, #tpu.memory_space<vmem>>, %arg3: memref<128x512xbf16, #tpu.memory_space<vmem>>, %arg4: memref<1x512xf32, #tpu.memory_space<vmem>>, %arg5: memref<256x128xbf16, #tpu.memory_space<vmem>>, %arg6: memref<256x512xf32, #tpu.memory_space<vmem>>, %arg7: memref<16x128xf32, #tpu.memory_space<vmem>>, %arg8: memref<16x128xf32, #tpu.memory_space<vmem>>) attributes {dimension_semantics = [#tpu.dimension_semantics<arbitrary>], iteration_bounds = array<i64: 1>, scalar_prefetch = 0 : i64, scratch_operands = 3 : i64, tpu.core_type = #tpu.core_type<tc>, window_params = [{transform_indices = @transform_0, window_bounds = array<i64: 256, 128>}, {pipeline_mode = #tpu.pipeline_mode<synchronous>, transform_indices = @transform_1, window_bounds = array<i64: 128, 512>}, {pipeline_mode = #tpu.pipeline_mode<synchronous>, transform_indices = @transform_2, window_bounds = array<i64: 128, 512>}, {pipeline_mode = #tpu.pipeline_mode<synchronous>, transform_indices = @transform_3, window_bounds = array<i64: 1, 512>}, {transform_indices = @transform_4, window_bounds = array<i64: 256, 128>}]} {
    %c0_i32 = arith.constant 0 : i32
    %0 = arith.cmpi eq, %arg0, %c0_i32 : i32
    %1 = arith.extui %0 : i1 to i32
    %c0_i32_0 = arith.constant 0 : i32
    %2 = arith.cmpi ne, %1, %c0_i32_0 : i32
    scf.if %2 {
      %cst_281 = arith.constant 0.000000e+00 : f32
      %650 = vector.broadcast %cst_281 : f32 to vector<16x128xf32>
      %c0_282 = arith.constant 0 : index
      %c0_283 = arith.constant 0 : index
      %651 = vector.load %arg7[%c0_282, %c0_283] : memref<16x128xf32, #tpu.memory_space<vmem>>, vector<16x128xf32>
      tpu.vector_store %arg7[%c0_282, %c0_283], %650 {strides = array<i32>} : memref<16x128xf32, #tpu.memory_space<vmem>>, vector<16x128xf32>,
      %cst_284 = arith.constant 0.000000e+00 : f32
      %652 = vector.broadcast %cst_284 : f32 to vector<16x128xf32>
      %c0_285 = arith.constant 0 : index
      %c0_286 = arith.constant 0 : index
      %653 = vector.load %arg8[%c0_285, %c0_286] : memref<16x128xf32, #tpu.memory_space<vmem>>, vector<16x128xf32>
      tpu.vector_store %arg8[%c0_285, %c0_286], %652 {strides = array<i32>} : memref<16x128xf32, #tpu.memory_space<vmem>>, vector<16x128xf32>,
    } else {
    }
    %c0 = arith.constant 0 : index
    %c0_1 = arith.constant 0 : index
    %3 = vector.load %arg1[%c0, %c0_1] : memref<256x128xbf16, #tpu.memory_space<vmem>>, vector<256x128xbf16>
    %c0_2 = arith.constant 0 : index
    %c0_3 = arith.constant 0 : index
    %4 = vector.load %arg2[%c0_2, %c0_3] : memref<128x512xbf16, #tpu.memory_space<vmem>>, vector<128x512xbf16>
    %cst = arith.constant dense<0.000000e+00> : vector<256x512xf32>
    %5 = tpu.matmul %3, %4, %cst {dimension_numbers = #tpu.dot_dimension_numbers<[1], [0], [0], [1], [0, 0, 1, 1], [], []>} : vector<256x128xbf16>, vector<128x512xbf16>, vector<256x512xf32> -> vector<256x512xf32>
    %c0_4 = arith.constant 0 : index
    %c0_5 = arith.constant 0 : index
    %6 = vector.load %arg4[%c0_4, %c0_5] : memref<1x512xf32, #tpu.memory_space<vmem>>, vector<1x512xf32>
    %7 = vector.broadcast %6 : vector<1x512xf32> to vector<256x512xf32>
    %8 = arith.addf %5, %7 : vector<256x512xf32>
    %c0_6 = arith.constant 0 : index
    %c0_7 = arith.constant 0 : index
    %9 = vector.load %arg6[%c0_6, %c0_7] : memref<256x512xf32, #tpu.memory_space<vmem>>, vector<256x512xf32>
    tpu.vector_store %arg6[%c0_6, %c0_7], %8 {strides = array<i32>} : memref<256x512xf32, #tpu.memory_space<vmem>>, vector<256x512xf32>,
    %c0_i32_8 = arith.constant 0 : i32
    %c16_i32 = arith.constant 16 : i32
    %10 = arith.muli %c0_i32_8, %c16_i32 : i32
    %11 = tpu.assume_multiple %10, 16 : i32
    %12 = arith.index_cast %11 : i32 to index
    %c0_9 = arith.constant 0 : index
    %13 = vector.load %arg6[%12, %c0_9] : memref<256x512xf32, #tpu.memory_space<vmem>>, vector<16x512xf32>
    %c0_10 = arith.constant 0 : index
    %c0_11 = arith.constant 0 : index
    %14 = vector.load %arg7[%c0_10, %c0_11] : memref<16x128xf32, #tpu.memory_space<vmem>>, vector<16x128xf32>
    %15 = arith.truncf %14 : vector<16x128xf32> to vector<16x128xbf16>
    %c0_12 = arith.constant 0 : index
    %c0_13 = arith.constant 0 : index
    %16 = vector.load %arg3[%c0_12, %c0_13] : memref<128x512xbf16, #tpu.memory_space<vmem>>, vector<128x512xbf16>
    %cst_14 = arith.constant dense<0.000000e+00> : vector<16x512xf32>
    %17 = tpu.matmul %15, %16, %cst_14 {dimension_numbers = #tpu.dot_dimension_numbers<[1], [0], [0], [1], [0, 0, 1, 1], [], []>} : vector<16x128xbf16>, vector<128x512xbf16>, vector<16x512xf32> -> vector<16x512xf32>
    %18 = arith.addf %13, %17 : vector<16x512xf32>
    %19 = vector.extract_strided_slice %18 {offsets = [0, 0], sizes = [16, 128], strides = [1, 1]} : vector<16x512xf32> to vector<16x128xf32>
    %20 = arith.negf %19 : vector<16x128xf32>
    %21 = math.exp %20 : vector<16x128xf32>
    %cst_15 = arith.constant 1.000000e+00 : f32
    %22 = vector.broadcast %cst_15 : f32 to vector<16x128xf32>
    %23 = arith.addf %22, %21 : vector<16x128xf32>
    %24 = arith.divf %22, %23 : vector<16x128xf32>
    %25 = vector.extract_strided_slice %18 {offsets = [0, 128], sizes = [16, 128], strides = [1, 1]} : vector<16x512xf32> to vector<16x128xf32>
    %26 = arith.negf %25 : vector<16x128xf32>
    %27 = math.exp %26 : vector<16x128xf32>
    %cst_16 = arith.constant 1.000000e+00 : f32
    %28 = vector.broadcast %cst_16 : f32 to vector<16x128xf32>
    %29 = arith.addf %28, %27 : vector<16x128xf32>
    %30 = arith.divf %28, %29 : vector<16x128xf32>
    %31 = vector.extract_strided_slice %18 {offsets = [0, 256], sizes = [16, 128], strides = [1, 1]} : vector<16x512xf32> to vector<16x128xf32>
    %32 = math.tanh %31 : vector<16x128xf32>
    %33 = vector.extract_strided_slice %18 {offsets = [0, 384], sizes = [16, 128], strides = [1, 1]} : vector<16x512xf32> to vector<16x128xf32>
    %34 = arith.negf %33 : vector<16x128xf32>
    %35 = math.exp %34 : vector<16x128xf32>
    %cst_17 = arith.constant 1.000000e+00 : f32
    %36 = vector.broadcast %cst_17 : f32 to vector<16x128xf32>
    %37 = arith.addf %36, %35 : vector<16x128xf32>
    %38 = arith.divf %36, %37 : vector<16x128xf32>
    %c0_18 = arith.constant 0 : index
    %c0_19 = arith.constant 0 : index
    %39 = vector.load %arg8[%c0_18, %c0_19] : memref<16x128xf32, #tpu.memory_space<vmem>>, vector<16x128xf32>
    %40 = arith.mulf %30, %39 : vector<16x128xf32>
    %41 = arith.mulf %24, %32 : vector<16x128xf32>
    %42 = arith.addf %40, %41 : vector<16x128xf32>
    %43 = math.tanh %42 : vector<16x128xf32>
    %44 = arith.mulf %38, %43 : vector<16x128xf32>
    %c0_20 = arith.constant 0 : index
    %c0_21 = arith.constant 0 : index
    %45 = vector.load %arg8[%c0_20, %c0_21] : memref<16x128xf32, #tpu.memory_space<vmem>>, vector<16x128xf32>
    tpu.vector_store %arg8[%c0_20, %c0_21], %42 {strides = array<i32>} : memref<16x128xf32, #tpu.memory_space<vmem>>, vector<16x128xf32>,
    %c0_22 = arith.constant 0 : index
    %c0_23 = arith.constant 0 : index
    %46 = vector.load %arg7[%c0_22, %c0_23] : memref<16x128xf32, #tpu.memory_space<vmem>>, vector<16x128xf32>
    tpu.vector_store %arg7[%c0_22, %c0_23], %44 {strides = array<i32>} : memref<16x128xf32, #tpu.memory_space<vmem>>, vector<16x128xf32>,
    %47 = arith.truncf %44 : vector<16x128xf32> to vector<16x128xbf16>
    %48 = arith.index_cast %11 : i32 to index
    %c0_24 = arith.constant 0 : index
    %49 = vector.load %arg5[%48, %c0_24] : memref<256x128xbf16, #tpu.memory_space<vmem>>, vector<16x128xbf16>
    tpu.vector_store %arg5[%48, %c0_24], %47 {strides = array<i32>} : memref<256x128xbf16, #tpu.memory_space<vmem>>, vector<16x128xbf16>,
    %c1_i32 = arith.constant 1 : i32
    %c16_i32_25 = arith.constant 16 : i32
    %50 = arith.muli %c1_i32, %c16_i32_25 : i32
    %51 = tpu.assume_multiple %50, 16 : i32
    %52 = arith.index_cast %51 : i32 to index
    %c0_26 = arith.constant 0 : index
    %53 = vector.load %arg6[%52, %c0_26] : memref<256x512xf32, #tpu.memory_space<vmem>>, vector<16x512xf32>
    %c0_27 = arith.constant 0 : index
    %c0_28 = arith.constant 0 : index
    %54 = vector.load %arg7[%c0_27, %c0_28] : memref<16x128xf32, #tpu.memory_space<vmem>>, vector<16x128xf32>
    %55 = arith.truncf %54 : vector<16x128xf32> to vector<16x128xbf16>
    %c0_29 = arith.constant 0 : index
    %c0_30 = arith.constant 0 : index
    %56 = vector.load %arg3[%c0_29, %c0_30] : memref<128x512xbf16, #tpu.memory_space<vmem>>, vector<128x512xbf16>
    %cst_31 = arith.constant dense<0.000000e+00> : vector<16x512xf32>
    %57 = tpu.matmul %55, %56, %cst_31 {dimension_numbers = #tpu.dot_dimension_numbers<[1], [0], [0], [1], [0, 0, 1, 1], [], []>} : vector<16x128xbf16>, vector<128x512xbf16>, vector<16x512xf32> -> vector<16x512xf32>
    %58 = arith.addf %53, %57 : vector<16x512xf32>
    %59 = vector.extract_strided_slice %58 {offsets = [0, 0], sizes = [16, 128], strides = [1, 1]} : vector<16x512xf32> to vector<16x128xf32>
    %60 = arith.negf %59 : vector<16x128xf32>
    %61 = math.exp %60 : vector<16x128xf32>
    %cst_32 = arith.constant 1.000000e+00 : f32
    %62 = vector.broadcast %cst_32 : f32 to vector<16x128xf32>
    %63 = arith.addf %62, %61 : vector<16x128xf32>
    %64 = arith.divf %62, %63 : vector<16x128xf32>
    %65 = vector.extract_strided_slice %58 {offsets = [0, 128], sizes = [16, 128], strides = [1, 1]} : vector<16x512xf32> to vector<16x128xf32>
    %66 = arith.negf %65 : vector<16x128xf32>
    %67 = math.exp %66 : vector<16x128xf32>
    %cst_33 = arith.constant 1.000000e+00 : f32
    %68 = vector.broadcast %cst_33 : f32 to vector<16x128xf32>
    %69 = arith.addf %68, %67 : vector<16x128xf32>
    %70 = arith.divf %68, %69 : vector<16x128xf32>
    %71 = vector.extract_strided_slice %58 {offsets = [0, 256], sizes = [16, 128], strides = [1, 1]} : vector<16x512xf32> to vector<16x128xf32>
    %72 = math.tanh %71 : vector<16x128xf32>
    %73 = vector.extract_strided_slice %58 {offsets = [0, 384], sizes = [16, 128], strides = [1, 1]} : vector<16x512xf32> to vector<16x128xf32>
    %74 = arith.negf %73 : vector<16x128xf32>
    %75 = math.exp %74 : vector<16x128xf32>
    %cst_34 = arith.constant 1.000000e+00 : f32
    %76 = vector.broadcast %cst_34 : f32 to vector<16x128xf32>
    %77 = arith.addf %76, %75 : vector<16x128xf32>
    %78 = arith.divf %76, %77 : vector<16x128xf32>
    %c0_35 = arith.constant 0 : index
    %c0_36 = arith.constant 0 : index
    %79 = vector.load %arg8[%c0_35, %c0_36] : memref<16x128xf32, #tpu.memory_space<vmem>>, vector<16x128xf32>
    %80 = arith.mulf %70, %79 : vector<16x128xf32>
    %81 = arith.mulf %64, %72 : vector<16x128xf32>
    %82 = arith.addf %80, %81 : vector<16x128xf32>
    %83 = math.tanh %82 : vector<16x128xf32>
    %84 = arith.mulf %78, %83 : vector<16x128xf32>
    %c0_37 = arith.constant 0 : index
    %c0_38 = arith.constant 0 : index
    %85 = vector.load %arg8[%c0_37, %c0_38] : memref<16x128xf32, #tpu.memory_space<vmem>>, vector<16x128xf32>
    tpu.vector_store %arg8[%c0_37, %c0_38], %82 {strides = array<i32>} : memref<16x128xf32, #tpu.memory_space<vmem>>, vector<16x128xf32>,
    %c0_39 = arith.constant 0 : index
    %c0_40 = arith.constant 0 : index
    %86 = vector.load %arg7[%c0_39, %c0_40] : memref<16x128xf32, #tpu.memory_space<vmem>>, vector<16x128xf32>
    tpu.vector_store %arg7[%c0_39, %c0_40], %84 {strides = array<i32>} : memref<16x128xf32, #tpu.memory_space<vmem>>, vector<16x128xf32>,
    %87 = arith.truncf %84 : vector<16x128xf32> to vector<16x128xbf16>
    %88 = arith.index_cast %51 : i32 to index
    %c0_41 = arith.constant 0 : index
    %89 = vector.load %arg5[%88, %c0_41] : memref<256x128xbf16, #tpu.memory_space<vmem>>, vector<16x128xbf16>
    tpu.vector_store %arg5[%88, %c0_41], %87 {strides = array<i32>} : memref<256x128xbf16, #tpu.memory_space<vmem>>, vector<16x128xbf16>,
    %c2_i32 = arith.constant 2 : i32
    %c16_i32_42 = arith.constant 16 : i32
    %90 = arith.muli %c2_i32, %c16_i32_42 : i32
    %91 = tpu.assume_multiple %90, 16 : i32
    %92 = arith.index_cast %91 : i32 to index
    %c0_43 = arith.constant 0 : index
    %93 = vector.load %arg6[%92, %c0_43] : memref<256x512xf32, #tpu.memory_space<vmem>>, vector<16x512xf32>
    %c0_44 = arith.constant 0 : index
    %c0_45 = arith.constant 0 : index
    %94 = vector.load %arg7[%c0_44, %c0_45] : memref<16x128xf32, #tpu.memory_space<vmem>>, vector<16x128xf32>
    %95 = arith.truncf %94 : vector<16x128xf32> to vector<16x128xbf16>
    %c0_46 = arith.constant 0 : index
    %c0_47 = arith.constant 0 : index
    %96 = vector.load %arg3[%c0_46, %c0_47] : memref<128x512xbf16, #tpu.memory_space<vmem>>, vector<128x512xbf16>
    %cst_48 = arith.constant dense<0.000000e+00> : vector<16x512xf32>
    %97 = tpu.matmul %95, %96, %cst_48 {dimension_numbers = #tpu.dot_dimension_numbers<[1], [0], [0], [1], [0, 0, 1, 1], [], []>} : vector<16x128xbf16>, vector<128x512xbf16>, vector<16x512xf32> -> vector<16x512xf32>
    %98 = arith.addf %93, %97 : vector<16x512xf32>
    %99 = vector.extract_strided_slice %98 {offsets = [0, 0], sizes = [16, 128], strides = [1, 1]} : vector<16x512xf32> to vector<16x128xf32>
    %100 = arith.negf %99 : vector<16x128xf32>
    %101 = math.exp %100 : vector<16x128xf32>
    %cst_49 = arith.constant 1.000000e+00 : f32
    %102 = vector.broadcast %cst_49 : f32 to vector<16x128xf32>
    %103 = arith.addf %102, %101 : vector<16x128xf32>
    %104 = arith.divf %102, %103 : vector<16x128xf32>
    %105 = vector.extract_strided_slice %98 {offsets = [0, 128], sizes = [16, 128], strides = [1, 1]} : vector<16x512xf32> to vector<16x128xf32>
    %106 = arith.negf %105 : vector<16x128xf32>
    %107 = math.exp %106 : vector<16x128xf32>
    %cst_50 = arith.constant 1.000000e+00 : f32
    %108 = vector.broadcast %cst_50 : f32 to vector<16x128xf32>
    %109 = arith.addf %108, %107 : vector<16x128xf32>
    %110 = arith.divf %108, %109 : vector<16x128xf32>
    %111 = vector.extract_strided_slice %98 {offsets = [0, 256], sizes = [16, 128], strides = [1, 1]} : vector<16x512xf32> to vector<16x128xf32>
    %112 = math.tanh %111 : vector<16x128xf32>
    %113 = vector.extract_strided_slice %98 {offsets = [0, 384], sizes = [16, 128], strides = [1, 1]} : vector<16x512xf32> to vector<16x128xf32>
    %114 = arith.negf %113 : vector<16x128xf32>
    %115 = math.exp %114 : vector<16x128xf32>
    %cst_51 = arith.constant 1.000000e+00 : f32
    %116 = vector.broadcast %cst_51 : f32 to vector<16x128xf32>
    %117 = arith.addf %116, %115 : vector<16x128xf32>
    %118 = arith.divf %116, %117 : vector<16x128xf32>
    %c0_52 = arith.constant 0 : index
    %c0_53 = arith.constant 0 : index
    %119 = vector.load %arg8[%c0_52, %c0_53] : memref<16x128xf32, #tpu.memory_space<vmem>>, vector<16x128xf32>
    %120 = arith.mulf %110, %119 : vector<16x128xf32>
    %121 = arith.mulf %104, %112 : vector<16x128xf32>
    %122 = arith.addf %120, %121 : vector<16x128xf32>
    %123 = math.tanh %122 : vector<16x128xf32>
    %124 = arith.mulf %118, %123 : vector<16x128xf32>
    %c0_54 = arith.constant 0 : index
    %c0_55 = arith.constant 0 : index
    %125 = vector.load %arg8[%c0_54, %c0_55] : memref<16x128xf32, #tpu.memory_space<vmem>>, vector<16x128xf32>
    tpu.vector_store %arg8[%c0_54, %c0_55], %122 {strides = array<i32>} : memref<16x128xf32, #tpu.memory_space<vmem>>, vector<16x128xf32>,
    %c0_56 = arith.constant 0 : index
    %c0_57 = arith.constant 0 : index
    %126 = vector.load %arg7[%c0_56, %c0_57] : memref<16x128xf32, #tpu.memory_space<vmem>>, vector<16x128xf32>
    tpu.vector_store %arg7[%c0_56, %c0_57], %124 {strides = array<i32>} : memref<16x128xf32, #tpu.memory_space<vmem>>, vector<16x128xf32>,
    %127 = arith.truncf %124 : vector<16x128xf32> to vector<16x128xbf16>
    %128 = arith.index_cast %91 : i32 to index
    %c0_58 = arith.constant 0 : index
    %129 = vector.load %arg5[%128, %c0_58] : memref<256x128xbf16, #tpu.memory_space<vmem>>, vector<16x128xbf16>
    tpu.vector_store %arg5[%128, %c0_58], %127 {strides = array<i32>} : memref<256x128xbf16, #tpu.memory_space<vmem>>, vector<16x128xbf16>,
    %c3_i32 = arith.constant 3 : i32
    %c16_i32_59 = arith.constant 16 : i32
    %130 = arith.muli %c3_i32, %c16_i32_59 : i32
    %131 = tpu.assume_multiple %130, 16 : i32
    %132 = arith.index_cast %131 : i32 to index
    %c0_60 = arith.constant 0 : index
    %133 = vector.load %arg6[%132, %c0_60] : memref<256x512xf32, #tpu.memory_space<vmem>>, vector<16x512xf32>
    %c0_61 = arith.constant 0 : index
    %c0_62 = arith.constant 0 : index
    %134 = vector.load %arg7[%c0_61, %c0_62] : memref<16x128xf32, #tpu.memory_space<vmem>>, vector<16x128xf32>
    %135 = arith.truncf %134 : vector<16x128xf32> to vector<16x128xbf16>
    %c0_63 = arith.constant 0 : index
    %c0_64 = arith.constant 0 : index
    %136 = vector.load %arg3[%c0_63, %c0_64] : memref<128x512xbf16, #tpu.memory_space<vmem>>, vector<128x512xbf16>
    %cst_65 = arith.constant dense<0.000000e+00> : vector<16x512xf32>
    %137 = tpu.matmul %135, %136, %cst_65 {dimension_numbers = #tpu.dot_dimension_numbers<[1], [0], [0], [1], [0, 0, 1, 1], [], []>} : vector<16x128xbf16>, vector<128x512xbf16>, vector<16x512xf32> -> vector<16x512xf32>
    %138 = arith.addf %133, %137 : vector<16x512xf32>
    %139 = vector.extract_strided_slice %138 {offsets = [0, 0], sizes = [16, 128], strides = [1, 1]} : vector<16x512xf32> to vector<16x128xf32>
    %140 = arith.negf %139 : vector<16x128xf32>
    %141 = math.exp %140 : vector<16x128xf32>
    %cst_66 = arith.constant 1.000000e+00 : f32
    %142 = vector.broadcast %cst_66 : f32 to vector<16x128xf32>
    %143 = arith.addf %142, %141 : vector<16x128xf32>
    %144 = arith.divf %142, %143 : vector<16x128xf32>
    %145 = vector.extract_strided_slice %138 {offsets = [0, 128], sizes = [16, 128], strides = [1, 1]} : vector<16x512xf32> to vector<16x128xf32>
    %146 = arith.negf %145 : vector<16x128xf32>
    %147 = math.exp %146 : vector<16x128xf32>
    %cst_67 = arith.constant 1.000000e+00 : f32
    %148 = vector.broadcast %cst_67 : f32 to vector<16x128xf32>
    %149 = arith.addf %148, %147 : vector<16x128xf32>
    %150 = arith.divf %148, %149 : vector<16x128xf32>
    %151 = vector.extract_strided_slice %138 {offsets = [0, 256], sizes = [16, 128], strides = [1, 1]} : vector<16x512xf32> to vector<16x128xf32>
    %152 = math.tanh %151 : vector<16x128xf32>
    %153 = vector.extract_strided_slice %138 {offsets = [0, 384], sizes = [16, 128], strides = [1, 1]} : vector<16x512xf32> to vector<16x128xf32>
    %154 = arith.negf %153 : vector<16x128xf32>
    %155 = math.exp %154 : vector<16x128xf32>
    %cst_68 = arith.constant 1.000000e+00 : f32
    %156 = vector.broadcast %cst_68 : f32 to vector<16x128xf32>
    %157 = arith.addf %156, %155 : vector<16x128xf32>
    %158 = arith.divf %156, %157 : vector<16x128xf32>
    %c0_69 = arith.constant 0 : index
    %c0_70 = arith.constant 0 : index
    %159 = vector.load %arg8[%c0_69, %c0_70] : memref<16x128xf32, #tpu.memory_space<vmem>>, vector<16x128xf32>
    %160 = arith.mulf %150, %159 : vector<16x128xf32>
    %161 = arith.mulf %144, %152 : vector<16x128xf32>
    %162 = arith.addf %160, %161 : vector<16x128xf32>
    %163 = math.tanh %162 : vector<16x128xf32>
    %164 = arith.mulf %158, %163 : vector<16x128xf32>
    %c0_71 = arith.constant 0 : index
    %c0_72 = arith.constant 0 : index
    %165 = vector.load %arg8[%c0_71, %c0_72] : memref<16x128xf32, #tpu.memory_space<vmem>>, vector<16x128xf32>
    tpu.vector_store %arg8[%c0_71, %c0_72], %162 {strides = array<i32>} : memref<16x128xf32, #tpu.memory_space<vmem>>, vector<16x128xf32>,
    %c0_73 = arith.constant 0 : index
    %c0_74 = arith.constant 0 : index
    %166 = vector.load %arg7[%c0_73, %c0_74] : memref<16x128xf32, #tpu.memory_space<vmem>>, vector<16x128xf32>
    tpu.vector_store %arg7[%c0_73, %c0_74], %164 {strides = array<i32>} : memref<16x128xf32, #tpu.memory_space<vmem>>, vector<16x128xf32>,
    %167 = arith.truncf %164 : vector<16x128xf32> to vector<16x128xbf16>
    %168 = arith.index_cast %131 : i32 to index
    %c0_75 = arith.constant 0 : index
    %169 = vector.load %arg5[%168, %c0_75] : memref<256x128xbf16, #tpu.memory_space<vmem>>, vector<16x128xbf16>
    tpu.vector_store %arg5[%168, %c0_75], %167 {strides = array<i32>} : memref<256x128xbf16, #tpu.memory_space<vmem>>, vector<16x128xbf16>,
    %c4_i32 = arith.constant 4 : i32
    %c16_i32_76 = arith.constant 16 : i32
    %170 = arith.muli %c4_i32, %c16_i32_76 : i32
    %171 = tpu.assume_multiple %170, 16 : i32
    %172 = arith.index_cast %171 : i32 to index
    %c0_77 = arith.constant 0 : index
    %173 = vector.load %arg6[%172, %c0_77] : memref<256x512xf32, #tpu.memory_space<vmem>>, vector<16x512xf32>
    %c0_78 = arith.constant 0 : index
    %c0_79 = arith.constant 0 : index
    %174 = vector.load %arg7[%c0_78, %c0_79] : memref<16x128xf32, #tpu.memory_space<vmem>>, vector<16x128xf32>
    %175 = arith.truncf %174 : vector<16x128xf32> to vector<16x128xbf16>
    %c0_80 = arith.constant 0 : index
    %c0_81 = arith.constant 0 : index
    %176 = vector.load %arg3[%c0_80, %c0_81] : memref<128x512xbf16, #tpu.memory_space<vmem>>, vector<128x512xbf16>
    %cst_82 = arith.constant dense<0.000000e+00> : vector<16x512xf32>
    %177 = tpu.matmul %175, %176, %cst_82 {dimension_numbers = #tpu.dot_dimension_numbers<[1], [0], [0], [1], [0, 0, 1, 1], [], []>} : vector<16x128xbf16>, vector<128x512xbf16>, vector<16x512xf32> -> vector<16x512xf32>
    %178 = arith.addf %173, %177 : vector<16x512xf32>
    %179 = vector.extract_strided_slice %178 {offsets = [0, 0], sizes = [16, 128], strides = [1, 1]} : vector<16x512xf32> to vector<16x128xf32>
    %180 = arith.negf %179 : vector<16x128xf32>
    %181 = math.exp %180 : vector<16x128xf32>
    %cst_83 = arith.constant 1.000000e+00 : f32
    %182 = vector.broadcast %cst_83 : f32 to vector<16x128xf32>
    %183 = arith.addf %182, %181 : vector<16x128xf32>
    %184 = arith.divf %182, %183 : vector<16x128xf32>
    %185 = vector.extract_strided_slice %178 {offsets = [0, 128], sizes = [16, 128], strides = [1, 1]} : vector<16x512xf32> to vector<16x128xf32>
    %186 = arith.negf %185 : vector<16x128xf32>
    %187 = math.exp %186 : vector<16x128xf32>
    %cst_84 = arith.constant 1.000000e+00 : f32
    %188 = vector.broadcast %cst_84 : f32 to vector<16x128xf32>
    %189 = arith.addf %188, %187 : vector<16x128xf32>
    %190 = arith.divf %188, %189 : vector<16x128xf32>
    %191 = vector.extract_strided_slice %178 {offsets = [0, 256], sizes = [16, 128], strides = [1, 1]} : vector<16x512xf32> to vector<16x128xf32>
    %192 = math.tanh %191 : vector<16x128xf32>
    %193 = vector.extract_strided_slice %178 {offsets = [0, 384], sizes = [16, 128], strides = [1, 1]} : vector<16x512xf32> to vector<16x128xf32>
    %194 = arith.negf %193 : vector<16x128xf32>
    %195 = math.exp %194 : vector<16x128xf32>
    %cst_85 = arith.constant 1.000000e+00 : f32
    %196 = vector.broadcast %cst_85 : f32 to vector<16x128xf32>
    %197 = arith.addf %196, %195 : vector<16x128xf32>
    %198 = arith.divf %196, %197 : vector<16x128xf32>
    %c0_86 = arith.constant 0 : index
    %c0_87 = arith.constant 0 : index
    %199 = vector.load %arg8[%c0_86, %c0_87] : memref<16x128xf32, #tpu.memory_space<vmem>>, vector<16x128xf32>
    %200 = arith.mulf %190, %199 : vector<16x128xf32>
    %201 = arith.mulf %184, %192 : vector<16x128xf32>
    %202 = arith.addf %200, %201 : vector<16x128xf32>
    %203 = math.tanh %202 : vector<16x128xf32>
    %204 = arith.mulf %198, %203 : vector<16x128xf32>
    %c0_88 = arith.constant 0 : index
    %c0_89 = arith.constant 0 : index
    %205 = vector.load %arg8[%c0_88, %c0_89] : memref<16x128xf32, #tpu.memory_space<vmem>>, vector<16x128xf32>
    tpu.vector_store %arg8[%c0_88, %c0_89], %202 {strides = array<i32>} : memref<16x128xf32, #tpu.memory_space<vmem>>, vector<16x128xf32>,
    %c0_90 = arith.constant 0 : index
    %c0_91 = arith.constant 0 : index
    %206 = vector.load %arg7[%c0_90, %c0_91] : memref<16x128xf32, #tpu.memory_space<vmem>>, vector<16x128xf32>
    tpu.vector_store %arg7[%c0_90, %c0_91], %204 {strides = array<i32>} : memref<16x128xf32, #tpu.memory_space<vmem>>, vector<16x128xf32>,
    %207 = arith.truncf %204 : vector<16x128xf32> to vector<16x128xbf16>
    %208 = arith.index_cast %171 : i32 to index
    %c0_92 = arith.constant 0 : index
    %209 = vector.load %arg5[%208, %c0_92] : memref<256x128xbf16, #tpu.memory_space<vmem>>, vector<16x128xbf16>
    tpu.vector_store %arg5[%208, %c0_92], %207 {strides = array<i32>} : memref<256x128xbf16, #tpu.memory_space<vmem>>, vector<16x128xbf16>,
    %c5_i32 = arith.constant 5 : i32
    %c16_i32_93 = arith.constant 16 : i32
    %210 = arith.muli %c5_i32, %c16_i32_93 : i32
    %211 = tpu.assume_multiple %210, 16 : i32
    %212 = arith.index_cast %211 : i32 to index
    %c0_94 = arith.constant 0 : index
    %213 = vector.load %arg6[%212, %c0_94] : memref<256x512xf32, #tpu.memory_space<vmem>>, vector<16x512xf32>
    %c0_95 = arith.constant 0 : index
    %c0_96 = arith.constant 0 : index
    %214 = vector.load %arg7[%c0_95, %c0_96] : memref<16x128xf32, #tpu.memory_space<vmem>>, vector<16x128xf32>
    %215 = arith.truncf %214 : vector<16x128xf32> to vector<16x128xbf16>
    %c0_97 = arith.constant 0 : index
    %c0_98 = arith.constant 0 : index
    %216 = vector.load %arg3[%c0_97, %c0_98] : memref<128x512xbf16, #tpu.memory_space<vmem>>, vector<128x512xbf16>
    %cst_99 = arith.constant dense<0.000000e+00> : vector<16x512xf32>
    %217 = tpu.matmul %215, %216, %cst_99 {dimension_numbers = #tpu.dot_dimension_numbers<[1], [0], [0], [1], [0, 0, 1, 1], [], []>} : vector<16x128xbf16>, vector<128x512xbf16>, vector<16x512xf32> -> vector<16x512xf32>
    %218 = arith.addf %213, %217 : vector<16x512xf32>
    %219 = vector.extract_strided_slice %218 {offsets = [0, 0], sizes = [16, 128], strides = [1, 1]} : vector<16x512xf32> to vector<16x128xf32>
    %220 = arith.negf %219 : vector<16x128xf32>
    %221 = math.exp %220 : vector<16x128xf32>
    %cst_100 = arith.constant 1.000000e+00 : f32
    %222 = vector.broadcast %cst_100 : f32 to vector<16x128xf32>
    %223 = arith.addf %222, %221 : vector<16x128xf32>
    %224 = arith.divf %222, %223 : vector<16x128xf32>
    %225 = vector.extract_strided_slice %218 {offsets = [0, 128], sizes = [16, 128], strides = [1, 1]} : vector<16x512xf32> to vector<16x128xf32>
    %226 = arith.negf %225 : vector<16x128xf32>
    %227 = math.exp %226 : vector<16x128xf32>
    %cst_101 = arith.constant 1.000000e+00 : f32
    %228 = vector.broadcast %cst_101 : f32 to vector<16x128xf32>
    %229 = arith.addf %228, %227 : vector<16x128xf32>
    %230 = arith.divf %228, %229 : vector<16x128xf32>
    %231 = vector.extract_strided_slice %218 {offsets = [0, 256], sizes = [16, 128], strides = [1, 1]} : vector<16x512xf32> to vector<16x128xf32>
    %232 = math.tanh %231 : vector<16x128xf32>
    %233 = vector.extract_strided_slice %218 {offsets = [0, 384], sizes = [16, 128], strides = [1, 1]} : vector<16x512xf32> to vector<16x128xf32>
    %234 = arith.negf %233 : vector<16x128xf32>
    %235 = math.exp %234 : vector<16x128xf32>
    %cst_102 = arith.constant 1.000000e+00 : f32
    %236 = vector.broadcast %cst_102 : f32 to vector<16x128xf32>
    %237 = arith.addf %236, %235 : vector<16x128xf32>
    %238 = arith.divf %236, %237 : vector<16x128xf32>
    %c0_103 = arith.constant 0 : index
    %c0_104 = arith.constant 0 : index
    %239 = vector.load %arg8[%c0_103, %c0_104] : memref<16x128xf32, #tpu.memory_space<vmem>>, vector<16x128xf32>
    %240 = arith.mulf %230, %239 : vector<16x128xf32>
    %241 = arith.mulf %224, %232 : vector<16x128xf32>
    %242 = arith.addf %240, %241 : vector<16x128xf32>
    %243 = math.tanh %242 : vector<16x128xf32>
    %244 = arith.mulf %238, %243 : vector<16x128xf32>
    %c0_105 = arith.constant 0 : index
    %c0_106 = arith.constant 0 : index
    %245 = vector.load %arg8[%c0_105, %c0_106] : memref<16x128xf32, #tpu.memory_space<vmem>>, vector<16x128xf32>
    tpu.vector_store %arg8[%c0_105, %c0_106], %242 {strides = array<i32>} : memref<16x128xf32, #tpu.memory_space<vmem>>, vector<16x128xf32>,
    %c0_107 = arith.constant 0 : index
    %c0_108 = arith.constant 0 : index
    %246 = vector.load %arg7[%c0_107, %c0_108] : memref<16x128xf32, #tpu.memory_space<vmem>>, vector<16x128xf32>
    tpu.vector_store %arg7[%c0_107, %c0_108], %244 {strides = array<i32>} : memref<16x128xf32, #tpu.memory_space<vmem>>, vector<16x128xf32>,
    %247 = arith.truncf %244 : vector<16x128xf32> to vector<16x128xbf16>
    %248 = arith.index_cast %211 : i32 to index
    %c0_109 = arith.constant 0 : index
    %249 = vector.load %arg5[%248, %c0_109] : memref<256x128xbf16, #tpu.memory_space<vmem>>, vector<16x128xbf16>
    tpu.vector_store %arg5[%248, %c0_109], %247 {strides = array<i32>} : memref<256x128xbf16, #tpu.memory_space<vmem>>, vector<16x128xbf16>,
    %c6_i32 = arith.constant 6 : i32
    %c16_i32_110 = arith.constant 16 : i32
    %250 = arith.muli %c6_i32, %c16_i32_110 : i32
    %251 = tpu.assume_multiple %250, 16 : i32
    %252 = arith.index_cast %251 : i32 to index
    %c0_111 = arith.constant 0 : index
    %253 = vector.load %arg6[%252, %c0_111] : memref<256x512xf32, #tpu.memory_space<vmem>>, vector<16x512xf32>
    %c0_112 = arith.constant 0 : index
    %c0_113 = arith.constant 0 : index
    %254 = vector.load %arg7[%c0_112, %c0_113] : memref<16x128xf32, #tpu.memory_space<vmem>>, vector<16x128xf32>
    %255 = arith.truncf %254 : vector<16x128xf32> to vector<16x128xbf16>
    %c0_114 = arith.constant 0 : index
    %c0_115 = arith.constant 0 : index
    %256 = vector.load %arg3[%c0_114, %c0_115] : memref<128x512xbf16, #tpu.memory_space<vmem>>, vector<128x512xbf16>
    %cst_116 = arith.constant dense<0.000000e+00> : vector<16x512xf32>
    %257 = tpu.matmul %255, %256, %cst_116 {dimension_numbers = #tpu.dot_dimension_numbers<[1], [0], [0], [1], [0, 0, 1, 1], [], []>} : vector<16x128xbf16>, vector<128x512xbf16>, vector<16x512xf32> -> vector<16x512xf32>
    %258 = arith.addf %253, %257 : vector<16x512xf32>
    %259 = vector.extract_strided_slice %258 {offsets = [0, 0], sizes = [16, 128], strides = [1, 1]} : vector<16x512xf32> to vector<16x128xf32>
    %260 = arith.negf %259 : vector<16x128xf32>
    %261 = math.exp %260 : vector<16x128xf32>
    %cst_117 = arith.constant 1.000000e+00 : f32
    %262 = vector.broadcast %cst_117 : f32 to vector<16x128xf32>
    %263 = arith.addf %262, %261 : vector<16x128xf32>
    %264 = arith.divf %262, %263 : vector<16x128xf32>
    %265 = vector.extract_strided_slice %258 {offsets = [0, 128], sizes = [16, 128], strides = [1, 1]} : vector<16x512xf32> to vector<16x128xf32>
    %266 = arith.negf %265 : vector<16x128xf32>
    %267 = math.exp %266 : vector<16x128xf32>
    %cst_118 = arith.constant 1.000000e+00 : f32
    %268 = vector.broadcast %cst_118 : f32 to vector<16x128xf32>
    %269 = arith.addf %268, %267 : vector<16x128xf32>
    %270 = arith.divf %268, %269 : vector<16x128xf32>
    %271 = vector.extract_strided_slice %258 {offsets = [0, 256], sizes = [16, 128], strides = [1, 1]} : vector<16x512xf32> to vector<16x128xf32>
    %272 = math.tanh %271 : vector<16x128xf32>
    %273 = vector.extract_strided_slice %258 {offsets = [0, 384], sizes = [16, 128], strides = [1, 1]} : vector<16x512xf32> to vector<16x128xf32>
    %274 = arith.negf %273 : vector<16x128xf32>
    %275 = math.exp %274 : vector<16x128xf32>
    %cst_119 = arith.constant 1.000000e+00 : f32
    %276 = vector.broadcast %cst_119 : f32 to vector<16x128xf32>
    %277 = arith.addf %276, %275 : vector<16x128xf32>
    %278 = arith.divf %276, %277 : vector<16x128xf32>
    %c0_120 = arith.constant 0 : index
    %c0_121 = arith.constant 0 : index
    %279 = vector.load %arg8[%c0_120, %c0_121] : memref<16x128xf32, #tpu.memory_space<vmem>>, vector<16x128xf32>
    %280 = arith.mulf %270, %279 : vector<16x128xf32>
    %281 = arith.mulf %264, %272 : vector<16x128xf32>
    %282 = arith.addf %280, %281 : vector<16x128xf32>
    %283 = math.tanh %282 : vector<16x128xf32>
    %284 = arith.mulf %278, %283 : vector<16x128xf32>
    %c0_122 = arith.constant 0 : index
    %c0_123 = arith.constant 0 : index
    %285 = vector.load %arg8[%c0_122, %c0_123] : memref<16x128xf32, #tpu.memory_space<vmem>>, vector<16x128xf32>
    tpu.vector_store %arg8[%c0_122, %c0_123], %282 {strides = array<i32>} : memref<16x128xf32, #tpu.memory_space<vmem>>, vector<16x128xf32>,
    %c0_124 = arith.constant 0 : index
    %c0_125 = arith.constant 0 : index
    %286 = vector.load %arg7[%c0_124, %c0_125] : memref<16x128xf32, #tpu.memory_space<vmem>>, vector<16x128xf32>
    tpu.vector_store %arg7[%c0_124, %c0_125], %284 {strides = array<i32>} : memref<16x128xf32, #tpu.memory_space<vmem>>, vector<16x128xf32>,
    %287 = arith.truncf %284 : vector<16x128xf32> to vector<16x128xbf16>
    %288 = arith.index_cast %251 : i32 to index
    %c0_126 = arith.constant 0 : index
    %289 = vector.load %arg5[%288, %c0_126] : memref<256x128xbf16, #tpu.memory_space<vmem>>, vector<16x128xbf16>
    tpu.vector_store %arg5[%288, %c0_126], %287 {strides = array<i32>} : memref<256x128xbf16, #tpu.memory_space<vmem>>, vector<16x128xbf16>,
    %c7_i32 = arith.constant 7 : i32
    %c16_i32_127 = arith.constant 16 : i32
    %290 = arith.muli %c7_i32, %c16_i32_127 : i32
    %291 = tpu.assume_multiple %290, 16 : i32
    %292 = arith.index_cast %291 : i32 to index
    %c0_128 = arith.constant 0 : index
    %293 = vector.load %arg6[%292, %c0_128] : memref<256x512xf32, #tpu.memory_space<vmem>>, vector<16x512xf32>
    %c0_129 = arith.constant 0 : index
    %c0_130 = arith.constant 0 : index
    %294 = vector.load %arg7[%c0_129, %c0_130] : memref<16x128xf32, #tpu.memory_space<vmem>>, vector<16x128xf32>
    %295 = arith.truncf %294 : vector<16x128xf32> to vector<16x128xbf16>
    %c0_131 = arith.constant 0 : index
    %c0_132 = arith.constant 0 : index
    %296 = vector.load %arg3[%c0_131, %c0_132] : memref<128x512xbf16, #tpu.memory_space<vmem>>, vector<128x512xbf16>
    %cst_133 = arith.constant dense<0.000000e+00> : vector<16x512xf32>
    %297 = tpu.matmul %295, %296, %cst_133 {dimension_numbers = #tpu.dot_dimension_numbers<[1], [0], [0], [1], [0, 0, 1, 1], [], []>} : vector<16x128xbf16>, vector<128x512xbf16>, vector<16x512xf32> -> vector<16x512xf32>
    %298 = arith.addf %293, %297 : vector<16x512xf32>
    %299 = vector.extract_strided_slice %298 {offsets = [0, 0], sizes = [16, 128], strides = [1, 1]} : vector<16x512xf32> to vector<16x128xf32>
    %300 = arith.negf %299 : vector<16x128xf32>
    %301 = math.exp %300 : vector<16x128xf32>
    %cst_134 = arith.constant 1.000000e+00 : f32
    %302 = vector.broadcast %cst_134 : f32 to vector<16x128xf32>
    %303 = arith.addf %302, %301 : vector<16x128xf32>
    %304 = arith.divf %302, %303 : vector<16x128xf32>
    %305 = vector.extract_strided_slice %298 {offsets = [0, 128], sizes = [16, 128], strides = [1, 1]} : vector<16x512xf32> to vector<16x128xf32>
    %306 = arith.negf %305 : vector<16x128xf32>
    %307 = math.exp %306 : vector<16x128xf32>
    %cst_135 = arith.constant 1.000000e+00 : f32
    %308 = vector.broadcast %cst_135 : f32 to vector<16x128xf32>
    %309 = arith.addf %308, %307 : vector<16x128xf32>
    %310 = arith.divf %308, %309 : vector<16x128xf32>
    %311 = vector.extract_strided_slice %298 {offsets = [0, 256], sizes = [16, 128], strides = [1, 1]} : vector<16x512xf32> to vector<16x128xf32>
    %312 = math.tanh %311 : vector<16x128xf32>
    %313 = vector.extract_strided_slice %298 {offsets = [0, 384], sizes = [16, 128], strides = [1, 1]} : vector<16x512xf32> to vector<16x128xf32>
    %314 = arith.negf %313 : vector<16x128xf32>
    %315 = math.exp %314 : vector<16x128xf32>
    %cst_136 = arith.constant 1.000000e+00 : f32
    %316 = vector.broadcast %cst_136 : f32 to vector<16x128xf32>
    %317 = arith.addf %316, %315 : vector<16x128xf32>
    %318 = arith.divf %316, %317 : vector<16x128xf32>
    %c0_137 = arith.constant 0 : index
    %c0_138 = arith.constant 0 : index
    %319 = vector.load %arg8[%c0_137, %c0_138] : memref<16x128xf32, #tpu.memory_space<vmem>>, vector<16x128xf32>
    %320 = arith.mulf %310, %319 : vector<16x128xf32>
    %321 = arith.mulf %304, %312 : vector<16x128xf32>
    %322 = arith.addf %320, %321 : vector<16x128xf32>
    %323 = math.tanh %322 : vector<16x128xf32>
    %324 = arith.mulf %318, %323 : vector<16x128xf32>
    %c0_139 = arith.constant 0 : index
    %c0_140 = arith.constant 0 : index
    %325 = vector.load %arg8[%c0_139, %c0_140] : memref<16x128xf32, #tpu.memory_space<vmem>>, vector<16x128xf32>
    tpu.vector_store %arg8[%c0_139, %c0_140], %322 {strides = array<i32>} : memref<16x128xf32, #tpu.memory_space<vmem>>, vector<16x128xf32>,
    %c0_141 = arith.constant 0 : index
    %c0_142 = arith.constant 0 : index
    %326 = vector.load %arg7[%c0_141, %c0_142] : memref<16x128xf32, #tpu.memory_space<vmem>>, vector<16x128xf32>
    tpu.vector_store %arg7[%c0_141, %c0_142], %324 {strides = array<i32>} : memref<16x128xf32, #tpu.memory_space<vmem>>, vector<16x128xf32>,
    %327 = arith.truncf %324 : vector<16x128xf32> to vector<16x128xbf16>
    %328 = arith.index_cast %291 : i32 to index
    %c0_143 = arith.constant 0 : index
    %329 = vector.load %arg5[%328, %c0_143] : memref<256x128xbf16, #tpu.memory_space<vmem>>, vector<16x128xbf16>
    tpu.vector_store %arg5[%328, %c0_143], %327 {strides = array<i32>} : memref<256x128xbf16, #tpu.memory_space<vmem>>, vector<16x128xbf16>,
    %c8_i32 = arith.constant 8 : i32
    %c16_i32_144 = arith.constant 16 : i32
    %330 = arith.muli %c8_i32, %c16_i32_144 : i32
    %331 = tpu.assume_multiple %330, 16 : i32
    %332 = arith.index_cast %331 : i32 to index
    %c0_145 = arith.constant 0 : index
    %333 = vector.load %arg6[%332, %c0_145] : memref<256x512xf32, #tpu.memory_space<vmem>>, vector<16x512xf32>
    %c0_146 = arith.constant 0 : index
    %c0_147 = arith.constant 0 : index
    %334 = vector.load %arg7[%c0_146, %c0_147] : memref<16x128xf32, #tpu.memory_space<vmem>>, vector<16x128xf32>
    %335 = arith.truncf %334 : vector<16x128xf32> to vector<16x128xbf16>
    %c0_148 = arith.constant 0 : index
    %c0_149 = arith.constant 0 : index
    %336 = vector.load %arg3[%c0_148, %c0_149] : memref<128x512xbf16, #tpu.memory_space<vmem>>, vector<128x512xbf16>
    %cst_150 = arith.constant dense<0.000000e+00> : vector<16x512xf32>
    %337 = tpu.matmul %335, %336, %cst_150 {dimension_numbers = #tpu.dot_dimension_numbers<[1], [0], [0], [1], [0, 0, 1, 1], [], []>} : vector<16x128xbf16>, vector<128x512xbf16>, vector<16x512xf32> -> vector<16x512xf32>
    %338 = arith.addf %333, %337 : vector<16x512xf32>
    %339 = vector.extract_strided_slice %338 {offsets = [0, 0], sizes = [16, 128], strides = [1, 1]} : vector<16x512xf32> to vector<16x128xf32>
    %340 = arith.negf %339 : vector<16x128xf32>
    %341 = math.exp %340 : vector<16x128xf32>
    %cst_151 = arith.constant 1.000000e+00 : f32
    %342 = vector.broadcast %cst_151 : f32 to vector<16x128xf32>
    %343 = arith.addf %342, %341 : vector<16x128xf32>
    %344 = arith.divf %342, %343 : vector<16x128xf32>
    %345 = vector.extract_strided_slice %338 {offsets = [0, 128], sizes = [16, 128], strides = [1, 1]} : vector<16x512xf32> to vector<16x128xf32>
    %346 = arith.negf %345 : vector<16x128xf32>
    %347 = math.exp %346 : vector<16x128xf32>
    %cst_152 = arith.constant 1.000000e+00 : f32
    %348 = vector.broadcast %cst_152 : f32 to vector<16x128xf32>
    %349 = arith.addf %348, %347 : vector<16x128xf32>
    %350 = arith.divf %348, %349 : vector<16x128xf32>
    %351 = vector.extract_strided_slice %338 {offsets = [0, 256], sizes = [16, 128], strides = [1, 1]} : vector<16x512xf32> to vector<16x128xf32>
    %352 = math.tanh %351 : vector<16x128xf32>
    %353 = vector.extract_strided_slice %338 {offsets = [0, 384], sizes = [16, 128], strides = [1, 1]} : vector<16x512xf32> to vector<16x128xf32>
    %354 = arith.negf %353 : vector<16x128xf32>
    %355 = math.exp %354 : vector<16x128xf32>
    %cst_153 = arith.constant 1.000000e+00 : f32
    %356 = vector.broadcast %cst_153 : f32 to vector<16x128xf32>
    %357 = arith.addf %356, %355 : vector<16x128xf32>
    %358 = arith.divf %356, %357 : vector<16x128xf32>
    %c0_154 = arith.constant 0 : index
    %c0_155 = arith.constant 0 : index
    %359 = vector.load %arg8[%c0_154, %c0_155] : memref<16x128xf32, #tpu.memory_space<vmem>>, vector<16x128xf32>
    %360 = arith.mulf %350, %359 : vector<16x128xf32>
    %361 = arith.mulf %344, %352 : vector<16x128xf32>
    %362 = arith.addf %360, %361 : vector<16x128xf32>
    %363 = math.tanh %362 : vector<16x128xf32>
    %364 = arith.mulf %358, %363 : vector<16x128xf32>
    %c0_156 = arith.constant 0 : index
    %c0_157 = arith.constant 0 : index
    %365 = vector.load %arg8[%c0_156, %c0_157] : memref<16x128xf32, #tpu.memory_space<vmem>>, vector<16x128xf32>
    tpu.vector_store %arg8[%c0_156, %c0_157], %362 {strides = array<i32>} : memref<16x128xf32, #tpu.memory_space<vmem>>, vector<16x128xf32>,
    %c0_158 = arith.constant 0 : index
    %c0_159 = arith.constant 0 : index
    %366 = vector.load %arg7[%c0_158, %c0_159] : memref<16x128xf32, #tpu.memory_space<vmem>>, vector<16x128xf32>
    tpu.vector_store %arg7[%c0_158, %c0_159], %364 {strides = array<i32>} : memref<16x128xf32, #tpu.memory_space<vmem>>, vector<16x128xf32>,
    %367 = arith.truncf %364 : vector<16x128xf32> to vector<16x128xbf16>
    %368 = arith.index_cast %331 : i32 to index
    %c0_160 = arith.constant 0 : index
    %369 = vector.load %arg5[%368, %c0_160] : memref<256x128xbf16, #tpu.memory_space<vmem>>, vector<16x128xbf16>
    tpu.vector_store %arg5[%368, %c0_160], %367 {strides = array<i32>} : memref<256x128xbf16, #tpu.memory_space<vmem>>, vector<16x128xbf16>,
    %c9_i32 = arith.constant 9 : i32
    %c16_i32_161 = arith.constant 16 : i32
    %370 = arith.muli %c9_i32, %c16_i32_161 : i32
    %371 = tpu.assume_multiple %370, 16 : i32
    %372 = arith.index_cast %371 : i32 to index
    %c0_162 = arith.constant 0 : index
    %373 = vector.load %arg6[%372, %c0_162] : memref<256x512xf32, #tpu.memory_space<vmem>>, vector<16x512xf32>
    %c0_163 = arith.constant 0 : index
    %c0_164 = arith.constant 0 : index
    %374 = vector.load %arg7[%c0_163, %c0_164] : memref<16x128xf32, #tpu.memory_space<vmem>>, vector<16x128xf32>
    %375 = arith.truncf %374 : vector<16x128xf32> to vector<16x128xbf16>
    %c0_165 = arith.constant 0 : index
    %c0_166 = arith.constant 0 : index
    %376 = vector.load %arg3[%c0_165, %c0_166] : memref<128x512xbf16, #tpu.memory_space<vmem>>, vector<128x512xbf16>
    %cst_167 = arith.constant dense<0.000000e+00> : vector<16x512xf32>
    %377 = tpu.matmul %375, %376, %cst_167 {dimension_numbers = #tpu.dot_dimension_numbers<[1], [0], [0], [1], [0, 0, 1, 1], [], []>} : vector<16x128xbf16>, vector<128x512xbf16>, vector<16x512xf32> -> vector<16x512xf32>
    %378 = arith.addf %373, %377 : vector<16x512xf32>
    %379 = vector.extract_strided_slice %378 {offsets = [0, 0], sizes = [16, 128], strides = [1, 1]} : vector<16x512xf32> to vector<16x128xf32>
    %380 = arith.negf %379 : vector<16x128xf32>
    %381 = math.exp %380 : vector<16x128xf32>
    %cst_168 = arith.constant 1.000000e+00 : f32
    %382 = vector.broadcast %cst_168 : f32 to vector<16x128xf32>
    %383 = arith.addf %382, %381 : vector<16x128xf32>
    %384 = arith.divf %382, %383 : vector<16x128xf32>
    %385 = vector.extract_strided_slice %378 {offsets = [0, 128], sizes = [16, 128], strides = [1, 1]} : vector<16x512xf32> to vector<16x128xf32>
    %386 = arith.negf %385 : vector<16x128xf32>
    %387 = math.exp %386 : vector<16x128xf32>
    %cst_169 = arith.constant 1.000000e+00 : f32
    %388 = vector.broadcast %cst_169 : f32 to vector<16x128xf32>
    %389 = arith.addf %388, %387 : vector<16x128xf32>
    %390 = arith.divf %388, %389 : vector<16x128xf32>
    %391 = vector.extract_strided_slice %378 {offsets = [0, 256], sizes = [16, 128], strides = [1, 1]} : vector<16x512xf32> to vector<16x128xf32>
    %392 = math.tanh %391 : vector<16x128xf32>
    %393 = vector.extract_strided_slice %378 {offsets = [0, 384], sizes = [16, 128], strides = [1, 1]} : vector<16x512xf32> to vector<16x128xf32>
    %394 = arith.negf %393 : vector<16x128xf32>
    %395 = math.exp %394 : vector<16x128xf32>
    %cst_170 = arith.constant 1.000000e+00 : f32
    %396 = vector.broadcast %cst_170 : f32 to vector<16x128xf32>
    %397 = arith.addf %396, %395 : vector<16x128xf32>
    %398 = arith.divf %396, %397 : vector<16x128xf32>
    %c0_171 = arith.constant 0 : index
    %c0_172 = arith.constant 0 : index
    %399 = vector.load %arg8[%c0_171, %c0_172] : memref<16x128xf32, #tpu.memory_space<vmem>>, vector<16x128xf32>
    %400 = arith.mulf %390, %399 : vector<16x128xf32>
    %401 = arith.mulf %384, %392 : vector<16x128xf32>
    %402 = arith.addf %400, %401 : vector<16x128xf32>
    %403 = math.tanh %402 : vector<16x128xf32>
    %404 = arith.mulf %398, %403 : vector<16x128xf32>
    %c0_173 = arith.constant 0 : index
    %c0_174 = arith.constant 0 : index
    %405 = vector.load %arg8[%c0_173, %c0_174] : memref<16x128xf32, #tpu.memory_space<vmem>>, vector<16x128xf32>
    tpu.vector_store %arg8[%c0_173, %c0_174], %402 {strides = array<i32>} : memref<16x128xf32, #tpu.memory_space<vmem>>, vector<16x128xf32>,
    %c0_175 = arith.constant 0 : index
    %c0_176 = arith.constant 0 : index
    %406 = vector.load %arg7[%c0_175, %c0_176] : memref<16x128xf32, #tpu.memory_space<vmem>>, vector<16x128xf32>
    tpu.vector_store %arg7[%c0_175, %c0_176], %404 {strides = array<i32>} : memref<16x128xf32, #tpu.memory_space<vmem>>, vector<16x128xf32>,
    %407 = arith.truncf %404 : vector<16x128xf32> to vector<16x128xbf16>
    %408 = arith.index_cast %371 : i32 to index
    %c0_177 = arith.constant 0 : index
    %409 = vector.load %arg5[%408, %c0_177] : memref<256x128xbf16, #tpu.memory_space<vmem>>, vector<16x128xbf16>
    tpu.vector_store %arg5[%408, %c0_177], %407 {strides = array<i32>} : memref<256x128xbf16, #tpu.memory_space<vmem>>, vector<16x128xbf16>,
    %c10_i32 = arith.constant 10 : i32
    %c16_i32_178 = arith.constant 16 : i32
    %410 = arith.muli %c10_i32, %c16_i32_178 : i32
    %411 = tpu.assume_multiple %410, 16 : i32
    %412 = arith.index_cast %411 : i32 to index
    %c0_179 = arith.constant 0 : index
    %413 = vector.load %arg6[%412, %c0_179] : memref<256x512xf32, #tpu.memory_space<vmem>>, vector<16x512xf32>
    %c0_180 = arith.constant 0 : index
    %c0_181 = arith.constant 0 : index
    %414 = vector.load %arg7[%c0_180, %c0_181] : memref<16x128xf32, #tpu.memory_space<vmem>>, vector<16x128xf32>
    %415 = arith.truncf %414 : vector<16x128xf32> to vector<16x128xbf16>
    %c0_182 = arith.constant 0 : index
    %c0_183 = arith.constant 0 : index
    %416 = vector.load %arg3[%c0_182, %c0_183] : memref<128x512xbf16, #tpu.memory_space<vmem>>, vector<128x512xbf16>
    %cst_184 = arith.constant dense<0.000000e+00> : vector<16x512xf32>
    %417 = tpu.matmul %415, %416, %cst_184 {dimension_numbers = #tpu.dot_dimension_numbers<[1], [0], [0], [1], [0, 0, 1, 1], [], []>} : vector<16x128xbf16>, vector<128x512xbf16>, vector<16x512xf32> -> vector<16x512xf32>
    %418 = arith.addf %413, %417 : vector<16x512xf32>
    %419 = vector.extract_strided_slice %418 {offsets = [0, 0], sizes = [16, 128], strides = [1, 1]} : vector<16x512xf32> to vector<16x128xf32>
    %420 = arith.negf %419 : vector<16x128xf32>
    %421 = math.exp %420 : vector<16x128xf32>
    %cst_185 = arith.constant 1.000000e+00 : f32
    %422 = vector.broadcast %cst_185 : f32 to vector<16x128xf32>
    %423 = arith.addf %422, %421 : vector<16x128xf32>
    %424 = arith.divf %422, %423 : vector<16x128xf32>
    %425 = vector.extract_strided_slice %418 {offsets = [0, 128], sizes = [16, 128], strides = [1, 1]} : vector<16x512xf32> to vector<16x128xf32>
    %426 = arith.negf %425 : vector<16x128xf32>
    %427 = math.exp %426 : vector<16x128xf32>
    %cst_186 = arith.constant 1.000000e+00 : f32
    %428 = vector.broadcast %cst_186 : f32 to vector<16x128xf32>
    %429 = arith.addf %428, %427 : vector<16x128xf32>
    %430 = arith.divf %428, %429 : vector<16x128xf32>
    %431 = vector.extract_strided_slice %418 {offsets = [0, 256], sizes = [16, 128], strides = [1, 1]} : vector<16x512xf32> to vector<16x128xf32>
    %432 = math.tanh %431 : vector<16x128xf32>
    %433 = vector.extract_strided_slice %418 {offsets = [0, 384], sizes = [16, 128], strides = [1, 1]} : vector<16x512xf32> to vector<16x128xf32>
    %434 = arith.negf %433 : vector<16x128xf32>
    %435 = math.exp %434 : vector<16x128xf32>
    %cst_187 = arith.constant 1.000000e+00 : f32
    %436 = vector.broadcast %cst_187 : f32 to vector<16x128xf32>
    %437 = arith.addf %436, %435 : vector<16x128xf32>
    %438 = arith.divf %436, %437 : vector<16x128xf32>
    %c0_188 = arith.constant 0 : index
    %c0_189 = arith.constant 0 : index
    %439 = vector.load %arg8[%c0_188, %c0_189] : memref<16x128xf32, #tpu.memory_space<vmem>>, vector<16x128xf32>
    %440 = arith.mulf %430, %439 : vector<16x128xf32>
    %441 = arith.mulf %424, %432 : vector<16x128xf32>
    %442 = arith.addf %440, %441 : vector<16x128xf32>
    %443 = math.tanh %442 : vector<16x128xf32>
    %444 = arith.mulf %438, %443 : vector<16x128xf32>
    %c0_190 = arith.constant 0 : index
    %c0_191 = arith.constant 0 : index
    %445 = vector.load %arg8[%c0_190, %c0_191] : memref<16x128xf32, #tpu.memory_space<vmem>>, vector<16x128xf32>
    tpu.vector_store %arg8[%c0_190, %c0_191], %442 {strides = array<i32>} : memref<16x128xf32, #tpu.memory_space<vmem>>, vector<16x128xf32>,
    %c0_192 = arith.constant 0 : index
    %c0_193 = arith.constant 0 : index
    %446 = vector.load %arg7[%c0_192, %c0_193] : memref<16x128xf32, #tpu.memory_space<vmem>>, vector<16x128xf32>
    tpu.vector_store %arg7[%c0_192, %c0_193], %444 {strides = array<i32>} : memref<16x128xf32, #tpu.memory_space<vmem>>, vector<16x128xf32>,
    %447 = arith.truncf %444 : vector<16x128xf32> to vector<16x128xbf16>
    %448 = arith.index_cast %411 : i32 to index
    %c0_194 = arith.constant 0 : index
    %449 = vector.load %arg5[%448, %c0_194] : memref<256x128xbf16, #tpu.memory_space<vmem>>, vector<16x128xbf16>
    tpu.vector_store %arg5[%448, %c0_194], %447 {strides = array<i32>} : memref<256x128xbf16, #tpu.memory_space<vmem>>, vector<16x128xbf16>,
    %c11_i32 = arith.constant 11 : i32
    %c16_i32_195 = arith.constant 16 : i32
    %450 = arith.muli %c11_i32, %c16_i32_195 : i32
    %451 = tpu.assume_multiple %450, 16 : i32
    %452 = arith.index_cast %451 : i32 to index
    %c0_196 = arith.constant 0 : index
    %453 = vector.load %arg6[%452, %c0_196] : memref<256x512xf32, #tpu.memory_space<vmem>>, vector<16x512xf32>
    %c0_197 = arith.constant 0 : index
    %c0_198 = arith.constant 0 : index
    %454 = vector.load %arg7[%c0_197, %c0_198] : memref<16x128xf32, #tpu.memory_space<vmem>>, vector<16x128xf32>
    %455 = arith.truncf %454 : vector<16x128xf32> to vector<16x128xbf16>
    %c0_199 = arith.constant 0 : index
    %c0_200 = arith.constant 0 : index
    %456 = vector.load %arg3[%c0_199, %c0_200] : memref<128x512xbf16, #tpu.memory_space<vmem>>, vector<128x512xbf16>
    %cst_201 = arith.constant dense<0.000000e+00> : vector<16x512xf32>
    %457 = tpu.matmul %455, %456, %cst_201 {dimension_numbers = #tpu.dot_dimension_numbers<[1], [0], [0], [1], [0, 0, 1, 1], [], []>} : vector<16x128xbf16>, vector<128x512xbf16>, vector<16x512xf32> -> vector<16x512xf32>
    %458 = arith.addf %453, %457 : vector<16x512xf32>
    %459 = vector.extract_strided_slice %458 {offsets = [0, 0], sizes = [16, 128], strides = [1, 1]} : vector<16x512xf32> to vector<16x128xf32>
    %460 = arith.negf %459 : vector<16x128xf32>
    %461 = math.exp %460 : vector<16x128xf32>
    %cst_202 = arith.constant 1.000000e+00 : f32
    %462 = vector.broadcast %cst_202 : f32 to vector<16x128xf32>
    %463 = arith.addf %462, %461 : vector<16x128xf32>
    %464 = arith.divf %462, %463 : vector<16x128xf32>
    %465 = vector.extract_strided_slice %458 {offsets = [0, 128], sizes = [16, 128], strides = [1, 1]} : vector<16x512xf32> to vector<16x128xf32>
    %466 = arith.negf %465 : vector<16x128xf32>
    %467 = math.exp %466 : vector<16x128xf32>
    %cst_203 = arith.constant 1.000000e+00 : f32
    %468 = vector.broadcast %cst_203 : f32 to vector<16x128xf32>
    %469 = arith.addf %468, %467 : vector<16x128xf32>
    %470 = arith.divf %468, %469 : vector<16x128xf32>
    %471 = vector.extract_strided_slice %458 {offsets = [0, 256], sizes = [16, 128], strides = [1, 1]} : vector<16x512xf32> to vector<16x128xf32>
    %472 = math.tanh %471 : vector<16x128xf32>
    %473 = vector.extract_strided_slice %458 {offsets = [0, 384], sizes = [16, 128], strides = [1, 1]} : vector<16x512xf32> to vector<16x128xf32>
    %474 = arith.negf %473 : vector<16x128xf32>
    %475 = math.exp %474 : vector<16x128xf32>
    %cst_204 = arith.constant 1.000000e+00 : f32
    %476 = vector.broadcast %cst_204 : f32 to vector<16x128xf32>
    %477 = arith.addf %476, %475 : vector<16x128xf32>
    %478 = arith.divf %476, %477 : vector<16x128xf32>
    %c0_205 = arith.constant 0 : index
    %c0_206 = arith.constant 0 : index
    %479 = vector.load %arg8[%c0_205, %c0_206] : memref<16x128xf32, #tpu.memory_space<vmem>>, vector<16x128xf32>
    %480 = arith.mulf %470, %479 : vector<16x128xf32>
    %481 = arith.mulf %464, %472 : vector<16x128xf32>
    %482 = arith.addf %480, %481 : vector<16x128xf32>
    %483 = math.tanh %482 : vector<16x128xf32>
    %484 = arith.mulf %478, %483 : vector<16x128xf32>
    %c0_207 = arith.constant 0 : index
    %c0_208 = arith.constant 0 : index
    %485 = vector.load %arg8[%c0_207, %c0_208] : memref<16x128xf32, #tpu.memory_space<vmem>>, vector<16x128xf32>
    tpu.vector_store %arg8[%c0_207, %c0_208], %482 {strides = array<i32>} : memref<16x128xf32, #tpu.memory_space<vmem>>, vector<16x128xf32>,
    %c0_209 = arith.constant 0 : index
    %c0_210 = arith.constant 0 : index
    %486 = vector.load %arg7[%c0_209, %c0_210] : memref<16x128xf32, #tpu.memory_space<vmem>>, vector<16x128xf32>
    tpu.vector_store %arg7[%c0_209, %c0_210], %484 {strides = array<i32>} : memref<16x128xf32, #tpu.memory_space<vmem>>, vector<16x128xf32>,
    %487 = arith.truncf %484 : vector<16x128xf32> to vector<16x128xbf16>
    %488 = arith.index_cast %451 : i32 to index
    %c0_211 = arith.constant 0 : index
    %489 = vector.load %arg5[%488, %c0_211] : memref<256x128xbf16, #tpu.memory_space<vmem>>, vector<16x128xbf16>
    tpu.vector_store %arg5[%488, %c0_211], %487 {strides = array<i32>} : memref<256x128xbf16, #tpu.memory_space<vmem>>, vector<16x128xbf16>,
    %c12_i32 = arith.constant 12 : i32
    %c16_i32_212 = arith.constant 16 : i32
    %490 = arith.muli %c12_i32, %c16_i32_212 : i32
    %491 = tpu.assume_multiple %490, 16 : i32
    %492 = arith.index_cast %491 : i32 to index
    %c0_213 = arith.constant 0 : index
    %493 = vector.load %arg6[%492, %c0_213] : memref<256x512xf32, #tpu.memory_space<vmem>>, vector<16x512xf32>
    %c0_214 = arith.constant 0 : index
    %c0_215 = arith.constant 0 : index
    %494 = vector.load %arg7[%c0_214, %c0_215] : memref<16x128xf32, #tpu.memory_space<vmem>>, vector<16x128xf32>
    %495 = arith.truncf %494 : vector<16x128xf32> to vector<16x128xbf16>
    %c0_216 = arith.constant 0 : index
    %c0_217 = arith.constant 0 : index
    %496 = vector.load %arg3[%c0_216, %c0_217] : memref<128x512xbf16, #tpu.memory_space<vmem>>, vector<128x512xbf16>
    %cst_218 = arith.constant dense<0.000000e+00> : vector<16x512xf32>
    %497 = tpu.matmul %495, %496, %cst_218 {dimension_numbers = #tpu.dot_dimension_numbers<[1], [0], [0], [1], [0, 0, 1, 1], [], []>} : vector<16x128xbf16>, vector<128x512xbf16>, vector<16x512xf32> -> vector<16x512xf32>
    %498 = arith.addf %493, %497 : vector<16x512xf32>
    %499 = vector.extract_strided_slice %498 {offsets = [0, 0], sizes = [16, 128], strides = [1, 1]} : vector<16x512xf32> to vector<16x128xf32>
    %500 = arith.negf %499 : vector<16x128xf32>
    %501 = math.exp %500 : vector<16x128xf32>
    %cst_219 = arith.constant 1.000000e+00 : f32
    %502 = vector.broadcast %cst_219 : f32 to vector<16x128xf32>
    %503 = arith.addf %502, %501 : vector<16x128xf32>
    %504 = arith.divf %502, %503 : vector<16x128xf32>
    %505 = vector.extract_strided_slice %498 {offsets = [0, 128], sizes = [16, 128], strides = [1, 1]} : vector<16x512xf32> to vector<16x128xf32>
    %506 = arith.negf %505 : vector<16x128xf32>
    %507 = math.exp %506 : vector<16x128xf32>
    %cst_220 = arith.constant 1.000000e+00 : f32
    %508 = vector.broadcast %cst_220 : f32 to vector<16x128xf32>
    %509 = arith.addf %508, %507 : vector<16x128xf32>
    %510 = arith.divf %508, %509 : vector<16x128xf32>
    %511 = vector.extract_strided_slice %498 {offsets = [0, 256], sizes = [16, 128], strides = [1, 1]} : vector<16x512xf32> to vector<16x128xf32>
    %512 = math.tanh %511 : vector<16x128xf32>
    %513 = vector.extract_strided_slice %498 {offsets = [0, 384], sizes = [16, 128], strides = [1, 1]} : vector<16x512xf32> to vector<16x128xf32>
    %514 = arith.negf %513 : vector<16x128xf32>
    %515 = math.exp %514 : vector<16x128xf32>
    %cst_221 = arith.constant 1.000000e+00 : f32
    %516 = vector.broadcast %cst_221 : f32 to vector<16x128xf32>
    %517 = arith.addf %516, %515 : vector<16x128xf32>
    %518 = arith.divf %516, %517 : vector<16x128xf32>
    %c0_222 = arith.constant 0 : index
    %c0_223 = arith.constant 0 : index
    %519 = vector.load %arg8[%c0_222, %c0_223] : memref<16x128xf32, #tpu.memory_space<vmem>>, vector<16x128xf32>
    %520 = arith.mulf %510, %519 : vector<16x128xf32>
    %521 = arith.mulf %504, %512 : vector<16x128xf32>
    %522 = arith.addf %520, %521 : vector<16x128xf32>
    %523 = math.tanh %522 : vector<16x128xf32>
    %524 = arith.mulf %518, %523 : vector<16x128xf32>
    %c0_224 = arith.constant 0 : index
    %c0_225 = arith.constant 0 : index
    %525 = vector.load %arg8[%c0_224, %c0_225] : memref<16x128xf32, #tpu.memory_space<vmem>>, vector<16x128xf32>
    tpu.vector_store %arg8[%c0_224, %c0_225], %522 {strides = array<i32>} : memref<16x128xf32, #tpu.memory_space<vmem>>, vector<16x128xf32>,
    %c0_226 = arith.constant 0 : index
    %c0_227 = arith.constant 0 : index
    %526 = vector.load %arg7[%c0_226, %c0_227] : memref<16x128xf32, #tpu.memory_space<vmem>>, vector<16x128xf32>
    tpu.vector_store %arg7[%c0_226, %c0_227], %524 {strides = array<i32>} : memref<16x128xf32, #tpu.memory_space<vmem>>, vector<16x128xf32>,
    %527 = arith.truncf %524 : vector<16x128xf32> to vector<16x128xbf16>
    %528 = arith.index_cast %491 : i32 to index
    %c0_228 = arith.constant 0 : index
    %529 = vector.load %arg5[%528, %c0_228] : memref<256x128xbf16, #tpu.memory_space<vmem>>, vector<16x128xbf16>
    tpu.vector_store %arg5[%528, %c0_228], %527 {strides = array<i32>} : memref<256x128xbf16, #tpu.memory_space<vmem>>, vector<16x128xbf16>,
    %c13_i32 = arith.constant 13 : i32
    %c16_i32_229 = arith.constant 16 : i32
    %530 = arith.muli %c13_i32, %c16_i32_229 : i32
    %531 = tpu.assume_multiple %530, 16 : i32
    %532 = arith.index_cast %531 : i32 to index
    %c0_230 = arith.constant 0 : index
    %533 = vector.load %arg6[%532, %c0_230] : memref<256x512xf32, #tpu.memory_space<vmem>>, vector<16x512xf32>
    %c0_231 = arith.constant 0 : index
    %c0_232 = arith.constant 0 : index
    %534 = vector.load %arg7[%c0_231, %c0_232] : memref<16x128xf32, #tpu.memory_space<vmem>>, vector<16x128xf32>
    %535 = arith.truncf %534 : vector<16x128xf32> to vector<16x128xbf16>
    %c0_233 = arith.constant 0 : index
    %c0_234 = arith.constant 0 : index
    %536 = vector.load %arg3[%c0_233, %c0_234] : memref<128x512xbf16, #tpu.memory_space<vmem>>, vector<128x512xbf16>
    %cst_235 = arith.constant dense<0.000000e+00> : vector<16x512xf32>
    %537 = tpu.matmul %535, %536, %cst_235 {dimension_numbers = #tpu.dot_dimension_numbers<[1], [0], [0], [1], [0, 0, 1, 1], [], []>} : vector<16x128xbf16>, vector<128x512xbf16>, vector<16x512xf32> -> vector<16x512xf32>
    %538 = arith.addf %533, %537 : vector<16x512xf32>
    %539 = vector.extract_strided_slice %538 {offsets = [0, 0], sizes = [16, 128], strides = [1, 1]} : vector<16x512xf32> to vector<16x128xf32>
    %540 = arith.negf %539 : vector<16x128xf32>
    %541 = math.exp %540 : vector<16x128xf32>
    %cst_236 = arith.constant 1.000000e+00 : f32
    %542 = vector.broadcast %cst_236 : f32 to vector<16x128xf32>
    %543 = arith.addf %542, %541 : vector<16x128xf32>
    %544 = arith.divf %542, %543 : vector<16x128xf32>
    %545 = vector.extract_strided_slice %538 {offsets = [0, 128], sizes = [16, 128], strides = [1, 1]} : vector<16x512xf32> to vector<16x128xf32>
    %546 = arith.negf %545 : vector<16x128xf32>
    %547 = math.exp %546 : vector<16x128xf32>
    %cst_237 = arith.constant 1.000000e+00 : f32
    %548 = vector.broadcast %cst_237 : f32 to vector<16x128xf32>
    %549 = arith.addf %548, %547 : vector<16x128xf32>
    %550 = arith.divf %548, %549 : vector<16x128xf32>
    %551 = vector.extract_strided_slice %538 {offsets = [0, 256], sizes = [16, 128], strides = [1, 1]} : vector<16x512xf32> to vector<16x128xf32>
    %552 = math.tanh %551 : vector<16x128xf32>
    %553 = vector.extract_strided_slice %538 {offsets = [0, 384], sizes = [16, 128], strides = [1, 1]} : vector<16x512xf32> to vector<16x128xf32>
    %554 = arith.negf %553 : vector<16x128xf32>
    %555 = math.exp %554 : vector<16x128xf32>
    %cst_238 = arith.constant 1.000000e+00 : f32
    %556 = vector.broadcast %cst_238 : f32 to vector<16x128xf32>
    %557 = arith.addf %556, %555 : vector<16x128xf32>
    %558 = arith.divf %556, %557 : vector<16x128xf32>
    %c0_239 = arith.constant 0 : index
    %c0_240 = arith.constant 0 : index
    %559 = vector.load %arg8[%c0_239, %c0_240] : memref<16x128xf32, #tpu.memory_space<vmem>>, vector<16x128xf32>
    %560 = arith.mulf %550, %559 : vector<16x128xf32>
    %561 = arith.mulf %544, %552 : vector<16x128xf32>
    %562 = arith.addf %560, %561 : vector<16x128xf32>
    %563 = math.tanh %562 : vector<16x128xf32>
    %564 = arith.mulf %558, %563 : vector<16x128xf32>
    %c0_241 = arith.constant 0 : index
    %c0_242 = arith.constant 0 : index
    %565 = vector.load %arg8[%c0_241, %c0_242] : memref<16x128xf32, #tpu.memory_space<vmem>>, vector<16x128xf32>
    tpu.vector_store %arg8[%c0_241, %c0_242], %562 {strides = array<i32>} : memref<16x128xf32, #tpu.memory_space<vmem>>, vector<16x128xf32>,
    %c0_243 = arith.constant 0 : index
    %c0_244 = arith.constant 0 : index
    %566 = vector.load %arg7[%c0_243, %c0_244] : memref<16x128xf32, #tpu.memory_space<vmem>>, vector<16x128xf32>
    tpu.vector_store %arg7[%c0_243, %c0_244], %564 {strides = array<i32>} : memref<16x128xf32, #tpu.memory_space<vmem>>, vector<16x128xf32>,
    %567 = arith.truncf %564 : vector<16x128xf32> to vector<16x128xbf16>
    %568 = arith.index_cast %531 : i32 to index
    %c0_245 = arith.constant 0 : index
    %569 = vector.load %arg5[%568, %c0_245] : memref<256x128xbf16, #tpu.memory_space<vmem>>, vector<16x128xbf16>
    tpu.vector_store %arg5[%568, %c0_245], %567 {strides = array<i32>} : memref<256x128xbf16, #tpu.memory_space<vmem>>, vector<16x128xbf16>,
    %c14_i32 = arith.constant 14 : i32
    %c16_i32_246 = arith.constant 16 : i32
    %570 = arith.muli %c14_i32, %c16_i32_246 : i32
    %571 = tpu.assume_multiple %570, 16 : i32
    %572 = arith.index_cast %571 : i32 to index
    %c0_247 = arith.constant 0 : index
    %573 = vector.load %arg6[%572, %c0_247] : memref<256x512xf32, #tpu.memory_space<vmem>>, vector<16x512xf32>
    %c0_248 = arith.constant 0 : index
    %c0_249 = arith.constant 0 : index
    %574 = vector.load %arg7[%c0_248, %c0_249] : memref<16x128xf32, #tpu.memory_space<vmem>>, vector<16x128xf32>
    %575 = arith.truncf %574 : vector<16x128xf32> to vector<16x128xbf16>
    %c0_250 = arith.constant 0 : index
    %c0_251 = arith.constant 0 : index
    %576 = vector.load %arg3[%c0_250, %c0_251] : memref<128x512xbf16, #tpu.memory_space<vmem>>, vector<128x512xbf16>
    %cst_252 = arith.constant dense<0.000000e+00> : vector<16x512xf32>
    %577 = tpu.matmul %575, %576, %cst_252 {dimension_numbers = #tpu.dot_dimension_numbers<[1], [0], [0], [1], [0, 0, 1, 1], [], []>} : vector<16x128xbf16>, vector<128x512xbf16>, vector<16x512xf32> -> vector<16x512xf32>
    %578 = arith.addf %573, %577 : vector<16x512xf32>
    %579 = vector.extract_strided_slice %578 {offsets = [0, 0], sizes = [16, 128], strides = [1, 1]} : vector<16x512xf32> to vector<16x128xf32>
    %580 = arith.negf %579 : vector<16x128xf32>
    %581 = math.exp %580 : vector<16x128xf32>
    %cst_253 = arith.constant 1.000000e+00 : f32
    %582 = vector.broadcast %cst_253 : f32 to vector<16x128xf32>
    %583 = arith.addf %582, %581 : vector<16x128xf32>
    %584 = arith.divf %582, %583 : vector<16x128xf32>
    %585 = vector.extract_strided_slice %578 {offsets = [0, 128], sizes = [16, 128], strides = [1, 1]} : vector<16x512xf32> to vector<16x128xf32>
    %586 = arith.negf %585 : vector<16x128xf32>
    %587 = math.exp %586 : vector<16x128xf32>
    %cst_254 = arith.constant 1.000000e+00 : f32
    %588 = vector.broadcast %cst_254 : f32 to vector<16x128xf32>
    %589 = arith.addf %588, %587 : vector<16x128xf32>
    %590 = arith.divf %588, %589 : vector<16x128xf32>
    %591 = vector.extract_strided_slice %578 {offsets = [0, 256], sizes = [16, 128], strides = [1, 1]} : vector<16x512xf32> to vector<16x128xf32>
    %592 = math.tanh %591 : vector<16x128xf32>
    %593 = vector.extract_strided_slice %578 {offsets = [0, 384], sizes = [16, 128], strides = [1, 1]} : vector<16x512xf32> to vector<16x128xf32>
    %594 = arith.negf %593 : vector<16x128xf32>
    %595 = math.exp %594 : vector<16x128xf32>
    %cst_255 = arith.constant 1.000000e+00 : f32
    %596 = vector.broadcast %cst_255 : f32 to vector<16x128xf32>
    %597 = arith.addf %596, %595 : vector<16x128xf32>
    %598 = arith.divf %596, %597 : vector<16x128xf32>
    %c0_256 = arith.constant 0 : index
    %c0_257 = arith.constant 0 : index
    %599 = vector.load %arg8[%c0_256, %c0_257] : memref<16x128xf32, #tpu.memory_space<vmem>>, vector<16x128xf32>
    %600 = arith.mulf %590, %599 : vector<16x128xf32>
    %601 = arith.mulf %584, %592 : vector<16x128xf32>
    %602 = arith.addf %600, %601 : vector<16x128xf32>
    %603 = math.tanh %602 : vector<16x128xf32>
    %604 = arith.mulf %598, %603 : vector<16x128xf32>
    %c0_258 = arith.constant 0 : index
    %c0_259 = arith.constant 0 : index
    %605 = vector.load %arg8[%c0_258, %c0_259] : memref<16x128xf32, #tpu.memory_space<vmem>>, vector<16x128xf32>
    tpu.vector_store %arg8[%c0_258, %c0_259], %602 {strides = array<i32>} : memref<16x128xf32, #tpu.memory_space<vmem>>, vector<16x128xf32>,
    %c0_260 = arith.constant 0 : index
    %c0_261 = arith.constant 0 : index
    %606 = vector.load %arg7[%c0_260, %c0_261] : memref<16x128xf32, #tpu.memory_space<vmem>>, vector<16x128xf32>
    tpu.vector_store %arg7[%c0_260, %c0_261], %604 {strides = array<i32>} : memref<16x128xf32, #tpu.memory_space<vmem>>, vector<16x128xf32>,
    %607 = arith.truncf %604 : vector<16x128xf32> to vector<16x128xbf16>
    %608 = arith.index_cast %571 : i32 to index
    %c0_262 = arith.constant 0 : index
    %609 = vector.load %arg5[%608, %c0_262] : memref<256x128xbf16, #tpu.memory_space<vmem>>, vector<16x128xbf16>
    tpu.vector_store %arg5[%608, %c0_262], %607 {strides = array<i32>} : memref<256x128xbf16, #tpu.memory_space<vmem>>, vector<16x128xbf16>,
    %c15_i32 = arith.constant 15 : i32
    %c16_i32_263 = arith.constant 16 : i32
    %610 = arith.muli %c15_i32, %c16_i32_263 : i32
    %611 = tpu.assume_multiple %610, 16 : i32
    %612 = arith.index_cast %611 : i32 to index
    %c0_264 = arith.constant 0 : index
    %613 = vector.load %arg6[%612, %c0_264] : memref<256x512xf32, #tpu.memory_space<vmem>>, vector<16x512xf32>
    %c0_265 = arith.constant 0 : index
    %c0_266 = arith.constant 0 : index
    %614 = vector.load %arg7[%c0_265, %c0_266] : memref<16x128xf32, #tpu.memory_space<vmem>>, vector<16x128xf32>
    %615 = arith.truncf %614 : vector<16x128xf32> to vector<16x128xbf16>
    %c0_267 = arith.constant 0 : index
    %c0_268 = arith.constant 0 : index
    %616 = vector.load %arg3[%c0_267, %c0_268] : memref<128x512xbf16, #tpu.memory_space<vmem>>, vector<128x512xbf16>
    %cst_269 = arith.constant dense<0.000000e+00> : vector<16x512xf32>
    %617 = tpu.matmul %615, %616, %cst_269 {dimension_numbers = #tpu.dot_dimension_numbers<[1], [0], [0], [1], [0, 0, 1, 1], [], []>} : vector<16x128xbf16>, vector<128x512xbf16>, vector<16x512xf32> -> vector<16x512xf32>
    %618 = arith.addf %613, %617 : vector<16x512xf32>
    %619 = vector.extract_strided_slice %618 {offsets = [0, 0], sizes = [16, 128], strides = [1, 1]} : vector<16x512xf32> to vector<16x128xf32>
    %620 = arith.negf %619 : vector<16x128xf32>
    %621 = math.exp %620 : vector<16x128xf32>
    %cst_270 = arith.constant 1.000000e+00 : f32
    %622 = vector.broadcast %cst_270 : f32 to vector<16x128xf32>
    %623 = arith.addf %622, %621 : vector<16x128xf32>
    %624 = arith.divf %622, %623 : vector<16x128xf32>
    %625 = vector.extract_strided_slice %618 {offsets = [0, 128], sizes = [16, 128], strides = [1, 1]} : vector<16x512xf32> to vector<16x128xf32>
    %626 = arith.negf %625 : vector<16x128xf32>
    %627 = math.exp %626 : vector<16x128xf32>
    %cst_271 = arith.constant 1.000000e+00 : f32
    %628 = vector.broadcast %cst_271 : f32 to vector<16x128xf32>
    %629 = arith.addf %628, %627 : vector<16x128xf32>
    %630 = arith.divf %628, %629 : vector<16x128xf32>
    %631 = vector.extract_strided_slice %618 {offsets = [0, 256], sizes = [16, 128], strides = [1, 1]} : vector<16x512xf32> to vector<16x128xf32>
    %632 = math.tanh %631 : vector<16x128xf32>
    %633 = vector.extract_strided_slice %618 {offsets = [0, 384], sizes = [16, 128], strides = [1, 1]} : vector<16x512xf32> to vector<16x128xf32>
    %634 = arith.negf %633 : vector<16x128xf32>
    %635 = math.exp %634 : vector<16x128xf32>
    %cst_272 = arith.constant 1.000000e+00 : f32
    %636 = vector.broadcast %cst_272 : f32 to vector<16x128xf32>
    %637 = arith.addf %636, %635 : vector<16x128xf32>
    %638 = arith.divf %636, %637 : vector<16x128xf32>
    %c0_273 = arith.constant 0 : index
    %c0_274 = arith.constant 0 : index
    %639 = vector.load %arg8[%c0_273, %c0_274] : memref<16x128xf32, #tpu.memory_space<vmem>>, vector<16x128xf32>
    %640 = arith.mulf %630, %639 : vector<16x128xf32>
    %641 = arith.mulf %624, %632 : vector<16x128xf32>
    %642 = arith.addf %640, %641 : vector<16x128xf32>
    %643 = math.tanh %642 : vector<16x128xf32>
    %644 = arith.mulf %638, %643 : vector<16x128xf32>
    %c0_275 = arith.constant 0 : index
    %c0_276 = arith.constant 0 : index
    %645 = vector.load %arg8[%c0_275, %c0_276] : memref<16x128xf32, #tpu.memory_space<vmem>>, vector<16x128xf32>
    tpu.vector_store %arg8[%c0_275, %c0_276], %642 {strides = array<i32>} : memref<16x128xf32, #tpu.memory_space<vmem>>, vector<16x128xf32>,
    %c0_277 = arith.constant 0 : index
    %c0_278 = arith.constant 0 : index
    %646 = vector.load %arg7[%c0_277, %c0_278] : memref<16x128xf32, #tpu.memory_space<vmem>>, vector<16x128xf32>
    tpu.vector_store %arg7[%c0_277, %c0_278], %644 {strides = array<i32>} : memref<16x128xf32, #tpu.memory_space<vmem>>, vector<16x128xf32>,
    %647 = arith.truncf %644 : vector<16x128xf32> to vector<16x128xbf16>
    %648 = arith.index_cast %611 : i32 to index
    %c0_279 = arith.constant 0 : index
    %649 = vector.load %arg5[%648, %c0_279] : memref<256x128xbf16, #tpu.memory_space<vmem>>, vector<16x128xbf16>
    tpu.vector_store %arg5[%648, %c0_279], %647 {strides = array<i32>} : memref<256x128xbf16, #tpu.memory_space<vmem>>, vector<16x128xbf16>,
    %c16_i32_280 = arith.constant 16 : i32
    return
  }
  func.func @transform_0(%arg0: i32) -> (i32, i32) {
    %c0_i32 = arith.constant 0 : i32
    %c0_i32_0 = arith.constant 0 : i32
    return %arg0, %c0_i32 : i32, i32
  }
  func.func @transform_1(%arg0: i32) -> (i32, i32) {
    %c0_i32 = arith.constant 0 : i32
    %c0_i32_0 = arith.constant 0 : i32
    %c0_i32_1 = arith.constant 0 : i32
    return %c0_i32, %c0_i32_0 : i32, i32
  }
  func.func @transform_2(%arg0: i32) -> (i32, i32) {
    %c0_i32 = arith.constant 0 : i32
    %c0_i32_0 = arith.constant 0 : i32
    %c0_i32_1 = arith.constant 0 : i32
    return %c0_i32, %c0_i32_0 : i32, i32
  }
  func.func @transform_3(%arg0: i32) -> (i32, i32) {
    %c0_i32 = arith.constant 0 : i32
    %c0_i32_0 = arith.constant 0 : i32
    %c0_i32_1 = arith.constant 0 : i32
    return %c0_i32, %c0_i32_0 : i32, i32
  }
  func.func @transform_4(%arg0: i32) -> (i32, i32) {
    %c0_i32 = arith.constant 0 : i32
    %c0_i32_0 = arith.constant 0 : i32
    return %arg0, %c0_i32 : i32, i32
  }
}

</mosaic_0001>

<llo_original>
// kernel: tpu_custom_call.1
$region0: #{tpu_custom_call.1}
  #allocation0 [shape = 'u32[]', space=smem, size = 0x4, offset = 0x4, fixed_abs, tag = 'smem constant byte address 0x4 - core index']
  #allocation1 [shape = 'u32[72,128]{1,0:T(1,128)}', space=vmem, size = 0x9000, scoped, tag = 'internal scratch']
  #allocation2 [shape = 'f32[256,512]{1,0:T(8,128)}', space=vmem, size = 0x80000, scoped, tag = 'scratch operand']
  #allocation3 [shape = 'f32[16,128]{1,0:T(8,128)}', space=vmem, size = 0x2000, scoped, tag = 'scratch operand']
  #allocation4 [shape = 'f32[16,128]{1,0:T(8,128)}', space=vmem, size = 0x2000, scoped, tag = 'scratch operand']
  %s0 = inlined_call_operand.hbm [shape: bf16[256,128], index: 0, kind: input, shape index: {}]
  %s1 = inlined_call_operand.hbm [shape: bf16[128,512], index: 1, kind: input, shape index: {}]
  %s2 = inlined_call_operand.hbm [shape: bf16[128,512], index: 2, kind: input, shape index: {}]
  %s3 = inlined_call_operand.hbm [shape: f32[1,512], index: 3, kind: input, shape index: {}]
  %s4 = inlined_call_operand.hbm [shape: bf16[256,128], index: 4, kind: output, shape index: {}]
  %s5 = sld [smem:[#allocation0]]
  $region46: #{tpu_custom_call.1} parent=0
    _
  %s7 = ssub.s32 1, %s5
  %s8 = scalar_select 0, %s7, %s5
  $region1: #{tpu_custom_call.1} parent=0
    #allocation5 [shape = 'u8[65536]{0}', space=vmem, size = 0x10000, scoped, tag = 'input window, operand 0, single buffered']
    #allocation6 [shape = 's32[1]{0}', space=sflag, size = 0x4, scoped, tag = 'scoped memory for tpu_custom_call.1']
    #allocation7 [shape = 's32[1]{0}', space=sflag, size = 0x4, scoped, tag = 'scoped memory for tpu_custom_call.1']
    #allocation8 [shape = 'u8[131072]{0}', space=vmem, size = 0x20000, scoped, tag = 'input window, operand 1, single buffered']
    #allocation9 [shape = 's32[1]{0}', space=sflag, size = 0x4, scoped, tag = 'scoped memory for tpu_custom_call.1']
    #allocation10 [shape = 'u8[131072]{0}', space=vmem, size = 0x20000, scoped, tag = 'input window, operand 2, single buffered']
    #allocation11 [shape = 'u8[2048]{0}', space=vmem, size = 0x800, scoped, tag = 'input window, operand 3, single buffered']
    #allocation12 [shape = 's32[1]{0}', space=sflag, size = 0x4, scoped, tag = 'scoped memory for tpu_custom_call.1']
    #allocation13 [shape = 'u8[65536]{0}', space=vmem, size = 0x10000, scoped, tag = 'output window, operand 0, single buffered']
    %9 = vsyncpa [#allocation6], 0
    %10 = vsyncpa [#allocation9], 0
    %11 = vsyncpa [#allocation12], 0
    %12 = vsyncpa [#allocation7], 0
    // Predicated region
    $region2: #{tpu_custom_call.1} parent=1 // pred_check
      _
    $region3: #{tpu_custom_call.1} parent=1 // pred_check_branch
      %14 = sbr.rel (0) target = $region5
    $region4: #{tpu_custom_call.1} parent=1 // pred_region
      %16 = vsyncadd [#allocation6], 0
      %s17 = sshll.u32 %s0, 4
      %s18 = int_to_ptr.hbm [resolvable:$true] %s17
      %s19 = sshll.u32 [#allocation5], 4
      %s20 = int_to_ptr.vmem [resolvable:$true] %s19
      %25 = dma.hbm_to_vmem [thread:$0]  %s18, 2048, %s20, [#allocation6], 64, 64, 4
    $region5: #{tpu_custom_call.1} parent=1 // pred_fallthru
      _
    // Predicated region
    $region6: #{tpu_custom_call.1} parent=1 // pred_check
      _
    $region7: #{tpu_custom_call.1} parent=1 // pred_check_branch
      %27 = sbr.rel (0) target = $region9
    $region8: #{tpu_custom_call.1} parent=1 // pred_region
      %29 = vsyncadd [#allocation9], 0
      %s30 = sshll.u32 %s1, 4
      %s31 = int_to_ptr.hbm [resolvable:$true] %s30
      %s32 = sshll.u32 [#allocation8], 4
      %s33 = int_to_ptr.vmem [resolvable:$true] %s32
      %38 = dma.hbm_to_vmem [thread:$0]  %s31, 4096, %s33, [#allocation9], 256, 256, 16
    $region9: #{tpu_custom_call.1} parent=1 // pred_fallthru
      _
    // Predicated region
    $region10: #{tpu_custom_call.1} parent=1 // pred_check
      _
    $region11: #{tpu_custom_call.1} parent=1 // pred_check_branch
      %40 = sbr.rel (0) target = $region13
    $region12: #{tpu_custom_call.1} parent=1 // pred_region
      %42 = vsyncadd [#allocation9], 0
      %s43 = sshll.u32 %s2, 4
      %s44 = int_to_ptr.hbm [resolvable:$true] %s43
      %s45 = sshll.u32 [#allocation10], 4
      %s46 = int_to_ptr.vmem [resolvable:$true] %s45
      %51 = dma.hbm_to_vmem [thread:$0]  %s44, 4096, %s46, [#allocation9], 256, 256, 16
    $region13: #{tpu_custom_call.1} parent=1 // pred_fallthru
      _
    // Predicated region
    $region14: #{tpu_custom_call.1} parent=1 // pred_check
      _
    $region15: #{tpu_custom_call.1} parent=1 // pred_check_branch
      %53 = sbr.rel (0) target = $region17
    $region16: #{tpu_custom_call.1} parent=1 // pred_region
      %55 = vsyncadd [#allocation12], 0
      %s57 = sshll.u32 %s3, 4
      %s58 = int_to_ptr.hbm [resolvable:$true] %s57
      %s59 = sshll.u32 [#allocation11], 4
      %s60 = int_to_ptr.vmem [resolvable:$true] %s59
      %62 = dma.hbm_to_vmem [thread:$0]  %s58, 64, %s60, [#allocation12]
    $region17: #{tpu_custom_call.1} parent=1 // pred_fallthru
      _
    // Predicated region
    $region18: #{tpu_custom_call.1} parent=1 // pred_check
      _
    $region19: #{tpu_custom_call.1} parent=1 // pred_check_branch
      %64 = sbr.rel (0) target = $region21
    $region20: #{tpu_custom_call.1} parent=1 // pred_region
      %66 = dma.done [#allocation6], 2048
    $region21: #{tpu_custom_call.1} parent=1 // pred_fallthru
      _
    // Predicated region
    $region22: #{tpu_custom_call.1} parent=1 // pred_check
      _
    $region23: #{tpu_custom_call.1} parent=1 // pred_check_branch
      %68 = sbr.rel (0) target = $region25
    $region24: #{tpu_custom_call.1} parent=1 // pred_region
      %70 = dma.done [#allocation9], 4096
    $region25: #{tpu_custom_call.1} parent=1 // pred_fallthru
      _
    // Predicated region
    $region26: #{tpu_custom_call.1} parent=1 // pred_check
      _
    $region27: #{tpu_custom_call.1} parent=1 // pred_check_branch
      %72 = sbr.rel (0) target = $region29
    $region28: #{tpu_custom_call.1} parent=1 // pred_region
      %74 = dma.done [#allocation9], 4096
    $region29: #{tpu_custom_call.1} parent=1 // pred_fallthru
      _
    // Predicated region
    $region30: #{tpu_custom_call.1} parent=1 // pred_check
      _
    $region31: #{tpu_custom_call.1} parent=1 // pred_check_branch
      %76 = sbr.rel (0) target = $region33
    $region32: #{tpu_custom_call.1} parent=1 // pred_region
      %78 = dma.done [#allocation12], 64
    $region33: #{tpu_custom_call.1} parent=1 // pred_fallthru
      _
    %p79 = scmp.eq.s32.totalorder 0, 0
    // Predicated region
    $region34: #{tpu_custom_call.1} parent=1 // pred_check
      %p80 = pneg %p79
    $region35: #{tpu_custom_call.1} parent=1 // pred_check_branch
      %82 = sbr.rel (%p80) target = $region37
    $region36: #{tpu_custom_call.1} parent=1 // pred_region
      %83 = vst [vmem:[#allocation3] sm:$0xff] 0.0
      %84 = vst [vmem:[#allocation3 + $0x8] sm:$0xff] 0.0
      %85 = vst [vmem:[#allocation4] sm:$0xff] 0.0
      %86 = vst [vmem:[#allocation4 + $0x8] sm:$0xff] 0.0
    $region37: #{tpu_custom_call.1} parent=1 // pred_fallthru
      _
    %v87 = vld [vmem:[#allocation5] sm:$0xf]
    %v88 = vld [vmem:[#allocation5 + $0x4] sm:$0xf]
    %v89 = vld [vmem:[#allocation5 + $0x8] sm:$0xf]
    %v90 = vld [vmem:[#allocation5 + $0xc] sm:$0xf]
    %v91 = vld [vmem:[#allocation5 + $0x10] sm:$0xf]
    %v92 = vld [vmem:[#allocation5 + $0x14] sm:$0xf]
    %v93 = vld [vmem:[#allocation5 + $0x18] sm:$0xf]
    %v94 = vld [vmem:[#allocation5 + $0x1c] sm:$0xf]
    %v95 = vld [vmem:[#allocation5 + $0x20] sm:$0xf]
    %v96 = vld [vmem:[#allocation5 + $0x24] sm:$0xf]
    %v97 = vld [vmem:[#allocation5 + $0x28] sm:$0xf]
    %v98 = vld [vmem:[#allocation5 + $0x2c] sm:$0xf]
    %v99 = vld [vmem:[#allocation5 + $0x30] sm:$0xf]
    %v100 = vld [vmem:[#allocation5 + $0x34] sm:$0xf]
    %v101 = vld [vmem:[#allocation5 + $0x38] sm:$0xf]
    %v102 = vld [vmem:[#allocation5 + $0x3c] sm:$0xf]
    %v103 = vld [vmem:[#allocation5 + $0x40] sm:$0xf]
    %v104 = vld [vmem:[#allocation5 + $0x44] sm:$0xf]
    %v105 = vld [vmem:[#allocation5 + $0x48] sm:$0xf]
    %v106 = vld [vmem:[#allocation5 + $0x4c] sm:$0xf]
    %v107 = vld [vmem:[#allocation5 + $0x50] sm:$0xf]
    %v108 = vld [vmem:[#allocation5 + $0x54] sm:$0xf]
    %v109 = vld [vmem:[#allocation5 + $0x58] sm:$0xf]
    %v110 = vld [vmem:[#allocation5 + $0x5c] sm:$0xf]
    %v111 = vld [vmem:[#allocation5 + $0x60] sm:$0xf]
    %v112 = vld [vmem:[#allocation5 + $0x64] sm:$0xf]
    %v113 = vld [vmem:[#allocation5 + $0x68] sm:$0xf]
    %v114 = vld [vmem:[#allocation5 + $0x6c] sm:$0xf]
    %v115 = vld [vmem:[#allocation5 + $0x70] sm:$0xf]
    %v116 = vld [vmem:[#allocation5 + $0x74] sm:$0xf]
    %v117 = vld [vmem:[#allocation5 + $0x78] sm:$0xf]
    %v118 = vld [vmem:[#allocation5 + $0x7c] sm:$0xf]
    %v119 = vld [vmem:[#allocation8] sm:$0xff]
    %v120 = vld [vmem:[#allocation8 + $0x8] sm:$0xff]
    %v121 = vld [vmem:[#allocation8 + $0x10] sm:$0xff]
    %v122 = vld [vmem:[#allocation8 + $0x18] sm:$0xff]
    %v123 = vld [vmem:[#allocation8 + $0x20] sm:$0xff]
    %v124 = vld [vmem:[#allocation8 + $0x28] sm:$0xff]
    %v125 = vld [vmem:[#allocation8 + $0x30] sm:$0xff]
    %v126 = vld [vmem:[#allocation8 + $0x38] sm:$0xff]
    %v127 = vld [vmem:[#allocation8 + $0x40] sm:$0xff]
    %v128 = vld [vmem:[#allocation8 + $0x48] sm:$0xff]
    %v129 = vld [vmem:[#allocation8 + $0x50] sm:$0xff]
    %v130 = vld [vmem:[#allocation8 + $0x58] sm:$0xff]
    %v131 = vld [vmem:[#allocation8 + $0x60] sm:$0xff]
    %v132 = vld [vmem:[#allocation8 + $0x68] sm:$0xff]
    %v133 = vld [vmem:[#allocation8 + $0x70] sm:$0xff]
    %v134 = vld [vmem:[#allocation8 + $0x78] sm:$0xff]
    %v135 = vld [vmem:[#allocation8 + $0x80] sm:$0xff]
    %v136 = vld [vmem:[#allocation8 + $0x88] sm:$0xff]
    %v137 = vld [vmem:[#allocation8 + $0x90] sm:$0xff]
    %v138 = vld [vmem:[#allocation8 + $0x98] sm:$0xff]
    %v139 = vld [vmem:[#allocation8 + $0xa0] sm:$0xff]
    %v140 = vld [vmem:[#allocation8 + $0xa8] sm:$0xff]
    %v141 = vld [vmem:[#allocation8 + $0xb0] sm:$0xff]
    %v142 = vld [vmem:[#allocation8 + $0xb8] sm:$0xff]
    %v143 = vld [vmem:[#allocation8 + $0xc0] sm:$0xff]
    %v144 = vld [vmem:[#allocation8 + $0xc8] sm:$0xff]
    %v145 = vld [vmem:[#allocation8 + $0xd0] sm:$0xff]
    %v146 = vld [vmem:[#allocation8 + $0xd8] sm:$0xff]
    %v147 = vld [vmem:[#allocation8 + $0xe0] sm:$0xff]
    %v148 = vld [vmem:[#allocation8 + $0xe8] sm:$0xff]
    %v149 = vld [vmem:[#allocation8 + $0xf0] sm:$0xff]
    %v150 = vld [vmem:[#allocation8 + $0xf8] sm:$0xff]
    %v151 = vld [vmem:[#allocation11] sm:$0xf]
    %v153 = vperm.slane %v151, 0
    %v154 = vperm.slane %v151, 1
    %v155 = vperm.slane %v151, 2
    %v156 = vperm.slane %v151, 3
    %v193 = vunpack.c.l.b16 %v87
    %v194 = vunpack.c.l.b16 %v88
    %v195 = vunpack.c.l.b16 %v89
    %v196 = vunpack.c.l.b16 %v90
    %v197 = vunpack.c.l.b16 %v91
    %v198 = vunpack.c.l.b16 %v92
    %v199 = vunpack.c.l.b16 %v93
    %v200 = vunpack.c.l.b16 %v94
    %v201 = vunpack.c.l.b16 %v95
    %v202 = vunpack.c.l.b16 %v96
    %v203 = vunpack.c.l.b16 %v97
    %v204 = vunpack.c.l.b16 %v98
    %v205 = vunpack.c.l.b16 %v99
    %v206 = vunpack.c.l.b16 %v100
    %v207 = vunpack.c.l.b16 %v101
    %v208 = vunpack.c.l.b16 %v102
    %v209 = vunpack.c.l.b16 %v103
    %v210 = vunpack.c.l.b16 %v104
    %v211 = vunpack.c.l.b16 %v105
    %v212 = vunpack.c.l.b16 %v106
    %v213 = vunpack.c.l.b16 %v107
    %v214 = vunpack.c.l.b16 %v108
    %v215 = vunpack.c.l.b16 %v109
    %v216 = vunpack.c.l.b16 %v110
    %v217 = vunpack.c.l.b16 %v111
    %v218 = vunpack.c.l.b16 %v112
    %v219 = vunpack.c.l.b16 %v113
    %v220 = vunpack.c.l.b16 %v114
    %v221 = vunpack.c.l.b16 %v115
    %v222 = vunpack.c.l.b16 %v116
    %v223 = vunpack.c.l.b16 %v117
    %v224 = vunpack.c.l.b16 %v118
    %v225 = vpack.c.b16 %v194, %v193
    %v226 = vpack.c.b16 %v196, %v195
    %v227 = vpack.c.b16 %v198, %v197
    %v228 = vpack.c.b16 %v200, %v199
    %v229 = vpack.c.b16 %v202, %v201
    %v230 = vpack.c.b16 %v204, %v203
    %v231 = vpack.c.b16 %v206, %v205
    %v232 = vpack.c.b16 %v208, %v207
    %v233 = vpack.c.b16 %v210, %v209
    %v234 = vpack.c.b16 %v212, %v211
    %v235 = vpack.c.b16 %v214, %v213
    %v236 = vpack.c.b16 %v216, %v215
    %v237 = vpack.c.b16 %v218, %v217
    %v238 = vpack.c.b16 %v220, %v219
    %v239 = vpack.c.b16 %v222, %v221
    %v240 = vpack.c.b16 %v224, %v223
    %v289 = vunpack.c.l.b16 %v119
    %v290 = vunpack.c.h.b16 %v119
    %v291 = vunpack.c.l.b16 %v120
    %v292 = vunpack.c.h.b16 %v120
    %v293 = vunpack.c.l.b16 %v121
    %v294 = vunpack.c.h.b16 %v121
    %v295 = vunpack.c.l.b16 %v122
    %v296 = vunpack.c.h.b16 %v122
    %v297 = vunpack.c.l.b16 %v123
    %v298 = vunpack.c.h.b16 %v123
    %v299 = vunpack.c.l.b16 %v124
    %v300 = vunpack.c.h.b16 %v124
    %v301 = vunpack.c.l.b16 %v125
    %v302 = vunpack.c.h.b16 %v125
    %v303 = vunpack.c.l.b16 %v126
    %v304 = vunpack.c.h.b16 %v126
    %v305 = vunpack.c.l.b16 %v127
    %v306 = vunpack.c.h.b16 %v127
    %v307 = vunpack.c.l.b16 %v128
    %v308 = vunpack.c.h.b16 %v128
    %v309 = vunpack.c.l.b16 %v129
    %v310 = vunpack.c.h.b16 %v129
    %v311 = vunpack.c.l.b16 %v130
    %v312 = vunpack.c.h.b16 %v130
    %v313 = vunpack.c.l.b16 %v131
    %v314 = vunpack.c.h.b16 %v131
    %v315 = vunpack.c.l.b16 %v132
    %v316 = vunpack.c.h.b16 %v132
    %v317 = vunpack.c.l.b16 %v133
    %v318 = vunpack.c.h.b16 %v133
    %v319 = vunpack.c.l.b16 %v134
    %v320 = vunpack.c.h.b16 %v134
    %v321 = vunpack.c.l.b16 %v135
    %v322 = vunpack.c.h.b16 %v135
    %v323 = vunpack.c.l.b16 %v136
    %v324 = vunpack.c.h.b16 %v136
    %v325 = vunpack.c.l.b16 %v137
    %v326 = vunpack.c.h.b16 %v137
    %v327 = vunpack.c.l.b16 %v138
    %v328 = vunpack.c.h.b16 %v138
    %v329 = vunpack.c.l.b16 %v139
    %v330 = vunpack.c.h.b16 %v139
    %v331 = vunpack.c.l.b16 %v140
    %v332 = vunpack.c.h.b16 %v140
    %v333 = vunpack.c.l.b16 %v141
    %v334 = vunpack.c.h.b16 %v141
    %v335 = vunpack.c.l.b16 %v142
    %v336 = vunpack.c.h.b16 %v142
    %v337 = vunpack.c.l.b16 %v143
    %v338 = vunpack.c.h.b16 %v143
    %v339 = vunpack.c.l.b16 %v144
    %v340 = vunpack.c.h.b16 %v144
    %v341 = vunpack.c.l.b16 %v145
    %v342 = vunpack.c.h.b16 %v145
    %v343 = vunpack.c.l.b16 %v146
    %v344 = vunpack.c.h.b16 %v146
    %v345 = vunpack.c.l.b16 %v147
    %v346 = vunpack.c.h.b16 %v147
    %v347 = vunpack.c.l.b16 %v148
    %v348 = vunpack.c.h.b16 %v148
    %v349 = vunpack.c.l.b16 %v149
    %v350 = vunpack.c.h.b16 %v149
    %v351 = vunpack.c.l.b16 %v150
    %v352 = vunpack.c.h.b16 %v150
    %v353 = vpack.c.b16 %v293, %v289
    %v354 = vpack.c.b16 %v294, %v290
    %v355 = vpack.c.b16 %v295, %v291
    %v356 = vpack.c.b16 %v296, %v292
    %v357 = vpack.c.b16 %v301, %v297
    %v358 = vpack.c.b16 %v302, %v298
    %v359 = vpack.c.b16 %v303, %v299
    %v360 = vpack.c.b16 %v304, %v300
    %v361 = vpack.c.b16 %v309, %v305
    %v362 = vpack.c.b16 %v310, %v306
    %v363 = vpack.c.b16 %v311, %v307
    %v364 = vpack.c.b16 %v312, %v308
    %v365 = vpack.c.b16 %v317, %v313
    %v366 = vpack.c.b16 %v318, %v314
    %v367 = vpack.c.b16 %v319, %v315
    %v368 = vpack.c.b16 %v320, %v316
    %v369 = vpack.c.b16 %v325, %v321
    %v370 = vpack.c.b16 %v326, %v322
    %v371 = vpack.c.b16 %v327, %v323
    %v372 = vpack.c.b16 %v328, %v324
    %v373 = vpack.c.b16 %v333, %v329
    %v374 = vpack.c.b16 %v334, %v330
    %v375 = vpack.c.b16 %v335, %v331
    %v376 = vpack.c.b16 %v336, %v332
    %v377 = vpack.c.b16 %v341, %v337
    %v378 = vpack.c.b16 %v342, %v338
    %v379 = vpack.c.b16 %v343, %v339
    %v380 = vpack.c.b16 %v344, %v340
    %v381 = vpack.c.b16 %v349, %v345
    %v382 = vpack.c.b16 %v350, %v346
    %v383 = vpack.c.b16 %v351, %v347
    %v384 = vpack.c.b16 %v352, %v348
    %417 = vmatpush.bf16.msra.mxu0 %v381
    %418 = vmatpush.bf16.msra.mxu0 %v377
    %419 = vmatpush.bf16.msra.mxu0 %v373
    %420 = vmatpush.bf16.msra.mxu0 %v369
    %421 = vmatpush.bf16.msra.mxu0 %v365
    %422 = vmatpush.bf16.msra.mxu0 %v361
    %423 = vmatpush.bf16.msra.mxu0 %v357
    %424 = vmatpush.bf16.msra.mxu0 %v353
    %425 = vmatmul.bf16.gmra.mxu0 %v225
    %v426 = vpop.f32.mrf.mxu0
    %v427 = vadd.f32 %v153, %v426
    %v428 = vpop.f32.mrf.mxu0
    %v429 = vadd.f32 %v153, %v428
    %430 = vmatmul.bf16.gmra.mxu0 %v226
    %v431 = vpop.f32.mrf.mxu0
    %v432 = vadd.f32 %v153, %v431
    %v433 = vpop.f32.mrf.mxu0
    %v434 = vadd.f32 %v153, %v433
    %435 = vmatmul.bf16.gmra.mxu0 %v227
    %v436 = vpop.f32.mrf.mxu0
    %v437 = vadd.f32 %v153, %v436
    %v438 = vpop.f32.mrf.mxu0
    %v439 = vadd.f32 %v153, %v438
    %440 = vmatmul.bf16.gmra.mxu0 %v228
    %v441 = vpop.f32.mrf.mxu0
    %v442 = vadd.f32 %v153, %v441
    %v443 = vpop.f32.mrf.mxu0
    %v444 = vadd.f32 %v153, %v443
    %445 = vmatmul.bf16.gmra.mxu0 %v229
    %v446 = vpop.f32.mrf.mxu0
    %v447 = vadd.f32 %v153, %v446
    %v448 = vpop.f32.mrf.mxu0
    %v449 = vadd.f32 %v153, %v448
    %450 = vmatmul.bf16.gmra.mxu0 %v230
    %v451 = vpop.f32.mrf.mxu0
    %v452 = vadd.f32 %v153, %v451
    %v453 = vpop.f32.mrf.mxu0
    %v454 = vadd.f32 %v153, %v453
    %455 = vmatmul.bf16.gmra.mxu0 %v231
    %v456 = vpop.f32.mrf.mxu0
    %v457 = vadd.f32 %v153, %v456
    %v458 = vpop.f32.mrf.mxu0
    %v459 = vadd.f32 %v153, %v458
    %460 = vmatmul.bf16.gmra.mxu0 %v232
    %v461 = vpop.f32.mrf.mxu0
    %v462 = vadd.f32 %v153, %v461
    %v463 = vpop.f32.mrf.mxu0
    %v464 = vadd.f32 %v153, %v463
    %465 = vmatmul.bf16.gmra.mxu0 %v233
    %v466 = vpop.f32.mrf.mxu0
    %v467 = vadd.f32 %v153, %v466
    %v468 = vpop.f32.mrf.mxu0
    %v469 = vadd.f32 %v153, %v468
    %470 = vmatmul.bf16.gmra.mxu0 %v234
    %v471 = vpop.f32.mrf.mxu0
    %v472 = vadd.f32 %v153, %v471
    %v473 = vpop.f32.mrf.mxu0
    %v474 = vadd.f32 %v153, %v473
    %475 = vmatmul.bf16.gmra.mxu0 %v235
    %v476 = vpop.f32.mrf.mxu0
    %v477 = vadd.f32 %v153, %v476
    %v478 = vpop.f32.mrf.mxu0
    %v479 = vadd.f32 %v153, %v478
    %480 = vmatmul.bf16.gmra.mxu0 %v236
    %v481 = vpop.f32.mrf.mxu0
    %v482 = vadd.f32 %v153, %v481
    %v483 = vpop.f32.mrf.mxu0
    %v484 = vadd.f32 %v153, %v483
    %485 = vmatmul.bf16.gmra.mxu0 %v237
    %v486 = vpop.f32.mrf.mxu0
    %v487 = vadd.f32 %v153, %v486
    %v488 = vpop.f32.mrf.mxu0
    %v489 = vadd.f32 %v153, %v488
    %490 = vmatmul.bf16.gmra.mxu0 %v238
    %v491 = vpop.f32.mrf.mxu0
    %v492 = vadd.f32 %v153, %v491
    %v493 = vpop.f32.mrf.mxu0
    %v494 = vadd.f32 %v153, %v493
    %495 = vmatmul.bf16.gmra.mxu0 %v239
    %v496 = vpop.f32.mrf.mxu0
    %v497 = vadd.f32 %v153, %v496
    %v498 = vpop.f32.mrf.mxu0
    %v499 = vadd.f32 %v153, %v498
    %500 = vmatmul.bf16.gmra.mxu0 %v240
    %v501 = vpop.f32.mrf.mxu0
    %v502 = vadd.f32 %v153, %v501
    %v503 = vpop.f32.mrf.mxu0
    %v504 = vadd.f32 %v153, %v503
    %505 = vdwg.mxu0
    %506 = vmatpush.bf16.msra.mxu0 %v382
    %507 = vmatpush.bf16.msra.mxu0 %v378
    %508 = vmatpush.bf16.msra.mxu0 %v374
    %509 = vmatpush.bf16.msra.mxu0 %v370
    %510 = vmatpush.bf16.msra.mxu0 %v366
    %511 = vmatpush.bf16.msra.mxu0 %v362
    %512 = vmatpush.bf16.msra.mxu0 %v358
    %513 = vmatpush.bf16.msra.mxu0 %v354
    %514 = vmatmul.bf16.gmra.mxu0 %v225
    %v515 = vpop.f32.mrf.mxu0
    %v516 = vadd.f32 %v154, %v515
    %v517 = vpop.f32.mrf.mxu0
    %v518 = vadd.f32 %v154, %v517
    %519 = vmatmul.bf16.gmra.mxu0 %v226
    %v520 = vpop.f32.mrf.mxu0
    %v521 = vadd.f32 %v154, %v520
    %v522 = vpop.f32.mrf.mxu0
    %v523 = vadd.f32 %v154, %v522
    %524 = vmatmul.bf16.gmra.mxu0 %v227
    %v525 = vpop.f32.mrf.mxu0
    %v526 = vadd.f32 %v154, %v525
    %v527 = vpop.f32.mrf.mxu0
    %v528 = vadd.f32 %v154, %v527
    %529 = vmatmul.bf16.gmra.mxu0 %v228
    %v530 = vpop.f32.mrf.mxu0
    %v531 = vadd.f32 %v154, %v530
    %v532 = vpop.f32.mrf.mxu0
    %v533 = vadd.f32 %v154, %v532
    %534 = vmatmul.bf16.gmra.mxu0 %v229
    %v535 = vpop.f32.mrf.mxu0
    %v536 = vadd.f32 %v154, %v535
    %v537 = vpop.f32.mrf.mxu0
    %v538 = vadd.f32 %v154, %v537
    %539 = vmatmul.bf16.gmra.mxu0 %v230
    %v540 = vpop.f32.mrf.mxu0
    %v541 = vadd.f32 %v154, %v540
    %v542 = vpop.f32.mrf.mxu0
    %v543 = vadd.f32 %v154, %v542
    %544 = vmatmul.bf16.gmra.mxu0 %v231
    %v545 = vpop.f32.mrf.mxu0
    %v546 = vadd.f32 %v154, %v545
    %v547 = vpop.f32.mrf.mxu0
    %v548 = vadd.f32 %v154, %v547
    %549 = vmatmul.bf16.gmra.mxu0 %v232
    %v550 = vpop.f32.mrf.mxu0
    %v551 = vadd.f32 %v154, %v550
    %v552 = vpop.f32.mrf.mxu0
    %v553 = vadd.f32 %v154, %v552
    %554 = vmatmul.bf16.gmra.mxu0 %v233
    %v555 = vpop.f32.mrf.mxu0
    %v556 = vadd.f32 %v154, %v555
    %v557 = vpop.f32.mrf.mxu0
    %v558 = vadd.f32 %v154, %v557
    %559 = vmatmul.bf16.gmra.mxu0 %v234
    %v560 = vpop.f32.mrf.mxu0
    %v561 = vadd.f32 %v154, %v560
    %v562 = vpop.f32.mrf.mxu0
    %v563 = vadd.f32 %v154, %v562
    %564 = vmatmul.bf16.gmra.mxu0 %v235
    %v565 = vpop.f32.mrf.mxu0
    %v566 = vadd.f32 %v154, %v565
    %v567 = vpop.f32.mrf.mxu0
    %v568 = vadd.f32 %v154, %v567
    %569 = vmatmul.bf16.gmra.mxu0 %v236
    %v570 = vpop.f32.mrf.mxu0
    %v571 = vadd.f32 %v154, %v570
    %v572 = vpop.f32.mrf.mxu0
    %v573 = vadd.f32 %v154, %v572
    %574 = vmatmul.bf16.gmra.mxu0 %v237
    %v575 = vpop.f32.mrf.mxu0
    %v576 = vadd.f32 %v154, %v575
    %v577 = vpop.f32.mrf.mxu0
    %v578 = vadd.f32 %v154, %v577
    %579 = vmatmul.bf16.gmra.mxu0 %v238
    %v580 = vpop.f32.mrf.mxu0
    %v581 = vadd.f32 %v154, %v580
    %v582 = vpop.f32.mrf.mxu0
    %v583 = vadd.f32 %v154, %v582
    %584 = vmatmul.bf16.gmra.mxu0 %v239
    %v585 = vpop.f32.mrf.mxu0
    %v586 = vadd.f32 %v154, %v585
    %v587 = vpop.f32.mrf.mxu0
    %v588 = vadd.f32 %v154, %v587
    %589 = vmatmul.bf16.gmra.mxu0 %v240
    %v590 = vpop.f32.mrf.mxu0
    %v591 = vadd.f32 %v154, %v590
    %v592 = vpop.f32.mrf.mxu0
    %v593 = vadd.f32 %v154, %v592
    %594 = vdwg.mxu0
    %595 = vmatpush.bf16.msra.mxu0 %v383
    %596 = vmatpush.bf16.msra.mxu0 %v379
    %597 = vmatpush.bf16.msra.mxu0 %v375
    %598 = vmatpush.bf16.msra.mxu0 %v371
    %599 = vmatpush.bf16.msra.mxu0 %v367
    %600 = vmatpush.bf16.msra.mxu0 %v363
    %601 = vmatpush.bf16.msra.mxu0 %v359
    %602 = vmatpush.bf16.msra.mxu0 %v355
    %603 = vmatmul.bf16.gmra.mxu0 %v225
    %v604 = vpop.f32.mrf.mxu0
    %v605 = vadd.f32 %v155, %v604
    %v606 = vpop.f32.mrf.mxu0
    %v607 = vadd.f32 %v155, %v606
    %608 = vmatmul.bf16.gmra.mxu0 %v226
    %v609 = vpop.f32.mrf.mxu0
    %v610 = vadd.f32 %v155, %v609
    %v611 = vpop.f32.mrf.mxu0
    %v612 = vadd.f32 %v155, %v611
    %613 = vmatmul.bf16.gmra.mxu0 %v227
    %v614 = vpop.f32.mrf.mxu0
    %v615 = vadd.f32 %v155, %v614
    %v616 = vpop.f32.mrf.mxu0
    %v617 = vadd.f32 %v155, %v616
    %618 = vmatmul.bf16.gmra.mxu0 %v228
    %v619 = vpop.f32.mrf.mxu0
    %v620 = vadd.f32 %v155, %v619
    %v621 = vpop.f32.mrf.mxu0
    %v622 = vadd.f32 %v155, %v621
    %623 = vmatmul.bf16.gmra.mxu0 %v229
    %v624 = vpop.f32.mrf.mxu0
    %v625 = vadd.f32 %v155, %v624
    %v626 = vpop.f32.mrf.mxu0
    %v627 = vadd.f32 %v155, %v626
    %628 = vmatmul.bf16.gmra.mxu0 %v230
    %v629 = vpop.f32.mrf.mxu0
    %v630 = vadd.f32 %v155, %v629
    %v631 = vpop.f32.mrf.mxu0
    %v632 = vadd.f32 %v155, %v631
    %633 = vmatmul.bf16.gmra.mxu0 %v231
    %v634 = vpop.f32.mrf.mxu0
    %v635 = vadd.f32 %v155, %v634
    %v636 = vpop.f32.mrf.mxu0
    %v637 = vadd.f32 %v155, %v636
    %638 = vmatmul.bf16.gmra.mxu0 %v232
    %v639 = vpop.f32.mrf.mxu0
    %v640 = vadd.f32 %v155, %v639
    %v641 = vpop.f32.mrf.mxu0
    %v642 = vadd.f32 %v155, %v641
    %643 = vmatmul.bf16.gmra.mxu0 %v233
    %v644 = vpop.f32.mrf.mxu0
    %v645 = vadd.f32 %v155, %v644
    %v646 = vpop.f32.mrf.mxu0
    %v647 = vadd.f32 %v155, %v646
    %648 = vmatmul.bf16.gmra.mxu0 %v234
    %v649 = vpop.f32.mrf.mxu0
    %v650 = vadd.f32 %v155, %v649
    %v651 = vpop.f32.mrf.mxu0
    %v652 = vadd.f32 %v155, %v651
    %653 = vmatmul.bf16.gmra.mxu0 %v235
    %v654 = vpop.f32.mrf.mxu0
    %v655 = vadd.f32 %v155, %v654
    %v656 = vpop.f32.mrf.mxu0
    %v657 = vadd.f32 %v155, %v656
    %658 = vmatmul.bf16.gmra.mxu0 %v236
    %v659 = vpop.f32.mrf.mxu0
    %v660 = vadd.f32 %v155, %v659
    %v661 = vpop.f32.mrf.mxu0
    %v662 = vadd.f32 %v155, %v661
    %663 = vmatmul.bf16.gmra.mxu0 %v237
    %v664 = vpop.f32.mrf.mxu0
    %v665 = vadd.f32 %v155, %v664
    %v666 = vpop.f32.mrf.mxu0
    %v667 = vadd.f32 %v155, %v666
    %668 = vmatmul.bf16.gmra.mxu0 %v238
    %v669 = vpop.f32.mrf.mxu0
    %v670 = vadd.f32 %v155, %v669
    %v671 = vpop.f32.mrf.mxu0
    %v672 = vadd.f32 %v155, %v671
    %673 = vmatmul.bf16.gmra.mxu0 %v239
    %v674 = vpop.f32.mrf.mxu0
    %v675 = vadd.f32 %v155, %v674
    %v676 = vpop.f32.mrf.mxu0
    %v677 = vadd.f32 %v155, %v676
    %678 = vmatmul.bf16.gmra.mxu0 %v240
    %v679 = vpop.f32.mrf.mxu0
    %v680 = vadd.f32 %v155, %v679
    %v681 = vpop.f32.mrf.mxu0
    %v682 = vadd.f32 %v155, %v681
    %683 = vdwg.mxu0
    %684 = vmatpush.bf16.msra.mxu0 %v384
    %685 = vmatpush.bf16.msra.mxu0 %v380
    %686 = vmatpush.bf16.msra.mxu0 %v376
    %687 = vmatpush.bf16.msra.mxu0 %v372
    %688 = vmatpush.bf16.msra.mxu0 %v368
    %689 = vmatpush.bf16.msra.mxu0 %v364
    %690 = vmatpush.bf16.msra.mxu0 %v360
    %691 = vmatpush.bf16.msra.mxu0 %v356
    %692 = vmatmul.bf16.gmra.mxu0 %v225
    %v693 = vpop.f32.mrf.mxu0
    %v694 = vadd.f32 %v156, %v693
    %v695 = vpop.f32.mrf.mxu0
    %v696 = vadd.f32 %v156, %v695
    %697 = vmatmul.bf16.gmra.mxu0 %v226
    %v698 = vpop.f32.mrf.mxu0
    %v699 = vadd.f32 %v156, %v698
    %v700 = vpop.f32.mrf.mxu0
    %v701 = vadd.f32 %v156, %v700
    %702 = vmatmul.bf16.gmra.mxu0 %v227
    %v703 = vpop.f32.mrf.mxu0
    %v704 = vadd.f32 %v156, %v703
    %v705 = vpop.f32.mrf.mxu0
    %v706 = vadd.f32 %v156, %v705
    %707 = vmatmul.bf16.gmra.mxu0 %v228
    %v708 = vpop.f32.mrf.mxu0
    %v709 = vadd.f32 %v156, %v708
    %v710 = vpop.f32.mrf.mxu0
    %v711 = vadd.f32 %v156, %v710
    %712 = vmatmul.bf16.gmra.mxu0 %v229
    %v713 = vpop.f32.mrf.mxu0
    %v714 = vadd.f32 %v156, %v713
    %v715 = vpop.f32.mrf.mxu0
    %v716 = vadd.f32 %v156, %v715
    %717 = vmatmul.bf16.gmra.mxu0 %v230
    %v718 = vpop.f32.mrf.mxu0
    %v719 = vadd.f32 %v156, %v718
    %v720 = vpop.f32.mrf.mxu0
    %v721 = vadd.f32 %v156, %v720
    %722 = vmatmul.bf16.gmra.mxu0 %v231
    %v723 = vpop.f32.mrf.mxu0
    %v724 = vadd.f32 %v156, %v723
    %v725 = vpop.f32.mrf.mxu0
    %v726 = vadd.f32 %v156, %v725
    %727 = vmatmul.bf16.gmra.mxu0 %v232
    %v728 = vpop.f32.mrf.mxu0
    %v729 = vadd.f32 %v156, %v728
    %v730 = vpop.f32.mrf.mxu0
    %v731 = vadd.f32 %v156, %v730
    %732 = vmatmul.bf16.gmra.mxu0 %v233
    %v733 = vpop.f32.mrf.mxu0
    %v734 = vadd.f32 %v156, %v733
    %v735 = vpop.f32.mrf.mxu0
    %v736 = vadd.f32 %v156, %v735
    %737 = vmatmul.bf16.gmra.mxu0 %v234
    %v738 = vpop.f32.mrf.mxu0
    %v739 = vadd.f32 %v156, %v738
    %v740 = vpop.f32.mrf.mxu0
    %v741 = vadd.f32 %v156, %v740
    %742 = vmatmul.bf16.gmra.mxu0 %v235
    %v743 = vpop.f32.mrf.mxu0
    %v744 = vadd.f32 %v156, %v743
    %v745 = vpop.f32.mrf.mxu0
    %v746 = vadd.f32 %v156, %v745
    %747 = vmatmul.bf16.gmra.mxu0 %v236
    %v748 = vpop.f32.mrf.mxu0
    %v749 = vadd.f32 %v156, %v748
    %v750 = vpop.f32.mrf.mxu0
    %v751 = vadd.f32 %v156, %v750
    %752 = vmatmul.bf16.gmra.mxu0 %v237
    %v753 = vpop.f32.mrf.mxu0
    %v754 = vadd.f32 %v156, %v753
    %v755 = vpop.f32.mrf.mxu0
    %v756 = vadd.f32 %v156, %v755
    %757 = vmatmul.bf16.gmra.mxu0 %v238
    %v758 = vpop.f32.mrf.mxu0
    %v759 = vadd.f32 %v156, %v758
    %v760 = vpop.f32.mrf.mxu0
    %v761 = vadd.f32 %v156, %v760
    %762 = vmatmul.bf16.gmra.mxu0 %v239
    %v763 = vpop.f32.mrf.mxu0
    %v764 = vadd.f32 %v156, %v763
    %v765 = vpop.f32.mrf.mxu0
    %v766 = vadd.f32 %v156, %v765
    %767 = vmatmul.bf16.gmra.mxu0 %v240
    %v768 = vpop.f32.mrf.mxu0
    %v769 = vadd.f32 %v156, %v768
    %v770 = vpop.f32.mrf.mxu0
    %v771 = vadd.f32 %v156, %v770
    %772 = vdwg.mxu0
    %773 = vst [vmem:[#allocation2] sm:$0xff] %v427
    %774 = vst [vmem:[#allocation2 + $0x8] sm:$0xff] %v516
    %775 = vst [vmem:[#allocation2 + $0x10] sm:$0xff] %v605
    %776 = vst [vmem:[#allocation2 + $0x18] sm:$0xff] %v694
    %777 = vst [vmem:[#allocation2 + $0x20] sm:$0xff] %v429
    %778 = vst [vmem:[#allocation2 + $0x28] sm:$0xff] %v518
    %779 = vst [vmem:[#allocation2 + $0x30] sm:$0xff] %v607
    %780 = vst [vmem:[#allocation2 + $0x38] sm:$0xff] %v696
    %781 = vst [vmem:[#allocation2 + $0x40] sm:$0xff] %v432
    %782 = vst [vmem:[#allocation2 + $0x48] sm:$0xff] %v521
    %783 = vst [vmem:[#allocation2 + $0x50] sm:$0xff] %v610
    %784 = vst [vmem:[#allocation2 + $0x58] sm:$0xff] %v699
    %785 = vst [vmem:[#allocation2 + $0x60] sm:$0xff] %v434
    %786 = vst [vmem:[#allocation2 + $0x68] sm:$0xff] %v523
    %787 = vst [vmem:[#allocation2 + $0x70] sm:$0xff] %v612
    %788 = vst [vmem:[#allocation2 + $0x78] sm:$0xff] %v701
    %789 = vst [vmem:[#allocation2 + $0x80] sm:$0xff] %v437
    %790 = vst [vmem:[#allocation2 + $0x88] sm:$0xff] %v526
    %791 = vst [vmem:[#allocation2 + $0x90] sm:$0xff] %v615
    %792 = vst [vmem:[#allocation2 + $0x98] sm:$0xff] %v704
    %793 = vst [vmem:[#allocation2 + $0xa0] sm:$0xff] %v439
    %794 = vst [vmem:[#allocation2 + $0xa8] sm:$0xff] %v528
    %795 = vst [vmem:[#allocation2 + $0xb0] sm:$0xff] %v617
    %796 = vst [vmem:[#allocation2 + $0xb8] sm:$0xff] %v706
    %797 = vst [vmem:[#allocation2 + $0xc0] sm:$0xff] %v442
    %798 = vst [vmem:[#allocation2 + $0xc8] sm:$0xff] %v531
    %799 = vst [vmem:[#allocation2 + $0xd0] sm:$0xff] %v620
    %800 = vst [vmem:[#allocation2 + $0xd8] sm:$0xff] %v709
    %801 = vst [vmem:[#allocation2 + $0xe0] sm:$0xff] %v444
    %802 = vst [vmem:[#allocation2 + $0xe8] sm:$0xff] %v533
    %803 = vst [vmem:[#allocation2 + $0xf0] sm:$0xff] %v622
    %804 = vst [vmem:[#allocation2 + $0xf8] sm:$0xff] %v711
    %805 = vst [vmem:[#allocation2 + $0x100] sm:$0xff] %v447
    %806 = vst [vmem:[#allocation2 + $0x108] sm:$0xff] %v536
    %807 = vst [vmem:[#allocation2 + $0x110] sm:$0xff] %v625
    %808 = vst [vmem:[#allocation2 + $0x118] sm:$0xff] %v714
    %809 = vst [vmem:[#allocation2 + $0x120] sm:$0xff] %v449
    %810 = vst [vmem:[#allocation2 + $0x128] sm:$0xff] %v538
    %811 = vst [vmem:[#allocation2 + $0x130] sm:$0xff] %v627
    %812 = vst [vmem:[#allocation2 + $0x138] sm:$0xff] %v716
    %813 = vst [vmem:[#allocation2 + $0x140] sm:$0xff] %v452
    %814 = vst [vmem:[#allocation2 + $0x148] sm:$0xff] %v541
    %815 = vst [vmem:[#allocation2 + $0x150] sm:$0xff] %v630
    %816 = vst [vmem:[#allocation2 + $0x158] sm:$0xff] %v719
    %817 = vst [vmem:[#allocation2 + $0x160] sm:$0xff] %v454
    %818 = vst [vmem:[#allocation2 + $0x168] sm:$0xff] %v543
    %819 = vst [vmem:[#allocation2 + $0x170] sm:$0xff] %v632
    %820 = vst [vmem:[#allocation2 + $0x178] sm:$0xff] %v721
    %821 = vst [vmem:[#allocation2 + $0x180] sm:$0xff] %v457
    %822 = vst [vmem:[#allocation2 + $0x188] sm:$0xff] %v546
    %823 = vst [vmem:[#allocation2 + $0x190] sm:$0xff] %v635
    %824 = vst [vmem:[#allocation2 + $0x198] sm:$0xff] %v724
    %825 = vst [vmem:[#allocation2 + $0x1a0] sm:$0xff] %v459
    %826 = vst [vmem:[#allocation2 + $0x1a8] sm:$0xff] %v548
    %827 = vst [vmem:[#allocation2 + $0x1b0] sm:$0xff] %v637
    %828 = vst [vmem:[#allocation2 + $0x1b8] sm:$0xff] %v726
    %829 = vst [vmem:[#allocation2 + $0x1c0] sm:$0xff] %v462
    %830 = vst [vmem:[#allocation2 + $0x1c8] sm:$0xff] %v551
    %831 = vst [vmem:[#allocation2 + $0x1d0] sm:$0xff] %v640
    %832 = vst [vmem:[#allocation2 + $0x1d8] sm:$0xff] %v729
    %833 = vst [vmem:[#allocation2 + $0x1e0] sm:$0xff] %v464
    %834 = vst [vmem:[#allocation2 + $0x1e8] sm:$0xff] %v553
    %835 = vst [vmem:[#allocation2 + $0x1f0] sm:$0xff] %v642
    %836 = vst [vmem:[#allocation2 + $0x1f8] sm:$0xff] %v731
    %837 = vst [vmem:[#allocation2 + $0x200] sm:$0xff] %v467
    %838 = vst [vmem:[#allocation2 + $0x208] sm:$0xff] %v556
    %839 = vst [vmem:[#allocation2 + $0x210] sm:$0xff] %v645
    %840 = vst [vmem:[#allocation2 + $0x218] sm:$0xff] %v734
    %841 = vst [vmem:[#allocation2 + $0x220] sm:$0xff] %v469
    %842 = vst [vmem:[#allocation2 + $0x228] sm:$0xff] %v558
    %843 = vst [vmem:[#allocation2 + $0x230] sm:$0xff] %v647
    %844 = vst [vmem:[#allocation2 + $0x238] sm:$0xff] %v736
    %845 = vst [vmem:[#allocation2 + $0x240] sm:$0xff] %v472
    %846 = vst [vmem:[#allocation2 + $0x248] sm:$0xff] %v561
    %847 = vst [vmem:[#allocation2 + $0x250] sm:$0xff] %v650
    %848 = vst [vmem:[#allocation2 + $0x258] sm:$0xff] %v739
    %849 = vst [vmem:[#allocation2 + $0x260] sm:$0xff] %v474
    %850 = vst [vmem:[#allocation2 + $0x268] sm:$0xff] %v563
    %851 = vst [vmem:[#allocation2 + $0x270] sm:$0xff] %v652
    %852 = vst [vmem:[#allocation2 + $0x278] sm:$0xff] %v741
    %853 = vst [vmem:[#allocation2 + $0x280] sm:$0xff] %v477
    %854 = vst [vmem:[#allocation2 + $0x288] sm:$0xff] %v566
    %855 = vst [vmem:[#allocation2 + $0x290] sm:$0xff] %v655
    %856 = vst [vmem:[#allocation2 + $0x298] sm:$0xff] %v744
    %857 = vst [vmem:[#allocation2 + $0x2a0] sm:$0xff] %v479
    %858 = vst [vmem:[#allocation2 + $0x2a8] sm:$0xff] %v568
    %859 = vst [vmem:[#allocation2 + $0x2b0] sm:$0xff] %v657
    %860 = vst [vmem:[#allocation2 + $0x2b8] sm:$0xff] %v746
    %861 = vst [vmem:[#allocation2 + $0x2c0] sm:$0xff] %v482
    %862 = vst [vmem:[#allocation2 + $0x2c8] sm:$0xff] %v571
    %863 = vst [vmem:[#allocation2 + $0x2d0] sm:$0xff] %v660
    %864 = vst [vmem:[#allocation2 + $0x2d8] sm:$0xff] %v749
    %865 = vst [vmem:[#allocation2 + $0x2e0] sm:$0xff] %v484
    %866 = vst [vmem:[#allocation2 + $0x2e8] sm:$0xff] %v573
    %867 = vst [vmem:[#allocation2 + $0x2f0] sm:$0xff] %v662
    %868 = vst [vmem:[#allocation2 + $0x2f8] sm:$0xff] %v751
    %869 = vst [vmem:[#allocation2 + $0x300] sm:$0xff] %v487
    %870 = vst [vmem:[#allocation2 + $0x308] sm:$0xff] %v576
    %871 = vst [vmem:[#allocation2 + $0x310] sm:$0xff] %v665
    %872 = vst [vmem:[#allocation2 + $0x318] sm:$0xff] %v754
    %873 = vst [vmem:[#allocation2 + $0x320] sm:$0xff] %v489
    %874 = vst [vmem:[#allocation2 + $0x328] sm:$0xff] %v578
    %875 = vst [vmem:[#allocation2 + $0x330] sm:$0xff] %v667
    %876 = vst [vmem:[#allocation2 + $0x338] sm:$0xff] %v756
    %877 = vst [vmem:[#allocation2 + $0x340] sm:$0xff] %v492
    %878 = vst [vmem:[#allocation2 + $0x348] sm:$0xff] %v581
    %879 = vst [vmem:[#allocation2 + $0x350] sm:$0xff] %v670
    %880 = vst [vmem:[#allocation2 + $0x358] sm:$0xff] %v759
    %881 = vst [vmem:[#allocation2 + $0x360] sm:$0xff] %v494
    %882 = vst [vmem:[#allocation2 + $0x368] sm:$0xff] %v583
    %883 = vst [vmem:[#allocation2 + $0x370] sm:$0xff] %v672
    %884 = vst [vmem:[#allocation2 + $0x378] sm:$0xff] %v761
    %885 = vst [vmem:[#allocation2 + $0x380] sm:$0xff] %v497
    %886 = vst [vmem:[#allocation2 + $0x388] sm:$0xff] %v586
    %887 = vst [vmem:[#allocation2 + $0x390] sm:$0xff] %v675
    %888 = vst [vmem:[#allocation2 + $0x398] sm:$0xff] %v764
    %889 = vst [vmem:[#allocation2 + $0x3a0] sm:$0xff] %v499
    %890 = vst [vmem:[#allocation2 + $0x3a8] sm:$0xff] %v588
    %891 = vst [vmem:[#allocation2 + $0x3b0] sm:$0xff] %v677
    %892 = vst [vmem:[#allocation2 + $0x3b8] sm:$0xff] %v766
    %893 = vst [vmem:[#allocation2 + $0x3c0] sm:$0xff] %v502
    %894 = vst [vmem:[#allocation2 + $0x3c8] sm:$0xff] %v591
    %895 = vst [vmem:[#allocation2 + $0x3d0] sm:$0xff] %v680
    %896 = vst [vmem:[#allocation2 + $0x3d8] sm:$0xff] %v769
    %897 = vst [vmem:[#allocation2 + $0x3e0] sm:$0xff] %v504
    %898 = vst [vmem:[#allocation2 + $0x3e8] sm:$0xff] %v593
    %899 = vst [vmem:[#allocation2 + $0x3f0] sm:$0xff] %v682
    %900 = vst [vmem:[#allocation2 + $0x3f8] sm:$0xff] %v771
    %s901 = smul.u32 0, 4
    %s902 = smul.addr %s901, 8
    %s903 = scalar_lea.vmem [#allocation2], %s902
    %v904 = vld [vmem:[%s903] sm:$0xff]
    %v905 = vld [vmem:[%s903 + $0x8] sm:$0xff]
    %v906 = vld [vmem:[%s903 + $0x10] sm:$0xff]
    %v907 = vld [vmem:[%s903 + $0x18] sm:$0xff]
    %v908 = vld [vmem:[%s903 + $0x20] sm:$0xff]
    %v909 = vld [vmem:[%s903 + $0x28] sm:$0xff]
    %v910 = vld [vmem:[%s903 + $0x30] sm:$0xff]
    %v911 = vld [vmem:[%s903 + $0x38] sm:$0xff]
    %v912 = vld [vmem:[#allocation3] sm:$0xff]
    %v913 = vld [vmem:[#allocation3 + $0x8] sm:$0xff]
    %v914 = vpack.c.bf16 %v913, %v912
    %v915 = vld [vmem:[#allocation10] sm:$0xff]
    %v916 = vld [vmem:[#allocation10 + $0x8] sm:$0xff]
    %v917 = vld [vmem:[#allocation10 + $0x10] sm:$0xff]
    %v918 = vld [vmem:[#allocation10 + $0x18] sm:$0xff]
    %v919 = vld [vmem:[#allocation10 + $0x20] sm:$0xff]
    %v920 = vld [vmem:[#allocation10 + $0x28] sm:$0xff]
    %v921 = vld [vmem:[#allocation10 + $0x30] sm:$0xff]
    %v922 = vld [vmem:[#allocation10 + $0x38] sm:$0xff]
    %v923 = vld [vmem:[#allocation10 + $0x40] sm:$0xff]
    %v924 = vld [vmem:[#allocation10 + $0x48] sm:$0xff]
    %v925 = vld [vmem:[#allocation10 + $0x50] sm:$0xff]
    %v926 = vld [vmem:[#allocation10 + $0x58] sm:$0xff]
    %v927 = vld [vmem:[#allocation10 + $0x60] sm:$0xff]
    %v928 = vld [vmem:[#allocation10 + $0x68] sm:$0xff]
    %v929 = vld [vmem:[#allocation10 + $0x70] sm:$0xff]
    %v930 = vld [vmem:[#allocation10 + $0x78] sm:$0xff]
    %v931 = vld [vmem:[#allocation10 + $0x80] sm:$0xff]
    %v932 = vld [vmem:[#allocation10 + $0x88] sm:$0xff]
    %v933 = vld [vmem:[#allocation10 + $0x90] sm:$0xff]
    %v934 = vld [vmem:[#allocation10 + $0x98] sm:$0xff]
    %v935 = vld [vmem:[#allocation10 + $0xa0] sm:$0xff]
    %v936 = vld [vmem:[#allocation10 + $0xa8] sm:$0xff]
    %v937 = vld [vmem:[#allocation10 + $0xb0] sm:$0xff]
    %v938 = vld [vmem:[#allocation10 + $0xb8] sm:$0xff]
    %v939 = vld [vmem:[#allocation10 + $0xc0] sm:$0xff]
    %v940 = vld [vmem:[#allocation10 + $0xc8] sm:$0xff]
    %v941 = vld [vmem:[#allocation10 + $0xd0] sm:$0xff]
    %v942 = vld [vmem:[#allocation10 + $0xd8] sm:$0xff]
    %v943 = vld [vmem:[#allocation10 + $0xe0] sm:$0xff]
    %v944 = vld [vmem:[#allocation10 + $0xe8] sm:$0xff]
    %v945 = vld [vmem:[#allocation10 + $0xf0] sm:$0xff]
    %v946 = vld [vmem:[#allocation10 + $0xf8] sm:$0xff]
    %v979 = vunpack.c.l.b16 %v915
    %v980 = vunpack.c.h.b16 %v915
    %v981 = vunpack.c.l.b16 %v916
    %v982 = vunpack.c.h.b16 %v916
    %v983 = vunpack.c.l.b16 %v917
    %v984 = vunpack.c.h.b16 %v917
    %v985 = vunpack.c.l.b16 %v918
    %v986 = vunpack.c.h.b16 %v918
    %v987 = vunpack.c.l.b16 %v919
    %v988 = vunpack.c.h.b16 %v919
    %v989 = vunpack.c.l.b16 %v920
    %v990 = vunpack.c.h.b16 %v920
    %v991 = vunpack.c.l.b16 %v921
    %v992 = vunpack.c.h.b16 %v921
    %v993 = vunpack.c.l.b16 %v922
    %v994 = vunpack.c.h.b16 %v922
    %v995 = vunpack.c.l.b16 %v923
    %v996 = vunpack.c.h.b16 %v923
    %v997 = vunpack.c.l.b16 %v924
    %v998 = vunpack.c.h.b16 %v924
    %v999 = vunpack.c.l.b16 %v925
    %v1000 = vunpack.c.h.b16 %v925
    %v1001 = vunpack.c.l.b16 %v926
    %v1002 = vunpack.c.h.b16 %v926
    %v1003 = vunpack.c.l.b16 %v927
    %v1004 = vunpack.c.h.b16 %v927
    %v1005 = vunpack.c.l.b16 %v928
    %v1006 = vunpack.c.h.b16 %v928
    %v1007 = vunpack.c.l.b16 %v929
    %v1008 = vunpack.c.h.b16 %v929
    %v1009 = vunpack.c.l.b16 %v930
    %v1010 = vunpack.c.h.b16 %v930
    %v1011 = vunpack.c.l.b16 %v931
    %v1012 = vunpack.c.h.b16 %v931
    %v1013 = vunpack.c.l.b16 %v932
    %v1014 = vunpack.c.h.b16 %v932
    %v1015 = vunpack.c.l.b16 %v933
    %v1016 = vunpack.c.h.b16 %v933
    %v1017 = vunpack.c.l.b16 %v934
    %v1018 = vunpack.c.h.b16 %v934
    %v1019 = vunpack.c.l.b16 %v935
    %v1020 = vunpack.c.h.b16 %v935
    %v1021 = vunpack.c.l.b16 %v936
    %v1022 = vunpack.c.h.b16 %v936
    %v1023 = vunpack.c.l.b16 %v937
    %v1024 = vunpack.c.h.b16 %v937
    %v1025 = vunpack.c.l.b16 %v938
    %v1026 = vunpack.c.h.b16 %v938
    %v1027 = vunpack.c.l.b16 %v939
    %v1028 = vunpack.c.h.b16 %v939
    %v1029 = vunpack.c.l.b16 %v940
    %v1030 = vunpack.c.h.b16 %v940
    %v1031 = vunpack.c.l.b16 %v941
    %v1032 = vunpack.c.h.b16 %v941
    %v1033 = vunpack.c.l.b16 %v942
    %v1034 = vunpack.c.h.b16 %v942
    %v1035 = vunpack.c.l.b16 %v943
    %v1036 = vunpack.c.h.b16 %v943
    %v1037 = vunpack.c.l.b16 %v944
    %v1038 = vunpack.c.h.b16 %v944
    %v1039 = vunpack.c.l.b16 %v945
    %v1040 = vunpack.c.h.b16 %v945
    %v1041 = vunpack.c.l.b16 %v946
    %v1042 = vunpack.c.h.b16 %v946
    %v1043 = vpack.c.b16 %v983, %v979
    %v1044 = vpack.c.b16 %v984, %v980
    %v1045 = vpack.c.b16 %v985, %v981
    %v1046 = vpack.c.b16 %v986, %v982
    %v1047 = vpack.c.b16 %v991, %v987
    %v1048 = vpack.c.b16 %v992, %v988
    %v1049 = vpack.c.b16 %v993, %v989
    %v1050 = vpack.c.b16 %v994, %v990
    %v1051 = vpack.c.b16 %v999, %v995
    %v1052 = vpack.c.b16 %v1000, %v996
    %v1053 = vpack.c.b16 %v1001, %v997
    %v1054 = vpack.c.b16 %v1002, %v998
    %v1055 = vpack.c.b16 %v1007, %v1003
    %v1056 = vpack.c.b16 %v1008, %v1004
    %v1057 = vpack.c.b16 %v1009, %v1005
    %v1058 = vpack.c.b16 %v1010, %v1006
    %v1059 = vpack.c.b16 %v1015, %v1011
    %v1060 = vpack.c.b16 %v1016, %v1012
    %v1061 = vpack.c.b16 %v1017, %v1013
    %v1062 = vpack.c.b16 %v1018, %v1014
    %v1063 = vpack.c.b16 %v1023, %v1019
    %v1064 = vpack.c.b16 %v1024, %v1020
    %v1065 = vpack.c.b16 %v1025, %v1021
    %v1066 = vpack.c.b16 %v1026, %v1022
    %v1067 = vpack.c.b16 %v1031, %v1027
    %v1068 = vpack.c.b16 %v1032, %v1028
    %v1069 = vpack.c.b16 %v1033, %v1029
    %v1070 = vpack.c.b16 %v1034, %v1030
    %v1071 = vpack.c.b16 %v1039, %v1035
    %v1072 = vpack.c.b16 %v1040, %v1036
    %v1073 = vpack.c.b16 %v1041, %v1037
    %v1074 = vpack.c.b16 %v1042, %v1038
    %1107 = vmatpush.bf16.msra.mxu0 %v1071
    %1108 = vmatpush.bf16.msra.mxu0 %v1067
    %1109 = vmatpush.bf16.msra.mxu0 %v1063
    %1110 = vmatpush.bf16.msra.mxu0 %v1059
    %1111 = vmatpush.bf16.msra.mxu0 %v1055
    %1112 = vmatpush.bf16.msra.mxu0 %v1051
    %1113 = vmatpush.bf16.msra.mxu0 %v1047
    %1114 = vmatpush.bf16.msra.mxu0 %v1043
    %1115 = vmatmul.bf16.gmra.mxu0 %v914
    %v1116 = vpop.f32.mrf.mxu0
    %v1117 = vadd.f32 0.0, %v1116
    %v1118 = vpop.f32.mrf.mxu0
    %v1119 = vadd.f32 0.0, %v1118
    %1120 = vdwg.mxu0
    %1121 = vmatpush.bf16.msra.mxu0 %v1072
    %1122 = vmatpush.bf16.msra.mxu0 %v1068
    %1123 = vmatpush.bf16.msra.mxu0 %v1064
    %1124 = vmatpush.bf16.msra.mxu0 %v1060
    %1125 = vmatpush.bf16.msra.mxu0 %v1056
    %1126 = vmatpush.bf16.msra.mxu0 %v1052
    %1127 = vmatpush.bf16.msra.mxu0 %v1048
    %1128 = vmatpush.bf16.msra.mxu0 %v1044
    %1129 = vmatmul.bf16.gmra.mxu0 %v914
    %v1130 = vpop.f32.mrf.mxu0
    %v1131 = vadd.f32 0.0, %v1130
    %v1132 = vpop.f32.mrf.mxu0
    %v1133 = vadd.f32 0.0, %v1132
    %1134 = vdwg.mxu0
    %1135 = vmatpush.bf16.msra.mxu0 %v1073
    %1136 = vmatpush.bf16.msra.mxu0 %v1069
    %1137 = vmatpush.bf16.msra.mxu0 %v1065
    %1138 = vmatpush.bf16.msra.mxu0 %v1061
    %1139 = vmatpush.bf16.msra.mxu0 %v1057
    %1140 = vmatpush.bf16.msra.mxu0 %v1053
    %1141 = vmatpush.bf16.msra.mxu0 %v1049
    %1142 = vmatpush.bf16.msra.mxu0 %v1045
    %1143 = vmatmul.bf16.gmra.mxu0 %v914
    %v1144 = vpop.f32.mrf.mxu0
    %v1145 = vadd.f32 0.0, %v1144
    %v1146 = vpop.f32.mrf.mxu0
    %v1147 = vadd.f32 0.0, %v1146
    %1148 = vdwg.mxu0
    %1149 = vmatpush.bf16.msra.mxu0 %v1074
    %1150 = vmatpush.bf16.msra.mxu0 %v1070
    %1151 = vmatpush.bf16.msra.mxu0 %v1066
    %1152 = vmatpush.bf16.msra.mxu0 %v1062
    %1153 = vmatpush.bf16.msra.mxu0 %v1058
    %1154 = vmatpush.bf16.msra.mxu0 %v1054
    %1155 = vmatpush.bf16.msra.mxu0 %v1050
    %1156 = vmatpush.bf16.msra.mxu0 %v1046
    %1157 = vmatmul.bf16.gmra.mxu0 %v914
    %v1158 = vpop.f32.mrf.mxu0
    %v1159 = vadd.f32 0.0, %v1158
    %v1160 = vpop.f32.mrf.mxu0
    %v1161 = vadd.f32 0.0, %v1160
    %1162 = vdwg.mxu0
    %v1163 = vadd.f32 %v904, %v1117
    %v1164 = vadd.f32 %v905, %v1131
    %v1165 = vadd.f32 %v906, %v1145
    %v1166 = vadd.f32 %v907, %v1159
    %v1167 = vadd.f32 %v908, %v1119
    %v1168 = vadd.f32 %v909, %v1133
    %v1169 = vadd.f32 %v910, %v1147
    %v1170 = vadd.f32 %v911, %v1161
    %v1171 = vxor.u32 %v1163, 2147483648
    %v1172 = vxor.u32 %v1167, 2147483648
    %v1173 = vmul.f32 %v1171, 1.442695
    %v1174 = vpow.pop %v1173
    %v1175 = vmul.f32 %v1172, 1.442695
    %v1176 = vpow.pop %v1175
    %v1177 = vadd.f32 %v1174, 1.0
    %v1178 = vadd.f32 %v1176, 1.0
    %v1179 = vrcp.pop %v1177
    %v1180 = vmul.f32 %v1177, %v1179
    %v1181 = vsub.f32 1.0, %v1180
    %v1182 = vmul.f32 %v1179, %v1181
    %v1183 = vadd.f32 %v1179, %v1182
    %vm1184 = vweird.f32 %v1177
    %vm1185 = vweird.f32 %v1179
    %vm1186 = vmor %vm1184, %vm1185
    %v1187 = vsel %vm1186, %v1179, %v1183
    %v1188 = vand.u32 2147483647, %v1177
    %vm1189 = vcmp.eq.f32.partialorder %v1188, 8.507059e+37
    %v1190 = vand.u32 %v1177, 2147483648
    %v1191 = vor.u32 1.1754944e-38, %v1190
    %v1192 = vsel %vm1189, %v1191, %v1187
    %v1193 = vmul.f32 1.0, %v1192
    %v1194 = vrcp.pop %v1178
    %v1195 = vmul.f32 %v1178, %v1194
    %v1196 = vsub.f32 1.0, %v1195
    %v1197 = vmul.f32 %v1194, %v1196
    %v1198 = vadd.f32 %v1194, %v1197
    %vm1199 = vweird.f32 %v1178
    %vm1200 = vweird.f32 %v1194
    %vm1201 = vmor %vm1199, %vm1200
    %v1202 = vsel %vm1201, %v1194, %v1198
    %v1203 = vand.u32 2147483647, %v1178
    %vm1204 = vcmp.eq.f32.partialorder %v1203, 8.507059e+37
    %v1205 = vand.u32 %v1178, 2147483648
    %v1206 = vor.u32 1.1754944e-38, %v1205
    %v1207 = vsel %vm1204, %v1206, %v1202
    %v1208 = vmul.f32 1.0, %v1207
    %v1209 = vxor.u32 %v1164, 2147483648
    %v1210 = vxor.u32 %v1168, 2147483648
    %v1211 = vmul.f32 %v1209, 1.442695
    %v1212 = vpow.pop %v1211
    %v1213 = vmul.f32 %v1210, 1.442695
    %v1214 = vpow.pop %v1213
    %v1215 = vadd.f32 %v1212, 1.0
    %v1216 = vadd.f32 %v1214, 1.0
    %v1217 = vrcp.pop %v1215
    %v1218 = vmul.f32 %v1215, %v1217
    %v1219 = vsub.f32 1.0, %v1218
    %v1220 = vmul.f32 %v1217, %v1219
    %v1221 = vadd.f32 %v1217, %v1220
    %vm1222 = vweird.f32 %v1215
    %vm1223 = vweird.f32 %v1217
    %vm1224 = vmor %vm1222, %vm1223
    %v1225 = vsel %vm1224, %v1217, %v1221
    %v1226 = vand.u32 2147483647, %v1215
    %vm1227 = vcmp.eq.f32.partialorder %v1226, 8.507059e+37
    %v1228 = vand.u32 %v1215, 2147483648
    %v1229 = vor.u32 1.1754944e-38, %v1228
    %v1230 = vsel %vm1227, %v1229, %v1225
    %v1231 = vmul.f32 1.0, %v1230
    %v1232 = vrcp.pop %v1216
    %v1233 = vmul.f32 %v1216, %v1232
    %v1234 = vsub.f32 1.0, %v1233
    %v1235 = vmul.f32 %v1232, %v1234
    %v1236 = vadd.f32 %v1232, %v1235
    %vm1237 = vweird.f32 %v1216
    %vm1238 = vweird.f32 %v1232
    %vm1239 = vmor %vm1237, %vm1238
    %v1240 = vsel %vm1239, %v1232, %v1236
    %v1241 = vand.u32 2147483647, %v1216
    %vm1242 = vcmp.eq.f32.partialorder %v1241, 8.507059e+37
    %v1243 = vand.u32 %v1216, 2147483648
    %v1244 = vor.u32 1.1754944e-38, %v1243
    %v1245 = vsel %vm1242, %v1244, %v1240
    %v1246 = vmul.f32 1.0, %v1245
    %v1247 = vtanh.pop %v1165
    %v1248 = vtanh.pop %v1169
    %v1249 = vxor.u32 %v1166, 2147483648
    %v1250 = vxor.u32 %v1170, 2147483648
    %v1251 = vmul.f32 %v1249, 1.442695
    %v1252 = vpow.pop %v1251
    %v1253 = vmul.f32 %v1250, 1.442695
    %v1254 = vpow.pop %v1253
    %v1255 = vadd.f32 %v1252, 1.0
    %v1256 = vadd.f32 %v1254, 1.0
    %v1257 = vrcp.pop %v1255
    %v1258 = vmul.f32 %v1255, %v1257
    %v1259 = vsub.f32 1.0, %v1258
    %v1260 = vmul.f32 %v1257, %v1259
    %v1261 = vadd.f32 %v1257, %v1260
    %vm1262 = vweird.f32 %v1255
    %vm1263 = vweird.f32 %v1257
    %vm1264 = vmor %vm1262, %vm1263
    %v1265 = vsel %vm1264, %v1257, %v1261
    %v1266 = vand.u32 2147483647, %v1255
    %vm1267 = vcmp.eq.f32.partialorder %v1266, 8.507059e+37
    %v1268 = vand.u32 %v1255, 2147483648
    %v1269 = vor.u32 1.1754944e-38, %v1268
    %v1270 = vsel %vm1267, %v1269, %v1265
    %v1271 = vmul.f32 1.0, %v1270
    %v1272 = vrcp.pop %v1256
    %v1273 = vmul.f32 %v1256, %v1272
    %v1274 = vsub.f32 1.0, %v1273
    %v1275 = vmul.f32 %v1272, %v1274
    %v1276 = vadd.f32 %v1272, %v1275
    %vm1277 = vweird.f32 %v1256
    %vm1278 = vweird.f32 %v1272
    %vm1279 = vmor %vm1277, %vm1278
    %v1280 = vsel %vm1279, %v1272, %v1276
    %v1281 = vand.u32 2147483647, %v1256
    %vm1282 = vcmp.eq.f32.partialorder %v1281, 8.507059e+37
    %v1283 = vand.u32 %v1256, 2147483648
    %v1284 = vor.u32 1.1754944e-38, %v1283
    %v1285 = vsel %vm1282, %v1284, %v1280
    %v1286 = vmul.f32 1.0, %v1285
    %v1287 = vld [vmem:[#allocation4] sm:$0xff]
    %v1288 = vld [vmem:[#allocation4 + $0x8] sm:$0xff]
    %v1289 = vmul.f32 %v1231, %v1287
    %v1290 = vmul.f32 %v1246, %v1288
    %v1291 = vmul.f32 %v1193, %v1247
    %v1292 = vmul.f32 %v1208, %v1248
    %v1293 = vadd.f32 %v1289, %v1291
    %v1294 = vadd.f32 %v1290, %v1292
    %v1295 = vtanh.pop %v1293
    %v1296 = vtanh.pop %v1294
    %v1297 = vmul.f32 %v1271, %v1295
    %v1298 = vmul.f32 %v1286, %v1296
    %1299 = vst [vmem:[#allocation4] sm:$0xff] %v1293
    %1300 = vst [vmem:[#allocation4 + $0x8] sm:$0xff] %v1294
    %1301 = vst [vmem:[#allocation3] sm:$0xff] %v1297
    %1302 = vst [vmem:[#allocation3 + $0x8] sm:$0xff] %v1298
    %v1303 = vpack.c.bf16 %v1297, %v1297
    %v1304 = vpack.c.bf16 %v1298, %v1298
    %1305 = vst [vmem:[#allocation13] sm:$0xf] %v1303
    %1306 = vst [vmem:[#allocation13 + $0x4] sm:$0xf] %v1304
    %s1307 = smul.u32 2, 4
    %s1308 = smul.addr %s1307, 8
    %s1309 = scalar_lea.vmem [#allocation2], %s1308
    %v1310 = vld [vmem:[%s1309] sm:$0xff]
    %v1311 = vld [vmem:[%s1309 + $0x8] sm:$0xff]
    %v1312 = vld [vmem:[%s1309 + $0x10] sm:$0xff]
    %v1313 = vld [vmem:[%s1309 + $0x18] sm:$0xff]
    %v1314 = vld [vmem:[%s1309 + $0x20] sm:$0xff]
    %v1315 = vld [vmem:[%s1309 + $0x28] sm:$0xff]
    %v1316 = vld [vmem:[%s1309 + $0x30] sm:$0xff]
    %v1317 = vld [vmem:[%s1309 + $0x38] sm:$0xff]
    %v1318 = vld [vmem:[#allocation3] sm:$0xff]
    %v1319 = vld [vmem:[#allocation3 + $0x8] sm:$0xff]
    %v1320 = vpack.c.bf16 %v1319, %v1318
    %v1321 = vld [vmem:[#allocation10] sm:$0xff]
    %v1322 = vld [vmem:[#allocation10 + $0x8] sm:$0xff]
    %v1323 = vld [vmem:[#allocation10 + $0x10] sm:$0xff]
    %v1324 = vld [vmem:[#allocation10 + $0x18] sm:$0xff]
    %v1325 = vld [vmem:[#allocation10 + $0x20] sm:$0xff]
    %v1326 = vld [vmem:[#allocation10 + $0x28] sm:$0xff]
    %v1327 = vld [vmem:[#allocation10 + $0x30] sm:$0xff]
    %v1328 = vld [vmem:[#allocation10 + $0x38] sm:$0xff]
    %v1329 = vld [vmem:[#allocation10 + $0x40] sm:$0xff]
    %v1330 = vld [vmem:[#allocation10 + $0x48] sm:$0xff]
    %v1331 = vld [vmem:[#allocation10 + $0x50] sm:$0xff]
    %v1332 = vld [vmem:[#allocation10 + $0x58] sm:$0xff]
    %v1333 = vld [vmem:[#allocation10 + $0x60] sm:$0xff]
    %v1334 = vld [vmem:[#allocation10 + $0x68] sm:$0xff]
    %v1335 = vld [vmem:[#allocation10 + $0x70] sm:$0xff]
    %v1336 = vld [vmem:[#allocation10 + $0x78] sm:$0xff]
    %v1337 = vld [vmem:[#allocation10 + $0x80] sm:$0xff]
    %v1338 = vld [vmem:[#allocation10 + $0x88] sm:$0xff]
    %v1339 = vld [vmem:[#allocation10 + $0x90] sm:$0xff]
    %v1340 = vld [vmem:[#allocation10 + $0x98] sm:$0xff]
    %v1341 = vld [vmem:[#allocation10 + $0xa0] sm:$0xff]
    %v1342 = vld [vmem:[#allocation10 + $0xa8] sm:$0xff]
    %v1343 = vld [vmem:[#allocation10 + $0xb0] sm:$0xff]
    %v1344 = vld [vmem:[#allocation10 + $0xb8] sm:$0xff]
    %v1345 = vld [vmem:[#allocation10 + $0xc0] sm:$0xff]
    %v1346 = vld [vmem:[#allocation10 + $0xc8] sm:$0xff]
    %v1347 = vld [vmem:[#allocation10 + $0xd0] sm:$0xff]
    %v1348 = vld [vmem:[#allocation10 + $0xd8] sm:$0xff]
    %v1349 = vld [vmem:[#allocation10 + $0xe0] sm:$0xff]
    %v1350 = vld [vmem:[#allocation10 + $0xe8] sm:$0xff]
    %v1351 = vld [vmem:[#allocation10 + $0xf0] sm:$0xff]
    %v1352 = vld [vmem:[#allocation10 + $0xf8] sm:$0xff]
    %v1385 = vunpack.c.l.b16 %v1321
    %v1386 = vunpack.c.h.b16 %v1321
    %v1387 = vunpack.c.l.b16 %v1322
    %v1388 = vunpack.c.h.b16 %v1322
    %v1389 = vunpack.c.l.b16 %v1323
    %v1390 = vunpack.c.h.b16 %v1323
    %v1391 = vunpack.c.l.b16 %v1324
    %v1392 = vunpack.c.h.b16 %v1324
    %v1393 = vunpack.c.l.b16 %v1325
    %v1394 = vunpack.c.h.b16 %v1325
    %v1395 = vunpack.c.l.b16 %v1326
    %v1396 = vunpack.c.h.b16 %v1326
    %v1397 = vunpack.c.l.b16 %v1327
    %v1398 = vunpack.c.h.b16 %v1327
    %v1399 = vunpack.c.l.b16 %v1328
    %v1400 = vunpack.c.h.b16 %v1328
    %v1401 = vunpack.c.l.b16 %v1329
    %v1402 = vunpack.c.h.b16 %v1329
    %v1403 = vunpack.c.l.b16 %v1330
    %v1404 = vunpack.c.h.b16 %v1330
    %v1405 = vunpack.c.l.b16 %v1331
    %v1406 = vunpack.c.h.b16 %v1331
    %v1407 = vunpack.c.l.b16 %v1332
    %v1408 = vunpack.c.h.b16 %v1332
    %v1409 = vunpack.c.l.b16 %v1333
    %v1410 = vunpack.c.h.b16 %v1333
    %v1411 = vunpack.c.l.b16 %v1334
    %v1412 = vunpack.c.h.b16 %v1334
    %v1413 = vunpack.c.l.b16 %v1335
    %v1414 = vunpack.c.h.b16 %v1335
    %v1415 = vunpack.c.l.b16 %v1336
    %v1416 = vunpack.c.h.b16 %v1336
    %v1417 = vunpack.c.l.b16 %v1337
    %v1418 = vunpack.c.h.b16 %v1337
    %v1419 = vunpack.c.l.b16 %v1338
    %v1420 = vunpack.c.h.b16 %v1338
    %v1421 = vunpack.c.l.b16 %v1339
    %v1422 = vunpack.c.h.b16 %v1339
    %v1423 = vunpack.c.l.b16 %v1340
    %v1424 = vunpack.c.h.b16 %v1340
    %v1425 = vunpack.c.l.b16 %v1341
    %v1426 = vunpack.c.h.b16 %v1341
    %v1427 = vunpack.c.l.b16 %v1342
    %v1428 = vunpack.c.h.b16 %v1342
    %v1429 = vunpack.c.l.b16 %v1343
    %v1430 = vunpack.c.h.b16 %v1343
    %v1431 = vunpack.c.l.b16 %v1344
    %v1432 = vunpack.c.h.b16 %v1344
    %v1433 = vunpack.c.l.b16 %v1345
    %v1434 = vunpack.c.h.b16 %v1345
    %v1435 = vunpack.c.l.b16 %v1346
    %v1436 = vunpack.c.h.b16 %v1346
    %v1437 = vunpack.c.l.b16 %v1347
    %v1438 = vunpack.c.h.b16 %v1347
    %v1439 = vunpack.c.l.b16 %v1348
    %v1440 = vunpack.c.h.b16 %v1348
    %v1441 = vunpack.c.l.b16 %v1349
    %v1442 = vunpack.c.h.b16 %v1349
    %v1443 = vunpack.c.l.b16 %v1350
    %v1444 = vunpack.c.h.b16 %v1350
    %v1445 = vunpack.c.l.b16 %v1351
    %v1446 = vunpack.c.h.b16 %v1351
    %v1447 = vunpack.c.l.b16 %v1352
    %v1448 = vunpack.c.h.b16 %v1352
    %v1449 = vpack.c.b16 %v1389, %v1385
    %v1450 = vpack.c.b16 %v1390, %v1386
    %v1451 = vpack.c.b16 %v1391, %v1387
    %v1452 = vpack.c.b16 %v1392, %v1388
    %v1453 = vpack.c.b16 %v1397, %v1393
    %v1454 = vpack.c.b16 %v1398, %v1394
    %v1455 = vpack.c.b16 %v1399, %v1395
    %v1456 = vpack.c.b16 %v1400, %v1396
    %v1457 = vpack.c.b16 %v1405, %v1401
    %v1458 = vpack.c.b16 %v1406, %v1402
    %v1459 = vpack.c.b16 %v1407, %v1403
    %v1460 = vpack.c.b16 %v1408, %v1404
    %v1461 = vpack.c.b16 %v1413, %v1409
    %v1462 = vpack.c.b16 %v1414, %v1410
    %v1463 = vpack.c.b16 %v1415, %v1411
    %v1464 = vpack.c.b16 %v1416, %v1412
    %v1465 = vpack.c.b16 %v1421, %v1417
    %v1466 = vpack.c.b16 %v1422, %v1418
    %v1467 = vpack.c.b16 %v1423, %v1419
    %v1468 = vpack.c.b16 %v1424, %v1420
    %v1469 = vpack.c.b16 %v1429, %v1425
    %v1470 = vpack.c.b16 %v1430, %v1426
    %v1471 = vpack.c.b16 %v1431, %v1427
    %v1472 = vpack.c.b16 %v1432, %v1428
    %v1473 = vpack.c.b16 %v1437, %v1433
    %v1474 = vpack.c.b16 %v1438, %v1434
    %v1475 = vpack.c.b16 %v1439, %v1435
    %v1476 = vpack.c.b16 %v1440, %v1436
    %v1477 = vpack.c.b16 %v1445, %v1441
    %v1478 = vpack.c.b16 %v1446, %v1442
    %v1479 = vpack.c.b16 %v1447, %v1443
    %v1480 = vpack.c.b16 %v1448, %v1444
    %1513 = vmatpush.bf16.msra.mxu0 %v1477
    %1514 = vmatpush.bf16.msra.mxu0 %v1473
    %1515 = vmatpush.bf16.msra.mxu0 %v1469
    %1516 = vmatpush.bf16.msra.mxu0 %v1465
    %1517 = vmatpush.bf16.msra.mxu0 %v1461
    %1518 = vmatpush.bf16.msra.mxu0 %v1457
    %1519 = vmatpush.bf16.msra.mxu0 %v1453
    %1520 = vmatpush.bf16.msra.mxu0 %v1449
    %1521 = vmatmul.bf16.gmra.mxu0 %v1320
    %v1522 = vpop.f32.mrf.mxu0
    %v1523 = vadd.f32 0.0, %v1522
    %v1524 = vpop.f32.mrf.mxu0
    %v1525 = vadd.f32 0.0, %v1524
    %1526 = vdwg.mxu0
    %1527 = vmatpush.bf16.msra.mxu0 %v1478
    %1528 = vmatpush.bf16.msra.mxu0 %v1474
    %1529 = vmatpush.bf16.msra.mxu0 %v1470
    %1530 = vmatpush.bf16.msra.mxu0 %v1466
    %1531 = vmatpush.bf16.msra.mxu0 %v1462
    %1532 = vmatpush.bf16.msra.mxu0 %v1458
    %1533 = vmatpush.bf16.msra.mxu0 %v1454
    %1534 = vmatpush.bf16.msra.mxu0 %v1450
    %1535 = vmatmul.bf16.gmra.mxu0 %v1320
    %v1536 = vpop.f32.mrf.mxu0
    %v1537 = vadd.f32 0.0, %v1536
    %v1538 = vpop.f32.mrf.mxu0
    %v1539 = vadd.f32 0.0, %v1538
    %1540 = vdwg.mxu0
    %1541 = vmatpush.bf16.msra.mxu0 %v1479
    %1542 = vmatpush.bf16.msra.mxu0 %v1475
    %1543 = vmatpush.bf16.msra.mxu0 %v1471
    %1544 = vmatpush.bf16.msra.mxu0 %v1467
    %1545 = vmatpush.bf16.msra.mxu0 %v1463
    %1546 = vmatpush.bf16.msra.mxu0 %v1459
    %1547 = vmatpush.bf16.msra.mxu0 %v1455
    %1548 = vmatpush.bf16.msra.mxu0 %v1451
    %1549 = vmatmul.bf16.gmra.mxu0 %v1320
    %v1550 = vpop.f32.mrf.mxu0
    %v1551 = vadd.f32 0.0, %v1550
    %v1552 = vpop.f32.mrf.mxu0
    %v1553 = vadd.f32 0.0, %v1552
    %1554 = vdwg.mxu0
    %1555 = vmatpush.bf16.msra.mxu0 %v1480
    %1556 = vmatpush.bf16.msra.mxu0 %v1476
    %1557 = vmatpush.bf16.msra.mxu0 %v1472
    %1558 = vmatpush.bf16.msra.mxu0 %v1468
    %1559 = vmatpush.bf16.msra.mxu0 %v1464
    %1560 = vmatpush.bf16.msra.mxu0 %v1460
    %1561 = vmatpush.bf16.msra.mxu0 %v1456
    %1562 = vmatpush.bf16.msra.mxu0 %v1452
    %1563 = vmatmul.bf16.gmra.mxu0 %v1320
    %v1564 = vpop.f32.mrf.mxu0
    %v1565 = vadd.f32 0.0, %v1564
    %v1566 = vpop.f32.mrf.mxu0
    %v1567 = vadd.f32 0.0, %v1566
    %1568 = vdwg.mxu0
    %v1569 = vadd.f32 %v1310, %v1523
    %v1570 = vadd.f32 %v1311, %v1537
    %v1571 = vadd.f32 %v1312, %v1551
    %v1572 = vadd.f32 %v1313, %v1565
    %v1573 = vadd.f32 %v1314, %v1525
    %v1574 = vadd.f32 %v1315, %v1539
    %v1575 = vadd.f32 %v1316, %v1553
    %v1576 = vadd.f32 %v1317, %v1567
    %v1577 = vxor.u32 %v1569, 2147483648
    %v1578 = vxor.u32 %v1573, 2147483648
    %v1579 = vmul.f32 %v1577, 1.442695
    %v1580 = vpow.pop %v1579
    %v1581 = vmul.f32 %v1578, 1.442695
    %v1582 = vpow.pop %v1581
    %v1583 = vadd.f32 %v1580, 1.0
    %v1584 = vadd.f32 %v1582, 1.0
    %v1585 = vrcp.pop %v1583
    %v1586 = vmul.f32 %v1583, %v1585
    %v1587 = vsub.f32 1.0, %v1586
    %v1588 = vmul.f32 %v1585, %v1587
    %v1589 = vadd.f32 %v1585, %v1588
    %vm1590 = vweird.f32 %v1583
    %vm1591 = vweird.f32 %v1585
    %vm1592 = vmor %vm1590, %vm1591
    %v1593 = vsel %vm1592, %v1585, %v1589
    %v1594 = vand.u32 2147483647, %v1583
    %vm1595 = vcmp.eq.f32.partialorder %v1594, 8.507059e+37
    %v1596 = vand.u32 %v1583, 2147483648
    %v1597 = vor.u32 1.1754944e-38, %v1596
    %v1598 = vsel %vm1595, %v1597, %v1593
    %v1599 = vmul.f32 1.0, %v1598
    %v1600 = vrcp.pop %v1584
    %v1601 = vmul.f32 %v1584, %v1600
    %v1602 = vsub.f32 1.0, %v1601
    %v1603 = vmul.f32 %v1600, %v1602
    %v1604 = vadd.f32 %v1600, %v1603
    %vm1605 = vweird.f32 %v1584
    %vm1606 = vweird.f32 %v1600
    %vm1607 = vmor %vm1605, %vm1606
    %v1608 = vsel %vm1607, %v1600, %v1604
    %v1609 = vand.u32 2147483647, %v1584
    %vm1610 = vcmp.eq.f32.partialorder %v1609, 8.507059e+37
    %v1611 = vand.u32 %v1584, 2147483648
    %v1612 = vor.u32 1.1754944e-38, %v1611
    %v1613 = vsel %vm1610, %v1612, %v1608
    %v1614 = vmul.f32 1.0, %v1613
    %v1615 = vxor.u32 %v1570, 2147483648
    %v1616 = vxor.u32 %v1574, 2147483648
    %v1617 = vmul.f32 %v1615, 1.442695
    %v1618 = vpow.pop %v1617
    %v1619 = vmul.f32 %v1616, 1.442695
    %v1620 = vpow.pop %v1619
    %v1621 = vadd.f32 %v1618, 1.0
    %v1622 = vadd.f32 %v1620, 1.0
    %v1623 = vrcp.pop %v1621
    %v1624 = vmul.f32 %v1621, %v1623
    %v1625 = vsub.f32 1.0, %v1624
    %v1626 = vmul.f32 %v1623, %v1625
    %v1627 = vadd.f32 %v1623, %v1626
    %vm1628 = vweird.f32 %v1621
    %vm1629 = vweird.f32 %v1623
    %vm1630 = vmor %vm1628, %vm1629
    %v1631 = vsel %vm1630, %v1623, %v1627
    %v1632 = vand.u32 2147483647, %v1621
    %vm1633 = vcmp.eq.f32.partialorder %v1632, 8.507059e+37
    %v1634 = vand.u32 %v1621, 2147483648
    %v1635 = vor.u32 1.1754944e-38, %v1634
    %v1636 = vsel %vm1633, %v1635, %v1631
    %v1637 = vmul.f32 1.0, %v1636
    %v1638 = vrcp.pop %v1622
    %v1639 = vmul.f32 %v1622, %v1638
    %v1640 = vsub.f32 1.0, %v1639
    %v1641 = vmul.f32 %v1638, %v1640
    %v1642 = vadd.f32 %v1638, %v1641
    %vm1643 = vweird.f32 %v1622
    %vm1644 = vweird.f32 %v1638
    %vm1645 = vmor %vm1643, %vm1644
    %v1646 = vsel %vm1645, %v1638, %v1642
    %v1647 = vand.u32 2147483647, %v1622
    %vm1648 = vcmp.eq.f32.partialorder %v1647, 8.507059e+37
    %v1649 = vand.u32 %v1622, 2147483648
    %v1650 = vor.u32 1.1754944e-38, %v1649
    %v1651 = vsel %vm1648, %v1650, %v1646
    %v1652 = vmul.f32 1.0, %v1651
    %v1653 = vtanh.pop %v1571
    %v1654 = vtanh.pop %v1575
    %v1655 = vxor.u32 %v1572, 2147483648
    %v1656 = vxor.u32 %v1576, 2147483648
    %v1657 = vmul.f32 %v1655, 1.442695
    %v1658 = vpow.pop %v1657
    %v1659 = vmul.f32 %v1656, 1.442695
    %v1660 = vpow.pop %v1659
    %v1661 = vadd.f32 %v1658, 1.0
    %v1662 = vadd.f32 %v1660, 1.0
    %v1663 = vrcp.pop %v1661
    %v1664 = vmul.f32 %v1661, %v1663
    %v1665 = vsub.f32 1.0, %v1664
    %v1666 = vmul.f32 %v1663, %v1665
    %v1667 = vadd.f32 %v1663, %v1666
    %vm1668 = vweird.f32 %v1661
    %vm1669 = vweird.f32 %v1663
    %vm1670 = vmor %vm1668, %vm1669
    %v1671 = vsel %vm1670, %v1663, %v1667
    %v1672 = vand.u32 2147483647, %v1661
    %vm1673 = vcmp.eq.f32.partialorder %v1672, 8.507059e+37
    %v1674 = vand.u32 %v1661, 2147483648
    %v1675 = vor.u32 1.1754944e-38, %v1674
    %v1676 = vsel %vm1673, %v1675, %v1671
    %v1677 = vmul.f32 1.0, %v1676
    %v1678 = vrcp.pop %v1662
    %v1679 = vmul.f32 %v1662, %v1678
    %v1680 = vsub.f32 1.0, %v1679
    %v1681 = vmul.f32 %v1678, %v1680
    %v1682 = vadd.f32 %v1678, %v1681
    %vm1683 = vweird.f32 %v1662
    %vm1684 = vweird.f32 %v1678
    %vm1685 = vmor %vm1683, %vm1684
    %v1686 = vsel %vm1685, %v1678, %v1682
    %v1687 = vand.u32 2147483647, %v1662
    %vm1688 = vcmp.eq.f32.partialorder %v1687, 8.507059e+37
    %v1689 = vand.u32 %v1662, 2147483648
    %v1690 = vor.u32 1.1754944e-38, %v1689
    %v1691 = vsel %vm1688, %v1690, %v1686
    %v1692 = vmul.f32 1.0, %v1691
    %v1693 = vld [vmem:[#allocation4] sm:$0xff]
    %v1694 = vld [vmem:[#allocation4 + $0x8] sm:$0xff]
    %v1695 = vmul.f32 %v1637, %v1693
    %v1696 = vmul.f32 %v1652, %v1694
    %v1697 = vmul.f32 %v1599, %v1653
    %v1698 = vmul.f32 %v1614, %v1654
    %v1699 = vadd.f32 %v1695, %v1697
    %v1700 = vadd.f32 %v1696, %v1698
    %v1701 = vtanh.pop %v1699
    %v1702 = vtanh.pop %v1700
    %v1703 = vmul.f32 %v1677, %v1701
    %v1704 = vmul.f32 %v1692, %v1702
    %1705 = vst [vmem:[#allocation4] sm:$0xff] %v1699
    %1706 = vst [vmem:[#allocation4 + $0x8] sm:$0xff] %v1700
    %1707 = vst [vmem:[#allocation3] sm:$0xff] %v1703
    %1708 = vst [vmem:[#allocation3 + $0x8] sm:$0xff] %v1704
    %v1709 = vpack.c.bf16 %v1703, %v1703
    %v1710 = vpack.c.bf16 %v1704, %v1704
    %s1711 = scalar_lea.vmem [#allocation13], 8
    %1712 = vst [vmem:[%s1711] sm:$0xf] %v1709
    %1713 = vst [vmem:[%s1711 + $0x4] sm:$0xf] %v1710
    %s1714 = smul.u32 4, 4
    %s1715 = smul.addr %s1714, 8
    %s1716 = scalar_lea.vmem [#allocation2], %s1715
    %v1717 = vld [vmem:[%s1716] sm:$0xff]
    %v1718 = vld [vmem:[%s1716 + $0x8] sm:$0xff]
    %v1719 = vld [vmem:[%s1716 + $0x10] sm:$0xff]
    %v1720 = vld [vmem:[%s1716 + $0x18] sm:$0xff]
    %v1721 = vld [vmem:[%s1716 + $0x20] sm:$0xff]
    %v1722 = vld [vmem:[%s1716 + $0x28] sm:$0xff]
    %v1723 = vld [vmem:[%s1716 + $0x30] sm:$0xff]
    %v1724 = vld [vmem:[%s1716 + $0x38] sm:$0xff]
    %v1725 = vld [vmem:[#allocation3] sm:$0xff]
    %v1726 = vld [vmem:[#allocation3 + $0x8] sm:$0xff]
    %v1727 = vpack.c.bf16 %v1726, %v1725
    %v1728 = vld [vmem:[#allocation10] sm:$0xff]
    %v1729 = vld [vmem:[#allocation10 + $0x8] sm:$0xff]
    %v1730 = vld [vmem:[#allocation10 + $0x10] sm:$0xff]
    %v1731 = vld [vmem:[#allocation10 + $0x18] sm:$0xff]
    %v1732 = vld [vmem:[#allocation10 + $0x20] sm:$0xff]
    %v1733 = vld [vmem:[#allocation10 + $0x28] sm:$0xff]
    %v1734 = vld [vmem:[#allocation10 + $0x30] sm:$0xff]
    %v1735 = vld [vmem:[#allocation10 + $0x38] sm:$0xff]
    %v1736 = vld [vmem:[#allocation10 + $0x40] sm:$0xff]
    %v1737 = vld [vmem:[#allocation10 + $0x48] sm:$0xff]
    %v1738 = vld [vmem:[#allocation10 + $0x50] sm:$0xff]
    %v1739 = vld [vmem:[#allocation10 + $0x58] sm:$0xff]
    %v1740 = vld [vmem:[#allocation10 + $0x60] sm:$0xff]
    %v1741 = vld [vmem:[#allocation10 + $0x68] sm:$0xff]
    %v1742 = vld [vmem:[#allocation10 + $0x70] sm:$0xff]
    %v1743 = vld [vmem:[#allocation10 + $0x78] sm:$0xff]
    %v1744 = vld [vmem:[#allocation10 + $0x80] sm:$0xff]
    %v1745 = vld [vmem:[#allocation10 + $0x88] sm:$0xff]
    %v1746 = vld [vmem:[#allocation10 + $0x90] sm:$0xff]
    %v1747 = vld [vmem:[#allocation10 + $0x98] sm:$0xff]
    %v1748 = vld [vmem:[#allocation10 + $0xa0] sm:$0xff]
    %v1749 = vld [vmem:[#allocation10 + $0xa8] sm:$0xff]
    %v1750 = vld [vmem:[#allocation10 + $0xb0] sm:$0xff]
    %v1751 = vld [vmem:[#allocation10 + $0xb8] sm:$0xff]
    %v1752 = vld [vmem:[#allocation10 + $0xc0] sm:$0xff]
    %v1753 = vld [vmem:[#allocation10 + $0xc8] sm:$0xff]
    %v1754 = vld [vmem:[#allocation10 + $0xd0] sm:$0xff]
    %v1755 = vld [vmem:[#allocation10 + $0xd8] sm:$0xff]
    %v1756 = vld [vmem:[#allocation10 + $0xe0] sm:$0xff]
    %v1757 = vld [vmem:[#allocation10 + $0xe8] sm:$0xff]
    %v1758 = vld [vmem:[#allocation10 + $0xf0] sm:$0xff]
    %v1759 = vld [vmem:[#allocation10 + $0xf8] sm:$0xff]
    %v1792 = vunpack.c.l.b16 %v1728
    %v1793 = vunpack.c.h.b16 %v1728
    %v1794 = vunpack.c.l.b16 %v1729
    %v1795 = vunpack.c.h.b16 %v1729
    %v1796 = vunpack.c.l.b16 %v1730
    %v1797 = vunpack.c.h.b16 %v1730
    %v1798 = vunpack.c.l.b16 %v1731
    %v1799 = vunpack.c.h.b16 %v1731
    %v1800 = vunpack.c.l.b16 %v1732
    %v1801 = vunpack.c.h.b16 %v1732
    %v1802 = vunpack.c.l.b16 %v1733
    %v1803 = vunpack.c.h.b16 %v1733
    %v1804 = vunpack.c.l.b16 %v1734
    %v1805 = vunpack.c.h.b16 %v1734
    %v1806 = vunpack.c.l.b16 %v1735
    %v1807 = vunpack.c.h.b16 %v1735
    %v1808 = vunpack.c.l.b16 %v1736
    %v1809 = vunpack.c.h.b16 %v1736
    %v1810 = vunpack.c.l.b16 %v1737
    %v1811 = vunpack.c.h.b16 %v1737
    %v1812 = vunpack.c.l.b16 %v1738
    %v1813 = vunpack.c.h.b16 %v1738
    %v1814 = vunpack.c.l.b16 %v1739
    %v1815 = vunpack.c.h.b16 %v1739
    %v1816 = vunpack.c.l.b16 %v1740
    %v1817 = vunpack.c.h.b16 %v1740
    %v1818 = vunpack.c.l.b16 %v1741
    %v1819 = vunpack.c.h.b16 %v1741
    %v1820 = vunpack.c.l.b16 %v1742
    %v1821 = vunpack.c.h.b16 %v1742
    %v1822 = vunpack.c.l.b16 %v1743
    %v1823 = vunpack.c.h.b16 %v1743
    %v1824 = vunpack.c.l.b16 %v1744
    %v1825 = vunpack.c.h.b16 %v1744
    %v1826 = vunpack.c.l.b16 %v1745
    %v1827 = vunpack.c.h.b16 %v1745
    %v1828 = vunpack.c.l.b16 %v1746
    %v1829 = vunpack.c.h.b16 %v1746
    %v1830 = vunpack.c.l.b16 %v1747
    %v1831 = vunpack.c.h.b16 %v1747
    %v1832 = vunpack.c.l.b16 %v1748
    %v1833 = vunpack.c.h.b16 %v1748
    %v1834 = vunpack.c.l.b16 %v1749
    %v1835 = vunpack.c.h.b16 %v1749
    %v1836 = vunpack.c.l.b16 %v1750
    %v1837 = vunpack.c.h.b16 %v1750
    %v1838 = vunpack.c.l.b16 %v1751
    %v1839 = vunpack.c.h.b16 %v1751
    %v1840 = vunpack.c.l.b16 %v1752
    %v1841 = vunpack.c.h.b16 %v1752
    %v1842 = vunpack.c.l.b16 %v1753
    %v1843 = vunpack.c.h.b16 %v1753
    %v1844 = vunpack.c.l.b16 %v1754
    %v1845 = vunpack.c.h.b16 %v1754
    %v1846 = vunpack.c.l.b16 %v1755
    %v1847 = vunpack.c.h.b16 %v1755
    %v1848 = vunpack.c.l.b16 %v1756
    %v1849 = vunpack.c.h.b16 %v1756
    %v1850 = vunpack.c.l.b16 %v1757
    %v1851 = vunpack.c.h.b16 %v1757
    %v1852 = vunpack.c.l.b16 %v1758
    %v1853 = vunpack.c.h.b16 %v1758
    %v1854 = vunpack.c.l.b16 %v1759
    %v1855 = vunpack.c.h.b16 %v1759
    %v1856 = vpack.c.b16 %v1796, %v1792
    %v1857 = vpack.c.b16 %v1797, %v1793
    %v1858 = vpack.c.b16 %v1798, %v1794
    %v1859 = vpack.c.b16 %v1799, %v1795
    %v1860 = vpack.c.b16 %v1804, %v1800
    %v1861 = vpack.c.b16 %v1805, %v1801
    %v1862 = vpack.c.b16 %v1806, %v1802
    %v1863 = vpack.c.b16 %v1807, %v1803
    %v1864 = vpack.c.b16 %v1812, %v1808
    %v1865 = vpack.c.b16 %v1813, %v1809
    %v1866 = vpack.c.b16 %v1814, %v1810
    %v1867 = vpack.c.b16 %v1815, %v1811
    %v1868 = vpack.c.b16 %v1820, %v1816
    %v1869 = vpack.c.b16 %v1821, %v1817
    %v1870 = vpack.c.b16 %v1822, %v1818
    %v1871 = vpack.c.b16 %v1823, %v1819
    %v1872 = vpack.c.b16 %v1828, %v1824
    %v1873 = vpack.c.b16 %v1829, %v1825
    %v1874 = vpack.c.b16 %v1830, %v1826
    %v1875 = vpack.c.b16 %v1831, %v1827
    %v1876 = vpack.c.b16 %v1836, %v1832
    %v1877 = vpack.c.b16 %v1837, %v1833
    %v1878 = vpack.c.b16 %v1838, %v1834
    %v1879 = vpack.c.b16 %v1839, %v1835
    %v1880 = vpack.c.b16 %v1844, %v1840
    %v1881 = vpack.c.b16 %v1845, %v1841
    %v1882 = vpack.c.b16 %v1846, %v1842
    %v1883 = vpack.c.b16 %v1847, %v1843
    %v1884 = vpack.c.b16 %v1852, %v1848
    %v1885 = vpack.c.b16 %v1853, %v1849
    %v1886 = vpack.c.b16 %v1854, %v1850
    %v1887 = vpack.c.b16 %v1855, %v1851
    %1920 = vmatpush.bf16.msra.mxu0 %v1884
    %1921 = vmatpush.bf16.msra.mxu0 %v1880
    %1922 = vmatpush.bf16.msra.mxu0 %v1876
    %1923 = vmatpush.bf16.msra.mxu0 %v1872
    %1924 = vmatpush.bf16.msra.mxu0 %v1868
    %1925 = vmatpush.bf16.msra.mxu0 %v1864
    %1926 = vmatpush.bf16.msra.mxu0 %v1860
    %1927 = vmatpush.bf16.msra.mxu0 %v1856
    %1928 = vmatmul.bf16.gmra.mxu0 %v1727
    %v1929 = vpop.f32.mrf.mxu0
    %v1930 = vadd.f32 0.0, %v1929
    %v1931 = vpop.f32.mrf.mxu0
    %v1932 = vadd.f32 0.0, %v1931
    %1933 = vdwg.mxu0
    %1934 = vmatpush.bf16.msra.mxu0 %v1885
    %1935 = vmatpush.bf16.msra.mxu0 %v1881
    %1936 = vmatpush.bf16.msra.mxu0 %v1877
    %1937 = vmatpush.bf16.msra.mxu0 %v1873
    %1938 = vmatpush.bf16.msra.mxu0 %v1869
    %1939 = vmatpush.bf16.msra.mxu0 %v1865
    %1940 = vmatpush.bf16.msra.mxu0 %v1861
    %1941 = vmatpush.bf16.msra.mxu0 %v1857
    %1942 = vmatmul.bf16.gmra.mxu0 %v1727
    %v1943 = vpop.f32.mrf.mxu0
    %v1944 = vadd.f32 0.0, %v1943
    %v1945 = vpop.f32.mrf.mxu0
    %v1946 = vadd.f32 0.0, %v1945
    %1947 = vdwg.mxu0
    %1948 = vmatpush.bf16.msra.mxu0 %v1886
    %1949 = vmatpush.bf16.msra.mxu0 %v1882
    %1950 = vmatpush.bf16.msra.mxu0 %v1878
    %1951 = vmatpush.bf16.msra.mxu0 %v1874
    %1952 = vmatpush.bf16.msra.mxu0 %v1870
    %1953 = vmatpush.bf16.msra.mxu0 %v1866
    %1954 = vmatpush.bf16.msra.mxu0 %v1862
    %1955 = vmatpush.bf16.msra.mxu0 %v1858
    %1956 = vmatmul.bf16.gmra.mxu0 %v1727
    %v1957 = vpop.f32.mrf.mxu0
    %v1958 = vadd.f32 0.0, %v1957
    %v1959 = vpop.f32.mrf.mxu0
    %v1960 = vadd.f32 0.0, %v1959
    %1961 = vdwg.mxu0
    %1962 = vmatpush.bf16.msra.mxu0 %v1887
    %1963 = vmatpush.bf16.msra.mxu0 %v1883
    %1964 = vmatpush.bf16.msra.mxu0 %v1879
    %1965 = vmatpush.bf16.msra.mxu0 %v1875
    %1966 = vmatpush.bf16.msra.mxu0 %v1871
    %1967 = vmatpush.bf16.msra.mxu0 %v1867
    %1968 = vmatpush.bf16.msra.mxu0 %v1863
    %1969 = vmatpush.bf16.msra.mxu0 %v1859
    %1970 = vmatmul.bf16.gmra.mxu0 %v1727
    %v1971 = vpop.f32.mrf.mxu0
    %v1972 = vadd.f32 0.0, %v1971
    %v1973 = vpop.f32.mrf.mxu0
    %v1974 = vadd.f32 0.0, %v1973
    %1975 = vdwg.mxu0
    %v1976 = vadd.f32 %v1717, %v1930
    %v1977 = vadd.f32 %v1718, %v1944
    %v1978 = vadd.f32 %v1719, %v1958
    %v1979 = vadd.f32 %v1720, %v1972
    %v1980 = vadd.f32 %v1721, %v1932
    %v1981 = vadd.f32 %v1722, %v1946
    %v1982 = vadd.f32 %v1723, %v1960
    %v1983 = vadd.f32 %v1724, %v1974
    %v1984 = vxor.u32 %v1976, 2147483648
    %v1985 = vxor.u32 %v1980, 2147483648
    %v1986 = vmul.f32 %v1984, 1.442695
    %v1987 = vpow.pop %v1986
    %v1988 = vmul.f32 %v1985, 1.442695
    %v1989 = vpow.pop %v1988
    %v1990 = vadd.f32 %v1987, 1.0
    %v1991 = vadd.f32 %v1989, 1.0
    %v1992 = vrcp.pop %v1990
    %v1993 = vmul.f32 %v1990, %v1992
    %v1994 = vsub.f32 1.0, %v1993
    %v1995 = vmul.f32 %v1992, %v1994
    %v1996 = vadd.f32 %v1992, %v1995
    %vm1997 = vweird.f32 %v1990
    %vm1998 = vweird.f32 %v1992
    %vm1999 = vmor %vm1997, %vm1998
    %v2000 = vsel %vm1999, %v1992, %v1996
    %v2001 = vand.u32 2147483647, %v1990
    %vm2002 = vcmp.eq.f32.partialorder %v2001, 8.507059e+37
    %v2003 = vand.u32 %v1990, 2147483648
    %v2004 = vor.u32 1.1754944e-38, %v2003
    %v2005 = vsel %vm2002, %v2004, %v2000
    %v2006 = vmul.f32 1.0, %v2005
    %v2007 = vrcp.pop %v1991
    %v2008 = vmul.f32 %v1991, %v2007
    %v2009 = vsub.f32 1.0, %v2008
    %v2010 = vmul.f32 %v2007, %v2009
    %v2011 = vadd.f32 %v2007, %v2010
    %vm2012 = vweird.f32 %v1991
    %vm2013 = vweird.f32 %v2007
    %vm2014 = vmor %vm2012, %vm2013
    %v2015 = vsel %vm2014, %v2007, %v2011
    %v2016 = vand.u32 2147483647, %v1991
    %vm2017 = vcmp.eq.f32.partialorder %v2016, 8.507059e+37
    %v2018 = vand.u32 %v1991, 2147483648
    %v2019 = vor.u32 1.1754944e-38, %v2018
    %v2020 = vsel %vm2017, %v2019, %v2015
    %v2021 = vmul.f32 1.0, %v2020
    %v2022 = vxor.u32 %v1977, 2147483648
    %v2023 = vxor.u32 %v1981, 2147483648
    %v2024 = vmul.f32 %v2022, 1.442695
    %v2025 = vpow.pop %v2024
    %v2026 = vmul.f32 %v2023, 1.442695
    %v2027 = vpow.pop %v2026
    %v2028 = vadd.f32 %v2025, 1.0
    %v2029 = vadd.f32 %v2027, 1.0
    %v2030 = vrcp.pop %v2028
    %v2031 = vmul.f32 %v2028, %v2030
    %v2032 = vsub.f32 1.0, %v2031
    %v2033 = vmul.f32 %v2030, %v2032
    %v2034 = vadd.f32 %v2030, %v2033
    %vm2035 = vweird.f32 %v2028
    %vm2036 = vweird.f32 %v2030
    %vm2037 = vmor %vm2035, %vm2036
    %v2038 = vsel %vm2037, %v2030, %v2034
    %v2039 = vand.u32 2147483647, %v2028
    %vm2040 = vcmp.eq.f32.partialorder %v2039, 8.507059e+37
    %v2041 = vand.u32 %v2028, 2147483648
    %v2042 = vor.u32 1.1754944e-38, %v2041
    %v2043 = vsel %vm2040, %v2042, %v2038
    %v2044 = vmul.f32 1.0, %v2043
    %v2045 = vrcp.pop %v2029
    %v2046 = vmul.f32 %v2029, %v2045
    %v2047 = vsub.f32 1.0, %v2046
    %v2048 = vmul.f32 %v2045, %v2047
    %v2049 = vadd.f32 %v2045, %v2048
    %vm2050 = vweird.f32 %v2029
    %vm2051 = vweird.f32 %v2045
    %vm2052 = vmor %vm2050, %vm2051
    %v2053 = vsel %vm2052, %v2045, %v2049
    %v2054 = vand.u32 2147483647, %v2029
    %vm2055 = vcmp.eq.f32.partialorder %v2054, 8.507059e+37
    %v2056 = vand.u32 %v2029, 2147483648
    %v2057 = vor.u32 1.1754944e-38, %v2056
    %v2058 = vsel %vm2055, %v2057, %v2053
    %v2059 = vmul.f32 1.0, %v2058
    %v2060 = vtanh.pop %v1978
    %v2061 = vtanh.pop %v1982
    %v2062 = vxor.u32 %v1979, 2147483648
    %v2063 = vxor.u32 %v1983, 2147483648
    %v2064 = vmul.f32 %v2062, 1.442695
    %v2065 = vpow.pop %v2064
    %v2066 = vmul.f32 %v2063, 1.442695
    %v2067 = vpow.pop %v2066
    %v2068 = vadd.f32 %v2065, 1.0
    %v2069 = vadd.f32 %v2067, 1.0
    %v2070 = vrcp.pop %v2068
    %v2071 = vmul.f32 %v2068, %v2070
    %v2072 = vsub.f32 1.0, %v2071
    %v2073 = vmul.f32 %v2070, %v2072
    %v2074 = vadd.f32 %v2070, %v2073
    %vm2075 = vweird.f32 %v2068
    %vm2076 = vweird.f32 %v2070
    %vm2077 = vmor %vm2075, %vm2076
    %v2078 = vsel %vm2077, %v2070, %v2074
    %v2079 = vand.u32 2147483647, %v2068
    %vm2080 = vcmp.eq.f32.partialorder %v2079, 8.507059e+37
    %v2081 = vand.u32 %v2068, 2147483648
    %v2082 = vor.u32 1.1754944e-38, %v2081
    %v2083 = vsel %vm2080, %v2082, %v2078
    %v2084 = vmul.f32 1.0, %v2083
    %v2085 = vrcp.pop %v2069
    %v2086 = vmul.f32 %v2069, %v2085
    %v2087 = vsub.f32 1.0, %v2086
    %v2088 = vmul.f32 %v2085, %v2087
    %v2089 = vadd.f32 %v2085, %v2088
    %vm2090 = vweird.f32 %v2069
    %vm2091 = vweird.f32 %v2085
    %vm2092 = vmor %vm2090, %vm2091
    %v2093 = vsel %vm2092, %v2085, %v2089
    %v2094 = vand.u32 2147483647, %v2069
    %vm2095 = vcmp.eq.f32.partialorder %v2094, 8.507059e+37
    %v2096 = vand.u32 %v2069, 2147483648
    %v2097 = vor.u32 1.1754944e-38, %v2096
    %v2098 = vsel %vm2095, %v2097, %v2093
    %v2099 = vmul.f32 1.0, %v2098
    %v2100 = vld [vmem:[#allocation4] sm:$0xff]
    %v2101 = vld [vmem:[#allocation4 + $0x8] sm:$0xff]
    %v2102 = vmul.f32 %v2044, %v2100
    %v2103 = vmul.f32 %v2059, %v2101
    %v2104 = vmul.f32 %v2006, %v2060
    %v2105 = vmul.f32 %v2021, %v2061
    %v2106 = vadd.f32 %v2102, %v2104
    %v2107 = vadd.f32 %v2103, %v2105
    %v2108 = vtanh.pop %v2106
    %v2109 = vtanh.pop %v2107
    %v2110 = vmul.f32 %v2084, %v2108
    %v2111 = vmul.f32 %v2099, %v2109
    %2112 = vst [vmem:[#allocation4] sm:$0xff] %v2106
    %2113 = vst [vmem:[#allocation4 + $0x8] sm:$0xff] %v2107
    %2114 = vst [vmem:[#allocation3] sm:$0xff] %v2110
    %2115 = vst [vmem:[#allocation3 + $0x8] sm:$0xff] %v2111
    %v2116 = vpack.c.bf16 %v2110, %v2110
    %v2117 = vpack.c.bf16 %v2111, %v2111
    %s2118 = scalar_lea.vmem [#allocation13], 16
    %2119 = vst [vmem:[%s2118] sm:$0xf] %v2116
    %2120 = vst [vmem:[%s2118 + $0x4] sm:$0xf] %v2117
    %s2121 = smul.u32 6, 4
    %s2122 = smul.addr %s2121, 8
    %s2123 = scalar_lea.vmem [#allocation2], %s2122
    %v2124 = vld [vmem:[%s2123] sm:$0xff]
    %v2125 = vld [vmem:[%s2123 + $0x8] sm:$0xff]
    %v2126 = vld [vmem:[%s2123 + $0x10] sm:$0xff]
    %v2127 = vld [vmem:[%s2123 + $0x18] sm:$0xff]
    %v2128 = vld [vmem:[%s2123 + $0x20] sm:$0xff]
    %v2129 = vld [vmem:[%s2123 + $0x28] sm:$0xff]
    %v2130 = vld [vmem:[%s2123 + $0x30] sm:$0xff]
    %v2131 = vld [vmem:[%s2123 + $0x38] sm:$0xff]
    %v2132 = vld [vmem:[#allocation3] sm:$0xff]
    %v2133 = vld [vmem:[#allocation3 + $0x8] sm:$0xff]
    %v2134 = vpack.c.bf16 %v2133, %v2132
    %v2135 = vld [vmem:[#allocation10] sm:$0xff]
    %v2136 = vld [vmem:[#allocation10 + $0x8] sm:$0xff]
    %v2137 = vld [vmem:[#allocation10 + $0x10] sm:$0xff]
    %v2138 = vld [vmem:[#allocation10 + $0x18] sm:$0xff]
    %v2139 = vld [vmem:[#allocation10 + $0x20] sm:$0xff]
    %v2140 = vld [vmem:[#allocation10 + $0x28] sm:$0xff]
    %v2141 = vld [vmem:[#allocation10 + $0x30] sm:$0xff]
    %v2142 = vld [vmem:[#allocation10 + $0x38] sm:$0xff]
    %v2143 = vld [vmem:[#allocation10 + $0x40] sm:$0xff]
    %v2144 = vld [vmem:[#allocation10 + $0x48] sm:$0xff]
    %v2145 = vld [vmem:[#allocation10 + $0x50] sm:$0xff]
    %v2146 = vld [vmem:[#allocation10 + $0x58] sm:$0xff]
    %v2147 = vld [vmem:[#allocation10 + $0x60] sm:$0xff]
    %v2148 = vld [vmem:[#allocation10 + $0x68] sm:$0xff]
    %v2149 = vld [vmem:[#allocation10 + $0x70] sm:$0xff]
    %v2150 = vld [vmem:[#allocation10 + $0x78] sm:$0xff]
    %v2151 = vld [vmem:[#allocation10 + $0x80] sm:$0xff]
    %v2152 = vld [vmem:[#allocation10 + $0x88] sm:$0xff]
    %v2153 = vld [vmem:[#allocation10 + $0x90] sm:$0xff]
    %v2154 = vld [vmem:[#allocation10 + $0x98] sm:$0xff]
    %v2155 = vld [vmem:[#allocation10 + $0xa0] sm:$0xff]
    %v2156 = vld [vmem:[#allocation10 + $0xa8] sm:$0xff]
    %v2157 = vld [vmem:[#allocation10 + $0xb0] sm:$0xff]
    %v2158 = vld [vmem:[#allocation10 + $0xb8] sm:$0xff]
    %v2159 = vld [vmem:[#allocation10 + $0xc0] sm:$0xff]
    %v2160 = vld [vmem:[#allocation10 + $0xc8] sm:$0xff]
    %v2161 = vld [vmem:[#allocation10 + $0xd0] sm:$0xff]
    %v2162 = vld [vmem:[#allocation10 + $0xd8] sm:$0xff]
    %v2163 = vld [vmem:[#allocation10 + $0xe0] sm:$0xff]
    %v2164 = vld [vmem:[#allocation10 + $0xe8] sm:$0xff]
    %v2165 = vld [vmem:[#allocation10 + $0xf0] sm:$0xff]
    %v2166 = vld [vmem:[#allocation10 + $0xf8] sm:$0xff]
    %v2199 = vunpack.c.l.b16 %v2135
    %v2200 = vunpack.c.h.b16 %v2135
    %v2201 = vunpack.c.l.b16 %v2136
    %v2202 = vunpack.c.h.b16 %v2136
    %v2203 = vunpack.c.l.b16 %v2137
    %v2204 = vunpack.c.h.b16 %v2137
    %v2205 = vunpack.c.l.b16 %v2138
    %v2206 = vunpack.c.h.b16 %v2138
    %v2207 = vunpack.c.l.b16 %v2139
    %v2208 = vunpack.c.h.b16 %v2139
    %v2209 = vunpack.c.l.b16 %v2140
    %v2210 = vunpack.c.h.b16 %v2140
    %v2211 = vunpack.c.l.b16 %v2141
    %v2212 = vunpack.c.h.b16 %v2141
    %v2213 = vunpack.c.l.b16 %v2142
    %v2214 = vunpack.c.h.b16 %v2142
    %v2215 = vunpack.c.l.b16 %v2143
    %v2216 = vunpack.c.h.b16 %v2143
    %v2217 = vunpack.c.l.b16 %v2144
    %v2218 = vunpack.c.h.b16 %v2144
    %v2219 = vunpack.c.l.b16 %v2145
    %v2220 = vunpack.c.h.b16 %v2145
    %v2221 = vunpack.c.l.b16 %v2146
    %v2222 = vunpack.c.h.b16 %v2146
    %v2223 = vunpack.c.l.b16 %v2147
    %v2224 = vunpack.c.h.b16 %v2147
    %v2225 = vunpack.c.l.b16 %v2148
    %v2226 = vunpack.c.h.b16 %v2148
    %v2227 = vunpack.c.l.b16 %v2149
    %v2228 = vunpack.c.h.b16 %v2149
    %v2229 = vunpack.c.l.b16 %v2150
    %v2230 = vunpack.c.h.b16 %v2150
    %v2231 = vunpack.c.l.b16 %v2151
    %v2232 = vunpack.c.h.b16 %v2151
    %v2233 = vunpack.c.l.b16 %v2152
    %v2234 = vunpack.c.h.b16 %v2152
    %v2235 = vunpack.c.l.b16 %v2153
    %v2236 = vunpack.c.h.b16 %v2153
    %v2237 = vunpack.c.l.b16 %v2154
    %v2238 = vunpack.c.h.b16 %v2154
    %v2239 = vunpack.c.l.b16 %v2155
    %v2240 = vunpack.c.h.b16 %v2155
    %v2241 = vunpack.c.l.b16 %v2156
    %v2242 = vunpack.c.h.b16 %v2156
    %v2243 = vunpack.c.l.b16 %v2157
    %v2244 = vunpack.c.h.b16 %v2157
    %v2245 = vunpack.c.l.b16 %v2158
    %v2246 = vunpack.c.h.b16 %v2158
    %v2247 = vunpack.c.l.b16 %v2159
    %v2248 = vunpack.c.h.b16 %v2159
    %v2249 = vunpack.c.l.b16 %v2160
    %v2250 = vunpack.c.h.b16 %v2160
    %v2251 = vunpack.c.l.b16 %v2161
    %v2252 = vunpack.c.h.b16 %v2161
    %v2253 = vunpack.c.l.b16 %v2162
    %v2254 = vunpack.c.h.b16 %v2162
    %v2255 = vunpack.c.l.b16 %v2163
    %v2256 = vunpack.c.h.b16 %v2163
    %v2257 = vunpack.c.l.b16 %v2164
    %v2258 = vunpack.c.h.b16 %v2164
    %v2259 = vunpack.c.l.b16 %v2165
    %v2260 = vunpack.c.h.b16 %v2165
    %v2261 = vunpack.c.l.b16 %v2166
    %v2262 = vunpack.c.h.b16 %v2166
    %v2263 = vpack.c.b16 %v2203, %v2199
    %v2264 = vpack.c.b16 %v2204, %v2200
    %v2265 = vpack.c.b16 %v2205, %v2201
    %v2266 = vpack.c.b16 %v2206, %v2202
    %v2267 = vpack.c.b16 %v2211, %v2207
    %v2268 = vpack.c.b16 %v2212, %v2208
    %v2269 = vpack.c.b16 %v2213, %v2209
    %v2270 = vpack.c.b16 %v2214, %v2210
    %v2271 = vpack.c.b16 %v2219, %v2215
    %v2272 = vpack.c.b16 %v2220, %v2216
    %v2273 = vpack.c.b16 %v2221, %v2217
    %v2274 = vpack.c.b16 %v2222, %v2218
    %v2275 = vpack.c.b16 %v2227, %v2223
    %v2276 = vpack.c.b16 %v2228, %v2224
    %v2277 = vpack.c.b16 %v2229, %v2225
    %v2278 = vpack.c.b16 %v2230, %v2226
    %v2279 = vpack.c.b16 %v2235, %v2231
    %v2280 = vpack.c.b16 %v2236, %v2232
    %v2281 = vpack.c.b16 %v2237, %v2233
    %v2282 = vpack.c.b16 %v2238, %v2234
    %v2283 = vpack.c.b16 %v2243, %v2239
    %v2284 = vpack.c.b16 %v2244, %v2240
    %v2285 = vpack.c.b16 %v2245, %v2241
    %v2286 = vpack.c.b16 %v2246, %v2242
    %v2287 = vpack.c.b16 %v2251, %v2247
    %v2288 = vpack.c.b16 %v2252, %v2248
    %v2289 = vpack.c.b16 %v2253, %v2249
    %v2290 = vpack.c.b16 %v2254, %v2250
    %v2291 = vpack.c.b16 %v2259, %v2255
    %v2292 = vpack.c.b16 %v2260, %v2256
    %v2293 = vpack.c.b16 %v2261, %v2257
    %v2294 = vpack.c.b16 %v2262, %v2258
    %2327 = vmatpush.bf16.msra.mxu0 %v2291
    %2328 = vmatpush.bf16.msra.mxu0 %v2287
    %2329 = vmatpush.bf16.msra.mxu0 %v2283
    %2330 = vmatpush.bf16.msra.mxu0 %v2279
    %2331 = vmatpush.bf16.msra.mxu0 %v2275
    %2332 = vmatpush.bf16.msra.mxu0 %v2271
    %2333 = vmatpush.bf16.msra.mxu0 %v2267
    %2334 = vmatpush.bf16.msra.mxu0 %v2263
    %2335 = vmatmul.bf16.gmra.mxu0 %v2134
    %v2336 = vpop.f32.mrf.mxu0
    %v2337 = vadd.f32 0.0, %v2336
    %v2338 = vpop.f32.mrf.mxu0
    %v2339 = vadd.f32 0.0, %v2338
    %2340 = vdwg.mxu0
    %2341 = vmatpush.bf16.msra.mxu0 %v2292
    %2342 = vmatpush.bf16.msra.mxu0 %v2288
    %2343 = vmatpush.bf16.msra.mxu0 %v2284
    %2344 = vmatpush.bf16.msra.mxu0 %v2280
    %2345 = vmatpush.bf16.msra.mxu0 %v2276
    %2346 = vmatpush.bf16.msra.mxu0 %v2272
    %2347 = vmatpush.bf16.msra.mxu0 %v2268
    %2348 = vmatpush.bf16.msra.mxu0 %v2264
    %2349 = vmatmul.bf16.gmra.mxu0 %v2134
    %v2350 = vpop.f32.mrf.mxu0
    %v2351 = vadd.f32 0.0, %v2350
    %v2352 = vpop.f32.mrf.mxu0
    %v2353 = vadd.f32 0.0, %v2352
    %2354 = vdwg.mxu0
    %2355 = vmatpush.bf16.msra.mxu0 %v2293
    %2356 = vmatpush.bf16.msra.mxu0 %v2289
    %2357 = vmatpush.bf16.msra.mxu0 %v2285
    %2358 = vmatpush.bf16.msra.mxu0 %v2281
    %2359 = vmatpush.bf16.msra.mxu0 %v2277
    %2360 = vmatpush.bf16.msra.mxu0 %v2273
    %2361 = vmatpush.bf16.msra.mxu0 %v2269
    %2362 = vmatpush.bf16.msra.mxu0 %v2265
    %2363 = vmatmul.bf16.gmra.mxu0 %v2134
    %v2364 = vpop.f32.mrf.mxu0
    %v2365 = vadd.f32 0.0, %v2364
    %v2366 = vpop.f32.mrf.mxu0
    %v2367 = vadd.f32 0.0, %v2366
    %2368 = vdwg.mxu0
    %2369 = vmatpush.bf16.msra.mxu0 %v2294
    %2370 = vmatpush.bf16.msra.mxu0 %v2290
    %2371 = vmatpush.bf16.msra.mxu0 %v2286
    %2372 = vmatpush.bf16.msra.mxu0 %v2282
    %2373 = vmatpush.bf16.msra.mxu0 %v2278
    %2374 = vmatpush.bf16.msra.mxu0 %v2274
    %2375 = vmatpush.bf16.msra.mxu0 %v2270
    %2376 = vmatpush.bf16.msra.mxu0 %v2266
    %2377 = vmatmul.bf16.gmra.mxu0 %v2134
    %v2378 = vpop.f32.mrf.mxu0
    %v2379 = vadd.f32 0.0, %v2378
    %v2380 = vpop.f32.mrf.mxu0
    %v2381 = vadd.f32 0.0, %v2380
    %2382 = vdwg.mxu0
    %v2383 = vadd.f32 %v2124, %v2337
    %v2384 = vadd.f32 %v2125, %v2351
    %v2385 = vadd.f32 %v2126, %v2365
    %v2386 = vadd.f32 %v2127, %v2379
    %v2387 = vadd.f32 %v2128, %v2339
    %v2388 = vadd.f32 %v2129, %v2353
    %v2389 = vadd.f32 %v2130, %v2367
    %v2390 = vadd.f32 %v2131, %v2381
    %v2391 = vxor.u32 %v2383, 2147483648
    %v2392 = vxor.u32 %v2387, 2147483648
    %v2393 = vmul.f32 %v2391, 1.442695
    %v2394 = vpow.pop %v2393
    %v2395 = vmul.f32 %v2392, 1.442695
    %v2396 = vpow.pop %v2395
    %v2397 = vadd.f32 %v2394, 1.0
    %v2398 = vadd.f32 %v2396, 1.0
    %v2399 = vrcp.pop %v2397
    %v2400 = vmul.f32 %v2397, %v2399
    %v2401 = vsub.f32 1.0, %v2400
    %v2402 = vmul.f32 %v2399, %v2401
    %v2403 = vadd.f32 %v2399, %v2402
    %vm2404 = vweird.f32 %v2397
    %vm2405 = vweird.f32 %v2399
    %vm2406 = vmor %vm2404, %vm2405
    %v2407 = vsel %vm2406, %v2399, %v2403
    %v2408 = vand.u32 2147483647, %v2397
    %vm2409 = vcmp.eq.f32.partialorder %v2408, 8.507059e+37
    %v2410 = vand.u32 %v2397, 2147483648
    %v2411 = vor.u32 1.1754944e-38, %v2410
    %v2412 = vsel %vm2409, %v2411, %v2407
    %v2413 = vmul.f32 1.0, %v2412
    %v2414 = vrcp.pop %v2398
    %v2415 = vmul.f32 %v2398, %v2414
    %v2416 = vsub.f32 1.0, %v2415
    %v2417 = vmul.f32 %v2414, %v2416
    %v2418 = vadd.f32 %v2414, %v2417
    %vm2419 = vweird.f32 %v2398
    %vm2420 = vweird.f32 %v2414
    %vm2421 = vmor %vm2419, %vm2420
    %v2422 = vsel %vm2421, %v2414, %v2418
    %v2423 = vand.u32 2147483647, %v2398
    %vm2424 = vcmp.eq.f32.partialorder %v2423, 8.507059e+37
    %v2425 = vand.u32 %v2398, 2147483648
    %v2426 = vor.u32 1.1754944e-38, %v2425
    %v2427 = vsel %vm2424, %v2426, %v2422
    %v2428 = vmul.f32 1.0, %v2427
    %v2429 = vxor.u32 %v2384, 2147483648
    %v2430 = vxor.u32 %v2388, 2147483648
    %v2431 = vmul.f32 %v2429, 1.442695
    %v2432 = vpow.pop %v2431
    %v2433 = vmul.f32 %v2430, 1.442695
    %v2434 = vpow.pop %v2433
    %v2435 = vadd.f32 %v2432, 1.0
    %v2436 = vadd.f32 %v2434, 1.0
    %v2437 = vrcp.pop %v2435
    %v2438 = vmul.f32 %v2435, %v2437
    %v2439 = vsub.f32 1.0, %v2438
    %v2440 = vmul.f32 %v2437, %v2439
    %v2441 = vadd.f32 %v2437, %v2440
    %vm2442 = vweird.f32 %v2435
    %vm2443 = vweird.f32 %v2437
    %vm2444 = vmor %vm2442, %vm2443
    %v2445 = vsel %vm2444, %v2437, %v2441
    %v2446 = vand.u32 2147483647, %v2435
    %vm2447 = vcmp.eq.f32.partialorder %v2446, 8.507059e+37
    %v2448 = vand.u32 %v2435, 2147483648
    %v2449 = vor.u32 1.1754944e-38, %v2448
    %v2450 = vsel %vm2447, %v2449, %v2445
    %v2451 = vmul.f32 1.0, %v2450
    %v2452 = vrcp.pop %v2436
    %v2453 = vmul.f32 %v2436, %v2452
    %v2454 = vsub.f32 1.0, %v2453
    %v2455 = vmul.f32 %v2452, %v2454
    %v2456 = vadd.f32 %v2452, %v2455
    %vm2457 = vweird.f32 %v2436
    %vm2458 = vweird.f32 %v2452
    %vm2459 = vmor %vm2457, %vm2458
    %v2460 = vsel %vm2459, %v2452, %v2456
    %v2461 = vand.u32 2147483647, %v2436
    %vm2462 = vcmp.eq.f32.partialorder %v2461, 8.507059e+37
    %v2463 = vand.u32 %v2436, 2147483648
    %v2464 = vor.u32 1.1754944e-38, %v2463
    %v2465 = vsel %vm2462, %v2464, %v2460
    %v2466 = vmul.f32 1.0, %v2465
    %v2467 = vtanh.pop %v2385
    %v2468 = vtanh.pop %v2389
    %v2469 = vxor.u32 %v2386, 2147483648
    %v2470 = vxor.u32 %v2390, 2147483648
    %v2471 = vmul.f32 %v2469, 1.442695
    %v2472 = vpow.pop %v2471
    %v2473 = vmul.f32 %v2470, 1.442695
    %v2474 = vpow.pop %v2473
    %v2475 = vadd.f32 %v2472, 1.0
    %v2476 = vadd.f32 %v2474, 1.0
    %v2477 = vrcp.pop %v2475
    %v2478 = vmul.f32 %v2475, %v2477
    %v2479 = vsub.f32 1.0, %v2478
    %v2480 = vmul.f32 %v2477, %v2479
    %v2481 = vadd.f32 %v2477, %v2480
    %vm2482 = vweird.f32 %v2475
    %vm2483 = vweird.f32 %v2477
    %vm2484 = vmor %vm2482, %vm2483
    %v2485 = vsel %vm2484, %v2477, %v2481
    %v2486 = vand.u32 2147483647, %v2475
    %vm2487 = vcmp.eq.f32.partialorder %v2486, 8.507059e+37
    %v2488 = vand.u32 %v2475, 2147483648
    %v2489 = vor.u32 1.1754944e-38, %v2488
    %v2490 = vsel %vm2487, %v2489, %v2485
    %v2491 = vmul.f32 1.0, %v2490
    %v2492 = vrcp.pop %v2476
    %v2493 = vmul.f32 %v2476, %v2492
    %v2494 = vsub.f32 1.0, %v2493
    %v2495 = vmul.f32 %v2492, %v2494
    %v2496 = vadd.f32 %v2492, %v2495
    %vm2497 = vweird.f32 %v2476
    %vm2498 = vweird.f32 %v2492
    %vm2499 = vmor %vm2497, %vm2498
    %v2500 = vsel %vm2499, %v2492, %v2496
    %v2501 = vand.u32 2147483647, %v2476
    %vm2502 = vcmp.eq.f32.partialorder %v2501, 8.507059e+37
    %v2503 = vand.u32 %v2476, 2147483648
    %v2504 = vor.u32 1.1754944e-38, %v2503
    %v2505 = vsel %vm2502, %v2504, %v2500
    %v2506 = vmul.f32 1.0, %v2505
    %v2507 = vld [vmem:[#allocation4] sm:$0xff]
    %v2508 = vld [vmem:[#allocation4 + $0x8] sm:$0xff]
    %v2509 = vmul.f32 %v2451, %v2507
    %v2510 = vmul.f32 %v2466, %v2508
    %v2511 = vmul.f32 %v2413, %v2467
    %v2512 = vmul.f32 %v2428, %v2468
    %v2513 = vadd.f32 %v2509, %v2511
    %v2514 = vadd.f32 %v2510, %v2512
    %v2515 = vtanh.pop %v2513
    %v2516 = vtanh.pop %v2514
    %v2517 = vmul.f32 %v2491, %v2515
    %v2518 = vmul.f32 %v2506, %v2516
    %2519 = vst [vmem:[#allocation4] sm:$0xff] %v2513
    %2520 = vst [vmem:[#allocation4 + $0x8] sm:$0xff] %v2514
    %2521 = vst [vmem:[#allocation3] sm:$0xff] %v2517
    %2522 = vst [vmem:[#allocation3 + $0x8] sm:$0xff] %v2518
    %v2523 = vpack.c.bf16 %v2517, %v2517
    %v2524 = vpack.c.bf16 %v2518, %v2518
    %s2525 = scalar_lea.vmem [#allocation13], 24
    %2526 = vst [vmem:[%s2525] sm:$0xf] %v2523
    %2527 = vst [vmem:[%s2525 + $0x4] sm:$0xf] %v2524
    %s2528 = smul.u32 8, 4
    %s2529 = smul.addr %s2528, 8
    %s2530 = scalar_lea.vmem [#allocation2], %s2529
    %v2531 = vld [vmem:[%s2530] sm:$0xff]
    %v2532 = vld [vmem:[%s2530 + $0x8] sm:$0xff]
    %v2533 = vld [vmem:[%s2530 + $0x10] sm:$0xff]
    %v2534 = vld [vmem:[%s2530 + $0x18] sm:$0xff]
    %v2535 = vld [vmem:[%s2530 + $0x20] sm:$0xff]
    %v2536 = vld [vmem:[%s2530 + $0x28] sm:$0xff]
    %v2537 = vld [vmem:[%s2530 + $0x30] sm:$0xff]
    %v2538 = vld [vmem:[%s2530 + $0x38] sm:$0xff]
    %v2539 = vld [vmem:[#allocation3] sm:$0xff]
    %v2540 = vld [vmem:[#allocation3 + $0x8] sm:$0xff]
    %v2541 = vpack.c.bf16 %v2540, %v2539
    %v2542 = vld [vmem:[#allocation10] sm:$0xff]
    %v2543 = vld [vmem:[#allocation10 + $0x8] sm:$0xff]
    %v2544 = vld [vmem:[#allocation10 + $0x10] sm:$0xff]
    %v2545 = vld [vmem:[#allocation10 + $0x18] sm:$0xff]
    %v2546 = vld [vmem:[#allocation10 + $0x20] sm:$0xff]
    %v2547 = vld [vmem:[#allocation10 + $0x28] sm:$0xff]
    %v2548 = vld [vmem:[#allocation10 + $0x30] sm:$0xff]
    %v2549 = vld [vmem:[#allocation10 + $0x38] sm:$0xff]
    %v2550 = vld [vmem:[#allocation10 + $0x40] sm:$0xff]
    %v2551 = vld [vmem:[#allocation10 + $0x48] sm:$0xff]
    %v2552 = vld [vmem:[#allocation10 + $0x50] sm:$0xff]
    %v2553 = vld [vmem:[#allocation10 + $0x58] sm:$0xff]
    %v2554 = vld [vmem:[#allocation10 + $0x60] sm:$0xff]
    %v2555 = vld [vmem:[#allocation10 + $0x68] sm:$0xff]
    %v2556 = vld [vmem:[#allocation10 + $0x70] sm:$0xff]
    %v2557 = vld [vmem:[#allocation10 + $0x78] sm:$0xff]
    %v2558 = vld [vmem:[#allocation10 + $0x80] sm:$0xff]
    %v2559 = vld [vmem:[#allocation10 + $0x88] sm:$0xff]
    %v2560 = vld [vmem:[#allocation10 + $0x90] sm:$0xff]
    %v2561 = vld [vmem:[#allocation10 + $0x98] sm:$0xff]
    %v2562 = vld [vmem:[#allocation10 + $0xa0] sm:$0xff]
    %v2563 = vld [vmem:[#allocation10 + $0xa8] sm:$0xff]
    %v2564 = vld [vmem:[#allocation10 + $0xb0] sm:$0xff]
    %v2565 = vld [vmem:[#allocation10 + $0xb8] sm:$0xff]
    %v2566 = vld [vmem:[#allocation10 + $0xc0] sm:$0xff]
    %v2567 = vld [vmem:[#allocation10 + $0xc8] sm:$0xff]
    %v2568 = vld [vmem:[#allocation10 + $0xd0] sm:$0xff]
    %v2569 = vld [vmem:[#allocation10 + $0xd8] sm:$0xff]
    %v2570 = vld [vmem:[#allocation10 + $0xe0] sm:$0xff]
    %v2571 = vld [vmem:[#allocation10 + $0xe8] sm:$0xff]
    %v2572 = vld [vmem:[#allocation10 + $0xf0] sm:$0xff]
    %v2573 = vld [vmem:[#allocation10 + $0xf8] sm:$0xff]
    %v2606 = vunpack.c.l.b16 %v2542
    %v2607 = vunpack.c.h.b16 %v2542
    %v2608 = vunpack.c.l.b16 %v2543
    %v2609 = vunpack.c.h.b16 %v2543
    %v2610 = vunpack.c.l.b16 %v2544
    %v2611 = vunpack.c.h.b16 %v2544
    %v2612 = vunpack.c.l.b16 %v2545
    %v2613 = vunpack.c.h.b16 %v2545
    %v2614 = vunpack.c.l.b16 %v2546
    %v2615 = vunpack.c.h.b16 %v2546
    %v2616 = vunpack.c.l.b16 %v2547
    %v2617 = vunpack.c.h.b16 %v2547
    %v2618 = vunpack.c.l.b16 %v2548
    %v2619 = vunpack.c.h.b16 %v2548
    %v2620 = vunpack.c.l.b16 %v2549
    %v2621 = vunpack.c.h.b16 %v2549
    %v2622 = vunpack.c.l.b16 %v2550
    %v2623 = vunpack.c.h.b16 %v2550
    %v2624 = vunpack.c.l.b16 %v2551
    %v2625 = vunpack.c.h.b16 %v2551
    %v2626 = vunpack.c.l.b16 %v2552
    %v2627 = vunpack.c.h.b16 %v2552
    %v2628 = vunpack.c.l.b16 %v2553
    %v2629 = vunpack.c.h.b16 %v2553
    %v2630 = vunpack.c.l.b16 %v2554
    %v2631 = vunpack.c.h.b16 %v2554
    %v2632 = vunpack.c.l.b16 %v2555
    %v2633 = vunpack.c.h.b16 %v2555
    %v2634 = vunpack.c.l.b16 %v2556
    %v2635 = vunpack.c.h.b16 %v2556
    %v2636 = vunpack.c.l.b16 %v2557
    %v2637 = vunpack.c.h.b16 %v2557
    %v2638 = vunpack.c.l.b16 %v2558
    %v2639 = vunpack.c.h.b16 %v2558
    %v2640 = vunpack.c.l.b16 %v2559
    %v2641 = vunpack.c.h.b16 %v2559
    %v2642 = vunpack.c.l.b16 %v2560
    %v2643 = vunpack.c.h.b16 %v2560
    %v2644 = vunpack.c.l.b16 %v2561
    %v2645 = vunpack.c.h.b16 %v2561
    %v2646 = vunpack.c.l.b16 %v2562
    %v2647 = vunpack.c.h.b16 %v2562
    %v2648 = vunpack.c.l.b16 %v2563
    %v2649 = vunpack.c.h.b16 %v2563
    %v2650 = vunpack.c.l.b16 %v2564
    %v2651 = vunpack.c.h.b16 %v2564
    %v2652 = vunpack.c.l.b16 %v2565
    %v2653 = vunpack.c.h.b16 %v2565
    %v2654 = vunpack.c.l.b16 %v2566
    %v2655 = vunpack.c.h.b16 %v2566
    %v2656 = vunpack.c.l.b16 %v2567
    %v2657 = vunpack.c.h.b16 %v2567
    %v2658 = vunpack.c.l.b16 %v2568
    %v2659 = vunpack.c.h.b16 %v2568
    %v2660 = vunpack.c.l.b16 %v2569
    %v2661 = vunpack.c.h.b16 %v2569
    %v2662 = vunpack.c.l.b16 %v2570
    %v2663 = vunpack.c.h.b16 %v2570
    %v2664 = vunpack.c.l.b16 %v2571
    %v2665 = vunpack.c.h.b16 %v2571
    %v2666 = vunpack.c.l.b16 %v2572
    %v2667 = vunpack.c.h.b16 %v2572
    %v2668 = vunpack.c.l.b16 %v2573
    %v2669 = vunpack.c.h.b16 %v2573
    %v2670 = vpack.c.b16 %v2610, %v2606
    %v2671 = vpack.c.b16 %v2611, %v2607
    %v2672 = vpack.c.b16 %v2612, %v2608
    %v2673 = vpack.c.b16 %v2613, %v2609
    %v2674 = vpack.c.b16 %v2618, %v2614
    %v2675 = vpack.c.b16 %v2619, %v2615
    %v2676 = vpack.c.b16 %v2620, %v2616
    %v2677 = vpack.c.b16 %v2621, %v2617
    %v2678 = vpack.c.b16 %v2626, %v2622
    %v2679 = vpack.c.b16 %v2627, %v2623
    %v2680 = vpack.c.b16 %v2628, %v2624
    %v2681 = vpack.c.b16 %v2629, %v2625
    %v2682 = vpack.c.b16 %v2634, %v2630
    %v2683 = vpack.c.b16 %v2635, %v2631
    %v2684 = vpack.c.b16 %v2636, %v2632
    %v2685 = vpack.c.b16 %v2637, %v2633
    %v2686 = vpack.c.b16 %v2642, %v2638
    %v2687 = vpack.c.b16 %v2643, %v2639
    %v2688 = vpack.c.b16 %v2644, %v2640
    %v2689 = vpack.c.b16 %v2645, %v2641
    %v2690 = vpack.c.b16 %v2650, %v2646
    %v2691 = vpack.c.b16 %v2651, %v2647
    %v2692 = vpack.c.b16 %v2652, %v2648
    %v2693 = vpack.c.b16 %v2653, %v2649
    %v2694 = vpack.c.b16 %v2658, %v2654
    %v2695 = vpack.c.b16 %v2659, %v2655
    %v2696 = vpack.c.b16 %v2660, %v2656
    %v2697 = vpack.c.b16 %v2661, %v2657
    %v2698 = vpack.c.b16 %v2666, %v2662
    %v2699 = vpack.c.b16 %v2667, %v2663
    %v2700 = vpack.c.b16 %v2668, %v2664
    %v2701 = vpack.c.b16 %v2669, %v2665
    %2734 = vmatpush.bf16.msra.mxu0 %v2698
    %2735 = vmatpush.bf16.msra.mxu0 %v2694
    %2736 = vmatpush.bf16.msra.mxu0 %v2690
    %2737 = vmatpush.bf16.msra.mxu0 %v2686
    %2738 = vmatpush.bf16.msra.mxu0 %v2682
    %2739 = vmatpush.bf16.msra.mxu0 %v2678
    %2740 = vmatpush.bf16.msra.mxu0 %v2674
    %2741 = vmatpush.bf16.msra.mxu0 %v2670
    %2742 = vmatmul.bf16.gmra.mxu0 %v2541
    %v2743 = vpop.f32.mrf.mxu0
    %v2744 = vadd.f32 0.0, %v2743
    %v2745 = vpop.f32.mrf.mxu0
    %v2746 = vadd.f32 0.0, %v2745
    %2747 = vdwg.mxu0
    %2748 = vmatpush.bf16.msra.mxu0 %v2699
    %2749 = vmatpush.bf16.msra.mxu0 %v2695
    %2750 = vmatpush.bf16.msra.mxu0 %v2691
    %2751 = vmatpush.bf16.msra.mxu0 %v2687
    %2752 = vmatpush.bf16.msra.mxu0 %v2683
    %2753 = vmatpush.bf16.msra.mxu0 %v2679
    %2754 = vmatpush.bf16.msra.mxu0 %v2675
    %2755 = vmatpush.bf16.msra.mxu0 %v2671
    %2756 = vmatmul.bf16.gmra.mxu0 %v2541
    %v2757 = vpop.f32.mrf.mxu0
    %v2758 = vadd.f32 0.0, %v2757
    %v2759 = vpop.f32.mrf.mxu0
    %v2760 = vadd.f32 0.0, %v2759
    %2761 = vdwg.mxu0
    %2762 = vmatpush.bf16.msra.mxu0 %v2700
    %2763 = vmatpush.bf16.msra.mxu0 %v2696
    %2764 = vmatpush.bf16.msra.mxu0 %v2692
    %2765 = vmatpush.bf16.msra.mxu0 %v2688
    %2766 = vmatpush.bf16.msra.mxu0 %v2684
    %2767 = vmatpush.bf16.msra.mxu0 %v2680
    %2768 = vmatpush.bf16.msra.mxu0 %v2676
    %2769 = vmatpush.bf16.msra.mxu0 %v2672
    %2770 = vmatmul.bf16.gmra.mxu0 %v2541
    %v2771 = vpop.f32.mrf.mxu0
    %v2772 = vadd.f32 0.0, %v2771
    %v2773 = vpop.f32.mrf.mxu0
    %v2774 = vadd.f32 0.0, %v2773
    %2775 = vdwg.mxu0
    %2776 = vmatpush.bf16.msra.mxu0 %v2701
    %2777 = vmatpush.bf16.msra.mxu0 %v2697
    %2778 = vmatpush.bf16.msra.mxu0 %v2693
    %2779 = vmatpush.bf16.msra.mxu0 %v2689
    %2780 = vmatpush.bf16.msra.mxu0 %v2685
    %2781 = vmatpush.bf16.msra.mxu0 %v2681
    %2782 = vmatpush.bf16.msra.mxu0 %v2677
    %2783 = vmatpush.bf16.msra.mxu0 %v2673
    %2784 = vmatmul.bf16.gmra.mxu0 %v2541
    %v2785 = vpop.f32.mrf.mxu0
    %v2786 = vadd.f32 0.0, %v2785
    %v2787 = vpop.f32.mrf.mxu0
    %v2788 = vadd.f32 0.0, %v2787
    %2789 = vdwg.mxu0
    %v2790 = vadd.f32 %v2531, %v2744
    %v2791 = vadd.f32 %v2532, %v2758
    %v2792 = vadd.f32 %v2533, %v2772
    %v2793 = vadd.f32 %v2534, %v2786
    %v2794 = vadd.f32 %v2535, %v2746
    %v2795 = vadd.f32 %v2536, %v2760
    %v2796 = vadd.f32 %v2537, %v2774
    %v2797 = vadd.f32 %v2538, %v2788
    %v2798 = vxor.u32 %v2790, 2147483648
    %v2799 = vxor.u32 %v2794, 2147483648
    %v2800 = vmul.f32 %v2798, 1.442695
    %v2801 = vpow.pop %v2800
    %v2802 = vmul.f32 %v2799, 1.442695
    %v2803 = vpow.pop %v2802
    %v2804 = vadd.f32 %v2801, 1.0
    %v2805 = vadd.f32 %v2803, 1.0
    %v2806 = vrcp.pop %v2804
    %v2807 = vmul.f32 %v2804, %v2806
    %v2808 = vsub.f32 1.0, %v2807
    %v2809 = vmul.f32 %v2806, %v2808
    %v2810 = vadd.f32 %v2806, %v2809
    %vm2811 = vweird.f32 %v2804
    %vm2812 = vweird.f32 %v2806
    %vm2813 = vmor %vm2811, %vm2812
    %v2814 = vsel %vm2813, %v2806, %v2810
    %v2815 = vand.u32 2147483647, %v2804
    %vm2816 = vcmp.eq.f32.partialorder %v2815, 8.507059e+37
    %v2817 = vand.u32 %v2804, 2147483648
    %v2818 = vor.u32 1.1754944e-38, %v2817
    %v2819 = vsel %vm2816, %v2818, %v2814
    %v2820 = vmul.f32 1.0, %v2819
    %v2821 = vrcp.pop %v2805
    %v2822 = vmul.f32 %v2805, %v2821
    %v2823 = vsub.f32 1.0, %v2822
    %v2824 = vmul.f32 %v2821, %v2823
    %v2825 = vadd.f32 %v2821, %v2824
    %vm2826 = vweird.f32 %v2805
    %vm2827 = vweird.f32 %v2821
    %vm2828 = vmor %vm2826, %vm2827
    %v2829 = vsel %vm2828, %v2821, %v2825
    %v2830 = vand.u32 2147483647, %v2805
    %vm2831 = vcmp.eq.f32.partialorder %v2830, 8.507059e+37
    %v2832 = vand.u32 %v2805, 2147483648
    %v2833 = vor.u32 1.1754944e-38, %v2832
    %v2834 = vsel %vm2831, %v2833, %v2829
    %v2835 = vmul.f32 1.0, %v2834
    %v2836 = vxor.u32 %v2791, 2147483648
    %v2837 = vxor.u32 %v2795, 2147483648
    %v2838 = vmul.f32 %v2836, 1.442695
    %v2839 = vpow.pop %v2838
    %v2840 = vmul.f32 %v2837, 1.442695
    %v2841 = vpow.pop %v2840
    %v2842 = vadd.f32 %v2839, 1.0
    %v2843 = vadd.f32 %v2841, 1.0
    %v2844 = vrcp.pop %v2842
    %v2845 = vmul.f32 %v2842, %v2844
    %v2846 = vsub.f32 1.0, %v2845
    %v2847 = vmul.f32 %v2844, %v2846
    %v2848 = vadd.f32 %v2844, %v2847
    %vm2849 = vweird.f32 %v2842
    %vm2850 = vweird.f32 %v2844
    %vm2851 = vmor %vm2849, %vm2850
    %v2852 = vsel %vm2851, %v2844, %v2848
    %v2853 = vand.u32 2147483647, %v2842
    %vm2854 = vcmp.eq.f32.partialorder %v2853, 8.507059e+37
    %v2855 = vand.u32 %v2842, 2147483648
    %v2856 = vor.u32 1.1754944e-38, %v2855
    %v2857 = vsel %vm2854, %v2856, %v2852
    %v2858 = vmul.f32 1.0, %v2857
    %v2859 = vrcp.pop %v2843
    %v2860 = vmul.f32 %v2843, %v2859
    %v2861 = vsub.f32 1.0, %v2860
    %v2862 = vmul.f32 %v2859, %v2861
    %v2863 = vadd.f32 %v2859, %v2862
    %vm2864 = vweird.f32 %v2843
    %vm2865 = vweird.f32 %v2859
    %vm2866 = vmor %vm2864, %vm2865
    %v2867 = vsel %vm2866, %v2859, %v2863
    %v2868 = vand.u32 2147483647, %v2843
    %vm2869 = vcmp.eq.f32.partialorder %v2868, 8.507059e+37
    %v2870 = vand.u32 %v2843, 2147483648
    %v2871 = vor.u32 1.1754944e-38, %v2870
    %v2872 = vsel %vm2869, %v2871, %v2867
    %v2873 = vmul.f32 1.0, %v2872
    %v2874 = vtanh.pop %v2792
    %v2875 = vtanh.pop %v2796
    %v2876 = vxor.u32 %v2793, 2147483648
    %v2877 = vxor.u32 %v2797, 2147483648
    %v2878 = vmul.f32 %v2876, 1.442695
    %v2879 = vpow.pop %v2878
    %v2880 = vmul.f32 %v2877, 1.442695
    %v2881 = vpow.pop %v2880
    %v2882 = vadd.f32 %v2879, 1.0
    %v2883 = vadd.f32 %v2881, 1.0
    %v2884 = vrcp.pop %v2882
    %v2885 = vmul.f32 %v2882, %v2884
    %v2886 = vsub.f32 1.0, %v2885
    %v2887 = vmul.f32 %v2884, %v2886
    %v2888 = vadd.f32 %v2884, %v2887
    %vm2889 = vweird.f32 %v2882
    %vm2890 = vweird.f32 %v2884
    %vm2891 = vmor %vm2889, %vm2890
    %v2892 = vsel %vm2891, %v2884, %v2888
    %v2893 = vand.u32 2147483647, %v2882
    %vm2894 = vcmp.eq.f32.partialorder %v2893, 8.507059e+37
    %v2895 = vand.u32 %v2882, 2147483648
    %v2896 = vor.u32 1.1754944e-38, %v2895
    %v2897 = vsel %vm2894, %v2896, %v2892
    %v2898 = vmul.f32 1.0, %v2897
    %v2899 = vrcp.pop %v2883
    %v2900 = vmul.f32 %v2883, %v2899
    %v2901 = vsub.f32 1.0, %v2900
    %v2902 = vmul.f32 %v2899, %v2901
    %v2903 = vadd.f32 %v2899, %v2902
    %vm2904 = vweird.f32 %v2883
    %vm2905 = vweird.f32 %v2899
    %vm2906 = vmor %vm2904, %vm2905
    %v2907 = vsel %vm2906, %v2899, %v2903
    %v2908 = vand.u32 2147483647, %v2883
    %vm2909 = vcmp.eq.f32.partialorder %v2908, 8.507059e+37
    %v2910 = vand.u32 %v2883, 2147483648
    %v2911 = vor.u32 1.1754944e-38, %v2910
    %v2912 = vsel %vm2909, %v2911, %v2907
    %v2913 = vmul.f32 1.0, %v2912
    %v2914 = vld [vmem:[#allocation4] sm:$0xff]
    %v2915 = vld [vmem:[#allocation4 + $0x8] sm:$0xff]
    %v2916 = vmul.f32 %v2858, %v2914
    %v2917 = vmul.f32 %v2873, %v2915
    %v2918 = vmul.f32 %v2820, %v2874
    %v2919 = vmul.f32 %v2835, %v2875
    %v2920 = vadd.f32 %v2916, %v2918
    %v2921 = vadd.f32 %v2917, %v2919
    %v2922 = vtanh.pop %v2920
    %v2923 = vtanh.pop %v2921
    %v2924 = vmul.f32 %v2898, %v2922
    %v2925 = vmul.f32 %v2913, %v2923
    %2926 = vst [vmem:[#allocation4] sm:$0xff] %v2920
    %2927 = vst [vmem:[#allocation4 + $0x8] sm:$0xff] %v2921
    %2928 = vst [vmem:[#allocation3] sm:$0xff] %v2924
    %2929 = vst [vmem:[#allocation3 + $0x8] sm:$0xff] %v2925
    %v2930 = vpack.c.bf16 %v2924, %v2924
    %v2931 = vpack.c.bf16 %v2925, %v2925
    %s2932 = scalar_lea.vmem [#allocation13], 32
    %2933 = vst [vmem:[%s2932] sm:$0xf] %v2930
    %2934 = vst [vmem:[%s2932 + $0x4] sm:$0xf] %v2931
    %s2935 = smul.u32 10, 4
    %s2936 = smul.addr %s2935, 8
    %s2937 = scalar_lea.vmem [#allocation2], %s2936
    %v2938 = vld [vmem:[%s2937] sm:$0xff]
    %v2939 = vld [vmem:[%s2937 + $0x8] sm:$0xff]
    %v2940 = vld [vmem:[%s2937 + $0x10] sm:$0xff]
    %v2941 = vld [vmem:[%s2937 + $0x18] sm:$0xff]
    %v2942 = vld [vmem:[%s2937 + $0x20] sm:$0xff]
    %v2943 = vld [vmem:[%s2937 + $0x28] sm:$0xff]
    %v2944 = vld [vmem:[%s2937 + $0x30] sm:$0xff]
    %v2945 = vld [vmem:[%s2937 + $0x38] sm:$0xff]
    %v2946 = vld [vmem:[#allocation3] sm:$0xff]
    %v2947 = vld [vmem:[#allocation3 + $0x8] sm:$0xff]
    %v2948 = vpack.c.bf16 %v2947, %v2946
    %v2949 = vld [vmem:[#allocation10] sm:$0xff]
    %v2950 = vld [vmem:[#allocation10 + $0x8] sm:$0xff]
    %v2951 = vld [vmem:[#allocation10 + $0x10] sm:$0xff]
    %v2952 = vld [vmem:[#allocation10 + $0x18] sm:$0xff]
    %v2953 = vld [vmem:[#allocation10 + $0x20] sm:$0xff]
    %v2954 = vld [vmem:[#allocation10 + $0x28] sm:$0xff]
    %v2955 = vld [vmem:[#allocation10 + $0x30] sm:$0xff]
    %v2956 = vld [vmem:[#allocation10 + $0x38] sm:$0xff]
    %v2957 = vld [vmem:[#allocation10 + $0x40] sm:$0xff]
    %v2958 = vld [vmem:[#allocation10 + $0x48] sm:$0xff]
    %v2959 = vld [vmem:[#allocation10 + $0x50] sm:$0xff]
    %v2960 = vld [vmem:[#allocation10 + $0x58] sm:$0xff]
    %v2961 = vld [vmem:[#allocation10 + $0x60] sm:$0xff]
    %v2962 = vld [vmem:[#allocation10 + $0x68] sm:$0xff]
    %v2963 = vld [vmem:[#allocation10 + $0x70] sm:$0xff]
    %v2964 = vld [vmem:[#allocation10 + $0x78] sm:$0xff]
    %v2965 = vld [vmem:[#allocation10 + $0x80] sm:$0xff]
    %v2966 = vld [vmem:[#allocation10 + $0x88] sm:$0xff]
    %v2967 = vld [vmem:[#allocation10 + $0x90] sm:$0xff]
    %v2968 = vld [vmem:[#allocation10 + $0x98] sm:$0xff]
    %v2969 = vld [vmem:[#allocation10 + $0xa0] sm:$0xff]
    %v2970 = vld [vmem:[#allocation10 + $0xa8] sm:$0xff]
    %v2971 = vld [vmem:[#allocation10 + $0xb0] sm:$0xff]
    %v2972 = vld [vmem:[#allocation10 + $0xb8] sm:$0xff]
    %v2973 = vld [vmem:[#allocation10 + $0xc0] sm:$0xff]
    %v2974 = vld [vmem:[#allocation10 + $0xc8] sm:$0xff]
    %v2975 = vld [vmem:[#allocation10 + $0xd0] sm:$0xff]
    %v2976 = vld [vmem:[#allocation10 + $0xd8] sm:$0xff]
    %v2977 = vld [vmem:[#allocation10 + $0xe0] sm:$0xff]
    %v2978 = vld [vmem:[#allocation10 + $0xe8] sm:$0xff]
    %v2979 = vld [vmem:[#allocation10 + $0xf0] sm:$0xff]
    %v2980 = vld [vmem:[#allocation10 + $0xf8] sm:$0xff]
    %v3013 = vunpack.c.l.b16 %v2949
    %v3014 = vunpack.c.h.b16 %v2949
    %v3015 = vunpack.c.l.b16 %v2950
    %v3016 = vunpack.c.h.b16 %v2950
    %v3017 = vunpack.c.l.b16 %v2951
    %v3018 = vunpack.c.h.b16 %v2951
    %v3019 = vunpack.c.l.b16 %v2952
    %v3020 = vunpack.c.h.b16 %v2952
    %v3021 = vunpack.c.l.b16 %v2953
    %v3022 = vunpack.c.h.b16 %v2953
    %v3023 = vunpack.c.l.b16 %v2954
    %v3024 = vunpack.c.h.b16 %v2954
    %v3025 = vunpack.c.l.b16 %v2955
    %v3026 = vunpack.c.h.b16 %v2955
    %v3027 = vunpack.c.l.b16 %v2956
    %v3028 = vunpack.c.h.b16 %v2956
    %v3029 = vunpack.c.l.b16 %v2957
    %v3030 = vunpack.c.h.b16 %v2957
    %v3031 = vunpack.c.l.b16 %v2958
    %v3032 = vunpack.c.h.b16 %v2958
    %v3033 = vunpack.c.l.b16 %v2959
    %v3034 = vunpack.c.h.b16 %v2959
    %v3035 = vunpack.c.l.b16 %v2960
    %v3036 = vunpack.c.h.b16 %v2960
    %v3037 = vunpack.c.l.b16 %v2961
    %v3038 = vunpack.c.h.b16 %v2961
    %v3039 = vunpack.c.l.b16 %v2962
    %v3040 = vunpack.c.h.b16 %v2962
    %v3041 = vunpack.c.l.b16 %v2963
    %v3042 = vunpack.c.h.b16 %v2963
    %v3043 = vunpack.c.l.b16 %v2964
    %v3044 = vunpack.c.h.b16 %v2964
    %v3045 = vunpack.c.l.b16 %v2965
    %v3046 = vunpack.c.h.b16 %v2965
    %v3047 = vunpack.c.l.b16 %v2966
    %v3048 = vunpack.c.h.b16 %v2966
    %v3049 = vunpack.c.l.b16 %v2967
    %v3050 = vunpack.c.h.b16 %v2967
    %v3051 = vunpack.c.l.b16 %v2968
    %v3052 = vunpack.c.h.b16 %v2968
    %v3053 = vunpack.c.l.b16 %v2969
    %v3054 = vunpack.c.h.b16 %v2969
    %v3055 = vunpack.c.l.b16 %v2970
    %v3056 = vunpack.c.h.b16 %v2970
    %v3057 = vunpack.c.l.b16 %v2971
    %v3058 = vunpack.c.h.b16 %v2971
    %v3059 = vunpack.c.l.b16 %v2972
    %v3060 = vunpack.c.h.b16 %v2972
    %v3061 = vunpack.c.l.b16 %v2973
    %v3062 = vunpack.c.h.b16 %v2973
    %v3063 = vunpack.c.l.b16 %v2974
    %v3064 = vunpack.c.h.b16 %v2974
    %v3065 = vunpack.c.l.b16 %v2975
    %v3066 = vunpack.c.h.b16 %v2975
    %v3067 = vunpack.c.l.b16 %v2976
    %v3068 = vunpack.c.h.b16 %v2976
    %v3069 = vunpack.c.l.b16 %v2977
    %v3070 = vunpack.c.h.b16 %v2977
    %v3071 = vunpack.c.l.b16 %v2978
    %v3072 = vunpack.c.h.b16 %v2978
    %v3073 = vunpack.c.l.b16 %v2979
    %v3074 = vunpack.c.h.b16 %v2979
    %v3075 = vunpack.c.l.b16 %v2980
    %v3076 = vunpack.c.h.b16 %v2980
    %v3077 = vpack.c.b16 %v3017, %v3013
    %v3078 = vpack.c.b16 %v3018, %v3014
    %v3079 = vpack.c.b16 %v3019, %v3015
    %v3080 = vpack.c.b16 %v3020, %v3016
    %v3081 = vpack.c.b16 %v3025, %v3021
    %v3082 = vpack.c.b16 %v3026, %v3022
    %v3083 = vpack.c.b16 %v3027, %v3023
    %v3084 = vpack.c.b16 %v3028, %v3024
    %v3085 = vpack.c.b16 %v3033, %v3029
    %v3086 = vpack.c.b16 %v3034, %v3030
    %v3087 = vpack.c.b16 %v3035, %v3031
    %v3088 = vpack.c.b16 %v3036, %v3032
    %v3089 = vpack.c.b16 %v3041, %v3037
    %v3090 = vpack.c.b16 %v3042, %v3038
    %v3091 = vpack.c.b16 %v3043, %v3039
    %v3092 = vpack.c.b16 %v3044, %v3040
    %v3093 = vpack.c.b16 %v3049, %v3045
    %v3094 = vpack.c.b16 %v3050, %v3046
    %v3095 = vpack.c.b16 %v3051, %v3047
    %v3096 = vpack.c.b16 %v3052, %v3048
    %v3097 = vpack.c.b16 %v3057, %v3053
    %v3098 = vpack.c.b16 %v3058, %v3054
    %v3099 = vpack.c.b16 %v3059, %v3055
    %v3100 = vpack.c.b16 %v3060, %v3056
    %v3101 = vpack.c.b16 %v3065, %v3061
    %v3102 = vpack.c.b16 %v3066, %v3062
    %v3103 = vpack.c.b16 %v3067, %v3063
    %v3104 = vpack.c.b16 %v3068, %v3064
    %v3105 = vpack.c.b16 %v3073, %v3069
    %v3106 = vpack.c.b16 %v3074, %v3070
    %v3107 = vpack.c.b16 %v3075, %v3071
    %v3108 = vpack.c.b16 %v3076, %v3072
    %3141 = vmatpush.bf16.msra.mxu0 %v3105
    %3142 = vmatpush.bf16.msra.mxu0 %v3101
    %3143 = vmatpush.bf16.msra.mxu0 %v3097
    %3144 = vmatpush.bf16.msra.mxu0 %v3093
    %3145 = vmatpush.bf16.msra.mxu0 %v3089
    %3146 = vmatpush.bf16.msra.mxu0 %v3085
    %3147 = vmatpush.bf16.msra.mxu0 %v3081
    %3148 = vmatpush.bf16.msra.mxu0 %v3077
    %3149 = vmatmul.bf16.gmra.mxu0 %v2948
    %v3150 = vpop.f32.mrf.mxu0
    %v3151 = vadd.f32 0.0, %v3150
    %v3152 = vpop.f32.mrf.mxu0
    %v3153 = vadd.f32 0.0, %v3152
    %3154 = vdwg.mxu0
    %3155 = vmatpush.bf16.msra.mxu0 %v3106
    %3156 = vmatpush.bf16.msra.mxu0 %v3102
    %3157 = vmatpush.bf16.msra.mxu0 %v3098
    %3158 = vmatpush.bf16.msra.mxu0 %v3094
    %3159 = vmatpush.bf16.msra.mxu0 %v3090
    %3160 = vmatpush.bf16.msra.mxu0 %v3086
    %3161 = vmatpush.bf16.msra.mxu0 %v3082
    %3162 = vmatpush.bf16.msra.mxu0 %v3078
    %3163 = vmatmul.bf16.gmra.mxu0 %v2948
    %v3164 = vpop.f32.mrf.mxu0
    %v3165 = vadd.f32 0.0, %v3164
    %v3166 = vpop.f32.mrf.mxu0
    %v3167 = vadd.f32 0.0, %v3166
    %3168 = vdwg.mxu0
    %3169 = vmatpush.bf16.msra.mxu0 %v3107
    %3170 = vmatpush.bf16.msra.mxu0 %v3103
    %3171 = vmatpush.bf16.msra.mxu0 %v3099
    %3172 = vmatpush.bf16.msra.mxu0 %v3095
    %3173 = vmatpush.bf16.msra.mxu0 %v3091
    %3174 = vmatpush.bf16.msra.mxu0 %v3087
    %3175 = vmatpush.bf16.msra.mxu0 %v3083
    %3176 = vmatpush.bf16.msra.mxu0 %v3079
    %3177 = vmatmul.bf16.gmra.mxu0 %v2948
    %v3178 = vpop.f32.mrf.mxu0
    %v3179 = vadd.f32 0.0, %v3178
    %v3180 = vpop.f32.mrf.mxu0
    %v3181 = vadd.f32 0.0, %v3180
    %3182 = vdwg.mxu0
    %3183 = vmatpush.bf16.msra.mxu0 %v3108
    %3184 = vmatpush.bf16.msra.mxu0 %v3104
    %3185 = vmatpush.bf16.msra.mxu0 %v3100
    %3186 = vmatpush.bf16.msra.mxu0 %v3096
    %3187 = vmatpush.bf16.msra.mxu0 %v3092
    %3188 = vmatpush.bf16.msra.mxu0 %v3088
    %3189 = vmatpush.bf16.msra.mxu0 %v3084
    %3190 = vmatpush.bf16.msra.mxu0 %v3080
    %3191 = vmatmul.bf16.gmra.mxu0 %v2948
    %v3192 = vpop.f32.mrf.mxu0
    %v3193 = vadd.f32 0.0, %v3192
    %v3194 = vpop.f32.mrf.mxu0
    %v3195 = vadd.f32 0.0, %v3194
    %3196 = vdwg.mxu0
    %v3197 = vadd.f32 %v2938, %v3151
    %v3198 = vadd.f32 %v2939, %v3165
    %v3199 = vadd.f32 %v2940, %v3179
    %v3200 = vadd.f32 %v2941, %v3193
    %v3201 = vadd.f32 %v2942, %v3153
    %v3202 = vadd.f32 %v2943, %v3167
    %v3203 = vadd.f32 %v2944, %v3181
    %v3204 = vadd.f32 %v2945, %v3195
    %v3205 = vxor.u32 %v3197, 2147483648
    %v3206 = vxor.u32 %v3201, 2147483648
    %v3207 = vmul.f32 %v3205, 1.442695
    %v3208 = vpow.pop %v3207
    %v3209 = vmul.f32 %v3206, 1.442695
    %v3210 = vpow.pop %v3209
    %v3211 = vadd.f32 %v3208, 1.0
    %v3212 = vadd.f32 %v3210, 1.0
    %v3213 = vrcp.pop %v3211
    %v3214 = vmul.f32 %v3211, %v3213
    %v3215 = vsub.f32 1.0, %v3214
    %v3216 = vmul.f32 %v3213, %v3215
    %v3217 = vadd.f32 %v3213, %v3216
    %vm3218 = vweird.f32 %v3211
    %vm3219 = vweird.f32 %v3213
    %vm3220 = vmor %vm3218, %vm3219
    %v3221 = vsel %vm3220, %v3213, %v3217
    %v3222 = vand.u32 2147483647, %v3211
    %vm3223 = vcmp.eq.f32.partialorder %v3222, 8.507059e+37
    %v3224 = vand.u32 %v3211, 2147483648
    %v3225 = vor.u32 1.1754944e-38, %v3224
    %v3226 = vsel %vm3223, %v3225, %v3221
    %v3227 = vmul.f32 1.0, %v3226
    %v3228 = vrcp.pop %v3212
    %v3229 = vmul.f32 %v3212, %v3228
    %v3230 = vsub.f32 1.0, %v3229
    %v3231 = vmul.f32 %v3228, %v3230
    %v3232 = vadd.f32 %v3228, %v3231
    %vm3233 = vweird.f32 %v3212
    %vm3234 = vweird.f32 %v3228
    %vm3235 = vmor %vm3233, %vm3234
    %v3236 = vsel %vm3235, %v3228, %v3232
    %v3237 = vand.u32 2147483647, %v3212
    %vm3238 = vcmp.eq.f32.partialorder %v3237, 8.507059e+37
    %v3239 = vand.u32 %v3212, 2147483648
    %v3240 = vor.u32 1.1754944e-38, %v3239
    %v3241 = vsel %vm3238, %v3240, %v3236
    %v3242 = vmul.f32 1.0, %v3241
    %v3243 = vxor.u32 %v3198, 2147483648
    %v3244 = vxor.u32 %v3202, 2147483648
    %v3245 = vmul.f32 %v3243, 1.442695
    %v3246 = vpow.pop %v3245
    %v3247 = vmul.f32 %v3244, 1.442695
    %v3248 = vpow.pop %v3247
    %v3249 = vadd.f32 %v3246, 1.0
    %v3250 = vadd.f32 %v3248, 1.0
    %v3251 = vrcp.pop %v3249
    %v3252 = vmul.f32 %v3249, %v3251
    %v3253 = vsub.f32 1.0, %v3252
    %v3254 = vmul.f32 %v3251, %v3253
    %v3255 = vadd.f32 %v3251, %v3254
    %vm3256 = vweird.f32 %v3249
    %vm3257 = vweird.f32 %v3251
    %vm3258 = vmor %vm3256, %vm3257
    %v3259 = vsel %vm3258, %v3251, %v3255
    %v3260 = vand.u32 2147483647, %v3249
    %vm3261 = vcmp.eq.f32.partialorder %v3260, 8.507059e+37
    %v3262 = vand.u32 %v3249, 2147483648
    %v3263 = vor.u32 1.1754944e-38, %v3262
    %v3264 = vsel %vm3261, %v3263, %v3259
    %v3265 = vmul.f32 1.0, %v3264
    %v3266 = vrcp.pop %v3250
    %v3267 = vmul.f32 %v3250, %v3266
    %v3268 = vsub.f32 1.0, %v3267
    %v3269 = vmul.f32 %v3266, %v3268
    %v3270 = vadd.f32 %v3266, %v3269
    %vm3271 = vweird.f32 %v3250
    %vm3272 = vweird.f32 %v3266
    %vm3273 = vmor %vm3271, %vm3272
    %v3274 = vsel %vm3273, %v3266, %v3270
    %v3275 = vand.u32 2147483647, %v3250
    %vm3276 = vcmp.eq.f32.partialorder %v3275, 8.507059e+37
    %v3277 = vand.u32 %v3250, 2147483648
    %v3278 = vor.u32 1.1754944e-38, %v3277
    %v3279 = vsel %vm3276, %v3278, %v3274
    %v3280 = vmul.f32 1.0, %v3279
    %v3281 = vtanh.pop %v3199
    %v3282 = vtanh.pop %v3203
    %v3283 = vxor.u32 %v3200, 2147483648
    %v3284 = vxor.u32 %v3204, 2147483648
    %v3285 = vmul.f32 %v3283, 1.442695
    %v3286 = vpow.pop %v3285
    %v3287 = vmul.f32 %v3284, 1.442695
    %v3288 = vpow.pop %v3287
    %v3289 = vadd.f32 %v3286, 1.0
    %v3290 = vadd.f32 %v3288, 1.0
    %v3291 = vrcp.pop %v3289
    %v3292 = vmul.f32 %v3289, %v3291
    %v3293 = vsub.f32 1.0, %v3292
    %v3294 = vmul.f32 %v3291, %v3293
    %v3295 = vadd.f32 %v3291, %v3294
    %vm3296 = vweird.f32 %v3289
    %vm3297 = vweird.f32 %v3291
    %vm3298 = vmor %vm3296, %vm3297
    %v3299 = vsel %vm3298, %v3291, %v3295
    %v3300 = vand.u32 2147483647, %v3289
    %vm3301 = vcmp.eq.f32.partialorder %v3300, 8.507059e+37
    %v3302 = vand.u32 %v3289, 2147483648
    %v3303 = vor.u32 1.1754944e-38, %v3302
    %v3304 = vsel %vm3301, %v3303, %v3299
    %v3305 = vmul.f32 1.0, %v3304
    %v3306 = vrcp.pop %v3290
    %v3307 = vmul.f32 %v3290, %v3306
    %v3308 = vsub.f32 1.0, %v3307
    %v3309 = vmul.f32 %v3306, %v3308
    %v3310 = vadd.f32 %v3306, %v3309
    %vm3311 = vweird.f32 %v3290
    %vm3312 = vweird.f32 %v3306
    %vm3313 = vmor %vm3311, %vm3312
    %v3314 = vsel %vm3313, %v3306, %v3310
    %v3315 = vand.u32 2147483647, %v3290
    %vm3316 = vcmp.eq.f32.partialorder %v3315, 8.507059e+37
    %v3317 = vand.u32 %v3290, 2147483648
    %v3318 = vor.u32 1.1754944e-38, %v3317
    %v3319 = vsel %vm3316, %v3318, %v3314
    %v3320 = vmul.f32 1.0, %v3319
    %v3321 = vld [vmem:[#allocation4] sm:$0xff]
    %v3322 = vld [vmem:[#allocation4 + $0x8] sm:$0xff]
    %v3323 = vmul.f32 %v3265, %v3321
    %v3324 = vmul.f32 %v3280, %v3322
    %v3325 = vmul.f32 %v3227, %v3281
    %v3326 = vmul.f32 %v3242, %v3282
    %v3327 = vadd.f32 %v3323, %v3325
    %v3328 = vadd.f32 %v3324, %v3326
    %v3329 = vtanh.pop %v3327
    %v3330 = vtanh.pop %v3328
    %v3331 = vmul.f32 %v3305, %v3329
    %v3332 = vmul.f32 %v3320, %v3330
    %3333 = vst [vmem:[#allocation4] sm:$0xff] %v3327
    %3334 = vst [vmem:[#allocation4 + $0x8] sm:$0xff] %v3328
    %3335 = vst [vmem:[#allocation3] sm:$0xff] %v3331
    %3336 = vst [vmem:[#allocation3 + $0x8] sm:$0xff] %v3332
    %v3337 = vpack.c.bf16 %v3331, %v3331
    %v3338 = vpack.c.bf16 %v3332, %v3332
    %s3339 = scalar_lea.vmem [#allocation13], 40
    %3340 = vst [vmem:[%s3339] sm:$0xf] %v3337
    %3341 = vst [vmem:[%s3339 + $0x4] sm:$0xf] %v3338
    %s3342 = smul.u32 12, 4
    %s3343 = smul.addr %s3342, 8
    %s3344 = scalar_lea.vmem [#allocation2], %s3343
    %v3345 = vld [vmem:[%s3344] sm:$0xff]
    %v3346 = vld [vmem:[%s3344 + $0x8] sm:$0xff]
    %v3347 = vld [vmem:[%s3344 + $0x10] sm:$0xff]
    %v3348 = vld [vmem:[%s3344 + $0x18] sm:$0xff]
    %v3349 = vld [vmem:[%s3344 + $0x20] sm:$0xff]
    %v3350 = vld [vmem:[%s3344 + $0x28] sm:$0xff]
    %v3351 = vld [vmem:[%s3344 + $0x30] sm:$0xff]
    %v3352 = vld [vmem:[%s3344 + $0x38] sm:$0xff]
    %v3353 = vld [vmem:[#allocation3] sm:$0xff]
    %v3354 = vld [vmem:[#allocation3 + $0x8] sm:$0xff]
    %v3355 = vpack.c.bf16 %v3354, %v3353
    %v3356 = vld [vmem:[#allocation10] sm:$0xff]
    %v3357 = vld [vmem:[#allocation10 + $0x8] sm:$0xff]
    %v3358 = vld [vmem:[#allocation10 + $0x10] sm:$0xff]
    %v3359 = vld [vmem:[#allocation10 + $0x18] sm:$0xff]
    %v3360 = vld [vmem:[#allocation10 + $0x20] sm:$0xff]
    %v3361 = vld [vmem:[#allocation10 + $0x28] sm:$0xff]
    %v3362 = vld [vmem:[#allocation10 + $0x30] sm:$0xff]
    %v3363 = vld [vmem:[#allocation10 + $0x38] sm:$0xff]
    %v3364 = vld [vmem:[#allocation10 + $0x40] sm:$0xff]
    %v3365 = vld [vmem:[#allocation10 + $0x48] sm:$0xff]
    %v3366 = vld [vmem:[#allocation10 + $0x50] sm:$0xff]
    %v3367 = vld [vmem:[#allocation10 + $0x58] sm:$0xff]
    %v3368 = vld [vmem:[#allocation10 + $0x60] sm:$0xff]
    %v3369 = vld [vmem:[#allocation10 + $0x68] sm:$0xff]
    %v3370 = vld [vmem:[#allocation10 + $0x70] sm:$0xff]
    %v3371 = vld [vmem:[#allocation10 + $0x78] sm:$0xff]
    %v3372 = vld [vmem:[#allocation10 + $0x80] sm:$0xff]
    %v3373 = vld [vmem:[#allocation10 + $0x88] sm:$0xff]
    %v3374 = vld [vmem:[#allocation10 + $0x90] sm:$0xff]
    %v3375 = vld [vmem:[#allocation10 + $0x98] sm:$0xff]
    %v3376 = vld [vmem:[#allocation10 + $0xa0] sm:$0xff]
    %v3377 = vld [vmem:[#allocation10 + $0xa8] sm:$0xff]
    %v3378 = vld [vmem:[#allocation10 + $0xb0] sm:$0xff]
    %v3379 = vld [vmem:[#allocation10 + $0xb8] sm:$0xff]
    %v3380 = vld [vmem:[#allocation10 + $0xc0] sm:$0xff]
    %v3381 = vld [vmem:[#allocation10 + $0xc8] sm:$0xff]
    %v3382 = vld [vmem:[#allocation10 + $0xd0] sm:$0xff]
    %v3383 = vld [vmem:[#allocation10 + $0xd8] sm:$0xff]
    %v3384 = vld [vmem:[#allocation10 + $0xe0] sm:$0xff]
    %v3385 = vld [vmem:[#allocation10 + $0xe8] sm:$0xff]
    %v3386 = vld [vmem:[#allocation10 + $0xf0] sm:$0xff]
    %v3387 = vld [vmem:[#allocation10 + $0xf8] sm:$0xff]
    %v3420 = vunpack.c.l.b16 %v3356
    %v3421 = vunpack.c.h.b16 %v3356
    %v3422 = vunpack.c.l.b16 %v3357
    %v3423 = vunpack.c.h.b16 %v3357
    %v3424 = vunpack.c.l.b16 %v3358
    %v3425 = vunpack.c.h.b16 %v3358
    %v3426 = vunpack.c.l.b16 %v3359
    %v3427 = vunpack.c.h.b16 %v3359
    %v3428 = vunpack.c.l.b16 %v3360
    %v3429 = vunpack.c.h.b16 %v3360
    %v3430 = vunpack.c.l.b16 %v3361
    %v3431 = vunpack.c.h.b16 %v3361
    %v3432 = vunpack.c.l.b16 %v3362
    %v3433 = vunpack.c.h.b16 %v3362
    %v3434 = vunpack.c.l.b16 %v3363
    %v3435 = vunpack.c.h.b16 %v3363
    %v3436 = vunpack.c.l.b16 %v3364
    %v3437 = vunpack.c.h.b16 %v3364
    %v3438 = vunpack.c.l.b16 %v3365
    %v3439 = vunpack.c.h.b16 %v3365
    %v3440 = vunpack.c.l.b16 %v3366
    %v3441 = vunpack.c.h.b16 %v3366
    %v3442 = vunpack.c.l.b16 %v3367
    %v3443 = vunpack.c.h.b16 %v3367
    %v3444 = vunpack.c.l.b16 %v3368
    %v3445 = vunpack.c.h.b16 %v3368
    %v3446 = vunpack.c.l.b16 %v3369
    %v3447 = vunpack.c.h.b16 %v3369
    %v3448 = vunpack.c.l.b16 %v3370
    %v3449 = vunpack.c.h.b16 %v3370
    %v3450 = vunpack.c.l.b16 %v3371
    %v3451 = vunpack.c.h.b16 %v3371
    %v3452 = vunpack.c.l.b16 %v3372
    %v3453 = vunpack.c.h.b16 %v3372
    %v3454 = vunpack.c.l.b16 %v3373
    %v3455 = vunpack.c.h.b16 %v3373
    %v3456 = vunpack.c.l.b16 %v3374
    %v3457 = vunpack.c.h.b16 %v3374
    %v3458 = vunpack.c.l.b16 %v3375
    %v3459 = vunpack.c.h.b16 %v3375
    %v3460 = vunpack.c.l.b16 %v3376
    %v3461 = vunpack.c.h.b16 %v3376
    %v3462 = vunpack.c.l.b16 %v3377
    %v3463 = vunpack.c.h.b16 %v3377
    %v3464 = vunpack.c.l.b16 %v3378
    %v3465 = vunpack.c.h.b16 %v3378
    %v3466 = vunpack.c.l.b16 %v3379
    %v3467 = vunpack.c.h.b16 %v3379
    %v3468 = vunpack.c.l.b16 %v3380
    %v3469 = vunpack.c.h.b16 %v3380
    %v3470 = vunpack.c.l.b16 %v3381
    %v3471 = vunpack.c.h.b16 %v3381
    %v3472 = vunpack.c.l.b16 %v3382
    %v3473 = vunpack.c.h.b16 %v3382
    %v3474 = vunpack.c.l.b16 %v3383
    %v3475 = vunpack.c.h.b16 %v3383
    %v3476 = vunpack.c.l.b16 %v3384
    %v3477 = vunpack.c.h.b16 %v3384
    %v3478 = vunpack.c.l.b16 %v3385
    %v3479 = vunpack.c.h.b16 %v3385
    %v3480 = vunpack.c.l.b16 %v3386
    %v3481 = vunpack.c.h.b16 %v3386
    %v3482 = vunpack.c.l.b16 %v3387
    %v3483 = vunpack.c.h.b16 %v3387
    %v3484 = vpack.c.b16 %v3424, %v3420
    %v3485 = vpack.c.b16 %v3425, %v3421
    %v3486 = vpack.c.b16 %v3426, %v3422
    %v3487 = vpack.c.b16 %v3427, %v3423
    %v3488 = vpack.c.b16 %v3432, %v3428
    %v3489 = vpack.c.b16 %v3433, %v3429
    %v3490 = vpack.c.b16 %v3434, %v3430
    %v3491 = vpack.c.b16 %v3435, %v3431
    %v3492 = vpack.c.b16 %v3440, %v3436
    %v3493 = vpack.c.b16 %v3441, %v3437
    %v3494 = vpack.c.b16 %v3442, %v3438
    %v3495 = vpack.c.b16 %v3443, %v3439
    %v3496 = vpack.c.b16 %v3448, %v3444
    %v3497 = vpack.c.b16 %v3449, %v3445
    %v3498 = vpack.c.b16 %v3450, %v3446
    %v3499 = vpack.c.b16 %v3451, %v3447
    %v3500 = vpack.c.b16 %v3456, %v3452
    %v3501 = vpack.c.b16 %v3457, %v3453
    %v3502 = vpack.c.b16 %v3458, %v3454
    %v3503 = vpack.c.b16 %v3459, %v3455
    %v3504 = vpack.c.b16 %v3464, %v3460
    %v3505 = vpack.c.b16 %v3465, %v3461
    %v3506 = vpack.c.b16 %v3466, %v3462
    %v3507 = vpack.c.b16 %v3467, %v3463
    %v3508 = vpack.c.b16 %v3472, %v3468
    %v3509 = vpack.c.b16 %v3473, %v3469
    %v3510 = vpack.c.b16 %v3474, %v3470
    %v3511 = vpack.c.b16 %v3475, %v3471
    %v3512 = vpack.c.b16 %v3480, %v3476
    %v3513 = vpack.c.b16 %v3481, %v3477
    %v3514 = vpack.c.b16 %v3482, %v3478
    %v3515 = vpack.c.b16 %v3483, %v3479
    %3548 = vmatpush.bf16.msra.mxu0 %v3512
    %3549 = vmatpush.bf16.msra.mxu0 %v3508
    %3550 = vmatpush.bf16.msra.mxu0 %v3504
    %3551 = vmatpush.bf16.msra.mxu0 %v3500
    %3552 = vmatpush.bf16.msra.mxu0 %v3496
    %3553 = vmatpush.bf16.msra.mxu0 %v3492
    %3554 = vmatpush.bf16.msra.mxu0 %v3488
    %3555 = vmatpush.bf16.msra.mxu0 %v3484
    %3556 = vmatmul.bf16.gmra.mxu0 %v3355
    %v3557 = vpop.f32.mrf.mxu0
    %v3558 = vadd.f32 0.0, %v3557
    %v3559 = vpop.f32.mrf.mxu0
    %v3560 = vadd.f32 0.0, %v3559
    %3561 = vdwg.mxu0
    %3562 = vmatpush.bf16.msra.mxu0 %v3513
    %3563 = vmatpush.bf16.msra.mxu0 %v3509
    %3564 = vmatpush.bf16.msra.mxu0 %v3505
    %3565 = vmatpush.bf16.msra.mxu0 %v3501
    %3566 = vmatpush.bf16.msra.mxu0 %v3497
    %3567 = vmatpush.bf16.msra.mxu0 %v3493
    %3568 = vmatpush.bf16.msra.mxu0 %v3489
    %3569 = vmatpush.bf16.msra.mxu0 %v3485
    %3570 = vmatmul.bf16.gmra.mxu0 %v3355
    %v3571 = vpop.f32.mrf.mxu0
    %v3572 = vadd.f32 0.0, %v3571
    %v3573 = vpop.f32.mrf.mxu0
    %v3574 = vadd.f32 0.0, %v3573
    %3575 = vdwg.mxu0
    %3576 = vmatpush.bf16.msra.mxu0 %v3514
    %3577 = vmatpush.bf16.msra.mxu0 %v3510
    %3578 = vmatpush.bf16.msra.mxu0 %v3506
    %3579 = vmatpush.bf16.msra.mxu0 %v3502
    %3580 = vmatpush.bf16.msra.mxu0 %v3498
    %3581 = vmatpush.bf16.msra.mxu0 %v3494
    %3582 = vmatpush.bf16.msra.mxu0 %v3490
    %3583 = vmatpush.bf16.msra.mxu0 %v3486
    %3584 = vmatmul.bf16.gmra.mxu0 %v3355
    %v3585 = vpop.f32.mrf.mxu0
    %v3586 = vadd.f32 0.0, %v3585
    %v3587 = vpop.f32.mrf.mxu0
    %v3588 = vadd.f32 0.0, %v3587
    %3589 = vdwg.mxu0
    %3590 = vmatpush.bf16.msra.mxu0 %v3515
    %3591 = vmatpush.bf16.msra.mxu0 %v3511
    %3592 = vmatpush.bf16.msra.mxu0 %v3507
    %3593 = vmatpush.bf16.msra.mxu0 %v3503
    %3594 = vmatpush.bf16.msra.mxu0 %v3499
    %3595 = vmatpush.bf16.msra.mxu0 %v3495
    %3596 = vmatpush.bf16.msra.mxu0 %v3491
    %3597 = vmatpush.bf16.msra.mxu0 %v3487
    %3598 = vmatmul.bf16.gmra.mxu0 %v3355
    %v3599 = vpop.f32.mrf.mxu0
    %v3600 = vadd.f32 0.0, %v3599
    %v3601 = vpop.f32.mrf.mxu0
    %v3602 = vadd.f32 0.0, %v3601
    %3603 = vdwg.mxu0
    %v3604 = vadd.f32 %v3345, %v3558
    %v3605 = vadd.f32 %v3346, %v3572
    %v3606 = vadd.f32 %v3347, %v3586
    %v3607 = vadd.f32 %v3348, %v3600
    %v3608 = vadd.f32 %v3349, %v3560
    %v3609 = vadd.f32 %v3350, %v3574
    %v3610 = vadd.f32 %v3351, %v3588
    %v3611 = vadd.f32 %v3352, %v3602
    %v3612 = vxor.u32 %v3604, 2147483648
    %v3613 = vxor.u32 %v3608, 2147483648
    %v3614 = vmul.f32 %v3612, 1.442695
    %v3615 = vpow.pop %v3614
    %v3616 = vmul.f32 %v3613, 1.442695
    %v3617 = vpow.pop %v3616
    %v3618 = vadd.f32 %v3615, 1.0
    %v3619 = vadd.f32 %v3617, 1.0
    %v3620 = vrcp.pop %v3618
    %v3621 = vmul.f32 %v3618, %v3620
    %v3622 = vsub.f32 1.0, %v3621
    %v3623 = vmul.f32 %v3620, %v3622
    %v3624 = vadd.f32 %v3620, %v3623
    %vm3625 = vweird.f32 %v3618
    %vm3626 = vweird.f32 %v3620
    %vm3627 = vmor %vm3625, %vm3626
    %v3628 = vsel %vm3627, %v3620, %v3624
    %v3629 = vand.u32 2147483647, %v3618
    %vm3630 = vcmp.eq.f32.partialorder %v3629, 8.507059e+37
    %v3631 = vand.u32 %v3618, 2147483648
    %v3632 = vor.u32 1.1754944e-38, %v3631
    %v3633 = vsel %vm3630, %v3632, %v3628
    %v3634 = vmul.f32 1.0, %v3633
    %v3635 = vrcp.pop %v3619
    %v3636 = vmul.f32 %v3619, %v3635
    %v3637 = vsub.f32 1.0, %v3636
    %v3638 = vmul.f32 %v3635, %v3637
    %v3639 = vadd.f32 %v3635, %v3638
    %vm3640 = vweird.f32 %v3619
    %vm3641 = vweird.f32 %v3635
    %vm3642 = vmor %vm3640, %vm3641
    %v3643 = vsel %vm3642, %v3635, %v3639
    %v3644 = vand.u32 2147483647, %v3619
    %vm3645 = vcmp.eq.f32.partialorder %v3644, 8.507059e+37
    %v3646 = vand.u32 %v3619, 2147483648
    %v3647 = vor.u32 1.1754944e-38, %v3646
    %v3648 = vsel %vm3645, %v3647, %v3643
    %v3649 = vmul.f32 1.0, %v3648
    %v3650 = vxor.u32 %v3605, 2147483648
    %v3651 = vxor.u32 %v3609, 2147483648
    %v3652 = vmul.f32 %v3650, 1.442695
    %v3653 = vpow.pop %v3652
    %v3654 = vmul.f32 %v3651, 1.442695
    %v3655 = vpow.pop %v3654
    %v3656 = vadd.f32 %v3653, 1.0
    %v3657 = vadd.f32 %v3655, 1.0
    %v3658 = vrcp.pop %v3656
    %v3659 = vmul.f32 %v3656, %v3658
    %v3660 = vsub.f32 1.0, %v3659
    %v3661 = vmul.f32 %v3658, %v3660
    %v3662 = vadd.f32 %v3658, %v3661
    %vm3663 = vweird.f32 %v3656
    %vm3664 = vweird.f32 %v3658
    %vm3665 = vmor %vm3663, %vm3664
    %v3666 = vsel %vm3665, %v3658, %v3662
    %v3667 = vand.u32 2147483647, %v3656
    %vm3668 = vcmp.eq.f32.partialorder %v3667, 8.507059e+37
    %v3669 = vand.u32 %v3656, 2147483648
    %v3670 = vor.u32 1.1754944e-38, %v3669
    %v3671 = vsel %vm3668, %v3670, %v3666
    %v3672 = vmul.f32 1.0, %v3671
    %v3673 = vrcp.pop %v3657
    %v3674 = vmul.f32 %v3657, %v3673
    %v3675 = vsub.f32 1.0, %v3674
    %v3676 = vmul.f32 %v3673, %v3675
    %v3677 = vadd.f32 %v3673, %v3676
    %vm3678 = vweird.f32 %v3657
    %vm3679 = vweird.f32 %v3673
    %vm3680 = vmor %vm3678, %vm3679
    %v3681 = vsel %vm3680, %v3673, %v3677
    %v3682 = vand.u32 2147483647, %v3657
    %vm3683 = vcmp.eq.f32.partialorder %v3682, 8.507059e+37
    %v3684 = vand.u32 %v3657, 2147483648
    %v3685 = vor.u32 1.1754944e-38, %v3684
    %v3686 = vsel %vm3683, %v3685, %v3681
    %v3687 = vmul.f32 1.0, %v3686
    %v3688 = vtanh.pop %v3606
    %v3689 = vtanh.pop %v3610
    %v3690 = vxor.u32 %v3607, 2147483648
    %v3691 = vxor.u32 %v3611, 2147483648
    %v3692 = vmul.f32 %v3690, 1.442695
    %v3693 = vpow.pop %v3692
    %v3694 = vmul.f32 %v3691, 1.442695
    %v3695 = vpow.pop %v3694
    %v3696 = vadd.f32 %v3693, 1.0
    %v3697 = vadd.f32 %v3695, 1.0
    %v3698 = vrcp.pop %v3696
    %v3699 = vmul.f32 %v3696, %v3698
    %v3700 = vsub.f32 1.0, %v3699
    %v3701 = vmul.f32 %v3698, %v3700
    %v3702 = vadd.f32 %v3698, %v3701
    %vm3703 = vweird.f32 %v3696
    %vm3704 = vweird.f32 %v3698
    %vm3705 = vmor %vm3703, %vm3704
    %v3706 = vsel %vm3705, %v3698, %v3702
    %v3707 = vand.u32 2147483647, %v3696
    %vm3708 = vcmp.eq.f32.partialorder %v3707, 8.507059e+37
    %v3709 = vand.u32 %v3696, 2147483648
    %v3710 = vor.u32 1.1754944e-38, %v3709
    %v3711 = vsel %vm3708, %v3710, %v3706
    %v3712 = vmul.f32 1.0, %v3711
    %v3713 = vrcp.pop %v3697
    %v3714 = vmul.f32 %v3697, %v3713
    %v3715 = vsub.f32 1.0, %v3714
    %v3716 = vmul.f32 %v3713, %v3715
    %v3717 = vadd.f32 %v3713, %v3716
    %vm3718 = vweird.f32 %v3697
    %vm3719 = vweird.f32 %v3713
    %vm3720 = vmor %vm3718, %vm3719
    %v3721 = vsel %vm3720, %v3713, %v3717
    %v3722 = vand.u32 2147483647, %v3697
    %vm3723 = vcmp.eq.f32.partialorder %v3722, 8.507059e+37
    %v3724 = vand.u32 %v3697, 2147483648
    %v3725 = vor.u32 1.1754944e-38, %v3724
    %v3726 = vsel %vm3723, %v3725, %v3721
    %v3727 = vmul.f32 1.0, %v3726
    %v3728 = vld [vmem:[#allocation4] sm:$0xff]
    %v3729 = vld [vmem:[#allocation4 + $0x8] sm:$0xff]
    %v3730 = vmul.f32 %v3672, %v3728
    %v3731 = vmul.f32 %v3687, %v3729
    %v3732 = vmul.f32 %v3634, %v3688
    %v3733 = vmul.f32 %v3649, %v3689
    %v3734 = vadd.f32 %v3730, %v3732
    %v3735 = vadd.f32 %v3731, %v3733
    %v3736 = vtanh.pop %v3734
    %v3737 = vtanh.pop %v3735
    %v3738 = vmul.f32 %v3712, %v3736
    %v3739 = vmul.f32 %v3727, %v3737
    %3740 = vst [vmem:[#allocation4] sm:$0xff] %v3734
    %3741 = vst [vmem:[#allocation4 + $0x8] sm:$0xff] %v3735
    %3742 = vst [vmem:[#allocation3] sm:$0xff] %v3738
    %3743 = vst [vmem:[#allocation3 + $0x8] sm:$0xff] %v3739
    %v3744 = vpack.c.bf16 %v3738, %v3738
    %v3745 = vpack.c.bf16 %v3739, %v3739
    %s3746 = scalar_lea.vmem [#allocation13], 48
    %3747 = vst [vmem:[%s3746] sm:$0xf] %v3744
    %3748 = vst [vmem:[%s3746 + $0x4] sm:$0xf] %v3745
    %s3749 = smul.u32 14, 4
    %s3750 = smul.addr %s3749, 8
    %s3751 = scalar_lea.vmem [#allocation2], %s3750
    %v3752 = vld [vmem:[%s3751] sm:$0xff]
    %v3753 = vld [vmem:[%s3751 + $0x8] sm:$0xff]
    %v3754 = vld [vmem:[%s3751 + $0x10] sm:$0xff]
    %v3755 = vld [vmem:[%s3751 + $0x18] sm:$0xff]
    %v3756 = vld [vmem:[%s3751 + $0x20] sm:$0xff]
    %v3757 = vld [vmem:[%s3751 + $0x28] sm:$0xff]
    %v3758 = vld [vmem:[%s3751 + $0x30] sm:$0xff]
    %v3759 = vld [vmem:[%s3751 + $0x38] sm:$0xff]
    %v3760 = vld [vmem:[#allocation3] sm:$0xff]
    %v3761 = vld [vmem:[#allocation3 + $0x8] sm:$0xff]
    %v3762 = vpack.c.bf16 %v3761, %v3760
    %v3763 = vld [vmem:[#allocation10] sm:$0xff]
    %v3764 = vld [vmem:[#allocation10 + $0x8] sm:$0xff]
    %v3765 = vld [vmem:[#allocation10 + $0x10] sm:$0xff]
    %v3766 = vld [vmem:[#allocation10 + $0x18] sm:$0xff]
    %v3767 = vld [vmem:[#allocation10 + $0x20] sm:$0xff]
    %v3768 = vld [vmem:[#allocation10 + $0x28] sm:$0xff]
    %v3769 = vld [vmem:[#allocation10 + $0x30] sm:$0xff]
    %v3770 = vld [vmem:[#allocation10 + $0x38] sm:$0xff]
    %v3771 = vld [vmem:[#allocation10 + $0x40] sm:$0xff]
    %v3772 = vld [vmem:[#allocation10 + $0x48] sm:$0xff]
    %v3773 = vld [vmem:[#allocation10 + $0x50] sm:$0xff]
    %v3774 = vld [vmem:[#allocation10 + $0x58] sm:$0xff]
    %v3775 = vld [vmem:[#allocation10 + $0x60] sm:$0xff]
    %v3776 = vld [vmem:[#allocation10 + $0x68] sm:$0xff]
    %v3777 = vld [vmem:[#allocation10 + $0x70] sm:$0xff]
    %v3778 = vld [vmem:[#allocation10 + $0x78] sm:$0xff]
    %v3779 = vld [vmem:[#allocation10 + $0x80] sm:$0xff]
    %v3780 = vld [vmem:[#allocation10 + $0x88] sm:$0xff]
    %v3781 = vld [vmem:[#allocation10 + $0x90] sm:$0xff]
    %v3782 = vld [vmem:[#allocation10 + $0x98] sm:$0xff]
    %v3783 = vld [vmem:[#allocation10 + $0xa0] sm:$0xff]
    %v3784 = vld [vmem:[#allocation10 + $0xa8] sm:$0xff]
    %v3785 = vld [vmem:[#allocation10 + $0xb0] sm:$0xff]
    %v3786 = vld [vmem:[#allocation10 + $0xb8] sm:$0xff]
    %v3787 = vld [vmem:[#allocation10 + $0xc0] sm:$0xff]
    %v3788 = vld [vmem:[#allocation10 + $0xc8] sm:$0xff]
    %v3789 = vld [vmem:[#allocation10 + $0xd0] sm:$0xff]
    %v3790 = vld [vmem:[#allocation10 + $0xd8] sm:$0xff]
    %v3791 = vld [vmem:[#allocation10 + $0xe0] sm:$0xff]
    %v3792 = vld [vmem:[#allocation10 + $0xe8] sm:$0xff]
    %v3793 = vld [vmem:[#allocation10 + $0xf0] sm:$0xff]
    %v3794 = vld [vmem:[#allocation10 + $0xf8] sm:$0xff]
    %v3827 = vunpack.c.l.b16 %v3763
    %v3828 = vunpack.c.h.b16 %v3763
    %v3829 = vunpack.c.l.b16 %v3764
    %v3830 = vunpack.c.h.b16 %v3764
    %v3831 = vunpack.c.l.b16 %v3765
    %v3832 = vunpack.c.h.b16 %v3765
    %v3833 = vunpack.c.l.b16 %v3766
    %v3834 = vunpack.c.h.b16 %v3766
    %v3835 = vunpack.c.l.b16 %v3767
    %v3836 = vunpack.c.h.b16 %v3767
    %v3837 = vunpack.c.l.b16 %v3768
    %v3838 = vunpack.c.h.b16 %v3768
    %v3839 = vunpack.c.l.b16 %v3769
    %v3840 = vunpack.c.h.b16 %v3769
    %v3841 = vunpack.c.l.b16 %v3770
    %v3842 = vunpack.c.h.b16 %v3770
    %v3843 = vunpack.c.l.b16 %v3771
    %v3844 = vunpack.c.h.b16 %v3771
    %v3845 = vunpack.c.l.b16 %v3772
    %v3846 = vunpack.c.h.b16 %v3772
    %v3847 = vunpack.c.l.b16 %v3773
    %v3848 = vunpack.c.h.b16 %v3773
    %v3849 = vunpack.c.l.b16 %v3774
    %v3850 = vunpack.c.h.b16 %v3774
    %v3851 = vunpack.c.l.b16 %v3775
    %v3852 = vunpack.c.h.b16 %v3775
    %v3853 = vunpack.c.l.b16 %v3776
    %v3854 = vunpack.c.h.b16 %v3776
    %v3855 = vunpack.c.l.b16 %v3777
    %v3856 = vunpack.c.h.b16 %v3777
    %v3857 = vunpack.c.l.b16 %v3778
    %v3858 = vunpack.c.h.b16 %v3778
    %v3859 = vunpack.c.l.b16 %v3779
    %v3860 = vunpack.c.h.b16 %v3779
    %v3861 = vunpack.c.l.b16 %v3780
    %v3862 = vunpack.c.h.b16 %v3780
    %v3863 = vunpack.c.l.b16 %v3781
    %v3864 = vunpack.c.h.b16 %v3781
    %v3865 = vunpack.c.l.b16 %v3782
    %v3866 = vunpack.c.h.b16 %v3782
    %v3867 = vunpack.c.l.b16 %v3783
    %v3868 = vunpack.c.h.b16 %v3783
    %v3869 = vunpack.c.l.b16 %v3784
    %v3870 = vunpack.c.h.b16 %v3784
    %v3871 = vunpack.c.l.b16 %v3785
    %v3872 = vunpack.c.h.b16 %v3785
    %v3873 = vunpack.c.l.b16 %v3786
    %v3874 = vunpack.c.h.b16 %v3786
    %v3875 = vunpack.c.l.b16 %v3787
    %v3876 = vunpack.c.h.b16 %v3787
    %v3877 = vunpack.c.l.b16 %v3788
    %v3878 = vunpack.c.h.b16 %v3788
    %v3879 = vunpack.c.l.b16 %v3789
    %v3880 = vunpack.c.h.b16 %v3789
    %v3881 = vunpack.c.l.b16 %v3790
    %v3882 = vunpack.c.h.b16 %v3790
    %v3883 = vunpack.c.l.b16 %v3791
    %v3884 = vunpack.c.h.b16 %v3791
    %v3885 = vunpack.c.l.b16 %v3792
    %v3886 = vunpack.c.h.b16 %v3792
    %v3887 = vunpack.c.l.b16 %v3793
    %v3888 = vunpack.c.h.b16 %v3793
    %v3889 = vunpack.c.l.b16 %v3794
    %v3890 = vunpack.c.h.b16 %v3794
    %v3891 = vpack.c.b16 %v3831, %v3827
    %v3892 = vpack.c.b16 %v3832, %v3828
    %v3893 = vpack.c.b16 %v3833, %v3829
    %v3894 = vpack.c.b16 %v3834, %v3830
    %v3895 = vpack.c.b16 %v3839, %v3835
    %v3896 = vpack.c.b16 %v3840, %v3836
    %v3897 = vpack.c.b16 %v3841, %v3837
    %v3898 = vpack.c.b16 %v3842, %v3838
    %v3899 = vpack.c.b16 %v3847, %v3843
    %v3900 = vpack.c.b16 %v3848, %v3844
    %v3901 = vpack.c.b16 %v3849, %v3845
    %v3902 = vpack.c.b16 %v3850, %v3846
    %v3903 = vpack.c.b16 %v3855, %v3851
    %v3904 = vpack.c.b16 %v3856, %v3852
    %v3905 = vpack.c.b16 %v3857, %v3853
    %v3906 = vpack.c.b16 %v3858, %v3854
    %v3907 = vpack.c.b16 %v3863, %v3859
    %v3908 = vpack.c.b16 %v3864, %v3860
    %v3909 = vpack.c.b16 %v3865, %v3861
    %v3910 = vpack.c.b16 %v3866, %v3862
    %v3911 = vpack.c.b16 %v3871, %v3867
    %v3912 = vpack.c.b16 %v3872, %v3868
    %v3913 = vpack.c.b16 %v3873, %v3869
    %v3914 = vpack.c.b16 %v3874, %v3870
    %v3915 = vpack.c.b16 %v3879, %v3875
    %v3916 = vpack.c.b16 %v3880, %v3876
    %v3917 = vpack.c.b16 %v3881, %v3877
    %v3918 = vpack.c.b16 %v3882, %v3878
    %v3919 = vpack.c.b16 %v3887, %v3883
    %v3920 = vpack.c.b16 %v3888, %v3884
    %v3921 = vpack.c.b16 %v3889, %v3885
    %v3922 = vpack.c.b16 %v3890, %v3886
    %3955 = vmatpush.bf16.msra.mxu0 %v3919
    %3956 = vmatpush.bf16.msra.mxu0 %v3915
    %3957 = vmatpush.bf16.msra.mxu0 %v3911
    %3958 = vmatpush.bf16.msra.mxu0 %v3907
    %3959 = vmatpush.bf16.msra.mxu0 %v3903
    %3960 = vmatpush.bf16.msra.mxu0 %v3899
    %3961 = vmatpush.bf16.msra.mxu0 %v3895
    %3962 = vmatpush.bf16.msra.mxu0 %v3891
    %3963 = vmatmul.bf16.gmra.mxu0 %v3762
    %v3964 = vpop.f32.mrf.mxu0
    %v3965 = vadd.f32 0.0, %v3964
    %v3966 = vpop.f32.mrf.mxu0
    %v3967 = vadd.f32 0.0, %v3966
    %3968 = vdwg.mxu0
    %3969 = vmatpush.bf16.msra.mxu0 %v3920
    %3970 = vmatpush.bf16.msra.mxu0 %v3916
    %3971 = vmatpush.bf16.msra.mxu0 %v3912
    %3972 = vmatpush.bf16.msra.mxu0 %v3908
    %3973 = vmatpush.bf16.msra.mxu0 %v3904
    %3974 = vmatpush.bf16.msra.mxu0 %v3900
    %3975 = vmatpush.bf16.msra.mxu0 %v3896
    %3976 = vmatpush.bf16.msra.mxu0 %v3892
    %3977 = vmatmul.bf16.gmra.mxu0 %v3762
    %v3978 = vpop.f32.mrf.mxu0
    %v3979 = vadd.f32 0.0, %v3978
    %v3980 = vpop.f32.mrf.mxu0
    %v3981 = vadd.f32 0.0, %v3980
    %3982 = vdwg.mxu0
    %3983 = vmatpush.bf16.msra.mxu0 %v3921
    %3984 = vmatpush.bf16.msra.mxu0 %v3917
    %3985 = vmatpush.bf16.msra.mxu0 %v3913
    %3986 = vmatpush.bf16.msra.mxu0 %v3909
    %3987 = vmatpush.bf16.msra.mxu0 %v3905
    %3988 = vmatpush.bf16.msra.mxu0 %v3901
    %3989 = vmatpush.bf16.msra.mxu0 %v3897
    %3990 = vmatpush.bf16.msra.mxu0 %v3893
    %3991 = vmatmul.bf16.gmra.mxu0 %v3762
    %v3992 = vpop.f32.mrf.mxu0
    %v3993 = vadd.f32 0.0, %v3992
    %v3994 = vpop.f32.mrf.mxu0
    %v3995 = vadd.f32 0.0, %v3994
    %3996 = vdwg.mxu0
    %3997 = vmatpush.bf16.msra.mxu0 %v3922
    %3998 = vmatpush.bf16.msra.mxu0 %v3918
    %3999 = vmatpush.bf16.msra.mxu0 %v3914
    %4000 = vmatpush.bf16.msra.mxu0 %v3910
    %4001 = vmatpush.bf16.msra.mxu0 %v3906
    %4002 = vmatpush.bf16.msra.mxu0 %v3902
    %4003 = vmatpush.bf16.msra.mxu0 %v3898
    %4004 = vmatpush.bf16.msra.mxu0 %v3894
    %4005 = vmatmul.bf16.gmra.mxu0 %v3762
    %v4006 = vpop.f32.mrf.mxu0
    %v4007 = vadd.f32 0.0, %v4006
    %v4008 = vpop.f32.mrf.mxu0
    %v4009 = vadd.f32 0.0, %v4008
    %4010 = vdwg.mxu0
    %v4011 = vadd.f32 %v3752, %v3965
    %v4012 = vadd.f32 %v3753, %v3979
    %v4013 = vadd.f32 %v3754, %v3993
    %v4014 = vadd.f32 %v3755, %v4007
    %v4015 = vadd.f32 %v3756, %v3967
    %v4016 = vadd.f32 %v3757, %v3981
    %v4017 = vadd.f32 %v3758, %v3995
    %v4018 = vadd.f32 %v3759, %v4009
    %v4019 = vxor.u32 %v4011, 2147483648
    %v4020 = vxor.u32 %v4015, 2147483648
    %v4021 = vmul.f32 %v4019, 1.442695
    %v4022 = vpow.pop %v4021
    %v4023 = vmul.f32 %v4020, 1.442695
    %v4024 = vpow.pop %v4023
    %v4025 = vadd.f32 %v4022, 1.0
    %v4026 = vadd.f32 %v4024, 1.0
    %v4027 = vrcp.pop %v4025
    %v4028 = vmul.f32 %v4025, %v4027
    %v4029 = vsub.f32 1.0, %v4028
    %v4030 = vmul.f32 %v4027, %v4029
    %v4031 = vadd.f32 %v4027, %v4030
    %vm4032 = vweird.f32 %v4025
    %vm4033 = vweird.f32 %v4027
    %vm4034 = vmor %vm4032, %vm4033
    %v4035 = vsel %vm4034, %v4027, %v4031
    %v4036 = vand.u32 2147483647, %v4025
    %vm4037 = vcmp.eq.f32.partialorder %v4036, 8.507059e+37
    %v4038 = vand.u32 %v4025, 2147483648
    %v4039 = vor.u32 1.1754944e-38, %v4038
    %v4040 = vsel %vm4037, %v4039, %v4035
    %v4041 = vmul.f32 1.0, %v4040
    %v4042 = vrcp.pop %v4026
    %v4043 = vmul.f32 %v4026, %v4042
    %v4044 = vsub.f32 1.0, %v4043
    %v4045 = vmul.f32 %v4042, %v4044
    %v4046 = vadd.f32 %v4042, %v4045
    %vm4047 = vweird.f32 %v4026
    %vm4048 = vweird.f32 %v4042
    %vm4049 = vmor %vm4047, %vm4048
    %v4050 = vsel %vm4049, %v4042, %v4046
    %v4051 = vand.u32 2147483647, %v4026
    %vm4052 = vcmp.eq.f32.partialorder %v4051, 8.507059e+37
    %v4053 = vand.u32 %v4026, 2147483648
    %v4054 = vor.u32 1.1754944e-38, %v4053
    %v4055 = vsel %vm4052, %v4054, %v4050
    %v4056 = vmul.f32 1.0, %v4055
    %v4057 = vxor.u32 %v4012, 2147483648
    %v4058 = vxor.u32 %v4016, 2147483648
    %v4059 = vmul.f32 %v4057, 1.442695
    %v4060 = vpow.pop %v4059
    %v4061 = vmul.f32 %v4058, 1.442695
    %v4062 = vpow.pop %v4061
    %v4063 = vadd.f32 %v4060, 1.0
    %v4064 = vadd.f32 %v4062, 1.0
    %v4065 = vrcp.pop %v4063
    %v4066 = vmul.f32 %v4063, %v4065
    %v4067 = vsub.f32 1.0, %v4066
    %v4068 = vmul.f32 %v4065, %v4067
    %v4069 = vadd.f32 %v4065, %v4068
    %vm4070 = vweird.f32 %v4063
    %vm4071 = vweird.f32 %v4065
    %vm4072 = vmor %vm4070, %vm4071
    %v4073 = vsel %vm4072, %v4065, %v4069
    %v4074 = vand.u32 2147483647, %v4063
    %vm4075 = vcmp.eq.f32.partialorder %v4074, 8.507059e+37
    %v4076 = vand.u32 %v4063, 2147483648
    %v4077 = vor.u32 1.1754944e-38, %v4076
    %v4078 = vsel %vm4075, %v4077, %v4073
    %v4079 = vmul.f32 1.0, %v4078
    %v4080 = vrcp.pop %v4064
    %v4081 = vmul.f32 %v4064, %v4080
    %v4082 = vsub.f32 1.0, %v4081
    %v4083 = vmul.f32 %v4080, %v4082
    %v4084 = vadd.f32 %v4080, %v4083
    %vm4085 = vweird.f32 %v4064
    %vm4086 = vweird.f32 %v4080
    %vm4087 = vmor %vm4085, %vm4086
    %v4088 = vsel %vm4087, %v4080, %v4084
    %v4089 = vand.u32 2147483647, %v4064
    %vm4090 = vcmp.eq.f32.partialorder %v4089, 8.507059e+37
    %v4091 = vand.u32 %v4064, 2147483648
    %v4092 = vor.u32 1.1754944e-38, %v4091
    %v4093 = vsel %vm4090, %v4092, %v4088
    %v4094 = vmul.f32 1.0, %v4093
    %v4095 = vtanh.pop %v4013
    %v4096 = vtanh.pop %v4017
    %v4097 = vxor.u32 %v4014, 2147483648
    %v4098 = vxor.u32 %v4018, 2147483648
    %v4099 = vmul.f32 %v4097, 1.442695
    %v4100 = vpow.pop %v4099
    %v4101 = vmul.f32 %v4098, 1.442695
    %v4102 = vpow.pop %v4101
    %v4103 = vadd.f32 %v4100, 1.0
    %v4104 = vadd.f32 %v4102, 1.0
    %v4105 = vrcp.pop %v4103
    %v4106 = vmul.f32 %v4103, %v4105
    %v4107 = vsub.f32 1.0, %v4106
    %v4108 = vmul.f32 %v4105, %v4107
    %v4109 = vadd.f32 %v4105, %v4108
    %vm4110 = vweird.f32 %v4103
    %vm4111 = vweird.f32 %v4105
    %vm4112 = vmor %vm4110, %vm4111
    %v4113 = vsel %vm4112, %v4105, %v4109
    %v4114 = vand.u32 2147483647, %v4103
    %vm4115 = vcmp.eq.f32.partialorder %v4114, 8.507059e+37
    %v4116 = vand.u32 %v4103, 2147483648
    %v4117 = vor.u32 1.1754944e-38, %v4116
    %v4118 = vsel %vm4115, %v4117, %v4113
    %v4119 = vmul.f32 1.0, %v4118
    %v4120 = vrcp.pop %v4104
    %v4121 = vmul.f32 %v4104, %v4120
    %v4122 = vsub.f32 1.0, %v4121
    %v4123 = vmul.f32 %v4120, %v4122
    %v4124 = vadd.f32 %v4120, %v4123
    %vm4125 = vweird.f32 %v4104
    %vm4126 = vweird.f32 %v4120
    %vm4127 = vmor %vm4125, %vm4126
    %v4128 = vsel %vm4127, %v4120, %v4124
    %v4129 = vand.u32 2147483647, %v4104
    %vm4130 = vcmp.eq.f32.partialorder %v4129, 8.507059e+37
    %v4131 = vand.u32 %v4104, 2147483648
    %v4132 = vor.u32 1.1754944e-38, %v4131
    %v4133 = vsel %vm4130, %v4132, %v4128
    %v4134 = vmul.f32 1.0, %v4133
    %v4135 = vld [vmem:[#allocation4] sm:$0xff]
    %v4136 = vld [vmem:[#allocation4 + $0x8] sm:$0xff]
    %v4137 = vmul.f32 %v4079, %v4135
    %v4138 = vmul.f32 %v4094, %v4136
    %v4139 = vmul.f32 %v4041, %v4095
    %v4140 = vmul.f32 %v4056, %v4096
    %v4141 = vadd.f32 %v4137, %v4139
    %v4142 = vadd.f32 %v4138, %v4140
    %v4143 = vtanh.pop %v4141
    %v4144 = vtanh.pop %v4142
    %v4145 = vmul.f32 %v4119, %v4143
    %v4146 = vmul.f32 %v4134, %v4144
    %4147 = vst [vmem:[#allocation4] sm:$0xff] %v4141
    %4148 = vst [vmem:[#allocation4 + $0x8] sm:$0xff] %v4142
    %4149 = vst [vmem:[#allocation3] sm:$0xff] %v4145
    %4150 = vst [vmem:[#allocation3 + $0x8] sm:$0xff] %v4146
    %v4151 = vpack.c.bf16 %v4145, %v4145
    %v4152 = vpack.c.bf16 %v4146, %v4146
    %s4153 = scalar_lea.vmem [#allocation13], 56
    %4154 = vst [vmem:[%s4153] sm:$0xf] %v4151
    %4155 = vst [vmem:[%s4153 + $0x4] sm:$0xf] %v4152
    %s4156 = smul.u32 16, 4
    %s4157 = smul.addr %s4156, 8
    %s4158 = scalar_lea.vmem [#allocation2], %s4157
    %v4159 = vld [vmem:[%s4158] sm:$0xff]
    %v4160 = vld [vmem:[%s4158 + $0x8] sm:$0xff]
    %v4161 = vld [vmem:[%s4158 + $0x10] sm:$0xff]
    %v4162 = vld [vmem:[%s4158 + $0x18] sm:$0xff]
    %v4163 = vld [vmem:[%s4158 + $0x20] sm:$0xff]
    %v4164 = vld [vmem:[%s4158 + $0x28] sm:$0xff]
    %v4165 = vld [vmem:[%s4158 + $0x30] sm:$0xff]
    %v4166 = vld [vmem:[%s4158 + $0x38] sm:$0xff]
    %v4167 = vld [vmem:[#allocation3] sm:$0xff]
    %v4168 = vld [vmem:[#allocation3 + $0x8] sm:$0xff]
    %v4169 = vpack.c.bf16 %v4168, %v4167
    %v4170 = vld [vmem:[#allocation10] sm:$0xff]
    %v4171 = vld [vmem:[#allocation10 + $0x8] sm:$0xff]
    %v4172 = vld [vmem:[#allocation10 + $0x10] sm:$0xff]
    %v4173 = vld [vmem:[#allocation10 + $0x18] sm:$0xff]
    %v4174 = vld [vmem:[#allocation10 + $0x20] sm:$0xff]
    %v4175 = vld [vmem:[#allocation10 + $0x28] sm:$0xff]
    %v4176 = vld [vmem:[#allocation10 + $0x30] sm:$0xff]
    %v4177 = vld [vmem:[#allocation10 + $0x38] sm:$0xff]
    %v4178 = vld [vmem:[#allocation10 + $0x40] sm:$0xff]
    %v4179 = vld [vmem:[#allocation10 + $0x48] sm:$0xff]
    %v4180 = vld [vmem:[#allocation10 + $0x50] sm:$0xff]
    %v4181 = vld [vmem:[#allocation10 + $0x58] sm:$0xff]
    %v4182 = vld [vmem:[#allocation10 + $0x60] sm:$0xff]
    %v4183 = vld [vmem:[#allocation10 + $0x68] sm:$0xff]
    %v4184 = vld [vmem:[#allocation10 + $0x70] sm:$0xff]
    %v4185 = vld [vmem:[#allocation10 + $0x78] sm:$0xff]
    %v4186 = vld [vmem:[#allocation10 + $0x80] sm:$0xff]
    %v4187 = vld [vmem:[#allocation10 + $0x88] sm:$0xff]
    %v4188 = vld [vmem:[#allocation10 + $0x90] sm:$0xff]
    %v4189 = vld [vmem:[#allocation10 + $0x98] sm:$0xff]
    %v4190 = vld [vmem:[#allocation10 + $0xa0] sm:$0xff]
    %v4191 = vld [vmem:[#allocation10 + $0xa8] sm:$0xff]
    %v4192 = vld [vmem:[#allocation10 + $0xb0] sm:$0xff]
    %v4193 = vld [vmem:[#allocation10 + $0xb8] sm:$0xff]
    %v4194 = vld [vmem:[#allocation10 + $0xc0] sm:$0xff]
    %v4195 = vld [vmem:[#allocation10 + $0xc8] sm:$0xff]
    %v4196 = vld [vmem:[#allocation10 + $0xd0] sm:$0xff]
    %v4197 = vld [vmem:[#allocation10 + $0xd8] sm:$0xff]
    %v4198 = vld [vmem:[#allocation10 + $0xe0] sm:$0xff]
    %v4199 = vld [vmem:[#allocation10 + $0xe8] sm:$0xff]
    %v4200 = vld [vmem:[#allocation10 + $0xf0] sm:$0xff]
    %v4201 = vld [vmem:[#allocation10 + $0xf8] sm:$0xff]
    %v4234 = vunpack.c.l.b16 %v4170
    %v4235 = vunpack.c.h.b16 %v4170
    %v4236 = vunpack.c.l.b16 %v4171
    %v4237 = vunpack.c.h.b16 %v4171
    %v4238 = vunpack.c.l.b16 %v4172
    %v4239 = vunpack.c.h.b16 %v4172
    %v4240 = vunpack.c.l.b16 %v4173
    %v4241 = vunpack.c.h.b16 %v4173
    %v4242 = vunpack.c.l.b16 %v4174
    %v4243 = vunpack.c.h.b16 %v4174
    %v4244 = vunpack.c.l.b16 %v4175
    %v4245 = vunpack.c.h.b16 %v4175
    %v4246 = vunpack.c.l.b16 %v4176
    %v4247 = vunpack.c.h.b16 %v4176
    %v4248 = vunpack.c.l.b16 %v4177
    %v4249 = vunpack.c.h.b16 %v4177
    %v4250 = vunpack.c.l.b16 %v4178
    %v4251 = vunpack.c.h.b16 %v4178
    %v4252 = vunpack.c.l.b16 %v4179
    %v4253 = vunpack.c.h.b16 %v4179
    %v4254 = vunpack.c.l.b16 %v4180
    %v4255 = vunpack.c.h.b16 %v4180
    %v4256 = vunpack.c.l.b16 %v4181
    %v4257 = vunpack.c.h.b16 %v4181
    %v4258 = vunpack.c.l.b16 %v4182
    %v4259 = vunpack.c.h.b16 %v4182
    %v4260 = vunpack.c.l.b16 %v4183
    %v4261 = vunpack.c.h.b16 %v4183
    %v4262 = vunpack.c.l.b16 %v4184
    %v4263 = vunpack.c.h.b16 %v4184
    %v4264 = vunpack.c.l.b16 %v4185
    %v4265 = vunpack.c.h.b16 %v4185
    %v4266 = vunpack.c.l.b16 %v4186
    %v4267 = vunpack.c.h.b16 %v4186
    %v4268 = vunpack.c.l.b16 %v4187
    %v4269 = vunpack.c.h.b16 %v4187
    %v4270 = vunpack.c.l.b16 %v4188
    %v4271 = vunpack.c.h.b16 %v4188
    %v4272 = vunpack.c.l.b16 %v4189
    %v4273 = vunpack.c.h.b16 %v4189
    %v4274 = vunpack.c.l.b16 %v4190
    %v4275 = vunpack.c.h.b16 %v4190
    %v4276 = vunpack.c.l.b16 %v4191
    %v4277 = vunpack.c.h.b16 %v4191
    %v4278 = vunpack.c.l.b16 %v4192
    %v4279 = vunpack.c.h.b16 %v4192
    %v4280 = vunpack.c.l.b16 %v4193
    %v4281 = vunpack.c.h.b16 %v4193
    %v4282 = vunpack.c.l.b16 %v4194
    %v4283 = vunpack.c.h.b16 %v4194
    %v4284 = vunpack.c.l.b16 %v4195
    %v4285 = vunpack.c.h.b16 %v4195
    %v4286 = vunpack.c.l.b16 %v4196
    %v4287 = vunpack.c.h.b16 %v4196
    %v4288 = vunpack.c.l.b16 %v4197
    %v4289 = vunpack.c.h.b16 %v4197
    %v4290 = vunpack.c.l.b16 %v4198
    %v4291 = vunpack.c.h.b16 %v4198
    %v4292 = vunpack.c.l.b16 %v4199
    %v4293 = vunpack.c.h.b16 %v4199
    %v4294 = vunpack.c.l.b16 %v4200
    %v4295 = vunpack.c.h.b16 %v4200
    %v4296 = vunpack.c.l.b16 %v4201
    %v4297 = vunpack.c.h.b16 %v4201
    %v4298 = vpack.c.b16 %v4238, %v4234
    %v4299 = vpack.c.b16 %v4239, %v4235
    %v4300 = vpack.c.b16 %v4240, %v4236
    %v4301 = vpack.c.b16 %v4241, %v4237
    %v4302 = vpack.c.b16 %v4246, %v4242
    %v4303 = vpack.c.b16 %v4247, %v4243
    %v4304 = vpack.c.b16 %v4248, %v4244
    %v4305 = vpack.c.b16 %v4249, %v4245
    %v4306 = vpack.c.b16 %v4254, %v4250
    %v4307 = vpack.c.b16 %v4255, %v4251
    %v4308 = vpack.c.b16 %v4256, %v4252
    %v4309 = vpack.c.b16 %v4257, %v4253
    %v4310 = vpack.c.b16 %v4262, %v4258
    %v4311 = vpack.c.b16 %v4263, %v4259
    %v4312 = vpack.c.b16 %v4264, %v4260
    %v4313 = vpack.c.b16 %v4265, %v4261
    %v4314 = vpack.c.b16 %v4270, %v4266
    %v4315 = vpack.c.b16 %v4271, %v4267
    %v4316 = vpack.c.b16 %v4272, %v4268
    %v4317 = vpack.c.b16 %v4273, %v4269
    %v4318 = vpack.c.b16 %v4278, %v4274
    %v4319 = vpack.c.b16 %v4279, %v4275
    %v4320 = vpack.c.b16 %v4280, %v4276
    %v4321 = vpack.c.b16 %v4281, %v4277
    %v4322 = vpack.c.b16 %v4286, %v4282
    %v4323 = vpack.c.b16 %v4287, %v4283
    %v4324 = vpack.c.b16 %v4288, %v4284
    %v4325 = vpack.c.b16 %v4289, %v4285
    %v4326 = vpack.c.b16 %v4294, %v4290
    %v4327 = vpack.c.b16 %v4295, %v4291
    %v4328 = vpack.c.b16 %v4296, %v4292
    %v4329 = vpack.c.b16 %v4297, %v4293
    %4362 = vmatpush.bf16.msra.mxu0 %v4326
    %4363 = vmatpush.bf16.msra.mxu0 %v4322
    %4364 = vmatpush.bf16.msra.mxu0 %v4318
    %4365 = vmatpush.bf16.msra.mxu0 %v4314
    %4366 = vmatpush.bf16.msra.mxu0 %v4310
    %4367 = vmatpush.bf16.msra.mxu0 %v4306
    %4368 = vmatpush.bf16.msra.mxu0 %v4302
    %4369 = vmatpush.bf16.msra.mxu0 %v4298
    %4370 = vmatmul.bf16.gmra.mxu0 %v4169
    %v4371 = vpop.f32.mrf.mxu0
    %v4372 = vadd.f32 0.0, %v4371
    %v4373 = vpop.f32.mrf.mxu0
    %v4374 = vadd.f32 0.0, %v4373
    %4375 = vdwg.mxu0
    %4376 = vmatpush.bf16.msra.mxu0 %v4327
    %4377 = vmatpush.bf16.msra.mxu0 %v4323
    %4378 = vmatpush.bf16.msra.mxu0 %v4319
    %4379 = vmatpush.bf16.msra.mxu0 %v4315
    %4380 = vmatpush.bf16.msra.mxu0 %v4311
    %4381 = vmatpush.bf16.msra.mxu0 %v4307
    %4382 = vmatpush.bf16.msra.mxu0 %v4303
    %4383 = vmatpush.bf16.msra.mxu0 %v4299
    %4384 = vmatmul.bf16.gmra.mxu0 %v4169
    %v4385 = vpop.f32.mrf.mxu0
    %v4386 = vadd.f32 0.0, %v4385
    %v4387 = vpop.f32.mrf.mxu0
    %v4388 = vadd.f32 0.0, %v4387
    %4389 = vdwg.mxu0
    %4390 = vmatpush.bf16.msra.mxu0 %v4328
    %4391 = vmatpush.bf16.msra.mxu0 %v4324
    %4392 = vmatpush.bf16.msra.mxu0 %v4320
    %4393 = vmatpush.bf16.msra.mxu0 %v4316
    %4394 = vmatpush.bf16.msra.mxu0 %v4312
    %4395 = vmatpush.bf16.msra.mxu0 %v4308
    %4396 = vmatpush.bf16.msra.mxu0 %v4304
    %4397 = vmatpush.bf16.msra.mxu0 %v4300
    %4398 = vmatmul.bf16.gmra.mxu0 %v4169
    %v4399 = vpop.f32.mrf.mxu0
    %v4400 = vadd.f32 0.0, %v4399
    %v4401 = vpop.f32.mrf.mxu0
    %v4402 = vadd.f32 0.0, %v4401
    %4403 = vdwg.mxu0
    %4404 = vmatpush.bf16.msra.mxu0 %v4329
    %4405 = vmatpush.bf16.msra.mxu0 %v4325
    %4406 = vmatpush.bf16.msra.mxu0 %v4321
    %4407 = vmatpush.bf16.msra.mxu0 %v4317
    %4408 = vmatpush.bf16.msra.mxu0 %v4313
    %4409 = vmatpush.bf16.msra.mxu0 %v4309
    %4410 = vmatpush.bf16.msra.mxu0 %v4305
    %4411 = vmatpush.bf16.msra.mxu0 %v4301
    %4412 = vmatmul.bf16.gmra.mxu0 %v4169
    %v4413 = vpop.f32.mrf.mxu0
    %v4414 = vadd.f32 0.0, %v4413
    %v4415 = vpop.f32.mrf.mxu0
    %v4416 = vadd.f32 0.0, %v4415
    %4417 = vdwg.mxu0
    %v4418 = vadd.f32 %v4159, %v4372
    %v4419 = vadd.f32 %v4160, %v4386
    %v4420 = vadd.f32 %v4161, %v4400
    %v4421 = vadd.f32 %v4162, %v4414
    %v4422 = vadd.f32 %v4163, %v4374
    %v4423 = vadd.f32 %v4164, %v4388
    %v4424 = vadd.f32 %v4165, %v4402
    %v4425 = vadd.f32 %v4166, %v4416
    %v4426 = vxor.u32 %v4418, 2147483648
    %v4427 = vxor.u32 %v4422, 2147483648
    %v4428 = vmul.f32 %v4426, 1.442695
    %v4429 = vpow.pop %v4428
    %v4430 = vmul.f32 %v4427, 1.442695
    %v4431 = vpow.pop %v4430
    %v4432 = vadd.f32 %v4429, 1.0
    %v4433 = vadd.f32 %v4431, 1.0
    %v4434 = vrcp.pop %v4432
    %v4435 = vmul.f32 %v4432, %v4434
    %v4436 = vsub.f32 1.0, %v4435
    %v4437 = vmul.f32 %v4434, %v4436
    %v4438 = vadd.f32 %v4434, %v4437
    %vm4439 = vweird.f32 %v4432
    %vm4440 = vweird.f32 %v4434
    %vm4441 = vmor %vm4439, %vm4440
    %v4442 = vsel %vm4441, %v4434, %v4438
    %v4443 = vand.u32 2147483647, %v4432
    %vm4444 = vcmp.eq.f32.partialorder %v4443, 8.507059e+37
    %v4445 = vand.u32 %v4432, 2147483648
    %v4446 = vor.u32 1.1754944e-38, %v4445
    %v4447 = vsel %vm4444, %v4446, %v4442
    %v4448 = vmul.f32 1.0, %v4447
    %v4449 = vrcp.pop %v4433
    %v4450 = vmul.f32 %v4433, %v4449
    %v4451 = vsub.f32 1.0, %v4450
    %v4452 = vmul.f32 %v4449, %v4451
    %v4453 = vadd.f32 %v4449, %v4452
    %vm4454 = vweird.f32 %v4433
    %vm4455 = vweird.f32 %v4449
    %vm4456 = vmor %vm4454, %vm4455
    %v4457 = vsel %vm4456, %v4449, %v4453
    %v4458 = vand.u32 2147483647, %v4433
    %vm4459 = vcmp.eq.f32.partialorder %v4458, 8.507059e+37
    %v4460 = vand.u32 %v4433, 2147483648
    %v4461 = vor.u32 1.1754944e-38, %v4460
    %v4462 = vsel %vm4459, %v4461, %v4457
    %v4463 = vmul.f32 1.0, %v4462
    %v4464 = vxor.u32 %v4419, 2147483648
    %v4465 = vxor.u32 %v4423, 2147483648
    %v4466 = vmul.f32 %v4464, 1.442695
    %v4467 = vpow.pop %v4466
    %v4468 = vmul.f32 %v4465, 1.442695
    %v4469 = vpow.pop %v4468
    %v4470 = vadd.f32 %v4467, 1.0
    %v4471 = vadd.f32 %v4469, 1.0
    %v4472 = vrcp.pop %v4470
    %v4473 = vmul.f32 %v4470, %v4472
    %v4474 = vsub.f32 1.0, %v4473
    %v4475 = vmul.f32 %v4472, %v4474
    %v4476 = vadd.f32 %v4472, %v4475
    %vm4477 = vweird.f32 %v4470
    %vm4478 = vweird.f32 %v4472
    %vm4479 = vmor %vm4477, %vm4478
    %v4480 = vsel %vm4479, %v4472, %v4476
    %v4481 = vand.u32 2147483647, %v4470
    %vm4482 = vcmp.eq.f32.partialorder %v4481, 8.507059e+37
    %v4483 = vand.u32 %v4470, 2147483648
    %v4484 = vor.u32 1.1754944e-38, %v4483
    %v4485 = vsel %vm4482, %v4484, %v4480
    %v4486 = vmul.f32 1.0, %v4485
    %v4487 = vrcp.pop %v4471
    %v4488 = vmul.f32 %v4471, %v4487
    %v4489 = vsub.f32 1.0, %v4488
    %v4490 = vmul.f32 %v4487, %v4489
    %v4491 = vadd.f32 %v4487, %v4490
    %vm4492 = vweird.f32 %v4471
    %vm4493 = vweird.f32 %v4487
    %vm4494 = vmor %vm4492, %vm4493
    %v4495 = vsel %vm4494, %v4487, %v4491
    %v4496 = vand.u32 2147483647, %v4471
    %vm4497 = vcmp.eq.f32.partialorder %v4496, 8.507059e+37
    %v4498 = vand.u32 %v4471, 2147483648
    %v4499 = vor.u32 1.1754944e-38, %v4498
    %v4500 = vsel %vm4497, %v4499, %v4495
    %v4501 = vmul.f32 1.0, %v4500
    %v4502 = vtanh.pop %v4420
    %v4503 = vtanh.pop %v4424
    %v4504 = vxor.u32 %v4421, 2147483648
    %v4505 = vxor.u32 %v4425, 2147483648
    %v4506 = vmul.f32 %v4504, 1.442695
    %v4507 = vpow.pop %v4506
    %v4508 = vmul.f32 %v4505, 1.442695
    %v4509 = vpow.pop %v4508
    %v4510 = vadd.f32 %v4507, 1.0
    %v4511 = vadd.f32 %v4509, 1.0
    %v4512 = vrcp.pop %v4510
    %v4513 = vmul.f32 %v4510, %v4512
    %v4514 = vsub.f32 1.0, %v4513
    %v4515 = vmul.f32 %v4512, %v4514
    %v4516 = vadd.f32 %v4512, %v4515
    %vm4517 = vweird.f32 %v4510
    %vm4518 = vweird.f32 %v4512
    %vm4519 = vmor %vm4517, %vm4518
    %v4520 = vsel %vm4519, %v4512, %v4516
    %v4521 = vand.u32 2147483647, %v4510
    %vm4522 = vcmp.eq.f32.partialorder %v4521, 8.507059e+37
    %v4523 = vand.u32 %v4510, 2147483648
    %v4524 = vor.u32 1.1754944e-38, %v4523
    %v4525 = vsel %vm4522, %v4524, %v4520
    %v4526 = vmul.f32 1.0, %v4525
    %v4527 = vrcp.pop %v4511
    %v4528 = vmul.f32 %v4511, %v4527
    %v4529 = vsub.f32 1.0, %v4528
    %v4530 = vmul.f32 %v4527, %v4529
    %v4531 = vadd.f32 %v4527, %v4530
    %vm4532 = vweird.f32 %v4511
    %vm4533 = vweird.f32 %v4527
    %vm4534 = vmor %vm4532, %vm4533
    %v4535 = vsel %vm4534, %v4527, %v4531
    %v4536 = vand.u32 2147483647, %v4511
    %vm4537 = vcmp.eq.f32.partialorder %v4536, 8.507059e+37
    %v4538 = vand.u32 %v4511, 2147483648
    %v4539 = vor.u32 1.1754944e-38, %v4538
    %v4540 = vsel %vm4537, %v4539, %v4535
    %v4541 = vmul.f32 1.0, %v4540
    %v4542 = vld [vmem:[#allocation4] sm:$0xff]
    %v4543 = vld [vmem:[#allocation4 + $0x8] sm:$0xff]
    %v4544 = vmul.f32 %v4486, %v4542
    %v4545 = vmul.f32 %v4501, %v4543
    %v4546 = vmul.f32 %v4448, %v4502
    %v4547 = vmul.f32 %v4463, %v4503
    %v4548 = vadd.f32 %v4544, %v4546
    %v4549 = vadd.f32 %v4545, %v4547
    %v4550 = vtanh.pop %v4548
    %v4551 = vtanh.pop %v4549
    %v4552 = vmul.f32 %v4526, %v4550
    %v4553 = vmul.f32 %v4541, %v4551
    %4554 = vst [vmem:[#allocation4] sm:$0xff] %v4548
    %4555 = vst [vmem:[#allocation4 + $0x8] sm:$0xff] %v4549
    %4556 = vst [vmem:[#allocation3] sm:$0xff] %v4552
    %4557 = vst [vmem:[#allocation3 + $0x8] sm:$0xff] %v4553
    %v4558 = vpack.c.bf16 %v4552, %v4552
    %v4559 = vpack.c.bf16 %v4553, %v4553
    %s4560 = scalar_lea.vmem [#allocation13], 64
    %4561 = vst [vmem:[%s4560] sm:$0xf] %v4558
    %4562 = vst [vmem:[%s4560 + $0x4] sm:$0xf] %v4559
    %s4563 = smul.u32 18, 4
    %s4564 = smul.addr %s4563, 8
    %s4565 = scalar_lea.vmem [#allocation2], %s4564
    %v4566 = vld [vmem:[%s4565] sm:$0xff]
    %v4567 = vld [vmem:[%s4565 + $0x8] sm:$0xff]
    %v4568 = vld [vmem:[%s4565 + $0x10] sm:$0xff]
    %v4569 = vld [vmem:[%s4565 + $0x18] sm:$0xff]
    %v4570 = vld [vmem:[%s4565 + $0x20] sm:$0xff]
    %v4571 = vld [vmem:[%s4565 + $0x28] sm:$0xff]
    %v4572 = vld [vmem:[%s4565 + $0x30] sm:$0xff]
    %v4573 = vld [vmem:[%s4565 + $0x38] sm:$0xff]
    %v4574 = vld [vmem:[#allocation3] sm:$0xff]
    %v4575 = vld [vmem:[#allocation3 + $0x8] sm:$0xff]
    %v4576 = vpack.c.bf16 %v4575, %v4574
    %v4577 = vld [vmem:[#allocation10] sm:$0xff]
    %v4578 = vld [vmem:[#allocation10 + $0x8] sm:$0xff]
    %v4579 = vld [vmem:[#allocation10 + $0x10] sm:$0xff]
    %v4580 = vld [vmem:[#allocation10 + $0x18] sm:$0xff]
    %v4581 = vld [vmem:[#allocation10 + $0x20] sm:$0xff]
    %v4582 = vld [vmem:[#allocation10 + $0x28] sm:$0xff]
    %v4583 = vld [vmem:[#allocation10 + $0x30] sm:$0xff]
    %v4584 = vld [vmem:[#allocation10 + $0x38] sm:$0xff]
    %v4585 = vld [vmem:[#allocation10 + $0x40] sm:$0xff]
    %v4586 = vld [vmem:[#allocation10 + $0x48] sm:$0xff]
    %v4587 = vld [vmem:[#allocation10 + $0x50] sm:$0xff]
    %v4588 = vld [vmem:[#allocation10 + $0x58] sm:$0xff]
    %v4589 = vld [vmem:[#allocation10 + $0x60] sm:$0xff]
    %v4590 = vld [vmem:[#allocation10 + $0x68] sm:$0xff]
    %v4591 = vld [vmem:[#allocation10 + $0x70] sm:$0xff]
    %v4592 = vld [vmem:[#allocation10 + $0x78] sm:$0xff]
    %v4593 = vld [vmem:[#allocation10 + $0x80] sm:$0xff]
    %v4594 = vld [vmem:[#allocation10 + $0x88] sm:$0xff]
    %v4595 = vld [vmem:[#allocation10 + $0x90] sm:$0xff]
    %v4596 = vld [vmem:[#allocation10 + $0x98] sm:$0xff]
    %v4597 = vld [vmem:[#allocation10 + $0xa0] sm:$0xff]
    %v4598 = vld [vmem:[#allocation10 + $0xa8] sm:$0xff]
    %v4599 = vld [vmem:[#allocation10 + $0xb0] sm:$0xff]
    %v4600 = vld [vmem:[#allocation10 + $0xb8] sm:$0xff]
    %v4601 = vld [vmem:[#allocation10 + $0xc0] sm:$0xff]
    %v4602 = vld [vmem:[#allocation10 + $0xc8] sm:$0xff]
    %v4603 = vld [vmem:[#allocation10 + $0xd0] sm:$0xff]
    %v4604 = vld [vmem:[#allocation10 + $0xd8] sm:$0xff]
    %v4605 = vld [vmem:[#allocation10 + $0xe0] sm:$0xff]
    %v4606 = vld [vmem:[#allocation10 + $0xe8] sm:$0xff]
    %v4607 = vld [vmem:[#allocation10 + $0xf0] sm:$0xff]
    %v4608 = vld [vmem:[#allocation10 + $0xf8] sm:$0xff]
    %v4641 = vunpack.c.l.b16 %v4577
    %v4642 = vunpack.c.h.b16 %v4577
    %v4643 = vunpack.c.l.b16 %v4578
    %v4644 = vunpack.c.h.b16 %v4578
    %v4645 = vunpack.c.l.b16 %v4579
    %v4646 = vunpack.c.h.b16 %v4579
    %v4647 = vunpack.c.l.b16 %v4580
    %v4648 = vunpack.c.h.b16 %v4580
    %v4649 = vunpack.c.l.b16 %v4581
    %v4650 = vunpack.c.h.b16 %v4581
    %v4651 = vunpack.c.l.b16 %v4582
    %v4652 = vunpack.c.h.b16 %v4582
    %v4653 = vunpack.c.l.b16 %v4583
    %v4654 = vunpack.c.h.b16 %v4583
    %v4655 = vunpack.c.l.b16 %v4584
    %v4656 = vunpack.c.h.b16 %v4584
    %v4657 = vunpack.c.l.b16 %v4585
    %v4658 = vunpack.c.h.b16 %v4585
    %v4659 = vunpack.c.l.b16 %v4586
    %v4660 = vunpack.c.h.b16 %v4586
    %v4661 = vunpack.c.l.b16 %v4587
    %v4662 = vunpack.c.h.b16 %v4587
    %v4663 = vunpack.c.l.b16 %v4588
    %v4664 = vunpack.c.h.b16 %v4588
    %v4665 = vunpack.c.l.b16 %v4589
    %v4666 = vunpack.c.h.b16 %v4589
    %v4667 = vunpack.c.l.b16 %v4590
    %v4668 = vunpack.c.h.b16 %v4590
    %v4669 = vunpack.c.l.b16 %v4591
    %v4670 = vunpack.c.h.b16 %v4591
    %v4671 = vunpack.c.l.b16 %v4592
    %v4672 = vunpack.c.h.b16 %v4592
    %v4673 = vunpack.c.l.b16 %v4593
    %v4674 = vunpack.c.h.b16 %v4593
    %v4675 = vunpack.c.l.b16 %v4594
    %v4676 = vunpack.c.h.b16 %v4594
    %v4677 = vunpack.c.l.b16 %v4595
    %v4678 = vunpack.c.h.b16 %v4595
    %v4679 = vunpack.c.l.b16 %v4596
    %v4680 = vunpack.c.h.b16 %v4596
    %v4681 = vunpack.c.l.b16 %v4597
    %v4682 = vunpack.c.h.b16 %v4597
    %v4683 = vunpack.c.l.b16 %v4598
    %v4684 = vunpack.c.h.b16 %v4598
    %v4685 = vunpack.c.l.b16 %v4599
    %v4686 = vunpack.c.h.b16 %v4599
    %v4687 = vunpack.c.l.b16 %v4600
    %v4688 = vunpack.c.h.b16 %v4600
    %v4689 = vunpack.c.l.b16 %v4601
    %v4690 = vunpack.c.h.b16 %v4601
    %v4691 = vunpack.c.l.b16 %v4602
    %v4692 = vunpack.c.h.b16 %v4602
    %v4693 = vunpack.c.l.b16 %v4603
    %v4694 = vunpack.c.h.b16 %v4603
    %v4695 = vunpack.c.l.b16 %v4604
    %v4696 = vunpack.c.h.b16 %v4604
    %v4697 = vunpack.c.l.b16 %v4605
    %v4698 = vunpack.c.h.b16 %v4605
    %v4699 = vunpack.c.l.b16 %v4606
    %v4700 = vunpack.c.h.b16 %v4606
    %v4701 = vunpack.c.l.b16 %v4607
    %v4702 = vunpack.c.h.b16 %v4607
    %v4703 = vunpack.c.l.b16 %v4608
    %v4704 = vunpack.c.h.b16 %v4608
    %v4705 = vpack.c.b16 %v4645, %v4641
    %v4706 = vpack.c.b16 %v4646, %v4642
    %v4707 = vpack.c.b16 %v4647, %v4643
    %v4708 = vpack.c.b16 %v4648, %v4644
    %v4709 = vpack.c.b16 %v4653, %v4649
    %v4710 = vpack.c.b16 %v4654, %v4650
    %v4711 = vpack.c.b16 %v4655, %v4651
    %v4712 = vpack.c.b16 %v4656, %v4652
    %v4713 = vpack.c.b16 %v4661, %v4657
    %v4714 = vpack.c.b16 %v4662, %v4658
    %v4715 = vpack.c.b16 %v4663, %v4659
    %v4716 = vpack.c.b16 %v4664, %v4660
    %v4717 = vpack.c.b16 %v4669, %v4665
    %v4718 = vpack.c.b16 %v4670, %v4666
    %v4719 = vpack.c.b16 %v4671, %v4667
    %v4720 = vpack.c.b16 %v4672, %v4668
    %v4721 = vpack.c.b16 %v4677, %v4673
    %v4722 = vpack.c.b16 %v4678, %v4674
    %v4723 = vpack.c.b16 %v4679, %v4675
    %v4724 = vpack.c.b16 %v4680, %v4676
    %v4725 = vpack.c.b16 %v4685, %v4681
    %v4726 = vpack.c.b16 %v4686, %v4682
    %v4727 = vpack.c.b16 %v4687, %v4683
    %v4728 = vpack.c.b16 %v4688, %v4684
    %v4729 = vpack.c.b16 %v4693, %v4689
    %v4730 = vpack.c.b16 %v4694, %v4690
    %v4731 = vpack.c.b16 %v4695, %v4691
    %v4732 = vpack.c.b16 %v4696, %v4692
    %v4733 = vpack.c.b16 %v4701, %v4697
    %v4734 = vpack.c.b16 %v4702, %v4698
    %v4735 = vpack.c.b16 %v4703, %v4699
    %v4736 = vpack.c.b16 %v4704, %v4700
    %4769 = vmatpush.bf16.msra.mxu0 %v4733
    %4770 = vmatpush.bf16.msra.mxu0 %v4729
    %4771 = vmatpush.bf16.msra.mxu0 %v4725
    %4772 = vmatpush.bf16.msra.mxu0 %v4721
    %4773 = vmatpush.bf16.msra.mxu0 %v4717
    %4774 = vmatpush.bf16.msra.mxu0 %v4713
    %4775 = vmatpush.bf16.msra.mxu0 %v4709
    %4776 = vmatpush.bf16.msra.mxu0 %v4705
    %4777 = vmatmul.bf16.gmra.mxu0 %v4576
    %v4778 = vpop.f32.mrf.mxu0
    %v4779 = vadd.f32 0.0, %v4778
    %v4780 = vpop.f32.mrf.mxu0
    %v4781 = vadd.f32 0.0, %v4780
    %4782 = vdwg.mxu0
    %4783 = vmatpush.bf16.msra.mxu0 %v4734
    %4784 = vmatpush.bf16.msra.mxu0 %v4730
    %4785 = vmatpush.bf16.msra.mxu0 %v4726
    %4786 = vmatpush.bf16.msra.mxu0 %v4722
    %4787 = vmatpush.bf16.msra.mxu0 %v4718
    %4788 = vmatpush.bf16.msra.mxu0 %v4714
    %4789 = vmatpush.bf16.msra.mxu0 %v4710
    %4790 = vmatpush.bf16.msra.mxu0 %v4706
    %4791 = vmatmul.bf16.gmra.mxu0 %v4576
    %v4792 = vpop.f32.mrf.mxu0
    %v4793 = vadd.f32 0.0, %v4792
    %v4794 = vpop.f32.mrf.mxu0
    %v4795 = vadd.f32 0.0, %v4794
    %4796 = vdwg.mxu0
    %4797 = vmatpush.bf16.msra.mxu0 %v4735
    %4798 = vmatpush.bf16.msra.mxu0 %v4731
    %4799 = vmatpush.bf16.msra.mxu0 %v4727
    %4800 = vmatpush.bf16.msra.mxu0 %v4723
    %4801 = vmatpush.bf16.msra.mxu0 %v4719
    %4802 = vmatpush.bf16.msra.mxu0 %v4715
    %4803 = vmatpush.bf16.msra.mxu0 %v4711
    %4804 = vmatpush.bf16.msra.mxu0 %v4707
    %4805 = vmatmul.bf16.gmra.mxu0 %v4576
    %v4806 = vpop.f32.mrf.mxu0
    %v4807 = vadd.f32 0.0, %v4806
    %v4808 = vpop.f32.mrf.mxu0
    %v4809 = vadd.f32 0.0, %v4808
    %4810 = vdwg.mxu0
    %4811 = vmatpush.bf16.msra.mxu0 %v4736
    %4812 = vmatpush.bf16.msra.mxu0 %v4732
    %4813 = vmatpush.bf16.msra.mxu0 %v4728
    %4814 = vmatpush.bf16.msra.mxu0 %v4724
    %4815 = vmatpush.bf16.msra.mxu0 %v4720
    %4816 = vmatpush.bf16.msra.mxu0 %v4716
    %4817 = vmatpush.bf16.msra.mxu0 %v4712
    %4818 = vmatpush.bf16.msra.mxu0 %v4708
    %4819 = vmatmul.bf16.gmra.mxu0 %v4576
    %v4820 = vpop.f32.mrf.mxu0
    %v4821 = vadd.f32 0.0, %v4820
    %v4822 = vpop.f32.mrf.mxu0
    %v4823 = vadd.f32 0.0, %v4822
    %4824 = vdwg.mxu0
    %v4825 = vadd.f32 %v4566, %v4779
    %v4826 = vadd.f32 %v4567, %v4793
    %v4827 = vadd.f32 %v4568, %v4807
    %v4828 = vadd.f32 %v4569, %v4821
    %v4829 = vadd.f32 %v4570, %v4781
    %v4830 = vadd.f32 %v4571, %v4795
    %v4831 = vadd.f32 %v4572, %v4809
    %v4832 = vadd.f32 %v4573, %v4823
    %v4833 = vxor.u32 %v4825, 2147483648
    %v4834 = vxor.u32 %v4829, 2147483648
    %v4835 = vmul.f32 %v4833, 1.442695
    %v4836 = vpow.pop %v4835
    %v4837 = vmul.f32 %v4834, 1.442695
    %v4838 = vpow.pop %v4837
    %v4839 = vadd.f32 %v4836, 1.0
    %v4840 = vadd.f32 %v4838, 1.0
    %v4841 = vrcp.pop %v4839
    %v4842 = vmul.f32 %v4839, %v4841
    %v4843 = vsub.f32 1.0, %v4842
    %v4844 = vmul.f32 %v4841, %v4843
    %v4845 = vadd.f32 %v4841, %v4844
    %vm4846 = vweird.f32 %v4839
    %vm4847 = vweird.f32 %v4841
    %vm4848 = vmor %vm4846, %vm4847
    %v4849 = vsel %vm4848, %v4841, %v4845
    %v4850 = vand.u32 2147483647, %v4839
    %vm4851 = vcmp.eq.f32.partialorder %v4850, 8.507059e+37
    %v4852 = vand.u32 %v4839, 2147483648
    %v4853 = vor.u32 1.1754944e-38, %v4852
    %v4854 = vsel %vm4851, %v4853, %v4849
    %v4855 = vmul.f32 1.0, %v4854
    %v4856 = vrcp.pop %v4840
    %v4857 = vmul.f32 %v4840, %v4856
    %v4858 = vsub.f32 1.0, %v4857
    %v4859 = vmul.f32 %v4856, %v4858
    %v4860 = vadd.f32 %v4856, %v4859
    %vm4861 = vweird.f32 %v4840
    %vm4862 = vweird.f32 %v4856
    %vm4863 = vmor %vm4861, %vm4862
    %v4864 = vsel %vm4863, %v4856, %v4860
    %v4865 = vand.u32 2147483647, %v4840
    %vm4866 = vcmp.eq.f32.partialorder %v4865, 8.507059e+37
    %v4867 = vand.u32 %v4840, 2147483648
    %v4868 = vor.u32 1.1754944e-38, %v4867
    %v4869 = vsel %vm4866, %v4868, %v4864
    %v4870 = vmul.f32 1.0, %v4869
    %v4871 = vxor.u32 %v4826, 2147483648
    %v4872 = vxor.u32 %v4830, 2147483648
    %v4873 = vmul.f32 %v4871, 1.442695
    %v4874 = vpow.pop %v4873
    %v4875 = vmul.f32 %v4872, 1.442695
    %v4876 = vpow.pop %v4875
    %v4877 = vadd.f32 %v4874, 1.0
    %v4878 = vadd.f32 %v4876, 1.0
    %v4879 = vrcp.pop %v4877
    %v4880 = vmul.f32 %v4877, %v4879
    %v4881 = vsub.f32 1.0, %v4880
    %v4882 = vmul.f32 %v4879, %v4881
    %v4883 = vadd.f32 %v4879, %v4882
    %vm4884 = vweird.f32 %v4877
    %vm4885 = vweird.f32 %v4879
    %vm4886 = vmor %vm4884, %vm4885
    %v4887 = vsel %vm4886, %v4879, %v4883
    %v4888 = vand.u32 2147483647, %v4877
    %vm4889 = vcmp.eq.f32.partialorder %v4888, 8.507059e+37
    %v4890 = vand.u32 %v4877, 2147483648
    %v4891 = vor.u32 1.1754944e-38, %v4890
    %v4892 = vsel %vm4889, %v4891, %v4887
    %v4893 = vmul.f32 1.0, %v4892
    %v4894 = vrcp.pop %v4878
    %v4895 = vmul.f32 %v4878, %v4894
    %v4896 = vsub.f32 1.0, %v4895
    %v4897 = vmul.f32 %v4894, %v4896
    %v4898 = vadd.f32 %v4894, %v4897
    %vm4899 = vweird.f32 %v4878
    %vm4900 = vweird.f32 %v4894
    %vm4901 = vmor %vm4899, %vm4900
    %v4902 = vsel %vm4901, %v4894, %v4898
    %v4903 = vand.u32 2147483647, %v4878
    %vm4904 = vcmp.eq.f32.partialorder %v4903, 8.507059e+37
    %v4905 = vand.u32 %v4878, 2147483648
    %v4906 = vor.u32 1.1754944e-38, %v4905
    %v4907 = vsel %vm4904, %v4906, %v4902
    %v4908 = vmul.f32 1.0, %v4907
    %v4909 = vtanh.pop %v4827
    %v4910 = vtanh.pop %v4831
    %v4911 = vxor.u32 %v4828, 2147483648
    %v4912 = vxor.u32 %v4832, 2147483648
    %v4913 = vmul.f32 %v4911, 1.442695
    %v4914 = vpow.pop %v4913
    %v4915 = vmul.f32 %v4912, 1.442695
    %v4916 = vpow.pop %v4915
    %v4917 = vadd.f32 %v4914, 1.0
    %v4918 = vadd.f32 %v4916, 1.0
    %v4919 = vrcp.pop %v4917
    %v4920 = vmul.f32 %v4917, %v4919
    %v4921 = vsub.f32 1.0, %v4920
    %v4922 = vmul.f32 %v4919, %v4921
    %v4923 = vadd.f32 %v4919, %v4922
    %vm4924 = vweird.f32 %v4917
    %vm4925 = vweird.f32 %v4919
    %vm4926 = vmor %vm4924, %vm4925
    %v4927 = vsel %vm4926, %v4919, %v4923
    %v4928 = vand.u32 2147483647, %v4917
    %vm4929 = vcmp.eq.f32.partialorder %v4928, 8.507059e+37
    %v4930 = vand.u32 %v4917, 2147483648
    %v4931 = vor.u32 1.1754944e-38, %v4930
    %v4932 = vsel %vm4929, %v4931, %v4927
    %v4933 = vmul.f32 1.0, %v4932
    %v4934 = vrcp.pop %v4918
    %v4935 = vmul.f32 %v4918, %v4934
    %v4936 = vsub.f32 1.0, %v4935
    %v4937 = vmul.f32 %v4934, %v4936
    %v4938 = vadd.f32 %v4934, %v4937
    %vm4939 = vweird.f32 %v4918
    %vm4940 = vweird.f32 %v4934
    %vm4941 = vmor %vm4939, %vm4940
    %v4942 = vsel %vm4941, %v4934, %v4938
    %v4943 = vand.u32 2147483647, %v4918
    %vm4944 = vcmp.eq.f32.partialorder %v4943, 8.507059e+37
    %v4945 = vand.u32 %v4918, 2147483648
    %v4946 = vor.u32 1.1754944e-38, %v4945
    %v4947 = vsel %vm4944, %v4946, %v4942
    %v4948 = vmul.f32 1.0, %v4947
    %v4949 = vld [vmem:[#allocation4] sm:$0xff]
    %v4950 = vld [vmem:[#allocation4 + $0x8] sm:$0xff]
    %v4951 = vmul.f32 %v4893, %v4949
    %v4952 = vmul.f32 %v4908, %v4950
    %v4953 = vmul.f32 %v4855, %v4909
    %v4954 = vmul.f32 %v4870, %v4910
    %v4955 = vadd.f32 %v4951, %v4953
    %v4956 = vadd.f32 %v4952, %v4954
    %v4957 = vtanh.pop %v4955
    %v4958 = vtanh.pop %v4956
    %v4959 = vmul.f32 %v4933, %v4957
    %v4960 = vmul.f32 %v4948, %v4958
    %4961 = vst [vmem:[#allocation4] sm:$0xff] %v4955
    %4962 = vst [vmem:[#allocation4 + $0x8] sm:$0xff] %v4956
    %4963 = vst [vmem:[#allocation3] sm:$0xff] %v4959
    %4964 = vst [vmem:[#allocation3 + $0x8] sm:$0xff] %v4960
    %v4965 = vpack.c.bf16 %v4959, %v4959
    %v4966 = vpack.c.bf16 %v4960, %v4960
    %s4967 = scalar_lea.vmem [#allocation13], 72
    %4968 = vst [vmem:[%s4967] sm:$0xf] %v4965
    %4969 = vst [vmem:[%s4967 + $0x4] sm:$0xf] %v4966
    %s4970 = smul.u32 20, 4
    %s4971 = smul.addr %s4970, 8
    %s4972 = scalar_lea.vmem [#allocation2], %s4971
    %v4973 = vld [vmem:[%s4972] sm:$0xff]
    %v4974 = vld [vmem:[%s4972 + $0x8] sm:$0xff]
    %v4975 = vld [vmem:[%s4972 + $0x10] sm:$0xff]
    %v4976 = vld [vmem:[%s4972 + $0x18] sm:$0xff]
    %v4977 = vld [vmem:[%s4972 + $0x20] sm:$0xff]
    %v4978 = vld [vmem:[%s4972 + $0x28] sm:$0xff]
    %v4979 = vld [vmem:[%s4972 + $0x30] sm:$0xff]
    %v4980 = vld [vmem:[%s4972 + $0x38] sm:$0xff]
    %v4981 = vld [vmem:[#allocation3] sm:$0xff]
    %v4982 = vld [vmem:[#allocation3 + $0x8] sm:$0xff]
    %v4983 = vpack.c.bf16 %v4982, %v4981
    %v4984 = vld [vmem:[#allocation10] sm:$0xff]
    %v4985 = vld [vmem:[#allocation10 + $0x8] sm:$0xff]
    %v4986 = vld [vmem:[#allocation10 + $0x10] sm:$0xff]
    %v4987 = vld [vmem:[#allocation10 + $0x18] sm:$0xff]
    %v4988 = vld [vmem:[#allocation10 + $0x20] sm:$0xff]
    %v4989 = vld [vmem:[#allocation10 + $0x28] sm:$0xff]
    %v4990 = vld [vmem:[#allocation10 + $0x30] sm:$0xff]
    %v4991 = vld [vmem:[#allocation10 + $0x38] sm:$0xff]
    %v4992 = vld [vmem:[#allocation10 + $0x40] sm:$0xff]
    %v4993 = vld [vmem:[#allocation10 + $0x48] sm:$0xff]
    %v4994 = vld [vmem:[#allocation10 + $0x50] sm:$0xff]
    %v4995 = vld [vmem:[#allocation10 + $0x58] sm:$0xff]
    %v4996 = vld [vmem:[#allocation10 + $0x60] sm:$0xff]
    %v4997 = vld [vmem:[#allocation10 + $0x68] sm:$0xff]
    %v4998 = vld [vmem:[#allocation10 + $0x70] sm:$0xff]
    %v4999 = vld [vmem:[#allocation10 + $0x78] sm:$0xff]
    %v5000 = vld [vmem:[#allocation10 + $0x80] sm:$0xff]
    %v5001 = vld [vmem:[#allocation10 + $0x88] sm:$0xff]
    %v5002 = vld [vmem:[#allocation10 + $0x90] sm:$0xff]
    %v5003 = vld [vmem:[#allocation10 + $0x98] sm:$0xff]
    %v5004 = vld [vmem:[#allocation10 + $0xa0] sm:$0xff]
    %v5005 = vld [vmem:[#allocation10 + $0xa8] sm:$0xff]
    %v5006 = vld [vmem:[#allocation10 + $0xb0] sm:$0xff]
    %v5007 = vld [vmem:[#allocation10 + $0xb8] sm:$0xff]
    %v5008 = vld [vmem:[#allocation10 + $0xc0] sm:$0xff]
    %v5009 = vld [vmem:[#allocation10 + $0xc8] sm:$0xff]
    %v5010 = vld [vmem:[#allocation10 + $0xd0] sm:$0xff]
    %v5011 = vld [vmem:[#allocation10 + $0xd8] sm:$0xff]
    %v5012 = vld [vmem:[#allocation10 + $0xe0] sm:$0xff]
    %v5013 = vld [vmem:[#allocation10 + $0xe8] sm:$0xff]
    %v5014 = vld [vmem:[#allocation10 + $0xf0] sm:$0xff]
    %v5015 = vld [vmem:[#allocation10 + $0xf8] sm:$0xff]
    %v5048 = vunpack.c.l.b16 %v4984
    %v5049 = vunpack.c.h.b16 %v4984
    %v5050 = vunpack.c.l.b16 %v4985
    %v5051 = vunpack.c.h.b16 %v4985
    %v5052 = vunpack.c.l.b16 %v4986
    %v5053 = vunpack.c.h.b16 %v4986
    %v5054 = vunpack.c.l.b16 %v4987
    %v5055 = vunpack.c.h.b16 %v4987
    %v5056 = vunpack.c.l.b16 %v4988
    %v5057 = vunpack.c.h.b16 %v4988
    %v5058 = vunpack.c.l.b16 %v4989
    %v5059 = vunpack.c.h.b16 %v4989
    %v5060 = vunpack.c.l.b16 %v4990
    %v5061 = vunpack.c.h.b16 %v4990
    %v5062 = vunpack.c.l.b16 %v4991
    %v5063 = vunpack.c.h.b16 %v4991
    %v5064 = vunpack.c.l.b16 %v4992
    %v5065 = vunpack.c.h.b16 %v4992
    %v5066 = vunpack.c.l.b16 %v4993
    %v5067 = vunpack.c.h.b16 %v4993
    %v5068 = vunpack.c.l.b16 %v4994
    %v5069 = vunpack.c.h.b16 %v4994
    %v5070 = vunpack.c.l.b16 %v4995
    %v5071 = vunpack.c.h.b16 %v4995
    %v5072 = vunpack.c.l.b16 %v4996
    %v5073 = vunpack.c.h.b16 %v4996
    %v5074 = vunpack.c.l.b16 %v4997
    %v5075 = vunpack.c.h.b16 %v4997
    %v5076 = vunpack.c.l.b16 %v4998
    %v5077 = vunpack.c.h.b16 %v4998
    %v5078 = vunpack.c.l.b16 %v4999
    %v5079 = vunpack.c.h.b16 %v4999
    %v5080 = vunpack.c.l.b16 %v5000
    %v5081 = vunpack.c.h.b16 %v5000
    %v5082 = vunpack.c.l.b16 %v5001
    %v5083 = vunpack.c.h.b16 %v5001
    %v5084 = vunpack.c.l.b16 %v5002
    %v5085 = vunpack.c.h.b16 %v5002
    %v5086 = vunpack.c.l.b16 %v5003
    %v5087 = vunpack.c.h.b16 %v5003
    %v5088 = vunpack.c.l.b16 %v5004
    %v5089 = vunpack.c.h.b16 %v5004
    %v5090 = vunpack.c.l.b16 %v5005
    %v5091 = vunpack.c.h.b16 %v5005
    %v5092 = vunpack.c.l.b16 %v5006
    %v5093 = vunpack.c.h.b16 %v5006
    %v5094 = vunpack.c.l.b16 %v5007
    %v5095 = vunpack.c.h.b16 %v5007
    %v5096 = vunpack.c.l.b16 %v5008
    %v5097 = vunpack.c.h.b16 %v5008
    %v5098 = vunpack.c.l.b16 %v5009
    %v5099 = vunpack.c.h.b16 %v5009
    %v5100 = vunpack.c.l.b16 %v5010
    %v5101 = vunpack.c.h.b16 %v5010
    %v5102 = vunpack.c.l.b16 %v5011
    %v5103 = vunpack.c.h.b16 %v5011
    %v5104 = vunpack.c.l.b16 %v5012
    %v5105 = vunpack.c.h.b16 %v5012
    %v5106 = vunpack.c.l.b16 %v5013
    %v5107 = vunpack.c.h.b16 %v5013
    %v5108 = vunpack.c.l.b16 %v5014
    %v5109 = vunpack.c.h.b16 %v5014
    %v5110 = vunpack.c.l.b16 %v5015
    %v5111 = vunpack.c.h.b16 %v5015
    %v5112 = vpack.c.b16 %v5052, %v5048
    %v5113 = vpack.c.b16 %v5053, %v5049
    %v5114 = vpack.c.b16 %v5054, %v5050
    %v5115 = vpack.c.b16 %v5055, %v5051
    %v5116 = vpack.c.b16 %v5060, %v5056
    %v5117 = vpack.c.b16 %v5061, %v5057
    %v5118 = vpack.c.b16 %v5062, %v5058
    %v5119 = vpack.c.b16 %v5063, %v5059
    %v5120 = vpack.c.b16 %v5068, %v5064
    %v5121 = vpack.c.b16 %v5069, %v5065
    %v5122 = vpack.c.b16 %v5070, %v5066
    %v5123 = vpack.c.b16 %v5071, %v5067
    %v5124 = vpack.c.b16 %v5076, %v5072
    %v5125 = vpack.c.b16 %v5077, %v5073
    %v5126 = vpack.c.b16 %v5078, %v5074
    %v5127 = vpack.c.b16 %v5079, %v5075
    %v5128 = vpack.c.b16 %v5084, %v5080
    %v5129 = vpack.c.b16 %v5085, %v5081
    %v5130 = vpack.c.b16 %v5086, %v5082
    %v5131 = vpack.c.b16 %v5087, %v5083
    %v5132 = vpack.c.b16 %v5092, %v5088
    %v5133 = vpack.c.b16 %v5093, %v5089
    %v5134 = vpack.c.b16 %v5094, %v5090
    %v5135 = vpack.c.b16 %v5095, %v5091
    %v5136 = vpack.c.b16 %v5100, %v5096
    %v5137 = vpack.c.b16 %v5101, %v5097
    %v5138 = vpack.c.b16 %v5102, %v5098
    %v5139 = vpack.c.b16 %v5103, %v5099
    %v5140 = vpack.c.b16 %v5108, %v5104
    %v5141 = vpack.c.b16 %v5109, %v5105
    %v5142 = vpack.c.b16 %v5110, %v5106
    %v5143 = vpack.c.b16 %v5111, %v5107
    %5176 = vmatpush.bf16.msra.mxu0 %v5140
    %5177 = vmatpush.bf16.msra.mxu0 %v5136
    %5178 = vmatpush.bf16.msra.mxu0 %v5132
    %5179 = vmatpush.bf16.msra.mxu0 %v5128
    %5180 = vmatpush.bf16.msra.mxu0 %v5124
    %5181 = vmatpush.bf16.msra.mxu0 %v5120
    %5182 = vmatpush.bf16.msra.mxu0 %v5116
    %5183 = vmatpush.bf16.msra.mxu0 %v5112
    %5184 = vmatmul.bf16.gmra.mxu0 %v4983
    %v5185 = vpop.f32.mrf.mxu0
    %v5186 = vadd.f32 0.0, %v5185
    %v5187 = vpop.f32.mrf.mxu0
    %v5188 = vadd.f32 0.0, %v5187
    %5189 = vdwg.mxu0
    %5190 = vmatpush.bf16.msra.mxu0 %v5141
    %5191 = vmatpush.bf16.msra.mxu0 %v5137
    %5192 = vmatpush.bf16.msra.mxu0 %v5133
    %5193 = vmatpush.bf16.msra.mxu0 %v5129
    %5194 = vmatpush.bf16.msra.mxu0 %v5125
    %5195 = vmatpush.bf16.msra.mxu0 %v5121
    %5196 = vmatpush.bf16.msra.mxu0 %v5117
    %5197 = vmatpush.bf16.msra.mxu0 %v5113
    %5198 = vmatmul.bf16.gmra.mxu0 %v4983
    %v5199 = vpop.f32.mrf.mxu0
    %v5200 = vadd.f32 0.0, %v5199
    %v5201 = vpop.f32.mrf.mxu0
    %v5202 = vadd.f32 0.0, %v5201
    %5203 = vdwg.mxu0
    %5204 = vmatpush.bf16.msra.mxu0 %v5142
    %5205 = vmatpush.bf16.msra.mxu0 %v5138
    %5206 = vmatpush.bf16.msra.mxu0 %v5134
    %5207 = vmatpush.bf16.msra.mxu0 %v5130
    %5208 = vmatpush.bf16.msra.mxu0 %v5126
    %5209 = vmatpush.bf16.msra.mxu0 %v5122
    %5210 = vmatpush.bf16.msra.mxu0 %v5118
    %5211 = vmatpush.bf16.msra.mxu0 %v5114
    %5212 = vmatmul.bf16.gmra.mxu0 %v4983
    %v5213 = vpop.f32.mrf.mxu0
    %v5214 = vadd.f32 0.0, %v5213
    %v5215 = vpop.f32.mrf.mxu0
    %v5216 = vadd.f32 0.0, %v5215
    %5217 = vdwg.mxu0
    %5218 = vmatpush.bf16.msra.mxu0 %v5143
    %5219 = vmatpush.bf16.msra.mxu0 %v5139
    %5220 = vmatpush.bf16.msra.mxu0 %v5135
    %5221 = vmatpush.bf16.msra.mxu0 %v5131
    %5222 = vmatpush.bf16.msra.mxu0 %v5127
    %5223 = vmatpush.bf16.msra.mxu0 %v5123
    %5224 = vmatpush.bf16.msra.mxu0 %v5119
    %5225 = vmatpush.bf16.msra.mxu0 %v5115
    %5226 = vmatmul.bf16.gmra.mxu0 %v4983
    %v5227 = vpop.f32.mrf.mxu0
    %v5228 = vadd.f32 0.0, %v5227
    %v5229 = vpop.f32.mrf.mxu0
    %v5230 = vadd.f32 0.0, %v5229
    %5231 = vdwg.mxu0
    %v5232 = vadd.f32 %v4973, %v5186
    %v5233 = vadd.f32 %v4974, %v5200
    %v5234 = vadd.f32 %v4975, %v5214
    %v5235 = vadd.f32 %v4976, %v5228
    %v5236 = vadd.f32 %v4977, %v5188
    %v5237 = vadd.f32 %v4978, %v5202
    %v5238 = vadd.f32 %v4979, %v5216
    %v5239 = vadd.f32 %v4980, %v5230
    %v5240 = vxor.u32 %v5232, 2147483648
    %v5241 = vxor.u32 %v5236, 2147483648
    %v5242 = vmul.f32 %v5240, 1.442695
    %v5243 = vpow.pop %v5242
    %v5244 = vmul.f32 %v5241, 1.442695
    %v5245 = vpow.pop %v5244
    %v5246 = vadd.f32 %v5243, 1.0
    %v5247 = vadd.f32 %v5245, 1.0
    %v5248 = vrcp.pop %v5246
    %v5249 = vmul.f32 %v5246, %v5248
    %v5250 = vsub.f32 1.0, %v5249
    %v5251 = vmul.f32 %v5248, %v5250
    %v5252 = vadd.f32 %v5248, %v5251
    %vm5253 = vweird.f32 %v5246
    %vm5254 = vweird.f32 %v5248
    %vm5255 = vmor %vm5253, %vm5254
    %v5256 = vsel %vm5255, %v5248, %v5252
    %v5257 = vand.u32 2147483647, %v5246
    %vm5258 = vcmp.eq.f32.partialorder %v5257, 8.507059e+37
    %v5259 = vand.u32 %v5246, 2147483648
    %v5260 = vor.u32 1.1754944e-38, %v5259
    %v5261 = vsel %vm5258, %v5260, %v5256
    %v5262 = vmul.f32 1.0, %v5261
    %v5263 = vrcp.pop %v5247
    %v5264 = vmul.f32 %v5247, %v5263
    %v5265 = vsub.f32 1.0, %v5264
    %v5266 = vmul.f32 %v5263, %v5265
    %v5267 = vadd.f32 %v5263, %v5266
    %vm5268 = vweird.f32 %v5247
    %vm5269 = vweird.f32 %v5263
    %vm5270 = vmor %vm5268, %vm5269
    %v5271 = vsel %vm5270, %v5263, %v5267
    %v5272 = vand.u32 2147483647, %v5247
    %vm5273 = vcmp.eq.f32.partialorder %v5272, 8.507059e+37
    %v5274 = vand.u32 %v5247, 2147483648
    %v5275 = vor.u32 1.1754944e-38, %v5274
    %v5276 = vsel %vm5273, %v5275, %v5271
    %v5277 = vmul.f32 1.0, %v5276
    %v5278 = vxor.u32 %v5233, 2147483648
    %v5279 = vxor.u32 %v5237, 2147483648
    %v5280 = vmul.f32 %v5278, 1.442695
    %v5281 = vpow.pop %v5280
    %v5282 = vmul.f32 %v5279, 1.442695
    %v5283 = vpow.pop %v5282
    %v5284 = vadd.f32 %v5281, 1.0
    %v5285 = vadd.f32 %v5283, 1.0
    %v5286 = vrcp.pop %v5284
    %v5287 = vmul.f32 %v5284, %v5286
    %v5288 = vsub.f32 1.0, %v5287
    %v5289 = vmul.f32 %v5286, %v5288
    %v5290 = vadd.f32 %v5286, %v5289
    %vm5291 = vweird.f32 %v5284
    %vm5292 = vweird.f32 %v5286
    %vm5293 = vmor %vm5291, %vm5292
    %v5294 = vsel %vm5293, %v5286, %v5290
    %v5295 = vand.u32 2147483647, %v5284
    %vm5296 = vcmp.eq.f32.partialorder %v5295, 8.507059e+37
    %v5297 = vand.u32 %v5284, 2147483648
    %v5298 = vor.u32 1.1754944e-38, %v5297
    %v5299 = vsel %vm5296, %v5298, %v5294
    %v5300 = vmul.f32 1.0, %v5299
    %v5301 = vrcp.pop %v5285
    %v5302 = vmul.f32 %v5285, %v5301
    %v5303 = vsub.f32 1.0, %v5302
    %v5304 = vmul.f32 %v5301, %v5303
    %v5305 = vadd.f32 %v5301, %v5304
    %vm5306 = vweird.f32 %v5285
    %vm5307 = vweird.f32 %v5301
    %vm5308 = vmor %vm5306, %vm5307
    %v5309 = vsel %vm5308, %v5301, %v5305
    %v5310 = vand.u32 2147483647, %v5285
    %vm5311 = vcmp.eq.f32.partialorder %v5310, 8.507059e+37
    %v5312 = vand.u32 %v5285, 2147483648
    %v5313 = vor.u32 1.1754944e-38, %v5312
    %v5314 = vsel %vm5311, %v5313, %v5309
    %v5315 = vmul.f32 1.0, %v5314
    %v5316 = vtanh.pop %v5234
    %v5317 = vtanh.pop %v5238
    %v5318 = vxor.u32 %v5235, 2147483648
    %v5319 = vxor.u32 %v5239, 2147483648
    %v5320 = vmul.f32 %v5318, 1.442695
    %v5321 = vpow.pop %v5320
    %v5322 = vmul.f32 %v5319, 1.442695
    %v5323 = vpow.pop %v5322
    %v5324 = vadd.f32 %v5321, 1.0
    %v5325 = vadd.f32 %v5323, 1.0
    %v5326 = vrcp.pop %v5324
    %v5327 = vmul.f32 %v5324, %v5326
    %v5328 = vsub.f32 1.0, %v5327
    %v5329 = vmul.f32 %v5326, %v5328
    %v5330 = vadd.f32 %v5326, %v5329
    %vm5331 = vweird.f32 %v5324
    %vm5332 = vweird.f32 %v5326
    %vm5333 = vmor %vm5331, %vm5332
    %v5334 = vsel %vm5333, %v5326, %v5330
    %v5335 = vand.u32 2147483647, %v5324
    %vm5336 = vcmp.eq.f32.partialorder %v5335, 8.507059e+37
    %v5337 = vand.u32 %v5324, 2147483648
    %v5338 = vor.u32 1.1754944e-38, %v5337
    %v5339 = vsel %vm5336, %v5338, %v5334
    %v5340 = vmul.f32 1.0, %v5339
    %v5341 = vrcp.pop %v5325
    %v5342 = vmul.f32 %v5325, %v5341
    %v5343 = vsub.f32 1.0, %v5342
    %v5344 = vmul.f32 %v5341, %v5343
    %v5345 = vadd.f32 %v5341, %v5344
    %vm5346 = vweird.f32 %v5325
    %vm5347 = vweird.f32 %v5341
    %vm5348 = vmor %vm5346, %vm5347
    %v5349 = vsel %vm5348, %v5341, %v5345
    %v5350 = vand.u32 2147483647, %v5325
    %vm5351 = vcmp.eq.f32.partialorder %v5350, 8.507059e+37
    %v5352 = vand.u32 %v5325, 2147483648
    %v5353 = vor.u32 1.1754944e-38, %v5352
    %v5354 = vsel %vm5351, %v5353, %v5349
    %v5355 = vmul.f32 1.0, %v5354
    %v5356 = vld [vmem:[#allocation4] sm:$0xff]
    %v5357 = vld [vmem:[#allocation4 + $0x8] sm:$0xff]
    %v5358 = vmul.f32 %v5300, %v5356
    %v5359 = vmul.f32 %v5315, %v5357
    %v5360 = vmul.f32 %v5262, %v5316
    %v5361 = vmul.f32 %v5277, %v5317
    %v5362 = vadd.f32 %v5358, %v5360
    %v5363 = vadd.f32 %v5359, %v5361
    %v5364 = vtanh.pop %v5362
    %v5365 = vtanh.pop %v5363
    %v5366 = vmul.f32 %v5340, %v5364
    %v5367 = vmul.f32 %v5355, %v5365
    %5368 = vst [vmem:[#allocation4] sm:$0xff] %v5362
    %5369 = vst [vmem:[#allocation4 + $0x8] sm:$0xff] %v5363
    %5370 = vst [vmem:[#allocation3] sm:$0xff] %v5366
    %5371 = vst [vmem:[#allocation3 + $0x8] sm:$0xff] %v5367
    %v5372 = vpack.c.bf16 %v5366, %v5366
    %v5373 = vpack.c.bf16 %v5367, %v5367
    %s5374 = scalar_lea.vmem [#allocation13], 80
    %5375 = vst [vmem:[%s5374] sm:$0xf] %v5372
    %5376 = vst [vmem:[%s5374 + $0x4] sm:$0xf] %v5373
    %s5377 = smul.u32 22, 4
    %s5378 = smul.addr %s5377, 8
    %s5379 = scalar_lea.vmem [#allocation2], %s5378
    %v5380 = vld [vmem:[%s5379] sm:$0xff]
    %v5381 = vld [vmem:[%s5379 + $0x8] sm:$0xff]
    %v5382 = vld [vmem:[%s5379 + $0x10] sm:$0xff]
    %v5383 = vld [vmem:[%s5379 + $0x18] sm:$0xff]
    %v5384 = vld [vmem:[%s5379 + $0x20] sm:$0xff]
    %v5385 = vld [vmem:[%s5379 + $0x28] sm:$0xff]
    %v5386 = vld [vmem:[%s5379 + $0x30] sm:$0xff]
    %v5387 = vld [vmem:[%s5379 + $0x38] sm:$0xff]
    %v5388 = vld [vmem:[#allocation3] sm:$0xff]
    %v5389 = vld [vmem:[#allocation3 + $0x8] sm:$0xff]
    %v5390 = vpack.c.bf16 %v5389, %v5388
    %v5391 = vld [vmem:[#allocation10] sm:$0xff]
    %v5392 = vld [vmem:[#allocation10 + $0x8] sm:$0xff]
    %v5393 = vld [vmem:[#allocation10 + $0x10] sm:$0xff]
    %v5394 = vld [vmem:[#allocation10 + $0x18] sm:$0xff]
    %v5395 = vld [vmem:[#allocation10 + $0x20] sm:$0xff]
    %v5396 = vld [vmem:[#allocation10 + $0x28] sm:$0xff]
    %v5397 = vld [vmem:[#allocation10 + $0x30] sm:$0xff]
    %v5398 = vld [vmem:[#allocation10 + $0x38] sm:$0xff]
    %v5399 = vld [vmem:[#allocation10 + $0x40] sm:$0xff]
    %v5400 = vld [vmem:[#allocation10 + $0x48] sm:$0xff]
    %v5401 = vld [vmem:[#allocation10 + $0x50] sm:$0xff]
    %v5402 = vld [vmem:[#allocation10 + $0x58] sm:$0xff]
    %v5403 = vld [vmem:[#allocation10 + $0x60] sm:$0xff]
    %v5404 = vld [vmem:[#allocation10 + $0x68] sm:$0xff]
    %v5405 = vld [vmem:[#allocation10 + $0x70] sm:$0xff]
    %v5406 = vld [vmem:[#allocation10 + $0x78] sm:$0xff]
    %v5407 = vld [vmem:[#allocation10 + $0x80] sm:$0xff]
    %v5408 = vld [vmem:[#allocation10 + $0x88] sm:$0xff]
    %v5409 = vld [vmem:[#allocation10 + $0x90] sm:$0xff]
    %v5410 = vld [vmem:[#allocation10 + $0x98] sm:$0xff]
    %v5411 = vld [vmem:[#allocation10 + $0xa0] sm:$0xff]
    %v5412 = vld [vmem:[#allocation10 + $0xa8] sm:$0xff]
    %v5413 = vld [vmem:[#allocation10 + $0xb0] sm:$0xff]
    %v5414 = vld [vmem:[#allocation10 + $0xb8] sm:$0xff]
    %v5415 = vld [vmem:[#allocation10 + $0xc0] sm:$0xff]
    %v5416 = vld [vmem:[#allocation10 + $0xc8] sm:$0xff]
    %v5417 = vld [vmem:[#allocation10 + $0xd0] sm:$0xff]
    %v5418 = vld [vmem:[#allocation10 + $0xd8] sm:$0xff]
    %v5419 = vld [vmem:[#allocation10 + $0xe0] sm:$0xff]
    %v5420 = vld [vmem:[#allocation10 + $0xe8] sm:$0xff]
    %v5421 = vld [vmem:[#allocation10 + $0xf0] sm:$0xff]
    %v5422 = vld [vmem:[#allocation10 + $0xf8] sm:$0xff]
    %v5455 = vunpack.c.l.b16 %v5391
    %v5456 = vunpack.c.h.b16 %v5391
    %v5457 = vunpack.c.l.b16 %v5392
    %v5458 = vunpack.c.h.b16 %v5392
    %v5459 = vunpack.c.l.b16 %v5393
    %v5460 = vunpack.c.h.b16 %v5393
    %v5461 = vunpack.c.l.b16 %v5394
    %v5462 = vunpack.c.h.b16 %v5394
    %v5463 = vunpack.c.l.b16 %v5395
    %v5464 = vunpack.c.h.b16 %v5395
    %v5465 = vunpack.c.l.b16 %v5396
    %v5466 = vunpack.c.h.b16 %v5396
    %v5467 = vunpack.c.l.b16 %v5397
    %v5468 = vunpack.c.h.b16 %v5397
    %v5469 = vunpack.c.l.b16 %v5398
    %v5470 = vunpack.c.h.b16 %v5398
    %v5471 = vunpack.c.l.b16 %v5399
    %v5472 = vunpack.c.h.b16 %v5399
    %v5473 = vunpack.c.l.b16 %v5400
    %v5474 = vunpack.c.h.b16 %v5400
    %v5475 = vunpack.c.l.b16 %v5401
    %v5476 = vunpack.c.h.b16 %v5401
    %v5477 = vunpack.c.l.b16 %v5402
    %v5478 = vunpack.c.h.b16 %v5402
    %v5479 = vunpack.c.l.b16 %v5403
    %v5480 = vunpack.c.h.b16 %v5403
    %v5481 = vunpack.c.l.b16 %v5404
    %v5482 = vunpack.c.h.b16 %v5404
    %v5483 = vunpack.c.l.b16 %v5405
    %v5484 = vunpack.c.h.b16 %v5405
    %v5485 = vunpack.c.l.b16 %v5406
    %v5486 = vunpack.c.h.b16 %v5406
    %v5487 = vunpack.c.l.b16 %v5407
    %v5488 = vunpack.c.h.b16 %v5407
    %v5489 = vunpack.c.l.b16 %v5408
    %v5490 = vunpack.c.h.b16 %v5408
    %v5491 = vunpack.c.l.b16 %v5409
    %v5492 = vunpack.c.h.b16 %v5409
    %v5493 = vunpack.c.l.b16 %v5410
    %v5494 = vunpack.c.h.b16 %v5410
    %v5495 = vunpack.c.l.b16 %v5411
    %v5496 = vunpack.c.h.b16 %v5411
    %v5497 = vunpack.c.l.b16 %v5412
    %v5498 = vunpack.c.h.b16 %v5412
    %v5499 = vunpack.c.l.b16 %v5413
    %v5500 = vunpack.c.h.b16 %v5413
    %v5501 = vunpack.c.l.b16 %v5414
    %v5502 = vunpack.c.h.b16 %v5414
    %v5503 = vunpack.c.l.b16 %v5415
    %v5504 = vunpack.c.h.b16 %v5415
    %v5505 = vunpack.c.l.b16 %v5416
    %v5506 = vunpack.c.h.b16 %v5416
    %v5507 = vunpack.c.l.b16 %v5417
    %v5508 = vunpack.c.h.b16 %v5417
    %v5509 = vunpack.c.l.b16 %v5418
    %v5510 = vunpack.c.h.b16 %v5418
    %v5511 = vunpack.c.l.b16 %v5419
    %v5512 = vunpack.c.h.b16 %v5419
    %v5513 = vunpack.c.l.b16 %v5420
    %v5514 = vunpack.c.h.b16 %v5420
    %v5515 = vunpack.c.l.b16 %v5421
    %v5516 = vunpack.c.h.b16 %v5421
    %v5517 = vunpack.c.l.b16 %v5422
    %v5518 = vunpack.c.h.b16 %v5422
    %v5519 = vpack.c.b16 %v5459, %v5455
    %v5520 = vpack.c.b16 %v5460, %v5456
    %v5521 = vpack.c.b16 %v5461, %v5457
    %v5522 = vpack.c.b16 %v5462, %v5458
    %v5523 = vpack.c.b16 %v5467, %v5463
    %v5524 = vpack.c.b16 %v5468, %v5464
    %v5525 = vpack.c.b16 %v5469, %v5465
    %v5526 = vpack.c.b16 %v5470, %v5466
    %v5527 = vpack.c.b16 %v5475, %v5471
    %v5528 = vpack.c.b16 %v5476, %v5472
    %v5529 = vpack.c.b16 %v5477, %v5473
    %v5530 = vpack.c.b16 %v5478, %v5474
    %v5531 = vpack.c.b16 %v5483, %v5479
    %v5532 = vpack.c.b16 %v5484, %v5480
    %v5533 = vpack.c.b16 %v5485, %v5481
    %v5534 = vpack.c.b16 %v5486, %v5482
    %v5535 = vpack.c.b16 %v5491, %v5487
    %v5536 = vpack.c.b16 %v5492, %v5488
    %v5537 = vpack.c.b16 %v5493, %v5489
    %v5538 = vpack.c.b16 %v5494, %v5490
    %v5539 = vpack.c.b16 %v5499, %v5495
    %v5540 = vpack.c.b16 %v5500, %v5496
    %v5541 = vpack.c.b16 %v5501, %v5497
    %v5542 = vpack.c.b16 %v5502, %v5498
    %v5543 = vpack.c.b16 %v5507, %v5503
    %v5544 = vpack.c.b16 %v5508, %v5504
    %v5545 = vpack.c.b16 %v5509, %v5505
    %v5546 = vpack.c.b16 %v5510, %v5506
    %v5547 = vpack.c.b16 %v5515, %v5511
    %v5548 = vpack.c.b16 %v5516, %v5512
    %v5549 = vpack.c.b16 %v5517, %v5513
    %v5550 = vpack.c.b16 %v5518, %v5514
    %5583 = vmatpush.bf16.msra.mxu0 %v5547
    %5584 = vmatpush.bf16.msra.mxu0 %v5543
    %5585 = vmatpush.bf16.msra.mxu0 %v5539
    %5586 = vmatpush.bf16.msra.mxu0 %v5535
    %5587 = vmatpush.bf16.msra.mxu0 %v5531
    %5588 = vmatpush.bf16.msra.mxu0 %v5527
    %5589 = vmatpush.bf16.msra.mxu0 %v5523
    %5590 = vmatpush.bf16.msra.mxu0 %v5519
    %5591 = vmatmul.bf16.gmra.mxu0 %v5390
    %v5592 = vpop.f32.mrf.mxu0
    %v5593 = vadd.f32 0.0, %v5592
    %v5594 = vpop.f32.mrf.mxu0
    %v5595 = vadd.f32 0.0, %v5594
    %5596 = vdwg.mxu0
    %5597 = vmatpush.bf16.msra.mxu0 %v5548
    %5598 = vmatpush.bf16.msra.mxu0 %v5544
    %5599 = vmatpush.bf16.msra.mxu0 %v5540
    %5600 = vmatpush.bf16.msra.mxu0 %v5536
    %5601 = vmatpush.bf16.msra.mxu0 %v5532
    %5602 = vmatpush.bf16.msra.mxu0 %v5528
    %5603 = vmatpush.bf16.msra.mxu0 %v5524
    %5604 = vmatpush.bf16.msra.mxu0 %v5520
    %5605 = vmatmul.bf16.gmra.mxu0 %v5390
    %v5606 = vpop.f32.mrf.mxu0
    %v5607 = vadd.f32 0.0, %v5606
    %v5608 = vpop.f32.mrf.mxu0
    %v5609 = vadd.f32 0.0, %v5608
    %5610 = vdwg.mxu0
    %5611 = vmatpush.bf16.msra.mxu0 %v5549
    %5612 = vmatpush.bf16.msra.mxu0 %v5545
    %5613 = vmatpush.bf16.msra.mxu0 %v5541
    %5614 = vmatpush.bf16.msra.mxu0 %v5537
    %5615 = vmatpush.bf16.msra.mxu0 %v5533
    %5616 = vmatpush.bf16.msra.mxu0 %v5529
    %5617 = vmatpush.bf16.msra.mxu0 %v5525
    %5618 = vmatpush.bf16.msra.mxu0 %v5521
    %5619 = vmatmul.bf16.gmra.mxu0 %v5390
    %v5620 = vpop.f32.mrf.mxu0
    %v5621 = vadd.f32 0.0, %v5620
    %v5622 = vpop.f32.mrf.mxu0
    %v5623 = vadd.f32 0.0, %v5622
    %5624 = vdwg.mxu0
    %5625 = vmatpush.bf16.msra.mxu0 %v5550
    %5626 = vmatpush.bf16.msra.mxu0 %v5546
    %5627 = vmatpush.bf16.msra.mxu0 %v5542
    %5628 = vmatpush.bf16.msra.mxu0 %v5538
    %5629 = vmatpush.bf16.msra.mxu0 %v5534
    %5630 = vmatpush.bf16.msra.mxu0 %v5530
    %5631 = vmatpush.bf16.msra.mxu0 %v5526
    %5632 = vmatpush.bf16.msra.mxu0 %v5522
    %5633 = vmatmul.bf16.gmra.mxu0 %v5390
    %v5634 = vpop.f32.mrf.mxu0
    %v5635 = vadd.f32 0.0, %v5634
    %v5636 = vpop.f32.mrf.mxu0
    %v5637 = vadd.f32 0.0, %v5636
    %5638 = vdwg.mxu0
    %v5639 = vadd.f32 %v5380, %v5593
    %v5640 = vadd.f32 %v5381, %v5607
    %v5641 = vadd.f32 %v5382, %v5621
    %v5642 = vadd.f32 %v5383, %v5635
    %v5643 = vadd.f32 %v5384, %v5595
    %v5644 = vadd.f32 %v5385, %v5609
    %v5645 = vadd.f32 %v5386, %v5623
    %v5646 = vadd.f32 %v5387, %v5637
    %v5647 = vxor.u32 %v5639, 2147483648
    %v5648 = vxor.u32 %v5643, 2147483648
    %v5649 = vmul.f32 %v5647, 1.442695
    %v5650 = vpow.pop %v5649
    %v5651 = vmul.f32 %v5648, 1.442695
    %v5652 = vpow.pop %v5651
    %v5653 = vadd.f32 %v5650, 1.0
    %v5654 = vadd.f32 %v5652, 1.0
    %v5655 = vrcp.pop %v5653
    %v5656 = vmul.f32 %v5653, %v5655
    %v5657 = vsub.f32 1.0, %v5656
    %v5658 = vmul.f32 %v5655, %v5657
    %v5659 = vadd.f32 %v5655, %v5658
    %vm5660 = vweird.f32 %v5653
    %vm5661 = vweird.f32 %v5655
    %vm5662 = vmor %vm5660, %vm5661
    %v5663 = vsel %vm5662, %v5655, %v5659
    %v5664 = vand.u32 2147483647, %v5653
    %vm5665 = vcmp.eq.f32.partialorder %v5664, 8.507059e+37
    %v5666 = vand.u32 %v5653, 2147483648
    %v5667 = vor.u32 1.1754944e-38, %v5666
    %v5668 = vsel %vm5665, %v5667, %v5663
    %v5669 = vmul.f32 1.0, %v5668
    %v5670 = vrcp.pop %v5654
    %v5671 = vmul.f32 %v5654, %v5670
    %v5672 = vsub.f32 1.0, %v5671
    %v5673 = vmul.f32 %v5670, %v5672
    %v5674 = vadd.f32 %v5670, %v5673
    %vm5675 = vweird.f32 %v5654
    %vm5676 = vweird.f32 %v5670
    %vm5677 = vmor %vm5675, %vm5676
    %v5678 = vsel %vm5677, %v5670, %v5674
    %v5679 = vand.u32 2147483647, %v5654
    %vm5680 = vcmp.eq.f32.partialorder %v5679, 8.507059e+37
    %v5681 = vand.u32 %v5654, 2147483648
    %v5682 = vor.u32 1.1754944e-38, %v5681
    %v5683 = vsel %vm5680, %v5682, %v5678
    %v5684 = vmul.f32 1.0, %v5683
    %v5685 = vxor.u32 %v5640, 2147483648
    %v5686 = vxor.u32 %v5644, 2147483648
    %v5687 = vmul.f32 %v5685, 1.442695
    %v5688 = vpow.pop %v5687
    %v5689 = vmul.f32 %v5686, 1.442695
    %v5690 = vpow.pop %v5689
    %v5691 = vadd.f32 %v5688, 1.0
    %v5692 = vadd.f32 %v5690, 1.0
    %v5693 = vrcp.pop %v5691
    %v5694 = vmul.f32 %v5691, %v5693
    %v5695 = vsub.f32 1.0, %v5694
    %v5696 = vmul.f32 %v5693, %v5695
    %v5697 = vadd.f32 %v5693, %v5696
    %vm5698 = vweird.f32 %v5691
    %vm5699 = vweird.f32 %v5693
    %vm5700 = vmor %vm5698, %vm5699
    %v5701 = vsel %vm5700, %v5693, %v5697
    %v5702 = vand.u32 2147483647, %v5691
    %vm5703 = vcmp.eq.f32.partialorder %v5702, 8.507059e+37
    %v5704 = vand.u32 %v5691, 2147483648
    %v5705 = vor.u32 1.1754944e-38, %v5704
    %v5706 = vsel %vm5703, %v5705, %v5701
    %v5707 = vmul.f32 1.0, %v5706
    %v5708 = vrcp.pop %v5692
    %v5709 = vmul.f32 %v5692, %v5708
    %v5710 = vsub.f32 1.0, %v5709
    %v5711 = vmul.f32 %v5708, %v5710
    %v5712 = vadd.f32 %v5708, %v5711
    %vm5713 = vweird.f32 %v5692
    %vm5714 = vweird.f32 %v5708
    %vm5715 = vmor %vm5713, %vm5714
    %v5716 = vsel %vm5715, %v5708, %v5712
    %v5717 = vand.u32 2147483647, %v5692
    %vm5718 = vcmp.eq.f32.partialorder %v5717, 8.507059e+37
    %v5719 = vand.u32 %v5692, 2147483648
    %v5720 = vor.u32 1.1754944e-38, %v5719
    %v5721 = vsel %vm5718, %v5720, %v5716
    %v5722 = vmul.f32 1.0, %v5721
    %v5723 = vtanh.pop %v5641
    %v5724 = vtanh.pop %v5645
    %v5725 = vxor.u32 %v5642, 2147483648
    %v5726 = vxor.u32 %v5646, 2147483648
    %v5727 = vmul.f32 %v5725, 1.442695
    %v5728 = vpow.pop %v5727
    %v5729 = vmul.f32 %v5726, 1.442695
    %v5730 = vpow.pop %v5729
    %v5731 = vadd.f32 %v5728, 1.0
    %v5732 = vadd.f32 %v5730, 1.0
    %v5733 = vrcp.pop %v5731
    %v5734 = vmul.f32 %v5731, %v5733
    %v5735 = vsub.f32 1.0, %v5734
    %v5736 = vmul.f32 %v5733, %v5735
    %v5737 = vadd.f32 %v5733, %v5736
    %vm5738 = vweird.f32 %v5731
    %vm5739 = vweird.f32 %v5733
    %vm5740 = vmor %vm5738, %vm5739
    %v5741 = vsel %vm5740, %v5733, %v5737
    %v5742 = vand.u32 2147483647, %v5731
    %vm5743 = vcmp.eq.f32.partialorder %v5742, 8.507059e+37
    %v5744 = vand.u32 %v5731, 2147483648
    %v5745 = vor.u32 1.1754944e-38, %v5744
    %v5746 = vsel %vm5743, %v5745, %v5741
    %v5747 = vmul.f32 1.0, %v5746
    %v5748 = vrcp.pop %v5732
    %v5749 = vmul.f32 %v5732, %v5748
    %v5750 = vsub.f32 1.0, %v5749
    %v5751 = vmul.f32 %v5748, %v5750
    %v5752 = vadd.f32 %v5748, %v5751
    %vm5753 = vweird.f32 %v5732
    %vm5754 = vweird.f32 %v5748
    %vm5755 = vmor %vm5753, %vm5754
    %v5756 = vsel %vm5755, %v5748, %v5752
    %v5757 = vand.u32 2147483647, %v5732
    %vm5758 = vcmp.eq.f32.partialorder %v5757, 8.507059e+37
    %v5759 = vand.u32 %v5732, 2147483648
    %v5760 = vor.u32 1.1754944e-38, %v5759
    %v5761 = vsel %vm5758, %v5760, %v5756
    %v5762 = vmul.f32 1.0, %v5761
    %v5763 = vld [vmem:[#allocation4] sm:$0xff]
    %v5764 = vld [vmem:[#allocation4 + $0x8] sm:$0xff]
    %v5765 = vmul.f32 %v5707, %v5763
    %v5766 = vmul.f32 %v5722, %v5764
    %v5767 = vmul.f32 %v5669, %v5723
    %v5768 = vmul.f32 %v5684, %v5724
    %v5769 = vadd.f32 %v5765, %v5767
    %v5770 = vadd.f32 %v5766, %v5768
    %v5771 = vtanh.pop %v5769
    %v5772 = vtanh.pop %v5770
    %v5773 = vmul.f32 %v5747, %v5771
    %v5774 = vmul.f32 %v5762, %v5772
    %5775 = vst [vmem:[#allocation4] sm:$0xff] %v5769
    %5776 = vst [vmem:[#allocation4 + $0x8] sm:$0xff] %v5770
    %5777 = vst [vmem:[#allocation3] sm:$0xff] %v5773
    %5778 = vst [vmem:[#allocation3 + $0x8] sm:$0xff] %v5774
    %v5779 = vpack.c.bf16 %v5773, %v5773
    %v5780 = vpack.c.bf16 %v5774, %v5774
    %s5781 = scalar_lea.vmem [#allocation13], 88
    %5782 = vst [vmem:[%s5781] sm:$0xf] %v5779
    %5783 = vst [vmem:[%s5781 + $0x4] sm:$0xf] %v5780
    %s5784 = smul.u32 24, 4
    %s5785 = smul.addr %s5784, 8
    %s5786 = scalar_lea.vmem [#allocation2], %s5785
    %v5787 = vld [vmem:[%s5786] sm:$0xff]
    %v5788 = vld [vmem:[%s5786 + $0x8] sm:$0xff]
    %v5789 = vld [vmem:[%s5786 + $0x10] sm:$0xff]
    %v5790 = vld [vmem:[%s5786 + $0x18] sm:$0xff]
    %v5791 = vld [vmem:[%s5786 + $0x20] sm:$0xff]
    %v5792 = vld [vmem:[%s5786 + $0x28] sm:$0xff]
    %v5793 = vld [vmem:[%s5786 + $0x30] sm:$0xff]
    %v5794 = vld [vmem:[%s5786 + $0x38] sm:$0xff]
    %v5795 = vld [vmem:[#allocation3] sm:$0xff]
    %v5796 = vld [vmem:[#allocation3 + $0x8] sm:$0xff]
    %v5797 = vpack.c.bf16 %v5796, %v5795
    %v5798 = vld [vmem:[#allocation10] sm:$0xff]
    %v5799 = vld [vmem:[#allocation10 + $0x8] sm:$0xff]
    %v5800 = vld [vmem:[#allocation10 + $0x10] sm:$0xff]
    %v5801 = vld [vmem:[#allocation10 + $0x18] sm:$0xff]
    %v5802 = vld [vmem:[#allocation10 + $0x20] sm:$0xff]
    %v5803 = vld [vmem:[#allocation10 + $0x28] sm:$0xff]
    %v5804 = vld [vmem:[#allocation10 + $0x30] sm:$0xff]
    %v5805 = vld [vmem:[#allocation10 + $0x38] sm:$0xff]
    %v5806 = vld [vmem:[#allocation10 + $0x40] sm:$0xff]
    %v5807 = vld [vmem:[#allocation10 + $0x48] sm:$0xff]
    %v5808 = vld [vmem:[#allocation10 + $0x50] sm:$0xff]
    %v5809 = vld [vmem:[#allocation10 + $0x58] sm:$0xff]
    %v5810 = vld [vmem:[#allocation10 + $0x60] sm:$0xff]
    %v5811 = vld [vmem:[#allocation10 + $0x68] sm:$0xff]
    %v5812 = vld [vmem:[#allocation10 + $0x70] sm:$0xff]
    %v5813 = vld [vmem:[#allocation10 + $0x78] sm:$0xff]
    %v5814 = vld [vmem:[#allocation10 + $0x80] sm:$0xff]
    %v5815 = vld [vmem:[#allocation10 + $0x88] sm:$0xff]
    %v5816 = vld [vmem:[#allocation10 + $0x90] sm:$0xff]
    %v5817 = vld [vmem:[#allocation10 + $0x98] sm:$0xff]
    %v5818 = vld [vmem:[#allocation10 + $0xa0] sm:$0xff]
    %v5819 = vld [vmem:[#allocation10 + $0xa8] sm:$0xff]
    %v5820 = vld [vmem:[#allocation10 + $0xb0] sm:$0xff]
    %v5821 = vld [vmem:[#allocation10 + $0xb8] sm:$0xff]
    %v5822 = vld [vmem:[#allocation10 + $0xc0] sm:$0xff]
    %v5823 = vld [vmem:[#allocation10 + $0xc8] sm:$0xff]
    %v5824 = vld [vmem:[#allocation10 + $0xd0] sm:$0xff]
    %v5825 = vld [vmem:[#allocation10 + $0xd8] sm:$0xff]
    %v5826 = vld [vmem:[#allocation10 + $0xe0] sm:$0xff]
    %v5827 = vld [vmem:[#allocation10 + $0xe8] sm:$0xff]
    %v5828 = vld [vmem:[#allocation10 + $0xf0] sm:$0xff]
    %v5829 = vld [vmem:[#allocation10 + $0xf8] sm:$0xff]
    %v5862 = vunpack.c.l.b16 %v5798
    %v5863 = vunpack.c.h.b16 %v5798
    %v5864 = vunpack.c.l.b16 %v5799
    %v5865 = vunpack.c.h.b16 %v5799
    %v5866 = vunpack.c.l.b16 %v5800
    %v5867 = vunpack.c.h.b16 %v5800
    %v5868 = vunpack.c.l.b16 %v5801
    %v5869 = vunpack.c.h.b16 %v5801
    %v5870 = vunpack.c.l.b16 %v5802
    %v5871 = vunpack.c.h.b16 %v5802
    %v5872 = vunpack.c.l.b16 %v5803
    %v5873 = vunpack.c.h.b16 %v5803
    %v5874 = vunpack.c.l.b16 %v5804
    %v5875 = vunpack.c.h.b16 %v5804
    %v5876 = vunpack.c.l.b16 %v5805
    %v5877 = vunpack.c.h.b16 %v5805
    %v5878 = vunpack.c.l.b16 %v5806
    %v5879 = vunpack.c.h.b16 %v5806
    %v5880 = vunpack.c.l.b16 %v5807
    %v5881 = vunpack.c.h.b16 %v5807
    %v5882 = vunpack.c.l.b16 %v5808
    %v5883 = vunpack.c.h.b16 %v5808
    %v5884 = vunpack.c.l.b16 %v5809
    %v5885 = vunpack.c.h.b16 %v5809
    %v5886 = vunpack.c.l.b16 %v5810
    %v5887 = vunpack.c.h.b16 %v5810
    %v5888 = vunpack.c.l.b16 %v5811
    %v5889 = vunpack.c.h.b16 %v5811
    %v5890 = vunpack.c.l.b16 %v5812
    %v5891 = vunpack.c.h.b16 %v5812
    %v5892 = vunpack.c.l.b16 %v5813
    %v5893 = vunpack.c.h.b16 %v5813
    %v5894 = vunpack.c.l.b16 %v5814
    %v5895 = vunpack.c.h.b16 %v5814
    %v5896 = vunpack.c.l.b16 %v5815
    %v5897 = vunpack.c.h.b16 %v5815
    %v5898 = vunpack.c.l.b16 %v5816
    %v5899 = vunpack.c.h.b16 %v5816
    %v5900 = vunpack.c.l.b16 %v5817
    %v5901 = vunpack.c.h.b16 %v5817
    %v5902 = vunpack.c.l.b16 %v5818
    %v5903 = vunpack.c.h.b16 %v5818
    %v5904 = vunpack.c.l.b16 %v5819
    %v5905 = vunpack.c.h.b16 %v5819
    %v5906 = vunpack.c.l.b16 %v5820
    %v5907 = vunpack.c.h.b16 %v5820
    %v5908 = vunpack.c.l.b16 %v5821
    %v5909 = vunpack.c.h.b16 %v5821
    %v5910 = vunpack.c.l.b16 %v5822
    %v5911 = vunpack.c.h.b16 %v5822
    %v5912 = vunpack.c.l.b16 %v5823
    %v5913 = vunpack.c.h.b16 %v5823
    %v5914 = vunpack.c.l.b16 %v5824
    %v5915 = vunpack.c.h.b16 %v5824
    %v5916 = vunpack.c.l.b16 %v5825
    %v5917 = vunpack.c.h.b16 %v5825
    %v5918 = vunpack.c.l.b16 %v5826
    %v5919 = vunpack.c.h.b16 %v5826
    %v5920 = vunpack.c.l.b16 %v5827
    %v5921 = vunpack.c.h.b16 %v5827
    %v5922 = vunpack.c.l.b16 %v5828
    %v5923 = vunpack.c.h.b16 %v5828
    %v5924 = vunpack.c.l.b16 %v5829
    %v5925 = vunpack.c.h.b16 %v5829
    %v5926 = vpack.c.b16 %v5866, %v5862
    %v5927 = vpack.c.b16 %v5867, %v5863
    %v5928 = vpack.c.b16 %v5868, %v5864
    %v5929 = vpack.c.b16 %v5869, %v5865
    %v5930 = vpack.c.b16 %v5874, %v5870
    %v5931 = vpack.c.b16 %v5875, %v5871
    %v5932 = vpack.c.b16 %v5876, %v5872
    %v5933 = vpack.c.b16 %v5877, %v5873
    %v5934 = vpack.c.b16 %v5882, %v5878
    %v5935 = vpack.c.b16 %v5883, %v5879
    %v5936 = vpack.c.b16 %v5884, %v5880
    %v5937 = vpack.c.b16 %v5885, %v5881
    %v5938 = vpack.c.b16 %v5890, %v5886
    %v5939 = vpack.c.b16 %v5891, %v5887
    %v5940 = vpack.c.b16 %v5892, %v5888
    %v5941 = vpack.c.b16 %v5893, %v5889
    %v5942 = vpack.c.b16 %v5898, %v5894
    %v5943 = vpack.c.b16 %v5899, %v5895
    %v5944 = vpack.c.b16 %v5900, %v5896
    %v5945 = vpack.c.b16 %v5901, %v5897
    %v5946 = vpack.c.b16 %v5906, %v5902
    %v5947 = vpack.c.b16 %v5907, %v5903
    %v5948 = vpack.c.b16 %v5908, %v5904
    %v5949 = vpack.c.b16 %v5909, %v5905
    %v5950 = vpack.c.b16 %v5914, %v5910
    %v5951 = vpack.c.b16 %v5915, %v5911
    %v5952 = vpack.c.b16 %v5916, %v5912
    %v5953 = vpack.c.b16 %v5917, %v5913
    %v5954 = vpack.c.b16 %v5922, %v5918
    %v5955 = vpack.c.b16 %v5923, %v5919
    %v5956 = vpack.c.b16 %v5924, %v5920
    %v5957 = vpack.c.b16 %v5925, %v5921
    %5990 = vmatpush.bf16.msra.mxu0 %v5954
    %5991 = vmatpush.bf16.msra.mxu0 %v5950
    %5992 = vmatpush.bf16.msra.mxu0 %v5946
    %5993 = vmatpush.bf16.msra.mxu0 %v5942
    %5994 = vmatpush.bf16.msra.mxu0 %v5938
    %5995 = vmatpush.bf16.msra.mxu0 %v5934
    %5996 = vmatpush.bf16.msra.mxu0 %v5930
    %5997 = vmatpush.bf16.msra.mxu0 %v5926
    %5998 = vmatmul.bf16.gmra.mxu0 %v5797
    %v5999 = vpop.f32.mrf.mxu0
    %v6000 = vadd.f32 0.0, %v5999
    %v6001 = vpop.f32.mrf.mxu0
    %v6002 = vadd.f32 0.0, %v6001
    %6003 = vdwg.mxu0
    %6004 = vmatpush.bf16.msra.mxu0 %v5955
    %6005 = vmatpush.bf16.msra.mxu0 %v5951
    %6006 = vmatpush.bf16.msra.mxu0 %v5947
    %6007 = vmatpush.bf16.msra.mxu0 %v5943
    %6008 = vmatpush.bf16.msra.mxu0 %v5939
    %6009 = vmatpush.bf16.msra.mxu0 %v5935
    %6010 = vmatpush.bf16.msra.mxu0 %v5931
    %6011 = vmatpush.bf16.msra.mxu0 %v5927
    %6012 = vmatmul.bf16.gmra.mxu0 %v5797
    %v6013 = vpop.f32.mrf.mxu0
    %v6014 = vadd.f32 0.0, %v6013
    %v6015 = vpop.f32.mrf.mxu0
    %v6016 = vadd.f32 0.0, %v6015
    %6017 = vdwg.mxu0
    %6018 = vmatpush.bf16.msra.mxu0 %v5956
    %6019 = vmatpush.bf16.msra.mxu0 %v5952
    %6020 = vmatpush.bf16.msra.mxu0 %v5948
    %6021 = vmatpush.bf16.msra.mxu0 %v5944
    %6022 = vmatpush.bf16.msra.mxu0 %v5940
    %6023 = vmatpush.bf16.msra.mxu0 %v5936
    %6024 = vmatpush.bf16.msra.mxu0 %v5932
    %6025 = vmatpush.bf16.msra.mxu0 %v5928
    %6026 = vmatmul.bf16.gmra.mxu0 %v5797
    %v6027 = vpop.f32.mrf.mxu0
    %v6028 = vadd.f32 0.0, %v6027
    %v6029 = vpop.f32.mrf.mxu0
    %v6030 = vadd.f32 0.0, %v6029
    %6031 = vdwg.mxu0
    %6032 = vmatpush.bf16.msra.mxu0 %v5957
    %6033 = vmatpush.bf16.msra.mxu0 %v5953
    %6034 = vmatpush.bf16.msra.mxu0 %v5949
    %6035 = vmatpush.bf16.msra.mxu0 %v5945
    %6036 = vmatpush.bf16.msra.mxu0 %v5941
    %6037 = vmatpush.bf16.msra.mxu0 %v5937
    %6038 = vmatpush.bf16.msra.mxu0 %v5933
    %6039 = vmatpush.bf16.msra.mxu0 %v5929
    %6040 = vmatmul.bf16.gmra.mxu0 %v5797
    %v6041 = vpop.f32.mrf.mxu0
    %v6042 = vadd.f32 0.0, %v6041
    %v6043 = vpop.f32.mrf.mxu0
    %v6044 = vadd.f32 0.0, %v6043
    %6045 = vdwg.mxu0
    %v6046 = vadd.f32 %v5787, %v6000
    %v6047 = vadd.f32 %v5788, %v6014
    %v6048 = vadd.f32 %v5789, %v6028
    %v6049 = vadd.f32 %v5790, %v6042
    %v6050 = vadd.f32 %v5791, %v6002
    %v6051 = vadd.f32 %v5792, %v6016
    %v6052 = vadd.f32 %v5793, %v6030
    %v6053 = vadd.f32 %v5794, %v6044
    %v6054 = vxor.u32 %v6046, 2147483648
    %v6055 = vxor.u32 %v6050, 2147483648
    %v6056 = vmul.f32 %v6054, 1.442695
    %v6057 = vpow.pop %v6056
    %v6058 = vmul.f32 %v6055, 1.442695
    %v6059 = vpow.pop %v6058
    %v6060 = vadd.f32 %v6057, 1.0
    %v6061 = vadd.f32 %v6059, 1.0
    %v6062 = vrcp.pop %v6060
    %v6063 = vmul.f32 %v6060, %v6062
    %v6064 = vsub.f32 1.0, %v6063
    %v6065 = vmul.f32 %v6062, %v6064
    %v6066 = vadd.f32 %v6062, %v6065
    %vm6067 = vweird.f32 %v6060
    %vm6068 = vweird.f32 %v6062
    %vm6069 = vmor %vm6067, %vm6068
    %v6070 = vsel %vm6069, %v6062, %v6066
    %v6071 = vand.u32 2147483647, %v6060
    %vm6072 = vcmp.eq.f32.partialorder %v6071, 8.507059e+37
    %v6073 = vand.u32 %v6060, 2147483648
    %v6074 = vor.u32 1.1754944e-38, %v6073
    %v6075 = vsel %vm6072, %v6074, %v6070
    %v6076 = vmul.f32 1.0, %v6075
    %v6077 = vrcp.pop %v6061
    %v6078 = vmul.f32 %v6061, %v6077
    %v6079 = vsub.f32 1.0, %v6078
    %v6080 = vmul.f32 %v6077, %v6079
    %v6081 = vadd.f32 %v6077, %v6080
    %vm6082 = vweird.f32 %v6061
    %vm6083 = vweird.f32 %v6077
    %vm6084 = vmor %vm6082, %vm6083
    %v6085 = vsel %vm6084, %v6077, %v6081
    %v6086 = vand.u32 2147483647, %v6061
    %vm6087 = vcmp.eq.f32.partialorder %v6086, 8.507059e+37
    %v6088 = vand.u32 %v6061, 2147483648
    %v6089 = vor.u32 1.1754944e-38, %v6088
    %v6090 = vsel %vm6087, %v6089, %v6085
    %v6091 = vmul.f32 1.0, %v6090
    %v6092 = vxor.u32 %v6047, 2147483648
    %v6093 = vxor.u32 %v6051, 2147483648
    %v6094 = vmul.f32 %v6092, 1.442695
    %v6095 = vpow.pop %v6094
    %v6096 = vmul.f32 %v6093, 1.442695
    %v6097 = vpow.pop %v6096
    %v6098 = vadd.f32 %v6095, 1.0
    %v6099 = vadd.f32 %v6097, 1.0
    %v6100 = vrcp.pop %v6098
    %v6101 = vmul.f32 %v6098, %v6100
    %v6102 = vsub.f32 1.0, %v6101
    %v6103 = vmul.f32 %v6100, %v6102
    %v6104 = vadd.f32 %v6100, %v6103
    %vm6105 = vweird.f32 %v6098
    %vm6106 = vweird.f32 %v6100
    %vm6107 = vmor %vm6105, %vm6106
    %v6108 = vsel %vm6107, %v6100, %v6104
    %v6109 = vand.u32 2147483647, %v6098
    %vm6110 = vcmp.eq.f32.partialorder %v6109, 8.507059e+37
    %v6111 = vand.u32 %v6098, 2147483648
    %v6112 = vor.u32 1.1754944e-38, %v6111
    %v6113 = vsel %vm6110, %v6112, %v6108
    %v6114 = vmul.f32 1.0, %v6113
    %v6115 = vrcp.pop %v6099
    %v6116 = vmul.f32 %v6099, %v6115
    %v6117 = vsub.f32 1.0, %v6116
    %v6118 = vmul.f32 %v6115, %v6117
    %v6119 = vadd.f32 %v6115, %v6118
    %vm6120 = vweird.f32 %v6099
    %vm6121 = vweird.f32 %v6115
    %vm6122 = vmor %vm6120, %vm6121
    %v6123 = vsel %vm6122, %v6115, %v6119
    %v6124 = vand.u32 2147483647, %v6099
    %vm6125 = vcmp.eq.f32.partialorder %v6124, 8.507059e+37
    %v6126 = vand.u32 %v6099, 2147483648
    %v6127 = vor.u32 1.1754944e-38, %v6126
    %v6128 = vsel %vm6125, %v6127, %v6123
    %v6129 = vmul.f32 1.0, %v6128
    %v6130 = vtanh.pop %v6048
    %v6131 = vtanh.pop %v6052
    %v6132 = vxor.u32 %v6049, 2147483648
    %v6133 = vxor.u32 %v6053, 2147483648
    %v6134 = vmul.f32 %v6132, 1.442695
    %v6135 = vpow.pop %v6134
    %v6136 = vmul.f32 %v6133, 1.442695
    %v6137 = vpow.pop %v6136
    %v6138 = vadd.f32 %v6135, 1.0
    %v6139 = vadd.f32 %v6137, 1.0
    %v6140 = vrcp.pop %v6138
    %v6141 = vmul.f32 %v6138, %v6140
    %v6142 = vsub.f32 1.0, %v6141
    %v6143 = vmul.f32 %v6140, %v6142
    %v6144 = vadd.f32 %v6140, %v6143
    %vm6145 = vweird.f32 %v6138
    %vm6146 = vweird.f32 %v6140
    %vm6147 = vmor %vm6145, %vm6146
    %v6148 = vsel %vm6147, %v6140, %v6144
    %v6149 = vand.u32 2147483647, %v6138
    %vm6150 = vcmp.eq.f32.partialorder %v6149, 8.507059e+37
    %v6151 = vand.u32 %v6138, 2147483648
    %v6152 = vor.u32 1.1754944e-38, %v6151
    %v6153 = vsel %vm6150, %v6152, %v6148
    %v6154 = vmul.f32 1.0, %v6153
    %v6155 = vrcp.pop %v6139
    %v6156 = vmul.f32 %v6139, %v6155
    %v6157 = vsub.f32 1.0, %v6156
    %v6158 = vmul.f32 %v6155, %v6157
    %v6159 = vadd.f32 %v6155, %v6158
    %vm6160 = vweird.f32 %v6139
    %vm6161 = vweird.f32 %v6155
    %vm6162 = vmor %vm6160, %vm6161
    %v6163 = vsel %vm6162, %v6155, %v6159
    %v6164 = vand.u32 2147483647, %v6139
    %vm6165 = vcmp.eq.f32.partialorder %v6164, 8.507059e+37
    %v6166 = vand.u32 %v6139, 2147483648
    %v6167 = vor.u32 1.1754944e-38, %v6166
    %v6168 = vsel %vm6165, %v6167, %v6163
    %v6169 = vmul.f32 1.0, %v6168
    %v6170 = vld [vmem:[#allocation4] sm:$0xff]
    %v6171 = vld [vmem:[#allocation4 + $0x8] sm:$0xff]
    %v6172 = vmul.f32 %v6114, %v6170
    %v6173 = vmul.f32 %v6129, %v6171
    %v6174 = vmul.f32 %v6076, %v6130
    %v6175 = vmul.f32 %v6091, %v6131
    %v6176 = vadd.f32 %v6172, %v6174
    %v6177 = vadd.f32 %v6173, %v6175
    %v6178 = vtanh.pop %v6176
    %v6179 = vtanh.pop %v6177
    %v6180 = vmul.f32 %v6154, %v6178
    %v6181 = vmul.f32 %v6169, %v6179
    %6182 = vst [vmem:[#allocation4] sm:$0xff] %v6176
    %6183 = vst [vmem:[#allocation4 + $0x8] sm:$0xff] %v6177
    %6184 = vst [vmem:[#allocation3] sm:$0xff] %v6180
    %6185 = vst [vmem:[#allocation3 + $0x8] sm:$0xff] %v6181
    %v6186 = vpack.c.bf16 %v6180, %v6180
    %v6187 = vpack.c.bf16 %v6181, %v6181
    %s6188 = scalar_lea.vmem [#allocation13], 96
    %6189 = vst [vmem:[%s6188] sm:$0xf] %v6186
    %6190 = vst [vmem:[%s6188 + $0x4] sm:$0xf] %v6187
    %s6191 = smul.u32 26, 4
    %s6192 = smul.addr %s6191, 8
    %s6193 = scalar_lea.vmem [#allocation2], %s6192
    %v6194 = vld [vmem:[%s6193] sm:$0xff]
    %v6195 = vld [vmem:[%s6193 + $0x8] sm:$0xff]
    %v6196 = vld [vmem:[%s6193 + $0x10] sm:$0xff]
    %v6197 = vld [vmem:[%s6193 + $0x18] sm:$0xff]
    %v6198 = vld [vmem:[%s6193 + $0x20] sm:$0xff]
    %v6199 = vld [vmem:[%s6193 + $0x28] sm:$0xff]
    %v6200 = vld [vmem:[%s6193 + $0x30] sm:$0xff]
    %v6201 = vld [vmem:[%s6193 + $0x38] sm:$0xff]
    %v6202 = vld [vmem:[#allocation3] sm:$0xff]
    %v6203 = vld [vmem:[#allocation3 + $0x8] sm:$0xff]
    %v6204 = vpack.c.bf16 %v6203, %v6202
    %v6205 = vld [vmem:[#allocation10] sm:$0xff]
    %v6206 = vld [vmem:[#allocation10 + $0x8] sm:$0xff]
    %v6207 = vld [vmem:[#allocation10 + $0x10] sm:$0xff]
    %v6208 = vld [vmem:[#allocation10 + $0x18] sm:$0xff]
    %v6209 = vld [vmem:[#allocation10 + $0x20] sm:$0xff]
    %v6210 = vld [vmem:[#allocation10 + $0x28] sm:$0xff]
    %v6211 = vld [vmem:[#allocation10 + $0x30] sm:$0xff]
    %v6212 = vld [vmem:[#allocation10 + $0x38] sm:$0xff]
    %v6213 = vld [vmem:[#allocation10 + $0x40] sm:$0xff]
    %v6214 = vld [vmem:[#allocation10 + $0x48] sm:$0xff]
    %v6215 = vld [vmem:[#allocation10 + $0x50] sm:$0xff]
    %v6216 = vld [vmem:[#allocation10 + $0x58] sm:$0xff]
    %v6217 = vld [vmem:[#allocation10 + $0x60] sm:$0xff]
    %v6218 = vld [vmem:[#allocation10 + $0x68] sm:$0xff]
    %v6219 = vld [vmem:[#allocation10 + $0x70] sm:$0xff]
    %v6220 = vld [vmem:[#allocation10 + $0x78] sm:$0xff]
    %v6221 = vld [vmem:[#allocation10 + $0x80] sm:$0xff]
    %v6222 = vld [vmem:[#allocation10 + $0x88] sm:$0xff]
    %v6223 = vld [vmem:[#allocation10 + $0x90] sm:$0xff]
    %v6224 = vld [vmem:[#allocation10 + $0x98] sm:$0xff]
    %v6225 = vld [vmem:[#allocation10 + $0xa0] sm:$0xff]
    %v6226 = vld [vmem:[#allocation10 + $0xa8] sm:$0xff]
    %v6227 = vld [vmem:[#allocation10 + $0xb0] sm:$0xff]
    %v6228 = vld [vmem:[#allocation10 + $0xb8] sm:$0xff]
    %v6229 = vld [vmem:[#allocation10 + $0xc0] sm:$0xff]
    %v6230 = vld [vmem:[#allocation10 + $0xc8] sm:$0xff]
    %v6231 = vld [vmem:[#allocation10 + $0xd0] sm:$0xff]
    %v6232 = vld [vmem:[#allocation10 + $0xd8] sm:$0xff]
    %v6233 = vld [vmem:[#allocation10 + $0xe0] sm:$0xff]
    %v6234 = vld [vmem:[#allocation10 + $0xe8] sm:$0xff]
    %v6235 = vld [vmem:[#allocation10 + $0xf0] sm:$0xff]
    %v6236 = vld [vmem:[#allocation10 + $0xf8] sm:$0xff]
    %v6269 = vunpack.c.l.b16 %v6205
    %v6270 = vunpack.c.h.b16 %v6205
    %v6271 = vunpack.c.l.b16 %v6206
    %v6272 = vunpack.c.h.b16 %v6206
    %v6273 = vunpack.c.l.b16 %v6207
    %v6274 = vunpack.c.h.b16 %v6207
    %v6275 = vunpack.c.l.b16 %v6208
    %v6276 = vunpack.c.h.b16 %v6208
    %v6277 = vunpack.c.l.b16 %v6209
    %v6278 = vunpack.c.h.b16 %v6209
    %v6279 = vunpack.c.l.b16 %v6210
    %v6280 = vunpack.c.h.b16 %v6210
    %v6281 = vunpack.c.l.b16 %v6211
    %v6282 = vunpack.c.h.b16 %v6211
    %v6283 = vunpack.c.l.b16 %v6212
    %v6284 = vunpack.c.h.b16 %v6212
    %v6285 = vunpack.c.l.b16 %v6213
    %v6286 = vunpack.c.h.b16 %v6213
    %v6287 = vunpack.c.l.b16 %v6214
    %v6288 = vunpack.c.h.b16 %v6214
    %v6289 = vunpack.c.l.b16 %v6215
    %v6290 = vunpack.c.h.b16 %v6215
    %v6291 = vunpack.c.l.b16 %v6216
    %v6292 = vunpack.c.h.b16 %v6216
    %v6293 = vunpack.c.l.b16 %v6217
    %v6294 = vunpack.c.h.b16 %v6217
    %v6295 = vunpack.c.l.b16 %v6218
    %v6296 = vunpack.c.h.b16 %v6218
    %v6297 = vunpack.c.l.b16 %v6219
    %v6298 = vunpack.c.h.b16 %v6219
    %v6299 = vunpack.c.l.b16 %v6220
    %v6300 = vunpack.c.h.b16 %v6220
    %v6301 = vunpack.c.l.b16 %v6221
    %v6302 = vunpack.c.h.b16 %v6221
    %v6303 = vunpack.c.l.b16 %v6222
    %v6304 = vunpack.c.h.b16 %v6222
    %v6305 = vunpack.c.l.b16 %v6223
    %v6306 = vunpack.c.h.b16 %v6223
    %v6307 = vunpack.c.l.b16 %v6224
    %v6308 = vunpack.c.h.b16 %v6224
    %v6309 = vunpack.c.l.b16 %v6225
    %v6310 = vunpack.c.h.b16 %v6225
    %v6311 = vunpack.c.l.b16 %v6226
    %v6312 = vunpack.c.h.b16 %v6226
    %v6313 = vunpack.c.l.b16 %v6227
    %v6314 = vunpack.c.h.b16 %v6227
    %v6315 = vunpack.c.l.b16 %v6228
    %v6316 = vunpack.c.h.b16 %v6228
    %v6317 = vunpack.c.l.b16 %v6229
    %v6318 = vunpack.c.h.b16 %v6229
    %v6319 = vunpack.c.l.b16 %v6230
    %v6320 = vunpack.c.h.b16 %v6230
    %v6321 = vunpack.c.l.b16 %v6231
    %v6322 = vunpack.c.h.b16 %v6231
    %v6323 = vunpack.c.l.b16 %v6232
    %v6324 = vunpack.c.h.b16 %v6232
    %v6325 = vunpack.c.l.b16 %v6233
    %v6326 = vunpack.c.h.b16 %v6233
    %v6327 = vunpack.c.l.b16 %v6234
    %v6328 = vunpack.c.h.b16 %v6234
    %v6329 = vunpack.c.l.b16 %v6235
    %v6330 = vunpack.c.h.b16 %v6235
    %v6331 = vunpack.c.l.b16 %v6236
    %v6332 = vunpack.c.h.b16 %v6236
    %v6333 = vpack.c.b16 %v6273, %v6269
    %v6334 = vpack.c.b16 %v6274, %v6270
    %v6335 = vpack.c.b16 %v6275, %v6271
    %v6336 = vpack.c.b16 %v6276, %v6272
    %v6337 = vpack.c.b16 %v6281, %v6277
    %v6338 = vpack.c.b16 %v6282, %v6278
    %v6339 = vpack.c.b16 %v6283, %v6279
    %v6340 = vpack.c.b16 %v6284, %v6280
    %v6341 = vpack.c.b16 %v6289, %v6285
    %v6342 = vpack.c.b16 %v6290, %v6286
    %v6343 = vpack.c.b16 %v6291, %v6287
    %v6344 = vpack.c.b16 %v6292, %v6288
    %v6345 = vpack.c.b16 %v6297, %v6293
    %v6346 = vpack.c.b16 %v6298, %v6294
    %v6347 = vpack.c.b16 %v6299, %v6295
    %v6348 = vpack.c.b16 %v6300, %v6296
    %v6349 = vpack.c.b16 %v6305, %v6301
    %v6350 = vpack.c.b16 %v6306, %v6302
    %v6351 = vpack.c.b16 %v6307, %v6303
    %v6352 = vpack.c.b16 %v6308, %v6304
    %v6353 = vpack.c.b16 %v6313, %v6309
    %v6354 = vpack.c.b16 %v6314, %v6310
    %v6355 = vpack.c.b16 %v6315, %v6311
    %v6356 = vpack.c.b16 %v6316, %v6312
    %v6357 = vpack.c.b16 %v6321, %v6317
    %v6358 = vpack.c.b16 %v6322, %v6318
    %v6359 = vpack.c.b16 %v6323, %v6319
    %v6360 = vpack.c.b16 %v6324, %v6320
    %v6361 = vpack.c.b16 %v6329, %v6325
    %v6362 = vpack.c.b16 %v6330, %v6326
    %v6363 = vpack.c.b16 %v6331, %v6327
    %v6364 = vpack.c.b16 %v6332, %v6328
    %6397 = vmatpush.bf16.msra.mxu0 %v6361
    %6398 = vmatpush.bf16.msra.mxu0 %v6357
    %6399 = vmatpush.bf16.msra.mxu0 %v6353
    %6400 = vmatpush.bf16.msra.mxu0 %v6349
    %6401 = vmatpush.bf16.msra.mxu0 %v6345
    %6402 = vmatpush.bf16.msra.mxu0 %v6341
    %6403 = vmatpush.bf16.msra.mxu0 %v6337
    %6404 = vmatpush.bf16.msra.mxu0 %v6333
    %6405 = vmatmul.bf16.gmra.mxu0 %v6204
    %v6406 = vpop.f32.mrf.mxu0
    %v6407 = vadd.f32 0.0, %v6406
    %v6408 = vpop.f32.mrf.mxu0
    %v6409 = vadd.f32 0.0, %v6408
    %6410 = vdwg.mxu0
    %6411 = vmatpush.bf16.msra.mxu0 %v6362
    %6412 = vmatpush.bf16.msra.mxu0 %v6358
    %6413 = vmatpush.bf16.msra.mxu0 %v6354
    %6414 = vmatpush.bf16.msra.mxu0 %v6350
    %6415 = vmatpush.bf16.msra.mxu0 %v6346
    %6416 = vmatpush.bf16.msra.mxu0 %v6342
    %6417 = vmatpush.bf16.msra.mxu0 %v6338
    %6418 = vmatpush.bf16.msra.mxu0 %v6334
    %6419 = vmatmul.bf16.gmra.mxu0 %v6204
    %v6420 = vpop.f32.mrf.mxu0
    %v6421 = vadd.f32 0.0, %v6420
    %v6422 = vpop.f32.mrf.mxu0
    %v6423 = vadd.f32 0.0, %v6422
    %6424 = vdwg.mxu0
    %6425 = vmatpush.bf16.msra.mxu0 %v6363
    %6426 = vmatpush.bf16.msra.mxu0 %v6359
    %6427 = vmatpush.bf16.msra.mxu0 %v6355
    %6428 = vmatpush.bf16.msra.mxu0 %v6351
    %6429 = vmatpush.bf16.msra.mxu0 %v6347
    %6430 = vmatpush.bf16.msra.mxu0 %v6343
    %6431 = vmatpush.bf16.msra.mxu0 %v6339
    %6432 = vmatpush.bf16.msra.mxu0 %v6335
    %6433 = vmatmul.bf16.gmra.mxu0 %v6204
    %v6434 = vpop.f32.mrf.mxu0
    %v6435 = vadd.f32 0.0, %v6434
    %v6436 = vpop.f32.mrf.mxu0
    %v6437 = vadd.f32 0.0, %v6436
    %6438 = vdwg.mxu0
    %6439 = vmatpush.bf16.msra.mxu0 %v6364
    %6440 = vmatpush.bf16.msra.mxu0 %v6360
    %6441 = vmatpush.bf16.msra.mxu0 %v6356
    %6442 = vmatpush.bf16.msra.mxu0 %v6352
    %6443 = vmatpush.bf16.msra.mxu0 %v6348
    %6444 = vmatpush.bf16.msra.mxu0 %v6344
    %6445 = vmatpush.bf16.msra.mxu0 %v6340
    %6446 = vmatpush.bf16.msra.mxu0 %v6336
    %6447 = vmatmul.bf16.gmra.mxu0 %v6204
    %v6448 = vpop.f32.mrf.mxu0
    %v6449 = vadd.f32 0.0, %v6448
    %v6450 = vpop.f32.mrf.mxu0
    %v6451 = vadd.f32 0.0, %v6450
    %6452 = vdwg.mxu0
    %v6453 = vadd.f32 %v6194, %v6407
    %v6454 = vadd.f32 %v6195, %v6421
    %v6455 = vadd.f32 %v6196, %v6435
    %v6456 = vadd.f32 %v6197, %v6449
    %v6457 = vadd.f32 %v6198, %v6409
    %v6458 = vadd.f32 %v6199, %v6423
    %v6459 = vadd.f32 %v6200, %v6437
    %v6460 = vadd.f32 %v6201, %v6451
    %v6461 = vxor.u32 %v6453, 2147483648
    %v6462 = vxor.u32 %v6457, 2147483648
    %v6463 = vmul.f32 %v6461, 1.442695
    %v6464 = vpow.pop %v6463
    %v6465 = vmul.f32 %v6462, 1.442695
    %v6466 = vpow.pop %v6465
    %v6467 = vadd.f32 %v6464, 1.0
    %v6468 = vadd.f32 %v6466, 1.0
    %v6469 = vrcp.pop %v6467
    %v6470 = vmul.f32 %v6467, %v6469
    %v6471 = vsub.f32 1.0, %v6470
    %v6472 = vmul.f32 %v6469, %v6471
    %v6473 = vadd.f32 %v6469, %v6472
    %vm6474 = vweird.f32 %v6467
    %vm6475 = vweird.f32 %v6469
    %vm6476 = vmor %vm6474, %vm6475
    %v6477 = vsel %vm6476, %v6469, %v6473
    %v6478 = vand.u32 2147483647, %v6467
    %vm6479 = vcmp.eq.f32.partialorder %v6478, 8.507059e+37
    %v6480 = vand.u32 %v6467, 2147483648
    %v6481 = vor.u32 1.1754944e-38, %v6480
    %v6482 = vsel %vm6479, %v6481, %v6477
    %v6483 = vmul.f32 1.0, %v6482
    %v6484 = vrcp.pop %v6468
    %v6485 = vmul.f32 %v6468, %v6484
    %v6486 = vsub.f32 1.0, %v6485
    %v6487 = vmul.f32 %v6484, %v6486
    %v6488 = vadd.f32 %v6484, %v6487
    %vm6489 = vweird.f32 %v6468
    %vm6490 = vweird.f32 %v6484
    %vm6491 = vmor %vm6489, %vm6490
    %v6492 = vsel %vm6491, %v6484, %v6488
    %v6493 = vand.u32 2147483647, %v6468
    %vm6494 = vcmp.eq.f32.partialorder %v6493, 8.507059e+37
    %v6495 = vand.u32 %v6468, 2147483648
    %v6496 = vor.u32 1.1754944e-38, %v6495
    %v6497 = vsel %vm6494, %v6496, %v6492
    %v6498 = vmul.f32 1.0, %v6497
    %v6499 = vxor.u32 %v6454, 2147483648
    %v6500 = vxor.u32 %v6458, 2147483648
    %v6501 = vmul.f32 %v6499, 1.442695
    %v6502 = vpow.pop %v6501
    %v6503 = vmul.f32 %v6500, 1.442695
    %v6504 = vpow.pop %v6503
    %v6505 = vadd.f32 %v6502, 1.0
    %v6506 = vadd.f32 %v6504, 1.0
    %v6507 = vrcp.pop %v6505
    %v6508 = vmul.f32 %v6505, %v6507
    %v6509 = vsub.f32 1.0, %v6508
    %v6510 = vmul.f32 %v6507, %v6509
    %v6511 = vadd.f32 %v6507, %v6510
    %vm6512 = vweird.f32 %v6505
    %vm6513 = vweird.f32 %v6507
    %vm6514 = vmor %vm6512, %vm6513
    %v6515 = vsel %vm6514, %v6507, %v6511
    %v6516 = vand.u32 2147483647, %v6505
    %vm6517 = vcmp.eq.f32.partialorder %v6516, 8.507059e+37
    %v6518 = vand.u32 %v6505, 2147483648
    %v6519 = vor.u32 1.1754944e-38, %v6518
    %v6520 = vsel %vm6517, %v6519, %v6515
    %v6521 = vmul.f32 1.0, %v6520
    %v6522 = vrcp.pop %v6506
    %v6523 = vmul.f32 %v6506, %v6522
    %v6524 = vsub.f32 1.0, %v6523
    %v6525 = vmul.f32 %v6522, %v6524
    %v6526 = vadd.f32 %v6522, %v6525
    %vm6527 = vweird.f32 %v6506
    %vm6528 = vweird.f32 %v6522
    %vm6529 = vmor %vm6527, %vm6528
    %v6530 = vsel %vm6529, %v6522, %v6526
    %v6531 = vand.u32 2147483647, %v6506
    %vm6532 = vcmp.eq.f32.partialorder %v6531, 8.507059e+37
    %v6533 = vand.u32 %v6506, 2147483648
    %v6534 = vor.u32 1.1754944e-38, %v6533
    %v6535 = vsel %vm6532, %v6534, %v6530
    %v6536 = vmul.f32 1.0, %v6535
    %v6537 = vtanh.pop %v6455
    %v6538 = vtanh.pop %v6459
    %v6539 = vxor.u32 %v6456, 2147483648
    %v6540 = vxor.u32 %v6460, 2147483648
    %v6541 = vmul.f32 %v6539, 1.442695
    %v6542 = vpow.pop %v6541
    %v6543 = vmul.f32 %v6540, 1.442695
    %v6544 = vpow.pop %v6543
    %v6545 = vadd.f32 %v6542, 1.0
    %v6546 = vadd.f32 %v6544, 1.0
    %v6547 = vrcp.pop %v6545
    %v6548 = vmul.f32 %v6545, %v6547
    %v6549 = vsub.f32 1.0, %v6548
    %v6550 = vmul.f32 %v6547, %v6549
    %v6551 = vadd.f32 %v6547, %v6550
    %vm6552 = vweird.f32 %v6545
    %vm6553 = vweird.f32 %v6547
    %vm6554 = vmor %vm6552, %vm6553
    %v6555 = vsel %vm6554, %v6547, %v6551
    %v6556 = vand.u32 2147483647, %v6545
    %vm6557 = vcmp.eq.f32.partialorder %v6556, 8.507059e+37
    %v6558 = vand.u32 %v6545, 2147483648
    %v6559 = vor.u32 1.1754944e-38, %v6558
    %v6560 = vsel %vm6557, %v6559, %v6555
    %v6561 = vmul.f32 1.0, %v6560
    %v6562 = vrcp.pop %v6546
    %v6563 = vmul.f32 %v6546, %v6562
    %v6564 = vsub.f32 1.0, %v6563
    %v6565 = vmul.f32 %v6562, %v6564
    %v6566 = vadd.f32 %v6562, %v6565
    %vm6567 = vweird.f32 %v6546
    %vm6568 = vweird.f32 %v6562
    %vm6569 = vmor %vm6567, %vm6568
    %v6570 = vsel %vm6569, %v6562, %v6566
    %v6571 = vand.u32 2147483647, %v6546
    %vm6572 = vcmp.eq.f32.partialorder %v6571, 8.507059e+37
    %v6573 = vand.u32 %v6546, 2147483648
    %v6574 = vor.u32 1.1754944e-38, %v6573
    %v6575 = vsel %vm6572, %v6574, %v6570
    %v6576 = vmul.f32 1.0, %v6575
    %v6577 = vld [vmem:[#allocation4] sm:$0xff]
    %v6578 = vld [vmem:[#allocation4 + $0x8] sm:$0xff]
    %v6579 = vmul.f32 %v6521, %v6577
    %v6580 = vmul.f32 %v6536, %v6578
    %v6581 = vmul.f32 %v6483, %v6537
    %v6582 = vmul.f32 %v6498, %v6538
    %v6583 = vadd.f32 %v6579, %v6581
    %v6584 = vadd.f32 %v6580, %v6582
    %v6585 = vtanh.pop %v6583
    %v6586 = vtanh.pop %v6584
    %v6587 = vmul.f32 %v6561, %v6585
    %v6588 = vmul.f32 %v6576, %v6586
    %6589 = vst [vmem:[#allocation4] sm:$0xff] %v6583
    %6590 = vst [vmem:[#allocation4 + $0x8] sm:$0xff] %v6584
    %6591 = vst [vmem:[#allocation3] sm:$0xff] %v6587
    %6592 = vst [vmem:[#allocation3 + $0x8] sm:$0xff] %v6588
    %v6593 = vpack.c.bf16 %v6587, %v6587
    %v6594 = vpack.c.bf16 %v6588, %v6588
    %s6595 = scalar_lea.vmem [#allocation13], 104
    %6596 = vst [vmem:[%s6595] sm:$0xf] %v6593
    %6597 = vst [vmem:[%s6595 + $0x4] sm:$0xf] %v6594
    %s6598 = smul.u32 28, 4
    %s6599 = smul.addr %s6598, 8
    %s6600 = scalar_lea.vmem [#allocation2], %s6599
    %v6601 = vld [vmem:[%s6600] sm:$0xff]
    %v6602 = vld [vmem:[%s6600 + $0x8] sm:$0xff]
    %v6603 = vld [vmem:[%s6600 + $0x10] sm:$0xff]
    %v6604 = vld [vmem:[%s6600 + $0x18] sm:$0xff]
    %v6605 = vld [vmem:[%s6600 + $0x20] sm:$0xff]
    %v6606 = vld [vmem:[%s6600 + $0x28] sm:$0xff]
    %v6607 = vld [vmem:[%s6600 + $0x30] sm:$0xff]
    %v6608 = vld [vmem:[%s6600 + $0x38] sm:$0xff]
    %v6609 = vld [vmem:[#allocation3] sm:$0xff]
    %v6610 = vld [vmem:[#allocation3 + $0x8] sm:$0xff]
    %v6611 = vpack.c.bf16 %v6610, %v6609
    %v6612 = vld [vmem:[#allocation10] sm:$0xff]
    %v6613 = vld [vmem:[#allocation10 + $0x8] sm:$0xff]
    %v6614 = vld [vmem:[#allocation10 + $0x10] sm:$0xff]
    %v6615 = vld [vmem:[#allocation10 + $0x18] sm:$0xff]
    %v6616 = vld [vmem:[#allocation10 + $0x20] sm:$0xff]
    %v6617 = vld [vmem:[#allocation10 + $0x28] sm:$0xff]
    %v6618 = vld [vmem:[#allocation10 + $0x30] sm:$0xff]
    %v6619 = vld [vmem:[#allocation10 + $0x38] sm:$0xff]
    %v6620 = vld [vmem:[#allocation10 + $0x40] sm:$0xff]
    %v6621 = vld [vmem:[#allocation10 + $0x48] sm:$0xff]
    %v6622 = vld [vmem:[#allocation10 + $0x50] sm:$0xff]
    %v6623 = vld [vmem:[#allocation10 + $0x58] sm:$0xff]
    %v6624 = vld [vmem:[#allocation10 + $0x60] sm:$0xff]
    %v6625 = vld [vmem:[#allocation10 + $0x68] sm:$0xff]
    %v6626 = vld [vmem:[#allocation10 + $0x70] sm:$0xff]
    %v6627 = vld [vmem:[#allocation10 + $0x78] sm:$0xff]
    %v6628 = vld [vmem:[#allocation10 + $0x80] sm:$0xff]
    %v6629 = vld [vmem:[#allocation10 + $0x88] sm:$0xff]
    %v6630 = vld [vmem:[#allocation10 + $0x90] sm:$0xff]
    %v6631 = vld [vmem:[#allocation10 + $0x98] sm:$0xff]
    %v6632 = vld [vmem:[#allocation10 + $0xa0] sm:$0xff]
    %v6633 = vld [vmem:[#allocation10 + $0xa8] sm:$0xff]
    %v6634 = vld [vmem:[#allocation10 + $0xb0] sm:$0xff]
    %v6635 = vld [vmem:[#allocation10 + $0xb8] sm:$0xff]
    %v6636 = vld [vmem:[#allocation10 + $0xc0] sm:$0xff]
    %v6637 = vld [vmem:[#allocation10 + $0xc8] sm:$0xff]
    %v6638 = vld [vmem:[#allocation10 + $0xd0] sm:$0xff]
    %v6639 = vld [vmem:[#allocation10 + $0xd8] sm:$0xff]
    %v6640 = vld [vmem:[#allocation10 + $0xe0] sm:$0xff]
    %v6641 = vld [vmem:[#allocation10 + $0xe8] sm:$0xff]
    %v6642 = vld [vmem:[#allocation10 + $0xf0] sm:$0xff]
    %v6643 = vld [vmem:[#allocation10 + $0xf8] sm:$0xff]
    %v6676 = vunpack.c.l.b16 %v6612
    %v6677 = vunpack.c.h.b16 %v6612
    %v6678 = vunpack.c.l.b16 %v6613
    %v6679 = vunpack.c.h.b16 %v6613
    %v6680 = vunpack.c.l.b16 %v6614
    %v6681 = vunpack.c.h.b16 %v6614
    %v6682 = vunpack.c.l.b16 %v6615
    %v6683 = vunpack.c.h.b16 %v6615
    %v6684 = vunpack.c.l.b16 %v6616
    %v6685 = vunpack.c.h.b16 %v6616
    %v6686 = vunpack.c.l.b16 %v6617
    %v6687 = vunpack.c.h.b16 %v6617
    %v6688 = vunpack.c.l.b16 %v6618
    %v6689 = vunpack.c.h.b16 %v6618
    %v6690 = vunpack.c.l.b16 %v6619
    %v6691 = vunpack.c.h.b16 %v6619
    %v6692 = vunpack.c.l.b16 %v6620
    %v6693 = vunpack.c.h.b16 %v6620
    %v6694 = vunpack.c.l.b16 %v6621
    %v6695 = vunpack.c.h.b16 %v6621
    %v6696 = vunpack.c.l.b16 %v6622
    %v6697 = vunpack.c.h.b16 %v6622
    %v6698 = vunpack.c.l.b16 %v6623
    %v6699 = vunpack.c.h.b16 %v6623
    %v6700 = vunpack.c.l.b16 %v6624
    %v6701 = vunpack.c.h.b16 %v6624
    %v6702 = vunpack.c.l.b16 %v6625
    %v6703 = vunpack.c.h.b16 %v6625
    %v6704 = vunpack.c.l.b16 %v6626
    %v6705 = vunpack.c.h.b16 %v6626
    %v6706 = vunpack.c.l.b16 %v6627
    %v6707 = vunpack.c.h.b16 %v6627
    %v6708 = vunpack.c.l.b16 %v6628
    %v6709 = vunpack.c.h.b16 %v6628
    %v6710 = vunpack.c.l.b16 %v6629
    %v6711 = vunpack.c.h.b16 %v6629
    %v6712 = vunpack.c.l.b16 %v6630
    %v6713 = vunpack.c.h.b16 %v6630
    %v6714 = vunpack.c.l.b16 %v6631
    %v6715 = vunpack.c.h.b16 %v6631
    %v6716 = vunpack.c.l.b16 %v6632
    %v6717 = vunpack.c.h.b16 %v6632
    %v6718 = vunpack.c.l.b16 %v6633
    %v6719 = vunpack.c.h.b16 %v6633
    %v6720 = vunpack.c.l.b16 %v6634
    %v6721 = vunpack.c.h.b16 %v6634
    %v6722 = vunpack.c.l.b16 %v6635
    %v6723 = vunpack.c.h.b16 %v6635
    %v6724 = vunpack.c.l.b16 %v6636
    %v6725 = vunpack.c.h.b16 %v6636
    %v6726 = vunpack.c.l.b16 %v6637
    %v6727 = vunpack.c.h.b16 %v6637
    %v6728 = vunpack.c.l.b16 %v6638
    %v6729 = vunpack.c.h.b16 %v6638
    %v6730 = vunpack.c.l.b16 %v6639
    %v6731 = vunpack.c.h.b16 %v6639
    %v6732 = vunpack.c.l.b16 %v6640
    %v6733 = vunpack.c.h.b16 %v6640
    %v6734 = vunpack.c.l.b16 %v6641
    %v6735 = vunpack.c.h.b16 %v6641
    %v6736 = vunpack.c.l.b16 %v6642
    %v6737 = vunpack.c.h.b16 %v6642
    %v6738 = vunpack.c.l.b16 %v6643
    %v6739 = vunpack.c.h.b16 %v6643
    %v6740 = vpack.c.b16 %v6680, %v6676
    %v6741 = vpack.c.b16 %v6681, %v6677
    %v6742 = vpack.c.b16 %v6682, %v6678
    %v6743 = vpack.c.b16 %v6683, %v6679
    %v6744 = vpack.c.b16 %v6688, %v6684
    %v6745 = vpack.c.b16 %v6689, %v6685
    %v6746 = vpack.c.b16 %v6690, %v6686
    %v6747 = vpack.c.b16 %v6691, %v6687
    %v6748 = vpack.c.b16 %v6696, %v6692
    %v6749 = vpack.c.b16 %v6697, %v6693
    %v6750 = vpack.c.b16 %v6698, %v6694
    %v6751 = vpack.c.b16 %v6699, %v6695
    %v6752 = vpack.c.b16 %v6704, %v6700
    %v6753 = vpack.c.b16 %v6705, %v6701
    %v6754 = vpack.c.b16 %v6706, %v6702
    %v6755 = vpack.c.b16 %v6707, %v6703
    %v6756 = vpack.c.b16 %v6712, %v6708
    %v6757 = vpack.c.b16 %v6713, %v6709
    %v6758 = vpack.c.b16 %v6714, %v6710
    %v6759 = vpack.c.b16 %v6715, %v6711
    %v6760 = vpack.c.b16 %v6720, %v6716
    %v6761 = vpack.c.b16 %v6721, %v6717
    %v6762 = vpack.c.b16 %v6722, %v6718
    %v6763 = vpack.c.b16 %v6723, %v6719
    %v6764 = vpack.c.b16 %v6728, %v6724
    %v6765 = vpack.c.b16 %v6729, %v6725
    %v6766 = vpack.c.b16 %v6730, %v6726
    %v6767 = vpack.c.b16 %v6731, %v6727
    %v6768 = vpack.c.b16 %v6736, %v6732
    %v6769 = vpack.c.b16 %v6737, %v6733
    %v6770 = vpack.c.b16 %v6738, %v6734
    %v6771 = vpack.c.b16 %v6739, %v6735
    %6804 = vmatpush.bf16.msra.mxu0 %v6768
    %6805 = vmatpush.bf16.msra.mxu0 %v6764
    %6806 = vmatpush.bf16.msra.mxu0 %v6760
    %6807 = vmatpush.bf16.msra.mxu0 %v6756
    %6808 = vmatpush.bf16.msra.mxu0 %v6752
    %6809 = vmatpush.bf16.msra.mxu0 %v6748
    %6810 = vmatpush.bf16.msra.mxu0 %v6744
    %6811 = vmatpush.bf16.msra.mxu0 %v6740
    %6812 = vmatmul.bf16.gmra.mxu0 %v6611
    %v6813 = vpop.f32.mrf.mxu0
    %v6814 = vadd.f32 0.0, %v6813
    %v6815 = vpop.f32.mrf.mxu0
    %v6816 = vadd.f32 0.0, %v6815
    %6817 = vdwg.mxu0
    %6818 = vmatpush.bf16.msra.mxu0 %v6769
    %6819 = vmatpush.bf16.msra.mxu0 %v6765
    %6820 = vmatpush.bf16.msra.mxu0 %v6761
    %6821 = vmatpush.bf16.msra.mxu0 %v6757
    %6822 = vmatpush.bf16.msra.mxu0 %v6753
    %6823 = vmatpush.bf16.msra.mxu0 %v6749
    %6824 = vmatpush.bf16.msra.mxu0 %v6745
    %6825 = vmatpush.bf16.msra.mxu0 %v6741
    %6826 = vmatmul.bf16.gmra.mxu0 %v6611
    %v6827 = vpop.f32.mrf.mxu0
    %v6828 = vadd.f32 0.0, %v6827
    %v6829 = vpop.f32.mrf.mxu0
    %v6830 = vadd.f32 0.0, %v6829
    %6831 = vdwg.mxu0
    %6832 = vmatpush.bf16.msra.mxu0 %v6770
    %6833 = vmatpush.bf16.msra.mxu0 %v6766
    %6834 = vmatpush.bf16.msra.mxu0 %v6762
    %6835 = vmatpush.bf16.msra.mxu0 %v6758
    %6836 = vmatpush.bf16.msra.mxu0 %v6754
    %6837 = vmatpush.bf16.msra.mxu0 %v6750
    %6838 = vmatpush.bf16.msra.mxu0 %v6746
    %6839 = vmatpush.bf16.msra.mxu0 %v6742
    %6840 = vmatmul.bf16.gmra.mxu0 %v6611
    %v6841 = vpop.f32.mrf.mxu0
    %v6842 = vadd.f32 0.0, %v6841
    %v6843 = vpop.f32.mrf.mxu0
    %v6844 = vadd.f32 0.0, %v6843
    %6845 = vdwg.mxu0
    %6846 = vmatpush.bf16.msra.mxu0 %v6771
    %6847 = vmatpush.bf16.msra.mxu0 %v6767
    %6848 = vmatpush.bf16.msra.mxu0 %v6763
    %6849 = vmatpush.bf16.msra.mxu0 %v6759
    %6850 = vmatpush.bf16.msra.mxu0 %v6755
    %6851 = vmatpush.bf16.msra.mxu0 %v6751
    %6852 = vmatpush.bf16.msra.mxu0 %v6747
    %6853 = vmatpush.bf16.msra.mxu0 %v6743
    %6854 = vmatmul.bf16.gmra.mxu0 %v6611
    %v6855 = vpop.f32.mrf.mxu0
    %v6856 = vadd.f32 0.0, %v6855
    %v6857 = vpop.f32.mrf.mxu0
    %v6858 = vadd.f32 0.0, %v6857
    %6859 = vdwg.mxu0
    %v6860 = vadd.f32 %v6601, %v6814
    %v6861 = vadd.f32 %v6602, %v6828
    %v6862 = vadd.f32 %v6603, %v6842
    %v6863 = vadd.f32 %v6604, %v6856
    %v6864 = vadd.f32 %v6605, %v6816
    %v6865 = vadd.f32 %v6606, %v6830
    %v6866 = vadd.f32 %v6607, %v6844
    %v6867 = vadd.f32 %v6608, %v6858
    %v6868 = vxor.u32 %v6860, 2147483648
    %v6869 = vxor.u32 %v6864, 2147483648
    %v6870 = vmul.f32 %v6868, 1.442695
    %v6871 = vpow.pop %v6870
    %v6872 = vmul.f32 %v6869, 1.442695
    %v6873 = vpow.pop %v6872
    %v6874 = vadd.f32 %v6871, 1.0
    %v6875 = vadd.f32 %v6873, 1.0
    %v6876 = vrcp.pop %v6874
    %v6877 = vmul.f32 %v6874, %v6876
    %v6878 = vsub.f32 1.0, %v6877
    %v6879 = vmul.f32 %v6876, %v6878
    %v6880 = vadd.f32 %v6876, %v6879
    %vm6881 = vweird.f32 %v6874
    %vm6882 = vweird.f32 %v6876
    %vm6883 = vmor %vm6881, %vm6882
    %v6884 = vsel %vm6883, %v6876, %v6880
    %v6885 = vand.u32 2147483647, %v6874
    %vm6886 = vcmp.eq.f32.partialorder %v6885, 8.507059e+37
    %v6887 = vand.u32 %v6874, 2147483648
    %v6888 = vor.u32 1.1754944e-38, %v6887
    %v6889 = vsel %vm6886, %v6888, %v6884
    %v6890 = vmul.f32 1.0, %v6889
    %v6891 = vrcp.pop %v6875
    %v6892 = vmul.f32 %v6875, %v6891
    %v6893 = vsub.f32 1.0, %v6892
    %v6894 = vmul.f32 %v6891, %v6893
    %v6895 = vadd.f32 %v6891, %v6894
    %vm6896 = vweird.f32 %v6875
    %vm6897 = vweird.f32 %v6891
    %vm6898 = vmor %vm6896, %vm6897
    %v6899 = vsel %vm6898, %v6891, %v6895
    %v6900 = vand.u32 2147483647, %v6875
    %vm6901 = vcmp.eq.f32.partialorder %v6900, 8.507059e+37
    %v6902 = vand.u32 %v6875, 2147483648
    %v6903 = vor.u32 1.1754944e-38, %v6902
    %v6904 = vsel %vm6901, %v6903, %v6899
    %v6905 = vmul.f32 1.0, %v6904
    %v6906 = vxor.u32 %v6861, 2147483648
    %v6907 = vxor.u32 %v6865, 2147483648
    %v6908 = vmul.f32 %v6906, 1.442695
    %v6909 = vpow.pop %v6908
    %v6910 = vmul.f32 %v6907, 1.442695
    %v6911 = vpow.pop %v6910
    %v6912 = vadd.f32 %v6909, 1.0
    %v6913 = vadd.f32 %v6911, 1.0
    %v6914 = vrcp.pop %v6912
    %v6915 = vmul.f32 %v6912, %v6914
    %v6916 = vsub.f32 1.0, %v6915
    %v6917 = vmul.f32 %v6914, %v6916
    %v6918 = vadd.f32 %v6914, %v6917
    %vm6919 = vweird.f32 %v6912
    %vm6920 = vweird.f32 %v6914
    %vm6921 = vmor %vm6919, %vm6920
    %v6922 = vsel %vm6921, %v6914, %v6918
    %v6923 = vand.u32 2147483647, %v6912
    %vm6924 = vcmp.eq.f32.partialorder %v6923, 8.507059e+37
    %v6925 = vand.u32 %v6912, 2147483648
    %v6926 = vor.u32 1.1754944e-38, %v6925
    %v6927 = vsel %vm6924, %v6926, %v6922
    %v6928 = vmul.f32 1.0, %v6927
    %v6929 = vrcp.pop %v6913
    %v6930 = vmul.f32 %v6913, %v6929
    %v6931 = vsub.f32 1.0, %v6930
    %v6932 = vmul.f32 %v6929, %v6931
    %v6933 = vadd.f32 %v6929, %v6932
    %vm6934 = vweird.f32 %v6913
    %vm6935 = vweird.f32 %v6929
    %vm6936 = vmor %vm6934, %vm6935
    %v6937 = vsel %vm6936, %v6929, %v6933
    %v6938 = vand.u32 2147483647, %v6913
    %vm6939 = vcmp.eq.f32.partialorder %v6938, 8.507059e+37
    %v6940 = vand.u32 %v6913, 2147483648
    %v6941 = vor.u32 1.1754944e-38, %v6940
    %v6942 = vsel %vm6939, %v6941, %v6937
    %v6943 = vmul.f32 1.0, %v6942
    %v6944 = vtanh.pop %v6862
    %v6945 = vtanh.pop %v6866
    %v6946 = vxor.u32 %v6863, 2147483648
    %v6947 = vxor.u32 %v6867, 2147483648
    %v6948 = vmul.f32 %v6946, 1.442695
    %v6949 = vpow.pop %v6948
    %v6950 = vmul.f32 %v6947, 1.442695
    %v6951 = vpow.pop %v6950
    %v6952 = vadd.f32 %v6949, 1.0
    %v6953 = vadd.f32 %v6951, 1.0
    %v6954 = vrcp.pop %v6952
    %v6955 = vmul.f32 %v6952, %v6954
    %v6956 = vsub.f32 1.0, %v6955
    %v6957 = vmul.f32 %v6954, %v6956
    %v6958 = vadd.f32 %v6954, %v6957
    %vm6959 = vweird.f32 %v6952
    %vm6960 = vweird.f32 %v6954
    %vm6961 = vmor %vm6959, %vm6960
    %v6962 = vsel %vm6961, %v6954, %v6958
    %v6963 = vand.u32 2147483647, %v6952
    %vm6964 = vcmp.eq.f32.partialorder %v6963, 8.507059e+37
    %v6965 = vand.u32 %v6952, 2147483648
    %v6966 = vor.u32 1.1754944e-38, %v6965
    %v6967 = vsel %vm6964, %v6966, %v6962
    %v6968 = vmul.f32 1.0, %v6967
    %v6969 = vrcp.pop %v6953
    %v6970 = vmul.f32 %v6953, %v6969
    %v6971 = vsub.f32 1.0, %v6970
    %v6972 = vmul.f32 %v6969, %v6971
    %v6973 = vadd.f32 %v6969, %v6972
    %vm6974 = vweird.f32 %v6953
    %vm6975 = vweird.f32 %v6969
    %vm6976 = vmor %vm6974, %vm6975
    %v6977 = vsel %vm6976, %v6969, %v6973
    %v6978 = vand.u32 2147483647, %v6953
    %vm6979 = vcmp.eq.f32.partialorder %v6978, 8.507059e+37
    %v6980 = vand.u32 %v6953, 2147483648
    %v6981 = vor.u32 1.1754944e-38, %v6980
    %v6982 = vsel %vm6979, %v6981, %v6977
    %v6983 = vmul.f32 1.0, %v6982
    %v6984 = vld [vmem:[#allocation4] sm:$0xff]
    %v6985 = vld [vmem:[#allocation4 + $0x8] sm:$0xff]
    %v6986 = vmul.f32 %v6928, %v6984
    %v6987 = vmul.f32 %v6943, %v6985
    %v6988 = vmul.f32 %v6890, %v6944
    %v6989 = vmul.f32 %v6905, %v6945
    %v6990 = vadd.f32 %v6986, %v6988
    %v6991 = vadd.f32 %v6987, %v6989
    %v6992 = vtanh.pop %v6990
    %v6993 = vtanh.pop %v6991
    %v6994 = vmul.f32 %v6968, %v6992
    %v6995 = vmul.f32 %v6983, %v6993
    %6996 = vst [vmem:[#allocation4] sm:$0xff] %v6990
    %6997 = vst [vmem:[#allocation4 + $0x8] sm:$0xff] %v6991
    %6998 = vst [vmem:[#allocation3] sm:$0xff] %v6994
    %6999 = vst [vmem:[#allocation3 + $0x8] sm:$0xff] %v6995
    %v7000 = vpack.c.bf16 %v6994, %v6994
    %v7001 = vpack.c.bf16 %v6995, %v6995
    %s7002 = scalar_lea.vmem [#allocation13], 112
    %7003 = vst [vmem:[%s7002] sm:$0xf] %v7000
    %7004 = vst [vmem:[%s7002 + $0x4] sm:$0xf] %v7001
    %s7005 = smul.u32 30, 4
    %s7006 = smul.addr %s7005, 8
    %s7007 = scalar_lea.vmem [#allocation2], %s7006
    %v7008 = vld [vmem:[%s7007] sm:$0xff]
    %v7009 = vld [vmem:[%s7007 + $0x8] sm:$0xff]
    %v7010 = vld [vmem:[%s7007 + $0x10] sm:$0xff]
    %v7011 = vld [vmem:[%s7007 + $0x18] sm:$0xff]
    %v7012 = vld [vmem:[%s7007 + $0x20] sm:$0xff]
    %v7013 = vld [vmem:[%s7007 + $0x28] sm:$0xff]
    %v7014 = vld [vmem:[%s7007 + $0x30] sm:$0xff]
    %v7015 = vld [vmem:[%s7007 + $0x38] sm:$0xff]
    %v7016 = vld [vmem:[#allocation3] sm:$0xff]
    %v7017 = vld [vmem:[#allocation3 + $0x8] sm:$0xff]
    %v7018 = vpack.c.bf16 %v7017, %v7016
    %v7019 = vld [vmem:[#allocation10] sm:$0xff]
    %v7020 = vld [vmem:[#allocation10 + $0x8] sm:$0xff]
    %v7021 = vld [vmem:[#allocation10 + $0x10] sm:$0xff]
    %v7022 = vld [vmem:[#allocation10 + $0x18] sm:$0xff]
    %v7023 = vld [vmem:[#allocation10 + $0x20] sm:$0xff]
    %v7024 = vld [vmem:[#allocation10 + $0x28] sm:$0xff]
    %v7025 = vld [vmem:[#allocation10 + $0x30] sm:$0xff]
    %v7026 = vld [vmem:[#allocation10 + $0x38] sm:$0xff]
    %v7027 = vld [vmem:[#allocation10 + $0x40] sm:$0xff]
    %v7028 = vld [vmem:[#allocation10 + $0x48] sm:$0xff]
    %v7029 = vld [vmem:[#allocation10 + $0x50] sm:$0xff]
    %v7030 = vld [vmem:[#allocation10 + $0x58] sm:$0xff]
    %v7031 = vld [vmem:[#allocation10 + $0x60] sm:$0xff]
    %v7032 = vld [vmem:[#allocation10 + $0x68] sm:$0xff]
    %v7033 = vld [vmem:[#allocation10 + $0x70] sm:$0xff]
    %v7034 = vld [vmem:[#allocation10 + $0x78] sm:$0xff]
    %v7035 = vld [vmem:[#allocation10 + $0x80] sm:$0xff]
    %v7036 = vld [vmem:[#allocation10 + $0x88] sm:$0xff]
    %v7037 = vld [vmem:[#allocation10 + $0x90] sm:$0xff]
    %v7038 = vld [vmem:[#allocation10 + $0x98] sm:$0xff]
    %v7039 = vld [vmem:[#allocation10 + $0xa0] sm:$0xff]
    %v7040 = vld [vmem:[#allocation10 + $0xa8] sm:$0xff]
    %v7041 = vld [vmem:[#allocation10 + $0xb0] sm:$0xff]
    %v7042 = vld [vmem:[#allocation10 + $0xb8] sm:$0xff]
    %v7043 = vld [vmem:[#allocation10 + $0xc0] sm:$0xff]
    %v7044 = vld [vmem:[#allocation10 + $0xc8] sm:$0xff]
    %v7045 = vld [vmem:[#allocation10 + $0xd0] sm:$0xff]
    %v7046 = vld [vmem:[#allocation10 + $0xd8] sm:$0xff]
    %v7047 = vld [vmem:[#allocation10 + $0xe0] sm:$0xff]
    %v7048 = vld [vmem:[#allocation10 + $0xe8] sm:$0xff]
    %v7049 = vld [vmem:[#allocation10 + $0xf0] sm:$0xff]
    %v7050 = vld [vmem:[#allocation10 + $0xf8] sm:$0xff]
    %v7083 = vunpack.c.l.b16 %v7019
    %v7084 = vunpack.c.h.b16 %v7019
    %v7085 = vunpack.c.l.b16 %v7020
    %v7086 = vunpack.c.h.b16 %v7020
    %v7087 = vunpack.c.l.b16 %v7021
    %v7088 = vunpack.c.h.b16 %v7021
    %v7089 = vunpack.c.l.b16 %v7022
    %v7090 = vunpack.c.h.b16 %v7022
    %v7091 = vunpack.c.l.b16 %v7023
    %v7092 = vunpack.c.h.b16 %v7023
    %v7093 = vunpack.c.l.b16 %v7024
    %v7094 = vunpack.c.h.b16 %v7024
    %v7095 = vunpack.c.l.b16 %v7025
    %v7096 = vunpack.c.h.b16 %v7025
    %v7097 = vunpack.c.l.b16 %v7026
    %v7098 = vunpack.c.h.b16 %v7026
    %v7099 = vunpack.c.l.b16 %v7027
    %v7100 = vunpack.c.h.b16 %v7027
    %v7101 = vunpack.c.l.b16 %v7028
    %v7102 = vunpack.c.h.b16 %v7028
    %v7103 = vunpack.c.l.b16 %v7029
    %v7104 = vunpack.c.h.b16 %v7029
    %v7105 = vunpack.c.l.b16 %v7030
    %v7106 = vunpack.c.h.b16 %v7030
    %v7107 = vunpack.c.l.b16 %v7031
    %v7108 = vunpack.c.h.b16 %v7031
    %v7109 = vunpack.c.l.b16 %v7032
    %v7110 = vunpack.c.h.b16 %v7032
    %v7111 = vunpack.c.l.b16 %v7033
    %v7112 = vunpack.c.h.b16 %v7033
    %v7113 = vunpack.c.l.b16 %v7034
    %v7114 = vunpack.c.h.b16 %v7034
    %v7115 = vunpack.c.l.b16 %v7035
    %v7116 = vunpack.c.h.b16 %v7035
    %v7117 = vunpack.c.l.b16 %v7036
    %v7118 = vunpack.c.h.b16 %v7036
    %v7119 = vunpack.c.l.b16 %v7037
    %v7120 = vunpack.c.h.b16 %v7037
    %v7121 = vunpack.c.l.b16 %v7038
    %v7122 = vunpack.c.h.b16 %v7038
    %v7123 = vunpack.c.l.b16 %v7039
    %v7124 = vunpack.c.h.b16 %v7039
    %v7125 = vunpack.c.l.b16 %v7040
    %v7126 = vunpack.c.h.b16 %v7040
    %v7127 = vunpack.c.l.b16 %v7041
    %v7128 = vunpack.c.h.b16 %v7041
    %v7129 = vunpack.c.l.b16 %v7042
    %v7130 = vunpack.c.h.b16 %v7042
    %v7131 = vunpack.c.l.b16 %v7043
    %v7132 = vunpack.c.h.b16 %v7043
    %v7133 = vunpack.c.l.b16 %v7044
    %v7134 = vunpack.c.h.b16 %v7044
    %v7135 = vunpack.c.l.b16 %v7045
    %v7136 = vunpack.c.h.b16 %v7045
    %v7137 = vunpack.c.l.b16 %v7046
    %v7138 = vunpack.c.h.b16 %v7046
    %v7139 = vunpack.c.l.b16 %v7047
    %v7140 = vunpack.c.h.b16 %v7047
    %v7141 = vunpack.c.l.b16 %v7048
    %v7142 = vunpack.c.h.b16 %v7048
    %v7143 = vunpack.c.l.b16 %v7049
    %v7144 = vunpack.c.h.b16 %v7049
    %v7145 = vunpack.c.l.b16 %v7050
    %v7146 = vunpack.c.h.b16 %v7050
    %v7147 = vpack.c.b16 %v7087, %v7083
    %v7148 = vpack.c.b16 %v7088, %v7084
    %v7149 = vpack.c.b16 %v7089, %v7085
    %v7150 = vpack.c.b16 %v7090, %v7086
    %v7151 = vpack.c.b16 %v7095, %v7091
    %v7152 = vpack.c.b16 %v7096, %v7092
    %v7153 = vpack.c.b16 %v7097, %v7093
    %v7154 = vpack.c.b16 %v7098, %v7094
    %v7155 = vpack.c.b16 %v7103, %v7099
    %v7156 = vpack.c.b16 %v7104, %v7100
    %v7157 = vpack.c.b16 %v7105, %v7101
    %v7158 = vpack.c.b16 %v7106, %v7102
    %v7159 = vpack.c.b16 %v7111, %v7107
    %v7160 = vpack.c.b16 %v7112, %v7108
    %v7161 = vpack.c.b16 %v7113, %v7109
    %v7162 = vpack.c.b16 %v7114, %v7110
    %v7163 = vpack.c.b16 %v7119, %v7115
    %v7164 = vpack.c.b16 %v7120, %v7116
    %v7165 = vpack.c.b16 %v7121, %v7117
    %v7166 = vpack.c.b16 %v7122, %v7118
    %v7167 = vpack.c.b16 %v7127, %v7123
    %v7168 = vpack.c.b16 %v7128, %v7124
    %v7169 = vpack.c.b16 %v7129, %v7125
    %v7170 = vpack.c.b16 %v7130, %v7126
    %v7171 = vpack.c.b16 %v7135, %v7131
    %v7172 = vpack.c.b16 %v7136, %v7132
    %v7173 = vpack.c.b16 %v7137, %v7133
    %v7174 = vpack.c.b16 %v7138, %v7134
    %v7175 = vpack.c.b16 %v7143, %v7139
    %v7176 = vpack.c.b16 %v7144, %v7140
    %v7177 = vpack.c.b16 %v7145, %v7141
    %v7178 = vpack.c.b16 %v7146, %v7142
    %7211 = vmatpush.bf16.msra.mxu0 %v7175
    %7212 = vmatpush.bf16.msra.mxu0 %v7171
    %7213 = vmatpush.bf16.msra.mxu0 %v7167
    %7214 = vmatpush.bf16.msra.mxu0 %v7163
    %7215 = vmatpush.bf16.msra.mxu0 %v7159
    %7216 = vmatpush.bf16.msra.mxu0 %v7155
    %7217 = vmatpush.bf16.msra.mxu0 %v7151
    %7218 = vmatpush.bf16.msra.mxu0 %v7147
    %7219 = vmatmul.bf16.gmra.mxu0 %v7018
    %v7220 = vpop.f32.mrf.mxu0
    %v7221 = vadd.f32 0.0, %v7220
    %v7222 = vpop.f32.mrf.mxu0
    %v7223 = vadd.f32 0.0, %v7222
    %7224 = vdwg.mxu0
    %7225 = vmatpush.bf16.msra.mxu0 %v7176
    %7226 = vmatpush.bf16.msra.mxu0 %v7172
    %7227 = vmatpush.bf16.msra.mxu0 %v7168
    %7228 = vmatpush.bf16.msra.mxu0 %v7164
    %7229 = vmatpush.bf16.msra.mxu0 %v7160
    %7230 = vmatpush.bf16.msra.mxu0 %v7156
    %7231 = vmatpush.bf16.msra.mxu0 %v7152
    %7232 = vmatpush.bf16.msra.mxu0 %v7148
    %7233 = vmatmul.bf16.gmra.mxu0 %v7018
    %v7234 = vpop.f32.mrf.mxu0
    %v7235 = vadd.f32 0.0, %v7234
    %v7236 = vpop.f32.mrf.mxu0
    %v7237 = vadd.f32 0.0, %v7236
    %7238 = vdwg.mxu0
    %7239 = vmatpush.bf16.msra.mxu0 %v7177
    %7240 = vmatpush.bf16.msra.mxu0 %v7173
    %7241 = vmatpush.bf16.msra.mxu0 %v7169
    %7242 = vmatpush.bf16.msra.mxu0 %v7165
    %7243 = vmatpush.bf16.msra.mxu0 %v7161
    %7244 = vmatpush.bf16.msra.mxu0 %v7157
    %7245 = vmatpush.bf16.msra.mxu0 %v7153
    %7246 = vmatpush.bf16.msra.mxu0 %v7149
    %7247 = vmatmul.bf16.gmra.mxu0 %v7018
    %v7248 = vpop.f32.mrf.mxu0
    %v7249 = vadd.f32 0.0, %v7248
    %v7250 = vpop.f32.mrf.mxu0
    %v7251 = vadd.f32 0.0, %v7250
    %7252 = vdwg.mxu0
    %7253 = vmatpush.bf16.msra.mxu0 %v7178
    %7254 = vmatpush.bf16.msra.mxu0 %v7174
    %7255 = vmatpush.bf16.msra.mxu0 %v7170
    %7256 = vmatpush.bf16.msra.mxu0 %v7166
    %7257 = vmatpush.bf16.msra.mxu0 %v7162
    %7258 = vmatpush.bf16.msra.mxu0 %v7158
    %7259 = vmatpush.bf16.msra.mxu0 %v7154
    %7260 = vmatpush.bf16.msra.mxu0 %v7150
    %7261 = vmatmul.bf16.gmra.mxu0 %v7018
    %v7262 = vpop.f32.mrf.mxu0
    %v7263 = vadd.f32 0.0, %v7262
    %v7264 = vpop.f32.mrf.mxu0
    %v7265 = vadd.f32 0.0, %v7264
    %7266 = vdwg.mxu0
    %v7267 = vadd.f32 %v7008, %v7221
    %v7268 = vadd.f32 %v7009, %v7235
    %v7269 = vadd.f32 %v7010, %v7249
    %v7270 = vadd.f32 %v7011, %v7263
    %v7271 = vadd.f32 %v7012, %v7223
    %v7272 = vadd.f32 %v7013, %v7237
    %v7273 = vadd.f32 %v7014, %v7251
    %v7274 = vadd.f32 %v7015, %v7265
    %v7275 = vxor.u32 %v7267, 2147483648
    %v7276 = vxor.u32 %v7271, 2147483648
    %v7277 = vmul.f32 %v7275, 1.442695
    %v7278 = vpow.pop %v7277
    %v7279 = vmul.f32 %v7276, 1.442695
    %v7280 = vpow.pop %v7279
    %v7281 = vadd.f32 %v7278, 1.0
    %v7282 = vadd.f32 %v7280, 1.0
    %v7283 = vrcp.pop %v7281
    %v7284 = vmul.f32 %v7281, %v7283
    %v7285 = vsub.f32 1.0, %v7284
    %v7286 = vmul.f32 %v7283, %v7285
    %v7287 = vadd.f32 %v7283, %v7286
    %vm7288 = vweird.f32 %v7281
    %vm7289 = vweird.f32 %v7283
    %vm7290 = vmor %vm7288, %vm7289
    %v7291 = vsel %vm7290, %v7283, %v7287
    %v7292 = vand.u32 2147483647, %v7281
    %vm7293 = vcmp.eq.f32.partialorder %v7292, 8.507059e+37
    %v7294 = vand.u32 %v7281, 2147483648
    %v7295 = vor.u32 1.1754944e-38, %v7294
    %v7296 = vsel %vm7293, %v7295, %v7291
    %v7297 = vmul.f32 1.0, %v7296
    %v7298 = vrcp.pop %v7282
    %v7299 = vmul.f32 %v7282, %v7298
    %v7300 = vsub.f32 1.0, %v7299
    %v7301 = vmul.f32 %v7298, %v7300
    %v7302 = vadd.f32 %v7298, %v7301
    %vm7303 = vweird.f32 %v7282
    %vm7304 = vweird.f32 %v7298
    %vm7305 = vmor %vm7303, %vm7304
    %v7306 = vsel %vm7305, %v7298, %v7302
    %v7307 = vand.u32 2147483647, %v7282
    %vm7308 = vcmp.eq.f32.partialorder %v7307, 8.507059e+37
    %v7309 = vand.u32 %v7282, 2147483648
    %v7310 = vor.u32 1.1754944e-38, %v7309
    %v7311 = vsel %vm7308, %v7310, %v7306
    %v7312 = vmul.f32 1.0, %v7311
    %v7313 = vxor.u32 %v7268, 2147483648
    %v7314 = vxor.u32 %v7272, 2147483648
    %v7315 = vmul.f32 %v7313, 1.442695
    %v7316 = vpow.pop %v7315
    %v7317 = vmul.f32 %v7314, 1.442695
    %v7318 = vpow.pop %v7317
    %v7319 = vadd.f32 %v7316, 1.0
    %v7320 = vadd.f32 %v7318, 1.0
    %v7321 = vrcp.pop %v7319
    %v7322 = vmul.f32 %v7319, %v7321
    %v7323 = vsub.f32 1.0, %v7322
    %v7324 = vmul.f32 %v7321, %v7323
    %v7325 = vadd.f32 %v7321, %v7324
    %vm7326 = vweird.f32 %v7319
    %vm7327 = vweird.f32 %v7321
    %vm7328 = vmor %vm7326, %vm7327
    %v7329 = vsel %vm7328, %v7321, %v7325
    %v7330 = vand.u32 2147483647, %v7319
    %vm7331 = vcmp.eq.f32.partialorder %v7330, 8.507059e+37
    %v7332 = vand.u32 %v7319, 2147483648
    %v7333 = vor.u32 1.1754944e-38, %v7332
    %v7334 = vsel %vm7331, %v7333, %v7329
    %v7335 = vmul.f32 1.0, %v7334
    %v7336 = vrcp.pop %v7320
    %v7337 = vmul.f32 %v7320, %v7336
    %v7338 = vsub.f32 1.0, %v7337
    %v7339 = vmul.f32 %v7336, %v7338
    %v7340 = vadd.f32 %v7336, %v7339
    %vm7341 = vweird.f32 %v7320
    %vm7342 = vweird.f32 %v7336
    %vm7343 = vmor %vm7341, %vm7342
    %v7344 = vsel %vm7343, %v7336, %v7340
    %v7345 = vand.u32 2147483647, %v7320
    %vm7346 = vcmp.eq.f32.partialorder %v7345, 8.507059e+37
    %v7347 = vand.u32 %v7320, 2147483648
    %v7348 = vor.u32 1.1754944e-38, %v7347
    %v7349 = vsel %vm7346, %v7348, %v7344
    %v7350 = vmul.f32 1.0, %v7349
    %v7351 = vtanh.pop %v7269
    %v7352 = vtanh.pop %v7273
    %v7353 = vxor.u32 %v7270, 2147483648
    %v7354 = vxor.u32 %v7274, 2147483648
    %v7355 = vmul.f32 %v7353, 1.442695
    %v7356 = vpow.pop %v7355
    %v7357 = vmul.f32 %v7354, 1.442695
    %v7358 = vpow.pop %v7357
    %v7359 = vadd.f32 %v7356, 1.0
    %v7360 = vadd.f32 %v7358, 1.0
    %v7361 = vrcp.pop %v7359
    %v7362 = vmul.f32 %v7359, %v7361
    %v7363 = vsub.f32 1.0, %v7362
    %v7364 = vmul.f32 %v7361, %v7363
    %v7365 = vadd.f32 %v7361, %v7364
    %vm7366 = vweird.f32 %v7359
    %vm7367 = vweird.f32 %v7361
    %vm7368 = vmor %vm7366, %vm7367
    %v7369 = vsel %vm7368, %v7361, %v7365
    %v7370 = vand.u32 2147483647, %v7359
    %vm7371 = vcmp.eq.f32.partialorder %v7370, 8.507059e+37
    %v7372 = vand.u32 %v7359, 2147483648
    %v7373 = vor.u32 1.1754944e-38, %v7372
    %v7374 = vsel %vm7371, %v7373, %v7369
    %v7375 = vmul.f32 1.0, %v7374
    %v7376 = vrcp.pop %v7360
    %v7377 = vmul.f32 %v7360, %v7376
    %v7378 = vsub.f32 1.0, %v7377
    %v7379 = vmul.f32 %v7376, %v7378
    %v7380 = vadd.f32 %v7376, %v7379
    %vm7381 = vweird.f32 %v7360
    %vm7382 = vweird.f32 %v7376
    %vm7383 = vmor %vm7381, %vm7382
    %v7384 = vsel %vm7383, %v7376, %v7380
    %v7385 = vand.u32 2147483647, %v7360
    %vm7386 = vcmp.eq.f32.partialorder %v7385, 8.507059e+37
    %v7387 = vand.u32 %v7360, 2147483648
    %v7388 = vor.u32 1.1754944e-38, %v7387
    %v7389 = vsel %vm7386, %v7388, %v7384
    %v7390 = vmul.f32 1.0, %v7389
    %v7391 = vld [vmem:[#allocation4] sm:$0xff]
    %v7392 = vld [vmem:[#allocation4 + $0x8] sm:$0xff]
    %v7393 = vmul.f32 %v7335, %v7391
    %v7394 = vmul.f32 %v7350, %v7392
    %v7395 = vmul.f32 %v7297, %v7351
    %v7396 = vmul.f32 %v7312, %v7352
    %v7397 = vadd.f32 %v7393, %v7395
    %v7398 = vadd.f32 %v7394, %v7396
    %v7399 = vtanh.pop %v7397
    %v7400 = vtanh.pop %v7398
    %v7401 = vmul.f32 %v7375, %v7399
    %v7402 = vmul.f32 %v7390, %v7400
    %7403 = vst [vmem:[#allocation4] sm:$0xff] %v7397
    %7404 = vst [vmem:[#allocation4 + $0x8] sm:$0xff] %v7398
    %7405 = vst [vmem:[#allocation3] sm:$0xff] %v7401
    %7406 = vst [vmem:[#allocation3 + $0x8] sm:$0xff] %v7402
    %v7407 = vpack.c.bf16 %v7401, %v7401
    %v7408 = vpack.c.bf16 %v7402, %v7402
    %s7409 = scalar_lea.vmem [#allocation13], 120
    %7410 = vst [vmem:[%s7409] sm:$0xf] %v7407
    %7411 = vst [vmem:[%s7409 + $0x4] sm:$0xf] %v7408
    // Predicated region
    $region38: #{tpu_custom_call.1} parent=1 // pred_check
      _
    $region39: #{tpu_custom_call.1} parent=1 // pred_check_branch
      %7413 = sbr.rel (0) target = $region41
    $region40: #{tpu_custom_call.1} parent=1 // pred_region
      %7415 = vsyncadd [#allocation7], 0
      %s7416 = sshll.u32 [#allocation13], 4
      %s7417 = int_to_ptr.vmem [resolvable:$true] %s7416
      %s7418 = sshll.u32 %s4, 4
      %s7419 = int_to_ptr.hbm [resolvable:$true] %s7418
      %7424 = dma.vmem_to_hbm [thread:$0]  %s7417, 2048, %s7419, [#allocation7], 64, 64, 4
    $region41: #{tpu_custom_call.1} parent=1 // pred_fallthru
      _
    // Predicated region
    $region42: #{tpu_custom_call.1} parent=1 // pred_check
      _
    $region43: #{tpu_custom_call.1} parent=1 // pred_check_branch
      %7426 = sbr.rel (0) target = $region45
    $region44: #{tpu_custom_call.1} parent=1 // pred_region
      %7428 = dma.done [#allocation7], 2048
    $region45: #{tpu_custom_call.1} parent=1 // pred_fallthru
      _
    %7429 = vsyncpa [#allocation6], 1
    %7430 = vsyncpa [#allocation9], 1
    %7431 = vsyncpa [#allocation12], 1
    %7432 = vsyncpa [#allocation7], 1

</llo_original>
